<compile_context>
chip_gen: v7x
topology: tpu7x:2x2x1
jax: 0.10.0
libtpu: 0.0.40
codegen_flags: <defaults>
</compile_context>

<pallas_src>
import numpy as np
import jax
import jax.numpy as jnp
from jax.experimental import pallas as pl
from jax.experimental.pallas import tpu as pltpu


def _round_up(x, m):
    return ((x + m - 1) // m) * m


def linear_head_kernel(x_ref, w_ref, b_ref, o_ref):
    # (tile_n, Cin) @ (Cin, Cout) on the MXU, f32 accumulate.  HIGHEST precision
    # (extra bf16 passes) stays hidden under the HBM DMA for this kernel.
    y = jnp.dot(
        x_ref[...],
        w_ref[...],
        preferred_element_type=jnp.float32,
        precision=jax.lax.Precision.HIGHEST,
    )
    o_ref[...] = (y + b_ref[...]).astype(o_ref.dtype)  # (1, Cout) bias broadcast


def segmentation_classifier_head(x, weight, bias, *, tile_n=4096, compute_dtype=None):
    """y = x @ weight.T + bias   (x: (N, Cin), weight: (Cout, Cin), bias: (Cout,))."""
    N, Cin = x.shape
    Cout, Cin_w = weight.shape
    assert Cin == Cin_w and bias.shape == (Cout,)

    out_dtype = x.dtype
    if compute_dtype is not None:
        # Only a win if the caller can supply activations already in this dtype;
        # casting f32 -> bf16 here would add a full HBM pass over x.
        x = x.astype(compute_dtype)
        weight = weight.astype(compute_dtype)

    # Row tile: multiple of 8; clamp to ~N/2 so the grid has >= 2 steps and the
    # "parallel" axis really splits across both TensorCores on v7x.
    tile = min(int(tile_n), _round_up(pl.cdiv(max(N, 1), 2), 8))
    tile = max(8, (tile // 8) * 8)
    grid = pl.cdiv(N, tile)  # ragged last block: no host-side padding needed

    w_t = weight.T                              # (Cin, Cout): kernel does plain x @ w
    b2 = bias.reshape(1, Cout).astype(jnp.float32)

    itemsize = jnp.dtype(x.dtype).itemsize
    cost = pl.CostEstimate(
        flops=2 * N * Cin * Cout,
        transcendentals=0,
        bytes_accessed=(N * Cin + Cin * Cout) * itemsize
        + N * Cout * jnp.dtype(out_dtype).itemsize
        + Cout * 4,
    )

    return pl.pallas_call(
        linear_head_kernel,
        out_shape=jax.ShapeDtypeStruct((N, Cout), out_dtype),
        grid_spec=pltpu.PrefetchScalarGridSpec(
            num_scalar_prefetch=0,
            grid=(grid,),
            in_specs=[
                pl.BlockSpec((tile, Cin), lambda i: (i, 0)),   # x row tile
                pl.BlockSpec((Cin, Cout), lambda i: (0, 0)),   # resident W^T
                pl.BlockSpec((1, Cout), lambda i: (0, 0)),     # resident bias
            ],
            out_specs=pl.BlockSpec((tile, Cout), lambda i: (i, 0)),
        ),
        compiler_params=pltpu.CompilerParams(
            dimension_semantics=("parallel",),
            vmem_limit_bytes=48 << 20,
        ),
        cost_estimate=cost,
    )(x, w_t, b2)


def reference(x, weight, bias):
    # Pure-JAX mirror of nn.Linear(in_channels, out_channels)(x), full precision.
    return jnp.dot(x, weight.T, precision=jax.lax.Precision.HIGHEST) + bias


if __name__ == "__main__":
    key = jax.random.PRNGKey(0)
    k1, k2, k3 = jax.random.split(key, 3)

    # Module defaults: in_channels=512 -> out_channels=26.  N=1000 is small and
    # deliberately NOT a tile multiple, exercising the ragged (un-padded) last
    # block and the >=2-step megacore split.
    N, CIN, COUT = 1000, 512, 26
    x = jax.random.normal(k1, (N, CIN), dtype=jnp.float32)

    # nn.Linear default init: U(-1/sqrt(fan_in), 1/sqrt(fan_in))
    bound = 1.0 / np.sqrt(CIN)
    weight = jax.random.uniform(k2, (COUT, CIN), jnp.float32, -bound, bound)
    bias = jax.random.uniform(k3, (COUT,), jnp.float32, -bound, bound)

    out = jax.block_until_ready(segmentation_classifier_head(x, weight, bias))
    ref = jax.block_until_ready(reference(x, weight, bias))

    assert out.shape == (N, COUT)
    assert bool(jnp.all(jnp.isfinite(out)))
    np.testing.assert_allclose(np.asarray(out), np.asarray(ref), rtol=1e-3, atol=1e-3)
    print("KERNEL_OK")
</pallas_src>

<mosaic_0001>
module attributes {stable_mosaic.version = 11 : i64} {
  func.func @linear_head_kernel(%arg0: i32, %arg1: memref<504x512xf32, #tpu.memory_space<vmem>>, %arg2: memref<512x26xf32, #tpu.memory_space<vmem>>, %arg3: memref<1x26xf32, #tpu.memory_space<vmem>>, %arg4: memref<504x26xf32, #tpu.memory_space<vmem>>) attributes {dimension_semantics = [#tpu.dimension_semantics<parallel>], iteration_bounds = array<i64: 2>, scalar_prefetch = 0 : i64, scratch_operands = 0 : i64, tpu.core_type = #tpu.core_type<tc>, window_params = [{transform_indices = @transform_0, window_bounds = array<i64: 504, 512>}, {pipeline_mode = #tpu.pipeline_mode<synchronous>, transform_indices = @transform_1, window_bounds = array<i64: 512, 26>}, {pipeline_mode = #tpu.pipeline_mode<synchronous>, transform_indices = @transform_2, window_bounds = array<i64: 1, 26>}, {transform_indices = @transform_3, window_bounds = array<i64: 504, 26>}]} {
    %c0 = arith.constant 0 : index
    %c0_0 = arith.constant 0 : index
    %0 = vector.load %arg1[%c0, %c0_0] : memref<504x512xf32, #tpu.memory_space<vmem>>, vector<504x512xf32>
    %c0_1 = arith.constant 0 : index
    %c0_2 = arith.constant 0 : index
    %1 = vector.load %arg2[%c0_1, %c0_2] : memref<512x26xf32, #tpu.memory_space<vmem>>, vector<512x26xf32>
    %cst = arith.constant dense<0.000000e+00> : vector<504x26xf32>
    %2 = tpu.matmul %0, %1, %cst {dimension_numbers = #tpu.dot_dimension_numbers<[1], [0], [0], [1], [0, 0, 1, 1], [], []>, precision = #tpu.contract_precision<fp32>} : vector<504x512xf32>, vector<512x26xf32>, vector<504x26xf32> -> vector<504x26xf32>
    %c0_3 = arith.constant 0 : index
    %c0_4 = arith.constant 0 : index
    %3 = vector.load %arg3[%c0_3, %c0_4] : memref<1x26xf32, #tpu.memory_space<vmem>>, vector<1x26xf32>
    %4 = vector.broadcast %3 : vector<1x26xf32> to vector<504x26xf32>
    %5 = arith.addf %2, %4 : vector<504x26xf32>
    %c0_5 = arith.constant 0 : index
    %c0_6 = arith.constant 0 : index
    %6 = vector.load %arg4[%c0_5, %c0_6] : memref<504x26xf32, #tpu.memory_space<vmem>>, vector<504x26xf32>
    tpu.vector_store %arg4[%c0_5, %c0_6], %5 {strides = array<i32>} : memref<504x26xf32, #tpu.memory_space<vmem>>, vector<504x26xf32>,
    return
  }
  func.func @transform_0(%arg0: i32) -> (i32, i32) {
    %c0_i32 = arith.constant 0 : i32
    %c0_i32_0 = arith.constant 0 : i32
    return %arg0, %c0_i32 : i32, i32
  }
  func.func @transform_1(%arg0: i32) -> (i32, i32) {
    %c0_i32 = arith.constant 0 : i32
    %c0_i32_0 = arith.constant 0 : i32
    %c0_i32_1 = arith.constant 0 : i32
    return %c0_i32, %c0_i32_0 : i32, i32
  }
  func.func @transform_2(%arg0: i32) -> (i32, i32) {
    %c0_i32 = arith.constant 0 : i32
    %c0_i32_0 = arith.constant 0 : i32
    %c0_i32_1 = arith.constant 0 : i32
    return %c0_i32, %c0_i32_0 : i32, i32
  }
  func.func @transform_3(%arg0: i32) -> (i32, i32) {
    %c0_i32 = arith.constant 0 : i32
    %c0_i32_0 = arith.constant 0 : i32
    return %arg0, %c0_i32 : i32, i32
  }
}

</mosaic_0001>

<llo_original>
// kernel: tpu_custom_call.1
$region0: #{tpu_custom_call.1}
  #allocation0 [shape = 'u32[]', space=smem, size = 0x4, offset = 0x4, fixed_abs, tag = 'smem constant byte address 0x4 - core index']
  #allocation1 [shape = 'u32[144,128]{1,0:T(1,128)}', space=vmem, size = 0x12000, scoped, tag = 'internal scratch']
  %s0 = inlined_call_operand.hbm [shape: f32[1000,512], index: 0, kind: input, shape index: {}]
  %s1 = inlined_call_operand.vmem [shape: f32[512,26], index: 1, kind: input, shape index: {}]
  %s2 = inlined_call_operand.hbm [shape: f32[1,26], index: 2, kind: input, shape index: {}]
  %s3 = inlined_call_operand.vmem [shape: f32[1000,26], index: 3, kind: output, shape index: {}]
  %s4 = sld [smem:[#allocation0]]
  $region101: #{tpu_custom_call.1} parent=0
    _
  %s6 = ssub.s32 1, %s4
  %s7 = scalar_select 0, %s6, %s4
  $region1: #{tpu_custom_call.1} parent=0
    #allocation2 [shape = 'u8[2064384]{0}', space=vmem, size = 0x1f8000, scoped, tag = 'input window, operand 0']
    #allocation3 [shape = 's32[2]{0}', space=sflag, size = 0x8, scoped, tag = 'scoped memory for tpu_custom_call.1']
    #allocation4 [shape = 'u8[512]{0}', space=vmem, size = 0x400, scoped, tag = 'input window, operand 2, single buffered']
    #allocation5 [shape = 's32[1]{0}', space=sflag, size = 0x4, scoped, tag = 'scoped memory for tpu_custom_call.1']
    #allocation6 [shape = 'u8[516096]{0}', space=vmem, size = 0x7e000, scoped, tag = 'output window, operand 0']
    %8 = vsyncpa [#allocation3], 0
    %s9 = scalar_lea.sflag [#allocation3], 1
    %10 = vsyncpa %s9, 0
    %11 = vsyncpa [#allocation5], 0
    loop: start=0, step=1, limit=4
    $region2: #{tpu_custom_call.1} parent=1 // loop_pre_header
      _
    $region3: #{tpu_custom_call.1} parent=1 // loop_header
      %s13 = sphi 0, %s17
      %p14 = scmp.ge.s32.totalorder %s13, 4
      %s23 = sphi 0, %s25
      %s26 = sphi 0, %s23
      %s27 = sphi 0, %s26
      %s43 = sphi 0, %s27
      %s47 = sphi 0, %s47
      %s49 = sphi 0, %s47
      %s50 = sphi 0, %s49
      %s64 = sphi 0, %s50
      %s68 = sphi 0, %s68
      %s70 = sphi 0, %s68
      %s71 = sphi 0, %s70
      %s85 = sphi 0, %s71
      %s91 = sphi 0, %s93
      %s94 = sphi 0, %s91
      %s95 = sphi 0, %s94
      %s111 = sphi 0, %s95
    $region4: #{tpu_custom_call.1} parent=1 // loop_header_branch
      %16 = sbr.rel (%p14) target = $region8
    $region5: #{tpu_custom_call.1} parent=1 // loop_body
      %s18 = ssub.s32 %s13, 1
      %s19 = ssub.s32 %s13, 2
      %s20 = sadd.s32 %s13, 1
      %s21 = ssub.s32 %s13, %s20
      %p22 = scmp.eq.s32.totalorder %s21, 0
      %s24 = sadd.s32 %s23, 1
      %s25 = scalar_select %p22, %s23, %s24
      %p28 = pneg %p22
      %p29 = scmp.eq.s32.totalorder %s13, 1
      %p30 = por %p28, %p29
      %p31 = scmp.ne.s32.totalorder %s23, %s26
      %p32 = scmp.eq.s32.totalorder %s13, 0
      %p33 = por %p31, %p32
      %p34 = scmp.ne.s32.totalorder %s23, %s26
      %p35 = scmp.eq.s32.totalorder %s18, 1
      %p36 = por %p34, %p35
      %p37 = scmp.ne.s32.totalorder %s26, %s27
      %p38 = scmp.eq.s32.totalorder %s18, 0
      %p39 = por %p37, %p38
      %p40 = scmp.ne.s32.totalorder %s26, %s27
      %p41 = scmp.eq.s32.totalorder %s19, 1
      %p42 = por %p40, %p41
      %p44 = scmp.ne.s32.totalorder %s27, %s43
      %p45 = scmp.eq.s32.totalorder %s19, 0
      %p46 = por %p44, %p45
      %s48 = sadd.s32 %s47, 1
      %p51 = scmp.eq.s32.totalorder %s13, 1
      %p52 = scmp.ne.s32.totalorder %s47, %s49
      %p53 = scmp.eq.s32.totalorder %s13, 0
      %p54 = por %p52, %p53
      %p55 = scmp.ne.s32.totalorder %s47, %s49
      %p56 = scmp.eq.s32.totalorder %s18, 1
      %p57 = por %p55, %p56
      %p58 = scmp.ne.s32.totalorder %s49, %s50
      %p59 = scmp.eq.s32.totalorder %s18, 0
      %p60 = por %p58, %p59
      %p61 = scmp.ne.s32.totalorder %s49, %s50
      %p62 = scmp.eq.s32.totalorder %s19, 1
      %p63 = por %p61, %p62
      %p65 = scmp.ne.s32.totalorder %s50, %s64
      %p66 = scmp.eq.s32.totalorder %s19, 0
      %p67 = por %p65, %p66
      %s69 = sadd.s32 %s68, 1
      %p72 = scmp.eq.s32.totalorder %s13, 1
      %p73 = scmp.ne.s32.totalorder %s68, %s70
      %p74 = scmp.eq.s32.totalorder %s13, 0
      %p75 = por %p73, %p74
      %p76 = scmp.ne.s32.totalorder %s68, %s70
      %p77 = scmp.eq.s32.totalorder %s18, 1
      %p78 = por %p76, %p77
      %p79 = scmp.ne.s32.totalorder %s70, %s71
      %p80 = scmp.eq.s32.totalorder %s18, 0
      %p81 = por %p79, %p80
      %p82 = scmp.ne.s32.totalorder %s70, %s71
      %p83 = scmp.eq.s32.totalorder %s19, 1
      %p84 = por %p82, %p83
      %p86 = scmp.ne.s32.totalorder %s71, %s85
      %p87 = scmp.eq.s32.totalorder %s19, 0
      %p88 = por %p86, %p87
      %s89 = ssub.s32 %s13, %s20
      %p90 = scmp.eq.s32.totalorder %s89, 0
      %s92 = sadd.s32 %s91, 1
      %s93 = scalar_select %p90, %s91, %s92
      %p96 = pneg %p90
      %p97 = scmp.eq.s32.totalorder %s13, 1
      %p98 = por %p96, %p97
      %p99 = scmp.ne.s32.totalorder %s91, %s94
      %p100 = scmp.eq.s32.totalorder %s13, 0
      %p101 = por %p99, %p100
      %p102 = scmp.ne.s32.totalorder %s91, %s94
      %p103 = scmp.eq.s32.totalorder %s18, 1
      %p104 = por %p102, %p103
      %p105 = scmp.ne.s32.totalorder %s94, %s95
      %p106 = scmp.eq.s32.totalorder %s18, 0
      %p107 = por %p105, %p106
      %p108 = scmp.ne.s32.totalorder %s94, %s95
      %p109 = scmp.eq.s32.totalorder %s19, 1
      %p110 = por %p108, %p109
      %p112 = scmp.ne.s32.totalorder %s95, %s111
      %p113 = scmp.eq.s32.totalorder %s19, 0
      %p114 = por %p112, %p113
      %p115 = scmp.le.s32.totalorder 1, %s13
      %p116 = scmp.lt.s32.totalorder %s13, 3
      %p117 = pnand %p115, %p116
      %p118 = pneg %p117
      // Predicated region
      $region9: #{tpu_custom_call.1} parent=5 // pred_check
        _
      $region10: #{tpu_custom_call.1} parent=5 // pred_check_branch
        %120 = sbr.rel (%p117) target = $region12
      $region11: #{tpu_custom_call.1} parent=5 // pred_region
        %s121 = ssub.s32 %s13, 1
        // Predicated region
        $region13: #{tpu_custom_call.1} parent=11 // pred_check
          %p122 = pneg %p60
        $region14: #{tpu_custom_call.1} parent=11 // pred_check_branch
          %124 = sbr.rel (%p122) target = $region16
        $region15: #{tpu_custom_call.1} parent=11 // pred_region
          _
        $region16: #{tpu_custom_call.1} parent=11 // pred_fallthru
          _
        // Predicated region
        $region17: #{tpu_custom_call.1} parent=11 // pred_check
          %p125 = pneg %p81
        $region18: #{tpu_custom_call.1} parent=11 // pred_check_branch
          %127 = sbr.rel (%p125) target = $region20
        $region19: #{tpu_custom_call.1} parent=11 // pred_region
          %s129 = ssub.s32 16, 16
          %130 = vsyncadd [#allocation5], %s129
          %s132 = sshll.u32 [#allocation4], 4
          %s133 = int_to_ptr.vmem [resolvable:$true] %s132
          %135 = dma.hbm_to_vmem [thread:$0]  %s2, 16, %s133, [#allocation5]
        $region20: #{tpu_custom_call.1} parent=11 // pred_fallthru
          _
      $region12: #{tpu_custom_call.1} parent=5 // pred_fallthru
        _
      %p136 = scmp.lt.s32.totalorder %s13, 2
      // Predicated region
      $region21: #{tpu_custom_call.1} parent=5 // pred_check
        %p137 = pneg %p136
      $region22: #{tpu_custom_call.1} parent=5 // pred_check_branch
        %139 = sbr.rel (%p137) target = $region24
      $region23: #{tpu_custom_call.1} parent=5 // pred_region
        // Predicated region
        $region25: #{tpu_custom_call.1} parent=23 // pred_check
          %p140 = pneg %p33
        $region26: #{tpu_custom_call.1} parent=23 // pred_check_branch
          %142 = sbr.rel (%p140) target = $region28
        $region27: #{tpu_custom_call.1} parent=23 // pred_region
          %s143 = sand.u32 %s23, 1
          %s144 = scalar_lea.sflag [#allocation3], %s143
          %s145 = sand.u32 %s23, 1
          %s146 = smul.addr %s145, 2016
          %s147 = scalar_lea.vmem [#allocation2], %s146
          %s148 = smul.u32 63, %s13
          %s149 = ssub.s32 125, %s148
          %p150 = scmp.lt.s32.totalorder %s149, 63
          %s151 = scalar_select %p150, %s149, 63
          %s152 = smul.u32 128, %s151
          %s153 = smul.u32 %s152, 4
          %s155 = ssub.s32 32256, %s153
          %156 = vsyncadd %s144, %s155
          %p157 = scmp.ne.s32.totalorder 0, %s153
          %s158 = smul.addr %s148, 4
          %s159 = smul.addr %s158, 128
          %s160 = scalar_lea.hbm %s0, %s159
          %s161 = smul.u32 32, %s151
          %s162 = sshll.u32 %s147, 4
          %s163 = int_to_ptr.vmem [resolvable:$true] %s162
          %s164 = sshll.u32 %s161, 4
          %168 = dma.hbm_to_vmem [thread:$0]  (%p157), %s160, %s164, %s163, %s144, 512, 512, 32
        $region28: #{tpu_custom_call.1} parent=23 // pred_fallthru
          _
      $region24: #{tpu_custom_call.1} parent=5 // pred_fallthru
        _
      %p169 = scmp.le.s32.totalorder 1, %s13
      %p170 = scmp.lt.s32.totalorder %s13, 3
      %p171 = pnand %p169, %p170
      %p172 = pneg %p171
      // Predicated region
      $region29: #{tpu_custom_call.1} parent=5 // pred_check
        _
      $region30: #{tpu_custom_call.1} parent=5 // pred_check_branch
        %174 = sbr.rel (%p171) target = $region32
      $region31: #{tpu_custom_call.1} parent=5 // pred_region
        %s175 = ssub.s32 %s13, 1
        %s176 = sand.u32 %s26, 1
        %s177 = scalar_lea.sflag [#allocation3], %s176
        %s178 = sand.u32 %s26, 1
        %s179 = smul.addr %s178, 2016
        %s180 = scalar_lea.vmem [#allocation2], %s179
        // Predicated region
        $region33: #{tpu_custom_call.1} parent=31 // pred_check
          %p181 = pneg %p39
        $region34: #{tpu_custom_call.1} parent=31 // pred_check_branch
          %183 = sbr.rel (%p181) target = $region36
        $region35: #{tpu_custom_call.1} parent=31 // pred_region
          %184 = dma.done %s177, 32256
        $region36: #{tpu_custom_call.1} parent=31 // pred_fallthru
          _
        // Predicated region
        $region37: #{tpu_custom_call.1} parent=31 // pred_check
          %p185 = pneg %p81
        $region38: #{tpu_custom_call.1} parent=31 // pred_check_branch
          %187 = sbr.rel (%p185) target = $region40
        $region39: #{tpu_custom_call.1} parent=31 // pred_region
          %188 = dma.done [#allocation5], 16
        $region40: #{tpu_custom_call.1} parent=31 // pred_fallthru
          _
        %s189 = sand.u32 %s26, 1
        %s190 = scalar_lea.sflag [#allocation3], %s189
        %s191 = sand.u32 %s26, 1
        %s192 = smul.addr %s191, 2016
        %s193 = scalar_lea.vmem [#allocation2], %s192
        %p194 = pneg %p39
        %p195 = pneg %p36
        %p196 = pneg %p60
        %p197 = pneg %p57
        %p198 = pneg %p81
        %p199 = pneg %p78
        %p200 = pneg %p107
        %p201 = pneg %p104
        %s202 = sand.u32 %s94, 1
        %s203 = sand.u32 %s94, 1
        %s204 = smul.addr %s203, 504
        %s205 = scalar_lea.vmem [#allocation6], %s204
        %s206 = smul.u32 63, %s18
        %s207 = ssub.s32 125, %s206
        %p208 = scmp.lt.s32.totalorder %s207, 63
        %s209 = scalar_select %p208, %s207, 63
        %s210 = smul.u32 128, %s209
        %s211 = smul.u32 %s210, 4
        %s212 = smul.u32 63, %s18
        %s213 = ssub.s32 125, %s212
        %p214 = scmp.lt.s32.totalorder %s213, 63
        %s215 = scalar_select %p214, %s213, 63
        %s216 = smul.u32 128, %s215
        %v217 = vld [vmem:[%s180] sm:$0xff]
        %v218 = vld [vmem:[%s180 + $0x8] sm:$0xff]
        %v219 = vld [vmem:[%s180 + $0x10] sm:$0xff]
        %v220 = vld [vmem:[%s180 + $0x18] sm:$0xff]
        %v221 = vld [vmem:[%s180 + $0x20] sm:$0xff]
        %v222 = vld [vmem:[%s180 + $0x28] sm:$0xff]
        %v223 = vld [vmem:[%s180 + $0x30] sm:$0xff]
        %v224 = vld [vmem:[%s180 + $0x38] sm:$0xff]
        %v225 = vld [vmem:[%s180 + $0x40] sm:$0xff]
        %v226 = vld [vmem:[%s180 + $0x48] sm:$0xff]
        %v227 = vld [vmem:[%s180 + $0x50] sm:$0xff]
        %v228 = vld [vmem:[%s180 + $0x58] sm:$0xff]
        %v229 = vld [vmem:[%s180 + $0x60] sm:$0xff]
        %v230 = vld [vmem:[%s180 + $0x68] sm:$0xff]
        %v231 = vld [vmem:[%s180 + $0x70] sm:$0xff]
        %v232 = vld [vmem:[%s180 + $0x78] sm:$0xff]
        %v233 = vld [vmem:[%s180 + $0x80] sm:$0xff]
        %v234 = vld [vmem:[%s180 + $0x88] sm:$0xff]
        %v235 = vld [vmem:[%s180 + $0x90] sm:$0xff]
        %v236 = vld [vmem:[%s180 + $0x98] sm:$0xff]
        %v237 = vld [vmem:[%s180 + $0xa0] sm:$0xff]
        %v238 = vld [vmem:[%s180 + $0xa8] sm:$0xff]
        %v239 = vld [vmem:[%s180 + $0xb0] sm:$0xff]
        %v240 = vld [vmem:[%s180 + $0xb8] sm:$0xff]
        %v241 = vld [vmem:[%s180 + $0xc0] sm:$0xff]
        %v242 = vld [vmem:[%s180 + $0xc8] sm:$0xff]
        %v243 = vld [vmem:[%s180 + $0xd0] sm:$0xff]
        %v244 = vld [vmem:[%s180 + $0xd8] sm:$0xff]
        %v245 = vld [vmem:[%s180 + $0xe0] sm:$0xff]
        %v246 = vld [vmem:[%s180 + $0xe8] sm:$0xff]
        %v247 = vld [vmem:[%s180 + $0xf0] sm:$0xff]
        %v248 = vld [vmem:[%s180 + $0xf8] sm:$0xff]
        %v249 = vld [vmem:[%s180 + $0x100] sm:$0xff]
        %v250 = vld [vmem:[%s180 + $0x108] sm:$0xff]
        %v251 = vld [vmem:[%s180 + $0x110] sm:$0xff]
        %v252 = vld [vmem:[%s180 + $0x118] sm:$0xff]
        %v253 = vld [vmem:[%s180 + $0x120] sm:$0xff]
        %v254 = vld [vmem:[%s180 + $0x128] sm:$0xff]
        %v255 = vld [vmem:[%s180 + $0x130] sm:$0xff]
        %v256 = vld [vmem:[%s180 + $0x138] sm:$0xff]
        %v257 = vld [vmem:[%s180 + $0x140] sm:$0xff]
        %v258 = vld [vmem:[%s180 + $0x148] sm:$0xff]
        %v259 = vld [vmem:[%s180 + $0x150] sm:$0xff]
        %v260 = vld [vmem:[%s180 + $0x158] sm:$0xff]
        %v261 = vld [vmem:[%s180 + $0x160] sm:$0xff]
        %v262 = vld [vmem:[%s180 + $0x168] sm:$0xff]
        %v263 = vld [vmem:[%s180 + $0x170] sm:$0xff]
        %v264 = vld [vmem:[%s180 + $0x178] sm:$0xff]
        %v265 = vld [vmem:[%s180 + $0x180] sm:$0xff]
        %v266 = vld [vmem:[%s180 + $0x188] sm:$0xff]
        %v267 = vld [vmem:[%s180 + $0x190] sm:$0xff]
        %v268 = vld [vmem:[%s180 + $0x198] sm:$0xff]
        %v269 = vld [vmem:[%s180 + $0x1a0] sm:$0xff]
        %v270 = vld [vmem:[%s180 + $0x1a8] sm:$0xff]
        %v271 = vld [vmem:[%s180 + $0x1b0] sm:$0xff]
        %v272 = vld [vmem:[%s180 + $0x1b8] sm:$0xff]
        %v273 = vld [vmem:[%s180 + $0x1c0] sm:$0xff]
        %v274 = vld [vmem:[%s180 + $0x1c8] sm:$0xff]
        %v275 = vld [vmem:[%s180 + $0x1d0] sm:$0xff]
        %v276 = vld [vmem:[%s180 + $0x1d8] sm:$0xff]
        %v277 = vld [vmem:[%s180 + $0x1e0] sm:$0xff]
        %v278 = vld [vmem:[%s180 + $0x1e8] sm:$0xff]
        %v279 = vld [vmem:[%s180 + $0x1f0] sm:$0xff]
        %v280 = vld [vmem:[%s180 + $0x1f8] sm:$0xff]
        %v281 = vld [vmem:[%s180 + $0x200] sm:$0xff]
        %v282 = vld [vmem:[%s180 + $0x208] sm:$0xff]
        %v283 = vld [vmem:[%s180 + $0x210] sm:$0xff]
        %v284 = vld [vmem:[%s180 + $0x218] sm:$0xff]
        %v285 = vld [vmem:[%s180 + $0x220] sm:$0xff]
        %v286 = vld [vmem:[%s180 + $0x228] sm:$0xff]
        %v287 = vld [vmem:[%s180 + $0x230] sm:$0xff]
        %v288 = vld [vmem:[%s180 + $0x238] sm:$0xff]
        %v289 = vld [vmem:[%s180 + $0x240] sm:$0xff]
        %v290 = vld [vmem:[%s180 + $0x248] sm:$0xff]
        %v291 = vld [vmem:[%s180 + $0x250] sm:$0xff]
        %v292 = vld [vmem:[%s180 + $0x258] sm:$0xff]
        %v293 = vld [vmem:[%s180 + $0x260] sm:$0xff]
        %v294 = vld [vmem:[%s180 + $0x268] sm:$0xff]
        %v295 = vld [vmem:[%s180 + $0x270] sm:$0xff]
        %v296 = vld [vmem:[%s180 + $0x278] sm:$0xff]
        %v297 = vld [vmem:[%s180 + $0x280] sm:$0xff]
        %v298 = vld [vmem:[%s180 + $0x288] sm:$0xff]
        %v299 = vld [vmem:[%s180 + $0x290] sm:$0xff]
        %v300 = vld [vmem:[%s180 + $0x298] sm:$0xff]
        %v301 = vld [vmem:[%s180 + $0x2a0] sm:$0xff]
        %v302 = vld [vmem:[%s180 + $0x2a8] sm:$0xff]
        %v303 = vld [vmem:[%s180 + $0x2b0] sm:$0xff]
        %v304 = vld [vmem:[%s180 + $0x2b8] sm:$0xff]
        %v305 = vld [vmem:[%s180 + $0x2c0] sm:$0xff]
        %v306 = vld [vmem:[%s180 + $0x2c8] sm:$0xff]
        %v307 = vld [vmem:[%s180 + $0x2d0] sm:$0xff]
        %v308 = vld [vmem:[%s180 + $0x2d8] sm:$0xff]
        %v309 = vld [vmem:[%s180 + $0x2e0] sm:$0xff]
        %v310 = vld [vmem:[%s180 + $0x2e8] sm:$0xff]
        %v311 = vld [vmem:[%s180 + $0x2f0] sm:$0xff]
        %v312 = vld [vmem:[%s180 + $0x2f8] sm:$0xff]
        %v313 = vld [vmem:[%s180 + $0x300] sm:$0xff]
        %v314 = vld [vmem:[%s180 + $0x308] sm:$0xff]
        %v315 = vld [vmem:[%s180 + $0x310] sm:$0xff]
        %v316 = vld [vmem:[%s180 + $0x318] sm:$0xff]
        %v317 = vld [vmem:[%s180 + $0x320] sm:$0xff]
        %v318 = vld [vmem:[%s180 + $0x328] sm:$0xff]
        %v319 = vld [vmem:[%s180 + $0x330] sm:$0xff]
        %v320 = vld [vmem:[%s180 + $0x338] sm:$0xff]
        %v321 = vld [vmem:[%s180 + $0x340] sm:$0xff]
        %v322 = vld [vmem:[%s180 + $0x348] sm:$0xff]
        %v323 = vld [vmem:[%s180 + $0x350] sm:$0xff]
        %v324 = vld [vmem:[%s180 + $0x358] sm:$0xff]
        %v325 = vld [vmem:[%s180 + $0x360] sm:$0xff]
        %v326 = vld [vmem:[%s180 + $0x368] sm:$0xff]
        %v327 = vld [vmem:[%s180 + $0x370] sm:$0xff]
        %v328 = vld [vmem:[%s180 + $0x378] sm:$0xff]
        %v329 = vld [vmem:[%s180 + $0x380] sm:$0xff]
        %v330 = vld [vmem:[%s180 + $0x388] sm:$0xff]
        %v331 = vld [vmem:[%s180 + $0x390] sm:$0xff]
        %v332 = vld [vmem:[%s180 + $0x398] sm:$0xff]
        %v333 = vld [vmem:[%s180 + $0x3a0] sm:$0xff]
        %v334 = vld [vmem:[%s180 + $0x3a8] sm:$0xff]
        %v335 = vld [vmem:[%s180 + $0x3b0] sm:$0xff]
        %v336 = vld [vmem:[%s180 + $0x3b8] sm:$0xff]
        %v337 = vld [vmem:[%s180 + $0x3c0] sm:$0xff]
        %v338 = vld [vmem:[%s180 + $0x3c8] sm:$0xff]
        %v339 = vld [vmem:[%s180 + $0x3d0] sm:$0xff]
        %v340 = vld [vmem:[%s180 + $0x3d8] sm:$0xff]
        %v341 = vld [vmem:[%s180 + $0x3e0] sm:$0xff]
        %v342 = vld [vmem:[%s180 + $0x3e8] sm:$0xff]
        %v343 = vld [vmem:[%s180 + $0x3f0] sm:$0xff]
        %v344 = vld [vmem:[%s180 + $0x3f8] sm:$0xff]
        %v345 = vld [vmem:[%s180 + $0x400] sm:$0xff]
        %v346 = vld [vmem:[%s180 + $0x408] sm:$0xff]
        %v347 = vld [vmem:[%s180 + $0x410] sm:$0xff]
        %v348 = vld [vmem:[%s180 + $0x418] sm:$0xff]
        %v349 = vld [vmem:[%s180 + $0x420] sm:$0xff]
        %v350 = vld [vmem:[%s180 + $0x428] sm:$0xff]
        %v351 = vld [vmem:[%s180 + $0x430] sm:$0xff]
        %v352 = vld [vmem:[%s180 + $0x438] sm:$0xff]
        %v353 = vld [vmem:[%s180 + $0x440] sm:$0xff]
        %v354 = vld [vmem:[%s180 + $0x448] sm:$0xff]
        %v355 = vld [vmem:[%s180 + $0x450] sm:$0xff]
        %v356 = vld [vmem:[%s180 + $0x458] sm:$0xff]
        %v357 = vld [vmem:[%s180 + $0x460] sm:$0xff]
        %v358 = vld [vmem:[%s180 + $0x468] sm:$0xff]
        %v359 = vld [vmem:[%s180 + $0x470] sm:$0xff]
        %v360 = vld [vmem:[%s180 + $0x478] sm:$0xff]
        %v361 = vld [vmem:[%s180 + $0x480] sm:$0xff]
        %v362 = vld [vmem:[%s180 + $0x488] sm:$0xff]
        %v363 = vld [vmem:[%s180 + $0x490] sm:$0xff]
        %v364 = vld [vmem:[%s180 + $0x498] sm:$0xff]
        %v365 = vld [vmem:[%s180 + $0x4a0] sm:$0xff]
        %v366 = vld [vmem:[%s180 + $0x4a8] sm:$0xff]
        %v367 = vld [vmem:[%s180 + $0x4b0] sm:$0xff]
        %v368 = vld [vmem:[%s180 + $0x4b8] sm:$0xff]
        %v369 = vld [vmem:[%s180 + $0x4c0] sm:$0xff]
        %v370 = vld [vmem:[%s180 + $0x4c8] sm:$0xff]
        %v371 = vld [vmem:[%s180 + $0x4d0] sm:$0xff]
        %v372 = vld [vmem:[%s180 + $0x4d8] sm:$0xff]
        %v373 = vld [vmem:[%s180 + $0x4e0] sm:$0xff]
        %v374 = vld [vmem:[%s180 + $0x4e8] sm:$0xff]
        %v375 = vld [vmem:[%s180 + $0x4f0] sm:$0xff]
        %v376 = vld [vmem:[%s180 + $0x4f8] sm:$0xff]
        %v377 = vld [vmem:[%s180 + $0x500] sm:$0xff]
        %v378 = vld [vmem:[%s180 + $0x508] sm:$0xff]
        %v379 = vld [vmem:[%s180 + $0x510] sm:$0xff]
        %v380 = vld [vmem:[%s180 + $0x518] sm:$0xff]
        %v381 = vld [vmem:[%s180 + $0x520] sm:$0xff]
        %v382 = vld [vmem:[%s180 + $0x528] sm:$0xff]
        %v383 = vld [vmem:[%s180 + $0x530] sm:$0xff]
        %v384 = vld [vmem:[%s180 + $0x538] sm:$0xff]
        %v385 = vld [vmem:[%s180 + $0x540] sm:$0xff]
        %v386 = vld [vmem:[%s180 + $0x548] sm:$0xff]
        %v387 = vld [vmem:[%s180 + $0x550] sm:$0xff]
        %v388 = vld [vmem:[%s180 + $0x558] sm:$0xff]
        %v389 = vld [vmem:[%s180 + $0x560] sm:$0xff]
        %v390 = vld [vmem:[%s180 + $0x568] sm:$0xff]
        %v391 = vld [vmem:[%s180 + $0x570] sm:$0xff]
        %v392 = vld [vmem:[%s180 + $0x578] sm:$0xff]
        %v393 = vld [vmem:[%s180 + $0x580] sm:$0xff]
        %v394 = vld [vmem:[%s180 + $0x588] sm:$0xff]
        %v395 = vld [vmem:[%s180 + $0x590] sm:$0xff]
        %v396 = vld [vmem:[%s180 + $0x598] sm:$0xff]
        %v397 = vld [vmem:[%s180 + $0x5a0] sm:$0xff]
        %v398 = vld [vmem:[%s180 + $0x5a8] sm:$0xff]
        %v399 = vld [vmem:[%s180 + $0x5b0] sm:$0xff]
        %v400 = vld [vmem:[%s180 + $0x5b8] sm:$0xff]
        %v401 = vld [vmem:[%s180 + $0x5c0] sm:$0xff]
        %v402 = vld [vmem:[%s180 + $0x5c8] sm:$0xff]
        %v403 = vld [vmem:[%s180 + $0x5d0] sm:$0xff]
        %v404 = vld [vmem:[%s180 + $0x5d8] sm:$0xff]
        %v405 = vld [vmem:[%s180 + $0x5e0] sm:$0xff]
        %v406 = vld [vmem:[%s180 + $0x5e8] sm:$0xff]
        %v407 = vld [vmem:[%s180 + $0x5f0] sm:$0xff]
        %v408 = vld [vmem:[%s180 + $0x5f8] sm:$0xff]
        %v409 = vld [vmem:[%s180 + $0x600] sm:$0xff]
        %v410 = vld [vmem:[%s180 + $0x608] sm:$0xff]
        %v411 = vld [vmem:[%s180 + $0x610] sm:$0xff]
        %v412 = vld [vmem:[%s180 + $0x618] sm:$0xff]
        %v413 = vld [vmem:[%s180 + $0x620] sm:$0xff]
        %v414 = vld [vmem:[%s180 + $0x628] sm:$0xff]
        %v415 = vld [vmem:[%s180 + $0x630] sm:$0xff]
        %v416 = vld [vmem:[%s180 + $0x638] sm:$0xff]
        %v417 = vld [vmem:[%s180 + $0x640] sm:$0xff]
        %v418 = vld [vmem:[%s180 + $0x648] sm:$0xff]
        %v419 = vld [vmem:[%s180 + $0x650] sm:$0xff]
        %v420 = vld [vmem:[%s180 + $0x658] sm:$0xff]
        %v421 = vld [vmem:[%s180 + $0x660] sm:$0xff]
        %v422 = vld [vmem:[%s180 + $0x668] sm:$0xff]
        %v423 = vld [vmem:[%s180 + $0x670] sm:$0xff]
        %v424 = vld [vmem:[%s180 + $0x678] sm:$0xff]
        %v425 = vld [vmem:[%s180 + $0x680] sm:$0xff]
        %v426 = vld [vmem:[%s180 + $0x688] sm:$0xff]
        %v427 = vld [vmem:[%s180 + $0x690] sm:$0xff]
        %v428 = vld [vmem:[%s180 + $0x698] sm:$0xff]
        %v429 = vld [vmem:[%s180 + $0x6a0] sm:$0xff]
        %v430 = vld [vmem:[%s180 + $0x6a8] sm:$0xff]
        %v431 = vld [vmem:[%s180 + $0x6b0] sm:$0xff]
        %v432 = vld [vmem:[%s180 + $0x6b8] sm:$0xff]
        %v433 = vld [vmem:[%s180 + $0x6c0] sm:$0xff]
        %v434 = vld [vmem:[%s180 + $0x6c8] sm:$0xff]
        %v435 = vld [vmem:[%s180 + $0x6d0] sm:$0xff]
        %v436 = vld [vmem:[%s180 + $0x6d8] sm:$0xff]
        %v437 = vld [vmem:[%s180 + $0x6e0] sm:$0xff]
        %v438 = vld [vmem:[%s180 + $0x6e8] sm:$0xff]
        %v439 = vld [vmem:[%s180 + $0x6f0] sm:$0xff]
        %v440 = vld [vmem:[%s180 + $0x6f8] sm:$0xff]
        %v441 = vld [vmem:[%s180 + $0x700] sm:$0xff]
        %v442 = vld [vmem:[%s180 + $0x708] sm:$0xff]
        %v443 = vld [vmem:[%s180 + $0x710] sm:$0xff]
        %v444 = vld [vmem:[%s180 + $0x718] sm:$0xff]
        %v445 = vld [vmem:[%s180 + $0x720] sm:$0xff]
        %v446 = vld [vmem:[%s180 + $0x728] sm:$0xff]
        %v447 = vld [vmem:[%s180 + $0x730] sm:$0xff]
        %v448 = vld [vmem:[%s180 + $0x738] sm:$0xff]
        %v449 = vld [vmem:[%s180 + $0x740] sm:$0xff]
        %v450 = vld [vmem:[%s180 + $0x748] sm:$0xff]
        %v451 = vld [vmem:[%s180 + $0x750] sm:$0xff]
        %v452 = vld [vmem:[%s180 + $0x758] sm:$0xff]
        %v453 = vld [vmem:[%s180 + $0x760] sm:$0xff]
        %v454 = vld [vmem:[%s180 + $0x768] sm:$0xff]
        %v455 = vld [vmem:[%s180 + $0x770] sm:$0xff]
        %v456 = vld [vmem:[%s180 + $0x778] sm:$0xff]
        %v457 = vld [vmem:[%s180 + $0x780] sm:$0xff]
        %v458 = vld [vmem:[%s180 + $0x788] sm:$0xff]
        %v459 = vld [vmem:[%s180 + $0x790] sm:$0xff]
        %v460 = vld [vmem:[%s180 + $0x798] sm:$0xff]
        %v461 = vld [vmem:[%s180 + $0x7a0] sm:$0xff]
        %v462 = vld [vmem:[%s180 + $0x7a8] sm:$0xff]
        %v463 = vld [vmem:[%s180 + $0x7b0] sm:$0xff]
        %v464 = vld [vmem:[%s180 + $0x7b8] sm:$0xff]
        %v465 = vld [vmem:[%s180 + $0x7c0] sm:$0xff]
        %v466 = vld [vmem:[%s180 + $0x7c8] sm:$0xff]
        %v467 = vld [vmem:[%s180 + $0x7d0] sm:$0xff]
        %v468 = vld [vmem:[%s180 + $0x7d8] sm:$0xff]
        %v469 = vld [vmem:[%s1] sm:$0xff]
        %v470 = vld [vmem:[%s1 + $0x8] sm:$0xff]
        %v471 = vld [vmem:[%s1 + $0x10] sm:$0xff]
        %v472 = vld [vmem:[%s1 + $0x18] sm:$0xff]
        %v473 = vld [vmem:[%s1 + $0x20] sm:$0xff]
        %v474 = vld [vmem:[%s1 + $0x28] sm:$0xff]
        %v475 = vld [vmem:[%s1 + $0x30] sm:$0xff]
        %v476 = vld [vmem:[%s1 + $0x38] sm:$0xff]
        %v477 = vld [vmem:[%s1 + $0x40] sm:$0xff]
        %v478 = vld [vmem:[%s1 + $0x48] sm:$0xff]
        %v479 = vld [vmem:[%s1 + $0x50] sm:$0xff]
        %v480 = vld [vmem:[%s1 + $0x58] sm:$0xff]
        %v481 = vld [vmem:[%s1 + $0x60] sm:$0xff]
        %v482 = vld [vmem:[%s1 + $0x68] sm:$0xff]
        %v483 = vld [vmem:[%s1 + $0x70] sm:$0xff]
        %v484 = vld [vmem:[%s1 + $0x78] sm:$0xff]
        %v485 = vld [vmem:[%s1 + $0x80] sm:$0xff]
        %v486 = vld [vmem:[%s1 + $0x88] sm:$0xff]
        %v487 = vld [vmem:[%s1 + $0x90] sm:$0xff]
        %v488 = vld [vmem:[%s1 + $0x98] sm:$0xff]
        %v489 = vld [vmem:[%s1 + $0xa0] sm:$0xff]
        %v490 = vld [vmem:[%s1 + $0xa8] sm:$0xff]
        %v491 = vld [vmem:[%s1 + $0xb0] sm:$0xff]
        %v492 = vld [vmem:[%s1 + $0xb8] sm:$0xff]
        %v493 = vld [vmem:[%s1 + $0xc0] sm:$0xff]
        %v494 = vld [vmem:[%s1 + $0xc8] sm:$0xff]
        %v495 = vld [vmem:[%s1 + $0xd0] sm:$0xff]
        %v496 = vld [vmem:[%s1 + $0xd8] sm:$0xff]
        %v497 = vld [vmem:[%s1 + $0xe0] sm:$0xff]
        %v498 = vld [vmem:[%s1 + $0xe8] sm:$0xff]
        %v499 = vld [vmem:[%s1 + $0xf0] sm:$0xff]
        %v500 = vld [vmem:[%s1 + $0xf8] sm:$0xff]
        %v501 = vld [vmem:[%s1 + $0x100] sm:$0xff]
        %v502 = vld [vmem:[%s1 + $0x108] sm:$0xff]
        %v503 = vld [vmem:[%s1 + $0x110] sm:$0xff]
        %v504 = vld [vmem:[%s1 + $0x118] sm:$0xff]
        %v505 = vld [vmem:[%s1 + $0x120] sm:$0xff]
        %v506 = vld [vmem:[%s1 + $0x128] sm:$0xff]
        %v507 = vld [vmem:[%s1 + $0x130] sm:$0xff]
        %v508 = vld [vmem:[%s1 + $0x138] sm:$0xff]
        %v509 = vld [vmem:[%s1 + $0x140] sm:$0xff]
        %v510 = vld [vmem:[%s1 + $0x148] sm:$0xff]
        %v511 = vld [vmem:[%s1 + $0x150] sm:$0xff]
        %v512 = vld [vmem:[%s1 + $0x158] sm:$0xff]
        %v513 = vld [vmem:[%s1 + $0x160] sm:$0xff]
        %v514 = vld [vmem:[%s1 + $0x168] sm:$0xff]
        %v515 = vld [vmem:[%s1 + $0x170] sm:$0xff]
        %v516 = vld [vmem:[%s1 + $0x178] sm:$0xff]
        %v517 = vld [vmem:[%s1 + $0x180] sm:$0xff]
        %v518 = vld [vmem:[%s1 + $0x188] sm:$0xff]
        %v519 = vld [vmem:[%s1 + $0x190] sm:$0xff]
        %v520 = vld [vmem:[%s1 + $0x198] sm:$0xff]
        %v521 = vld [vmem:[%s1 + $0x1a0] sm:$0xff]
        %v522 = vld [vmem:[%s1 + $0x1a8] sm:$0xff]
        %v523 = vld [vmem:[%s1 + $0x1b0] sm:$0xff]
        %v524 = vld [vmem:[%s1 + $0x1b8] sm:$0xff]
        %v525 = vld [vmem:[%s1 + $0x1c0] sm:$0xff]
        %v526 = vld [vmem:[%s1 + $0x1c8] sm:$0xff]
        %v527 = vld [vmem:[%s1 + $0x1d0] sm:$0xff]
        %v528 = vld [vmem:[%s1 + $0x1d8] sm:$0xff]
        %v529 = vld [vmem:[%s1 + $0x1e0] sm:$0xff]
        %v530 = vld [vmem:[%s1 + $0x1e8] sm:$0xff]
        %v531 = vld [vmem:[%s1 + $0x1f0] sm:$0xff]
        %v532 = vld [vmem:[%s1 + $0x1f8] sm:$0xff]
        %v533 = vld [vmem:[#allocation4] sm:$0x1]
        %v535 = vlaneseq
        %v536 = vshrl.u32 %v535, 7
        %v537 = vsub.s32 0, %v536
        %v538 = vrot.slane %v533, %v537
        %540 = vmatprep.subr.mxu0 0.0
        %v541 = vand.u32 %v469, 4294901760
        %542 = vmatpush1.msra.mxu0 %v541
        %543 = vmatprep.subr.mxu0 0.0
        %v544 = vand.u32 %v470, 4294901760
        %545 = vmatpush1.msra.mxu0 %v544
        %546 = vmatprep.subr.mxu0 0.0
        %v547 = vand.u32 %v471, 4294901760
        %548 = vmatpush1.msra.mxu0 %v547
        %549 = vmatprep.subr.mxu0 0.0
        %v550 = vand.u32 %v472, 4294901760
        %551 = vmatpush1.msra.mxu0 %v550
        %552 = vmatprep.subr.mxu0 0.0
        %v553 = vand.u32 %v473, 4294901760
        %554 = vmatpush1.msra.mxu0 %v553
        %555 = vmatprep.subr.mxu0 0.0
        %v556 = vand.u32 %v474, 4294901760
        %557 = vmatpush1.msra.mxu0 %v556
        %558 = vmatprep.subr.mxu0 0.0
        %v559 = vand.u32 %v475, 4294901760
        %560 = vmatpush1.msra.mxu0 %v559
        %561 = vmatprep.subr.mxu0 0.0
        %v562 = vand.u32 %v476, 4294901760
        %563 = vmatpush1.msra.mxu0 %v562
        %564 = vmatprep.subr.mxu0 0.0
        %v565 = vand.u32 %v477, 4294901760
        %566 = vmatpush1.msra.mxu0 %v565
        %567 = vmatprep.subr.mxu0 0.0
        %v568 = vand.u32 %v478, 4294901760
        %569 = vmatpush1.msra.mxu0 %v568
        %570 = vmatprep.subr.mxu0 0.0
        %v571 = vand.u32 %v479, 4294901760
        %572 = vmatpush1.msra.mxu0 %v571
        %573 = vmatprep.subr.mxu0 0.0
        %v574 = vand.u32 %v480, 4294901760
        %575 = vmatpush1.msra.mxu0 %v574
        %576 = vmatprep.subr.mxu0 0.0
        %v577 = vand.u32 %v481, 4294901760
        %578 = vmatpush1.msra.mxu0 %v577
        %579 = vmatprep.subr.mxu0 0.0
        %v580 = vand.u32 %v482, 4294901760
        %581 = vmatpush1.msra.mxu0 %v580
        %582 = vmatprep.subr.mxu0 0.0
        %v583 = vand.u32 %v483, 4294901760
        %584 = vmatpush1.msra.mxu0 %v583
        %585 = vmatprep.subr.mxu0 0.0
        %v586 = vand.u32 %v484, 4294901760
        %587 = vmatpush1.msra.mxu0 %v586
        %588 = vmatprep.subr.mxu0 0.0
        %v589 = vand.u32 %v485, 4294901760
        %590 = vmatpush1.msra.mxu0 %v589
        %591 = vmatprep.subr.mxu0 0.0
        %v592 = vand.u32 %v486, 4294901760
        %593 = vmatpush1.msra.mxu0 %v592
        %594 = vmatprep.subr.mxu0 0.0
        %v595 = vand.u32 %v487, 4294901760
        %596 = vmatpush1.msra.mxu0 %v595
        %597 = vmatprep.subr.mxu0 0.0
        %v598 = vand.u32 %v488, 4294901760
        %599 = vmatpush1.msra.mxu0 %v598
        %600 = vmatprep.subr.mxu0 0.0
        %v601 = vand.u32 %v489, 4294901760
        %602 = vmatpush1.msra.mxu0 %v601
        %603 = vmatprep.subr.mxu0 0.0
        %v604 = vand.u32 %v490, 4294901760
        %605 = vmatpush1.msra.mxu0 %v604
        %606 = vmatprep.subr.mxu0 0.0
        %v607 = vand.u32 %v491, 4294901760
        %608 = vmatpush1.msra.mxu0 %v607
        %609 = vmatprep.subr.mxu0 0.0
        %v610 = vand.u32 %v492, 4294901760
        %611 = vmatpush1.msra.mxu0 %v610
        %612 = vmatprep.subr.mxu0 0.0
        %v613 = vand.u32 %v493, 4294901760
        %614 = vmatpush1.msra.mxu0 %v613
        %615 = vmatprep.subr.mxu0 0.0
        %v616 = vand.u32 %v494, 4294901760
        %617 = vmatpush1.msra.mxu0 %v616
        %618 = vmatprep.subr.mxu0 0.0
        %v619 = vand.u32 %v495, 4294901760
        %620 = vmatpush1.msra.mxu0 %v619
        %621 = vmatprep.subr.mxu0 0.0
        %v622 = vand.u32 %v496, 4294901760
        %623 = vmatpush1.msra.mxu0 %v622
        %624 = vmatprep.subr.mxu0 0.0
        %v625 = vand.u32 %v497, 4294901760
        %626 = vmatpush1.msra.mxu0 %v625
        %627 = vmatprep.subr.mxu0 0.0
        %v628 = vand.u32 %v498, 4294901760
        %629 = vmatpush1.msra.mxu0 %v628
        %630 = vmatprep.subr.mxu0 0.0
        %v631 = vand.u32 %v499, 4294901760
        %632 = vmatpush1.msra.mxu0 %v631
        %633 = vmatprep.subr.mxu0 0.0
        %v634 = vand.u32 %v500, 4294901760
        %635 = vmatpush1.msra.mxu0 %v634
        %v636 = vand.u32 %v218, 4294901760
        %v637 = vsub.f32 %v218, %v636
        %v638 = vand.u32 %v637, 4294901760
        %v639 = vsub.f32 %v637, %v638
        %v640 = vand.u32 %v639, 4294901760
        %641 = vmatprep.mubr.f32.mxu0 %v640
        %v642 = vand.u32 %v217, 4294901760
        %v643 = vsub.f32 %v217, %v642
        %v644 = vand.u32 %v643, 4294901760
        %v645 = vsub.f32 %v643, %v644
        %v646 = vand.u32 %v645, 4294901760
        %647 = vmatmul.mubr.f32.gmra.mrb[0].mxu0 %v646
        %v648 = vpop.f32.mrb[0].mxu0
        %v649 = vadd.f32 %v538, %v648
        %v650 = vpop.f32.mrb[0].mxu0
        %v651 = vand.u32 %v222, 4294901760
        %v652 = vsub.f32 %v222, %v651
        %v653 = vand.u32 %v652, 4294901760
        %v654 = vsub.f32 %v652, %v653
        %v655 = vand.u32 %v654, 4294901760
        %656 = vmatprep.mubr.f32.mxu0 %v655
        %v657 = vand.u32 %v221, 4294901760
        %v658 = vsub.f32 %v221, %v657
        %v659 = vand.u32 %v658, 4294901760
        %v660 = vsub.f32 %v658, %v659
        %v661 = vand.u32 %v660, 4294901760
        %662 = vmatmul.mubr.f32.gmra.mrb[0].mxu0 %v661
        %v663 = vpop.f32.mrb[0].mxu0
        %v664 = vadd.f32 %v538, %v663
        %v665 = vpop.f32.mrb[0].mxu0
        %v666 = vand.u32 %v226, 4294901760
        %v667 = vsub.f32 %v226, %v666
        %v668 = vand.u32 %v667, 4294901760
        %v669 = vsub.f32 %v667, %v668
        %v670 = vand.u32 %v669, 4294901760
        %671 = vmatprep.mubr.f32.mxu0 %v670
        %v672 = vand.u32 %v225, 4294901760
        %v673 = vsub.f32 %v225, %v672
        %v674 = vand.u32 %v673, 4294901760
        %v675 = vsub.f32 %v673, %v674
        %v676 = vand.u32 %v675, 4294901760
        %677 = vmatmul.mubr.f32.gmra.mrb[0].mxu0 %v676
        %v678 = vpop.f32.mrb[0].mxu0
        %v679 = vadd.f32 %v538, %v678
        %v680 = vpop.f32.mrb[0].mxu0
        %v681 = vand.u32 %v230, 4294901760
        %v682 = vsub.f32 %v230, %v681
        %v683 = vand.u32 %v682, 4294901760
        %v684 = vsub.f32 %v682, %v683
        %v685 = vand.u32 %v684, 4294901760
        %686 = vmatprep.mubr.f32.mxu0 %v685
        %v687 = vand.u32 %v229, 4294901760
        %v688 = vsub.f32 %v229, %v687
        %v689 = vand.u32 %v688, 4294901760
        %v690 = vsub.f32 %v688, %v689
        %v691 = vand.u32 %v690, 4294901760
        %692 = vmatmul.mubr.f32.gmra.mrb[0].mxu0 %v691
        %v693 = vpop.f32.mrb[0].mxu0
        %v694 = vadd.f32 %v538, %v693
        %v695 = vpop.f32.mrb[0].mxu0
        %v696 = vand.u32 %v234, 4294901760
        %v697 = vsub.f32 %v234, %v696
        %v698 = vand.u32 %v697, 4294901760
        %v699 = vsub.f32 %v697, %v698
        %v700 = vand.u32 %v699, 4294901760
        %701 = vmatprep.mubr.f32.mxu0 %v700
        %v702 = vand.u32 %v233, 4294901760
        %v703 = vsub.f32 %v233, %v702
        %v704 = vand.u32 %v703, 4294901760
        %v705 = vsub.f32 %v703, %v704
        %v706 = vand.u32 %v705, 4294901760
        %707 = vmatmul.mubr.f32.gmra.mrb[0].mxu0 %v706
        %v708 = vpop.f32.mrb[0].mxu0
        %v709 = vadd.f32 %v538, %v708
        %v710 = vpop.f32.mrb[0].mxu0
        %v711 = vand.u32 %v238, 4294901760
        %v712 = vsub.f32 %v238, %v711
        %v713 = vand.u32 %v712, 4294901760
        %v714 = vsub.f32 %v712, %v713
        %v715 = vand.u32 %v714, 4294901760
        %716 = vmatprep.mubr.f32.mxu0 %v715
        %v717 = vand.u32 %v237, 4294901760
        %v718 = vsub.f32 %v237, %v717
        %v719 = vand.u32 %v718, 4294901760
        %v720 = vsub.f32 %v718, %v719
        %v721 = vand.u32 %v720, 4294901760
        %722 = vmatmul.mubr.f32.gmra.mrb[0].mxu0 %v721
        %v723 = vpop.f32.mrb[0].mxu0
        %v724 = vadd.f32 %v538, %v723
        %v725 = vpop.f32.mrb[0].mxu0
        %v726 = vand.u32 %v242, 4294901760
        %v727 = vsub.f32 %v242, %v726
        %v728 = vand.u32 %v727, 4294901760
        %v729 = vsub.f32 %v727, %v728
        %v730 = vand.u32 %v729, 4294901760
        %731 = vmatprep.mubr.f32.mxu0 %v730
        %v732 = vand.u32 %v241, 4294901760
        %v733 = vsub.f32 %v241, %v732
        %v734 = vand.u32 %v733, 4294901760
        %v735 = vsub.f32 %v733, %v734
        %v736 = vand.u32 %v735, 4294901760
        %737 = vmatmul.mubr.f32.gmra.mrb[0].mxu0 %v736
        %v738 = vpop.f32.mrb[0].mxu0
        %v739 = vadd.f32 %v538, %v738
        %v740 = vpop.f32.mrb[0].mxu0
        %v741 = vand.u32 %v246, 4294901760
        %v742 = vsub.f32 %v246, %v741
        %v743 = vand.u32 %v742, 4294901760
        %v744 = vsub.f32 %v742, %v743
        %v745 = vand.u32 %v744, 4294901760
        %746 = vmatprep.mubr.f32.mxu0 %v745
        %v747 = vand.u32 %v245, 4294901760
        %v748 = vsub.f32 %v245, %v747
        %v749 = vand.u32 %v748, 4294901760
        %v750 = vsub.f32 %v748, %v749
        %v751 = vand.u32 %v750, 4294901760
        %752 = vmatmul.mubr.f32.gmra.mrb[0].mxu0 %v751
        %v753 = vpop.f32.mrb[0].mxu0
        %v754 = vadd.f32 %v538, %v753
        %v755 = vpop.f32.mrb[0].mxu0
        %v756 = vand.u32 %v250, 4294901760
        %v757 = vsub.f32 %v250, %v756
        %v758 = vand.u32 %v757, 4294901760
        %v759 = vsub.f32 %v757, %v758
        %v760 = vand.u32 %v759, 4294901760
        %761 = vmatprep.mubr.f32.mxu0 %v760
        %v762 = vand.u32 %v249, 4294901760
        %v763 = vsub.f32 %v249, %v762
        %v764 = vand.u32 %v763, 4294901760
        %v765 = vsub.f32 %v763, %v764
        %v766 = vand.u32 %v765, 4294901760
        %767 = vmatmul.mubr.f32.gmra.mrb[0].mxu0 %v766
        %v768 = vpop.f32.mrb[0].mxu0
        %v769 = vadd.f32 %v538, %v768
        %v770 = vpop.f32.mrb[0].mxu0
        %v771 = vand.u32 %v254, 4294901760
        %v772 = vsub.f32 %v254, %v771
        %v773 = vand.u32 %v772, 4294901760
        %v774 = vsub.f32 %v772, %v773
        %v775 = vand.u32 %v774, 4294901760
        %776 = vmatprep.mubr.f32.mxu0 %v775
        %v777 = vand.u32 %v253, 4294901760
        %v778 = vsub.f32 %v253, %v777
        %v779 = vand.u32 %v778, 4294901760
        %v780 = vsub.f32 %v778, %v779
        %v781 = vand.u32 %v780, 4294901760
        %782 = vmatmul.mubr.f32.gmra.mrb[0].mxu0 %v781
        %v783 = vpop.f32.mrb[0].mxu0
        %v784 = vadd.f32 %v538, %v783
        %v785 = vpop.f32.mrb[0].mxu0
        %v786 = vand.u32 %v258, 4294901760
        %v787 = vsub.f32 %v258, %v786
        %v788 = vand.u32 %v787, 4294901760
        %v789 = vsub.f32 %v787, %v788
        %v790 = vand.u32 %v789, 4294901760
        %791 = vmatprep.mubr.f32.mxu0 %v790
        %v792 = vand.u32 %v257, 4294901760
        %v793 = vsub.f32 %v257, %v792
        %v794 = vand.u32 %v793, 4294901760
        %v795 = vsub.f32 %v793, %v794
        %v796 = vand.u32 %v795, 4294901760
        %797 = vmatmul.mubr.f32.gmra.mrb[0].mxu0 %v796
        %v798 = vpop.f32.mrb[0].mxu0
        %v799 = vadd.f32 %v538, %v798
        %v800 = vpop.f32.mrb[0].mxu0
        %v801 = vand.u32 %v262, 4294901760
        %v802 = vsub.f32 %v262, %v801
        %v803 = vand.u32 %v802, 4294901760
        %v804 = vsub.f32 %v802, %v803
        %v805 = vand.u32 %v804, 4294901760
        %806 = vmatprep.mubr.f32.mxu0 %v805
        %v807 = vand.u32 %v261, 4294901760
        %v808 = vsub.f32 %v261, %v807
        %v809 = vand.u32 %v808, 4294901760
        %v810 = vsub.f32 %v808, %v809
        %v811 = vand.u32 %v810, 4294901760
        %812 = vmatmul.mubr.f32.gmra.mrb[0].mxu0 %v811
        %v813 = vpop.f32.mrb[0].mxu0
        %v814 = vadd.f32 %v538, %v813
        %v815 = vpop.f32.mrb[0].mxu0
        %v816 = vand.u32 %v266, 4294901760
        %v817 = vsub.f32 %v266, %v816
        %v818 = vand.u32 %v817, 4294901760
        %v819 = vsub.f32 %v817, %v818
        %v820 = vand.u32 %v819, 4294901760
        %821 = vmatprep.mubr.f32.mxu0 %v820
        %v822 = vand.u32 %v265, 4294901760
        %v823 = vsub.f32 %v265, %v822
        %v824 = vand.u32 %v823, 4294901760
        %v825 = vsub.f32 %v823, %v824
        %v826 = vand.u32 %v825, 4294901760
        %827 = vmatmul.mubr.f32.gmra.mrb[0].mxu0 %v826
        %v828 = vpop.f32.mrb[0].mxu0
        %v829 = vadd.f32 %v538, %v828
        %v830 = vpop.f32.mrb[0].mxu0
        %v831 = vand.u32 %v270, 4294901760
        %v832 = vsub.f32 %v270, %v831
        %v833 = vand.u32 %v832, 4294901760
        %v834 = vsub.f32 %v832, %v833
        %v835 = vand.u32 %v834, 4294901760
        %836 = vmatprep.mubr.f32.mxu0 %v835
        %v837 = vand.u32 %v269, 4294901760
        %v838 = vsub.f32 %v269, %v837
        %v839 = vand.u32 %v838, 4294901760
        %v840 = vsub.f32 %v838, %v839
        %v841 = vand.u32 %v840, 4294901760
        %842 = vmatmul.mubr.f32.gmra.mrb[0].mxu0 %v841
        %v843 = vpop.f32.mrb[0].mxu0
        %v844 = vadd.f32 %v538, %v843
        %v845 = vpop.f32.mrb[0].mxu0
        %v846 = vand.u32 %v274, 4294901760
        %v847 = vsub.f32 %v274, %v846
        %v848 = vand.u32 %v847, 4294901760
        %v849 = vsub.f32 %v847, %v848
        %v850 = vand.u32 %v849, 4294901760
        %851 = vmatprep.mubr.f32.mxu0 %v850
        %v852 = vand.u32 %v273, 4294901760
        %v853 = vsub.f32 %v273, %v852
        %v854 = vand.u32 %v853, 4294901760
        %v855 = vsub.f32 %v853, %v854
        %v856 = vand.u32 %v855, 4294901760
        %857 = vmatmul.mubr.f32.gmra.mrb[0].mxu0 %v856
        %v858 = vpop.f32.mrb[0].mxu0
        %v859 = vadd.f32 %v538, %v858
        %v860 = vpop.f32.mrb[0].mxu0
        %v861 = vand.u32 %v278, 4294901760
        %v862 = vsub.f32 %v278, %v861
        %v863 = vand.u32 %v862, 4294901760
        %v864 = vsub.f32 %v862, %v863
        %v865 = vand.u32 %v864, 4294901760
        %866 = vmatprep.mubr.f32.mxu0 %v865
        %v867 = vand.u32 %v277, 4294901760
        %v868 = vsub.f32 %v277, %v867
        %v869 = vand.u32 %v868, 4294901760
        %v870 = vsub.f32 %v868, %v869
        %v871 = vand.u32 %v870, 4294901760
        %872 = vmatmul.mubr.f32.gmra.mrb[0].mxu0 %v871
        %v873 = vpop.f32.mrb[0].mxu0
        %v874 = vadd.f32 %v538, %v873
        %v875 = vpop.f32.mrb[0].mxu0
        %v876 = vand.u32 %v282, 4294901760
        %v877 = vsub.f32 %v282, %v876
        %v878 = vand.u32 %v877, 4294901760
        %v879 = vsub.f32 %v877, %v878
        %v880 = vand.u32 %v879, 4294901760
        %881 = vmatprep.mubr.f32.mxu0 %v880
        %v882 = vand.u32 %v281, 4294901760
        %v883 = vsub.f32 %v281, %v882
        %v884 = vand.u32 %v883, 4294901760
        %v885 = vsub.f32 %v883, %v884
        %v886 = vand.u32 %v885, 4294901760
        %887 = vmatmul.mubr.f32.gmra.mrb[0].mxu0 %v886
        %v888 = vpop.f32.mrb[0].mxu0
        %v889 = vadd.f32 %v538, %v888
        %v890 = vpop.f32.mrb[0].mxu0
        %v891 = vand.u32 %v286, 4294901760
        %v892 = vsub.f32 %v286, %v891
        %v893 = vand.u32 %v892, 4294901760
        %v894 = vsub.f32 %v892, %v893
        %v895 = vand.u32 %v894, 4294901760
        %896 = vmatprep.mubr.f32.mxu0 %v895
        %v897 = vand.u32 %v285, 4294901760
        %v898 = vsub.f32 %v285, %v897
        %v899 = vand.u32 %v898, 4294901760
        %v900 = vsub.f32 %v898, %v899
        %v901 = vand.u32 %v900, 4294901760
        %902 = vmatmul.mubr.f32.gmra.mrb[0].mxu0 %v901
        %v903 = vpop.f32.mrb[0].mxu0
        %v904 = vadd.f32 %v538, %v903
        %v905 = vpop.f32.mrb[0].mxu0
        %v906 = vand.u32 %v290, 4294901760
        %v907 = vsub.f32 %v290, %v906
        %v908 = vand.u32 %v907, 4294901760
        %v909 = vsub.f32 %v907, %v908
        %v910 = vand.u32 %v909, 4294901760
        %911 = vmatprep.mubr.f32.mxu0 %v910
        %v912 = vand.u32 %v289, 4294901760
        %v913 = vsub.f32 %v289, %v912
        %v914 = vand.u32 %v913, 4294901760
        %v915 = vsub.f32 %v913, %v914
        %v916 = vand.u32 %v915, 4294901760
        %917 = vmatmul.mubr.f32.gmra.mrb[0].mxu0 %v916
        %v918 = vpop.f32.mrb[0].mxu0
        %v919 = vadd.f32 %v538, %v918
        %v920 = vpop.f32.mrb[0].mxu0
        %v921 = vand.u32 %v294, 4294901760
        %v922 = vsub.f32 %v294, %v921
        %v923 = vand.u32 %v922, 4294901760
        %v924 = vsub.f32 %v922, %v923
        %v925 = vand.u32 %v924, 4294901760
        %926 = vmatprep.mubr.f32.mxu0 %v925
        %v927 = vand.u32 %v293, 4294901760
        %v928 = vsub.f32 %v293, %v927
        %v929 = vand.u32 %v928, 4294901760
        %v930 = vsub.f32 %v928, %v929
        %v931 = vand.u32 %v930, 4294901760
        %932 = vmatmul.mubr.f32.gmra.mrb[0].mxu0 %v931
        %v933 = vpop.f32.mrb[0].mxu0
        %v934 = vadd.f32 %v538, %v933
        %v935 = vpop.f32.mrb[0].mxu0
        %v936 = vand.u32 %v298, 4294901760
        %v937 = vsub.f32 %v298, %v936
        %v938 = vand.u32 %v937, 4294901760
        %v939 = vsub.f32 %v937, %v938
        %v940 = vand.u32 %v939, 4294901760
        %941 = vmatprep.mubr.f32.mxu0 %v940
        %v942 = vand.u32 %v297, 4294901760
        %v943 = vsub.f32 %v297, %v942
        %v944 = vand.u32 %v943, 4294901760
        %v945 = vsub.f32 %v943, %v944
        %v946 = vand.u32 %v945, 4294901760
        %947 = vmatmul.mubr.f32.gmra.mrb[0].mxu0 %v946
        %v948 = vpop.f32.mrb[0].mxu0
        %v949 = vadd.f32 %v538, %v948
        %v950 = vpop.f32.mrb[0].mxu0
        %v951 = vand.u32 %v302, 4294901760
        %v952 = vsub.f32 %v302, %v951
        %v953 = vand.u32 %v952, 4294901760
        %v954 = vsub.f32 %v952, %v953
        %v955 = vand.u32 %v954, 4294901760
        %956 = vmatprep.mubr.f32.mxu0 %v955
        %v957 = vand.u32 %v301, 4294901760
        %v958 = vsub.f32 %v301, %v957
        %v959 = vand.u32 %v958, 4294901760
        %v960 = vsub.f32 %v958, %v959
        %v961 = vand.u32 %v960, 4294901760
        %962 = vmatmul.mubr.f32.gmra.mrb[0].mxu0 %v961
        %v963 = vpop.f32.mrb[0].mxu0
        %v964 = vadd.f32 %v538, %v963
        %v965 = vpop.f32.mrb[0].mxu0
        %v966 = vand.u32 %v306, 4294901760
        %v967 = vsub.f32 %v306, %v966
        %v968 = vand.u32 %v967, 4294901760
        %v969 = vsub.f32 %v967, %v968
        %v970 = vand.u32 %v969, 4294901760
        %971 = vmatprep.mubr.f32.mxu0 %v970
        %v972 = vand.u32 %v305, 4294901760
        %v973 = vsub.f32 %v305, %v972
        %v974 = vand.u32 %v973, 4294901760
        %v975 = vsub.f32 %v973, %v974
        %v976 = vand.u32 %v975, 4294901760
        %977 = vmatmul.mubr.f32.gmra.mrb[0].mxu0 %v976
        %v978 = vpop.f32.mrb[0].mxu0
        %v979 = vadd.f32 %v538, %v978
        %v980 = vpop.f32.mrb[0].mxu0
        %v981 = vand.u32 %v310, 4294901760
        %v982 = vsub.f32 %v310, %v981
        %v983 = vand.u32 %v982, 4294901760
        %v984 = vsub.f32 %v982, %v983
        %v985 = vand.u32 %v984, 4294901760
        %986 = vmatprep.mubr.f32.mxu0 %v985
        %v987 = vand.u32 %v309, 4294901760
        %v988 = vsub.f32 %v309, %v987
        %v989 = vand.u32 %v988, 4294901760
        %v990 = vsub.f32 %v988, %v989
        %v991 = vand.u32 %v990, 4294901760
        %992 = vmatmul.mubr.f32.gmra.mrb[0].mxu0 %v991
        %v993 = vpop.f32.mrb[0].mxu0
        %v994 = vadd.f32 %v538, %v993
        %v995 = vpop.f32.mrb[0].mxu0
        %v996 = vand.u32 %v314, 4294901760
        %v997 = vsub.f32 %v314, %v996
        %v998 = vand.u32 %v997, 4294901760
        %v999 = vsub.f32 %v997, %v998
        %v1000 = vand.u32 %v999, 4294901760
        %1001 = vmatprep.mubr.f32.mxu0 %v1000
        %v1002 = vand.u32 %v313, 4294901760
        %v1003 = vsub.f32 %v313, %v1002
        %v1004 = vand.u32 %v1003, 4294901760
        %v1005 = vsub.f32 %v1003, %v1004
        %v1006 = vand.u32 %v1005, 4294901760
        %1007 = vmatmul.mubr.f32.gmra.mrb[0].mxu0 %v1006
        %v1008 = vpop.f32.mrb[0].mxu0
        %v1009 = vadd.f32 %v538, %v1008
        %v1010 = vpop.f32.mrb[0].mxu0
        %v1011 = vand.u32 %v318, 4294901760
        %v1012 = vsub.f32 %v318, %v1011
        %v1013 = vand.u32 %v1012, 4294901760
        %v1014 = vsub.f32 %v1012, %v1013
        %v1015 = vand.u32 %v1014, 4294901760
        %1016 = vmatprep.mubr.f32.mxu0 %v1015
        %v1017 = vand.u32 %v317, 4294901760
        %v1018 = vsub.f32 %v317, %v1017
        %v1019 = vand.u32 %v1018, 4294901760
        %v1020 = vsub.f32 %v1018, %v1019
        %v1021 = vand.u32 %v1020, 4294901760
        %1022 = vmatmul.mubr.f32.gmra.mrb[0].mxu0 %v1021
        %v1023 = vpop.f32.mrb[0].mxu0
        %v1024 = vadd.f32 %v538, %v1023
        %v1025 = vpop.f32.mrb[0].mxu0
        %v1026 = vand.u32 %v322, 4294901760
        %v1027 = vsub.f32 %v322, %v1026
        %v1028 = vand.u32 %v1027, 4294901760
        %v1029 = vsub.f32 %v1027, %v1028
        %v1030 = vand.u32 %v1029, 4294901760
        %1031 = vmatprep.mubr.f32.mxu0 %v1030
        %v1032 = vand.u32 %v321, 4294901760
        %v1033 = vsub.f32 %v321, %v1032
        %v1034 = vand.u32 %v1033, 4294901760
        %v1035 = vsub.f32 %v1033, %v1034
        %v1036 = vand.u32 %v1035, 4294901760
        %1037 = vmatmul.mubr.f32.gmra.mrb[0].mxu0 %v1036
        %v1038 = vpop.f32.mrb[0].mxu0
        %v1039 = vadd.f32 %v538, %v1038
        %v1040 = vpop.f32.mrb[0].mxu0
        %v1041 = vand.u32 %v326, 4294901760
        %v1042 = vsub.f32 %v326, %v1041
        %v1043 = vand.u32 %v1042, 4294901760
        %v1044 = vsub.f32 %v1042, %v1043
        %v1045 = vand.u32 %v1044, 4294901760
        %1046 = vmatprep.mubr.f32.mxu0 %v1045
        %v1047 = vand.u32 %v325, 4294901760
        %v1048 = vsub.f32 %v325, %v1047
        %v1049 = vand.u32 %v1048, 4294901760
        %v1050 = vsub.f32 %v1048, %v1049
        %v1051 = vand.u32 %v1050, 4294901760
        %1052 = vmatmul.mubr.f32.gmra.mrb[0].mxu0 %v1051
        %v1053 = vpop.f32.mrb[0].mxu0
        %v1054 = vadd.f32 %v538, %v1053
        %v1055 = vpop.f32.mrb[0].mxu0
        %v1056 = vand.u32 %v330, 4294901760
        %v1057 = vsub.f32 %v330, %v1056
        %v1058 = vand.u32 %v1057, 4294901760
        %v1059 = vsub.f32 %v1057, %v1058
        %v1060 = vand.u32 %v1059, 4294901760
        %1061 = vmatprep.mubr.f32.mxu0 %v1060
        %v1062 = vand.u32 %v329, 4294901760
        %v1063 = vsub.f32 %v329, %v1062
        %v1064 = vand.u32 %v1063, 4294901760
        %v1065 = vsub.f32 %v1063, %v1064
        %v1066 = vand.u32 %v1065, 4294901760
        %1067 = vmatmul.mubr.f32.gmra.mrb[0].mxu0 %v1066
        %v1068 = vpop.f32.mrb[0].mxu0
        %v1069 = vadd.f32 %v538, %v1068
        %v1070 = vpop.f32.mrb[0].mxu0
        %v1071 = vand.u32 %v334, 4294901760
        %v1072 = vsub.f32 %v334, %v1071
        %v1073 = vand.u32 %v1072, 4294901760
        %v1074 = vsub.f32 %v1072, %v1073
        %v1075 = vand.u32 %v1074, 4294901760
        %1076 = vmatprep.mubr.f32.mxu0 %v1075
        %v1077 = vand.u32 %v333, 4294901760
        %v1078 = vsub.f32 %v333, %v1077
        %v1079 = vand.u32 %v1078, 4294901760
        %v1080 = vsub.f32 %v1078, %v1079
        %v1081 = vand.u32 %v1080, 4294901760
        %1082 = vmatmul.mubr.f32.gmra.mrb[0].mxu0 %v1081
        %v1083 = vpop.f32.mrb[0].mxu0
        %v1084 = vadd.f32 %v538, %v1083
        %v1085 = vpop.f32.mrb[0].mxu0
        %v1086 = vand.u32 %v338, 4294901760
        %v1087 = vsub.f32 %v338, %v1086
        %v1088 = vand.u32 %v1087, 4294901760
        %v1089 = vsub.f32 %v1087, %v1088
        %v1090 = vand.u32 %v1089, 4294901760
        %1091 = vmatprep.mubr.f32.mxu0 %v1090
        %v1092 = vand.u32 %v337, 4294901760
        %v1093 = vsub.f32 %v337, %v1092
        %v1094 = vand.u32 %v1093, 4294901760
        %v1095 = vsub.f32 %v1093, %v1094
        %v1096 = vand.u32 %v1095, 4294901760
        %1097 = vmatmul.mubr.f32.gmra.mrb[0].mxu0 %v1096
        %v1098 = vpop.f32.mrb[0].mxu0
        %v1099 = vadd.f32 %v538, %v1098
        %v1100 = vpop.f32.mrb[0].mxu0
        %v1101 = vand.u32 %v342, 4294901760
        %v1102 = vsub.f32 %v342, %v1101
        %v1103 = vand.u32 %v1102, 4294901760
        %v1104 = vsub.f32 %v1102, %v1103
        %v1105 = vand.u32 %v1104, 4294901760
        %1106 = vmatprep.mubr.f32.mxu0 %v1105
        %v1107 = vand.u32 %v341, 4294901760
        %v1108 = vsub.f32 %v341, %v1107
        %v1109 = vand.u32 %v1108, 4294901760
        %v1110 = vsub.f32 %v1108, %v1109
        %v1111 = vand.u32 %v1110, 4294901760
        %1112 = vmatmul.mubr.f32.gmra.mrb[0].mxu0 %v1111
        %v1113 = vpop.f32.mrb[0].mxu0
        %v1114 = vadd.f32 %v538, %v1113
        %v1115 = vpop.f32.mrb[0].mxu0
        %v1116 = vand.u32 %v346, 4294901760
        %v1117 = vsub.f32 %v346, %v1116
        %v1118 = vand.u32 %v1117, 4294901760
        %v1119 = vsub.f32 %v1117, %v1118
        %v1120 = vand.u32 %v1119, 4294901760
        %1121 = vmatprep.mubr.f32.mxu0 %v1120
        %v1122 = vand.u32 %v345, 4294901760
        %v1123 = vsub.f32 %v345, %v1122
        %v1124 = vand.u32 %v1123, 4294901760
        %v1125 = vsub.f32 %v1123, %v1124
        %v1126 = vand.u32 %v1125, 4294901760
        %1127 = vmatmul.mubr.f32.gmra.mrb[0].mxu0 %v1126
        %v1128 = vpop.f32.mrb[0].mxu0
        %v1129 = vadd.f32 %v538, %v1128
        %v1130 = vpop.f32.mrb[0].mxu0
        %v1131 = vand.u32 %v350, 4294901760
        %v1132 = vsub.f32 %v350, %v1131
        %v1133 = vand.u32 %v1132, 4294901760
        %v1134 = vsub.f32 %v1132, %v1133
        %v1135 = vand.u32 %v1134, 4294901760
        %1136 = vmatprep.mubr.f32.mxu0 %v1135
        %v1137 = vand.u32 %v349, 4294901760
        %v1138 = vsub.f32 %v349, %v1137
        %v1139 = vand.u32 %v1138, 4294901760
        %v1140 = vsub.f32 %v1138, %v1139
        %v1141 = vand.u32 %v1140, 4294901760
        %1142 = vmatmul.mubr.f32.gmra.mrb[0].mxu0 %v1141
        %v1143 = vpop.f32.mrb[0].mxu0
        %v1144 = vadd.f32 %v538, %v1143
        %v1145 = vpop.f32.mrb[0].mxu0
        %v1146 = vand.u32 %v354, 4294901760
        %v1147 = vsub.f32 %v354, %v1146
        %v1148 = vand.u32 %v1147, 4294901760
        %v1149 = vsub.f32 %v1147, %v1148
        %v1150 = vand.u32 %v1149, 4294901760
        %1151 = vmatprep.mubr.f32.mxu0 %v1150
        %v1152 = vand.u32 %v353, 4294901760
        %v1153 = vsub.f32 %v353, %v1152
        %v1154 = vand.u32 %v1153, 4294901760
        %v1155 = vsub.f32 %v1153, %v1154
        %v1156 = vand.u32 %v1155, 4294901760
        %1157 = vmatmul.mubr.f32.gmra.mrb[0].mxu0 %v1156
        %v1158 = vpop.f32.mrb[0].mxu0
        %v1159 = vadd.f32 %v538, %v1158
        %v1160 = vpop.f32.mrb[0].mxu0
        %v1161 = vand.u32 %v358, 4294901760
        %v1162 = vsub.f32 %v358, %v1161
        %v1163 = vand.u32 %v1162, 4294901760
        %v1164 = vsub.f32 %v1162, %v1163
        %v1165 = vand.u32 %v1164, 4294901760
        %1166 = vmatprep.mubr.f32.mxu0 %v1165
        %v1167 = vand.u32 %v357, 4294901760
        %v1168 = vsub.f32 %v357, %v1167
        %v1169 = vand.u32 %v1168, 4294901760
        %v1170 = vsub.f32 %v1168, %v1169
        %v1171 = vand.u32 %v1170, 4294901760
        %1172 = vmatmul.mubr.f32.gmra.mrb[0].mxu0 %v1171
        %v1173 = vpop.f32.mrb[0].mxu0
        %v1174 = vadd.f32 %v538, %v1173
        %v1175 = vpop.f32.mrb[0].mxu0
        %v1176 = vand.u32 %v362, 4294901760
        %v1177 = vsub.f32 %v362, %v1176
        %v1178 = vand.u32 %v1177, 4294901760
        %v1179 = vsub.f32 %v1177, %v1178
        %v1180 = vand.u32 %v1179, 4294901760
        %1181 = vmatprep.mubr.f32.mxu0 %v1180
        %v1182 = vand.u32 %v361, 4294901760
        %v1183 = vsub.f32 %v361, %v1182
        %v1184 = vand.u32 %v1183, 4294901760
        %v1185 = vsub.f32 %v1183, %v1184
        %v1186 = vand.u32 %v1185, 4294901760
        %1187 = vmatmul.mubr.f32.gmra.mrb[0].mxu0 %v1186
        %v1188 = vpop.f32.mrb[0].mxu0
        %v1189 = vadd.f32 %v538, %v1188
        %v1190 = vpop.f32.mrb[0].mxu0
        %v1191 = vand.u32 %v366, 4294901760
        %v1192 = vsub.f32 %v366, %v1191
        %v1193 = vand.u32 %v1192, 4294901760
        %v1194 = vsub.f32 %v1192, %v1193
        %v1195 = vand.u32 %v1194, 4294901760
        %1196 = vmatprep.mubr.f32.mxu0 %v1195
        %v1197 = vand.u32 %v365, 4294901760
        %v1198 = vsub.f32 %v365, %v1197
        %v1199 = vand.u32 %v1198, 4294901760
        %v1200 = vsub.f32 %v1198, %v1199
        %v1201 = vand.u32 %v1200, 4294901760
        %1202 = vmatmul.mubr.f32.gmra.mrb[0].mxu0 %v1201
        %v1203 = vpop.f32.mrb[0].mxu0
        %v1204 = vadd.f32 %v538, %v1203
        %v1205 = vpop.f32.mrb[0].mxu0
        %v1206 = vand.u32 %v370, 4294901760
        %v1207 = vsub.f32 %v370, %v1206
        %v1208 = vand.u32 %v1207, 4294901760
        %v1209 = vsub.f32 %v1207, %v1208
        %v1210 = vand.u32 %v1209, 4294901760
        %1211 = vmatprep.mubr.f32.mxu0 %v1210
        %v1212 = vand.u32 %v369, 4294901760
        %v1213 = vsub.f32 %v369, %v1212
        %v1214 = vand.u32 %v1213, 4294901760
        %v1215 = vsub.f32 %v1213, %v1214
        %v1216 = vand.u32 %v1215, 4294901760
        %1217 = vmatmul.mubr.f32.gmra.mrb[0].mxu0 %v1216
        %v1218 = vpop.f32.mrb[0].mxu0
        %v1219 = vadd.f32 %v538, %v1218
        %v1220 = vpop.f32.mrb[0].mxu0
        %v1221 = vand.u32 %v374, 4294901760
        %v1222 = vsub.f32 %v374, %v1221
        %v1223 = vand.u32 %v1222, 4294901760
        %v1224 = vsub.f32 %v1222, %v1223
        %v1225 = vand.u32 %v1224, 4294901760
        %1226 = vmatprep.mubr.f32.mxu0 %v1225
        %v1227 = vand.u32 %v373, 4294901760
        %v1228 = vsub.f32 %v373, %v1227
        %v1229 = vand.u32 %v1228, 4294901760
        %v1230 = vsub.f32 %v1228, %v1229
        %v1231 = vand.u32 %v1230, 4294901760
        %1232 = vmatmul.mubr.f32.gmra.mrb[0].mxu0 %v1231
        %v1233 = vpop.f32.mrb[0].mxu0
        %v1234 = vadd.f32 %v538, %v1233
        %v1235 = vpop.f32.mrb[0].mxu0
        %v1236 = vand.u32 %v378, 4294901760
        %v1237 = vsub.f32 %v378, %v1236
        %v1238 = vand.u32 %v1237, 4294901760
        %v1239 = vsub.f32 %v1237, %v1238
        %v1240 = vand.u32 %v1239, 4294901760
        %1241 = vmatprep.mubr.f32.mxu0 %v1240
        %v1242 = vand.u32 %v377, 4294901760
        %v1243 = vsub.f32 %v377, %v1242
        %v1244 = vand.u32 %v1243, 4294901760
        %v1245 = vsub.f32 %v1243, %v1244
        %v1246 = vand.u32 %v1245, 4294901760
        %1247 = vmatmul.mubr.f32.gmra.mrb[0].mxu0 %v1246
        %v1248 = vpop.f32.mrb[0].mxu0
        %v1249 = vadd.f32 %v538, %v1248
        %v1250 = vpop.f32.mrb[0].mxu0
        %v1251 = vand.u32 %v382, 4294901760
        %v1252 = vsub.f32 %v382, %v1251
        %v1253 = vand.u32 %v1252, 4294901760
        %v1254 = vsub.f32 %v1252, %v1253
        %v1255 = vand.u32 %v1254, 4294901760
        %1256 = vmatprep.mubr.f32.mxu0 %v1255
        %v1257 = vand.u32 %v381, 4294901760
        %v1258 = vsub.f32 %v381, %v1257
        %v1259 = vand.u32 %v1258, 4294901760
        %v1260 = vsub.f32 %v1258, %v1259
        %v1261 = vand.u32 %v1260, 4294901760
        %1262 = vmatmul.mubr.f32.gmra.mrb[0].mxu0 %v1261
        %v1263 = vpop.f32.mrb[0].mxu0
        %v1264 = vadd.f32 %v538, %v1263
        %v1265 = vpop.f32.mrb[0].mxu0
        %v1266 = vand.u32 %v386, 4294901760
        %v1267 = vsub.f32 %v386, %v1266
        %v1268 = vand.u32 %v1267, 4294901760
        %v1269 = vsub.f32 %v1267, %v1268
        %v1270 = vand.u32 %v1269, 4294901760
        %1271 = vmatprep.mubr.f32.mxu0 %v1270
        %v1272 = vand.u32 %v385, 4294901760
        %v1273 = vsub.f32 %v385, %v1272
        %v1274 = vand.u32 %v1273, 4294901760
        %v1275 = vsub.f32 %v1273, %v1274
        %v1276 = vand.u32 %v1275, 4294901760
        %1277 = vmatmul.mubr.f32.gmra.mrb[0].mxu0 %v1276
        %v1278 = vpop.f32.mrb[0].mxu0
        %v1279 = vadd.f32 %v538, %v1278
        %v1280 = vpop.f32.mrb[0].mxu0
        %v1281 = vand.u32 %v390, 4294901760
        %v1282 = vsub.f32 %v390, %v1281
        %v1283 = vand.u32 %v1282, 4294901760
        %v1284 = vsub.f32 %v1282, %v1283
        %v1285 = vand.u32 %v1284, 4294901760
        %1286 = vmatprep.mubr.f32.mxu0 %v1285
        %v1287 = vand.u32 %v389, 4294901760
        %v1288 = vsub.f32 %v389, %v1287
        %v1289 = vand.u32 %v1288, 4294901760
        %v1290 = vsub.f32 %v1288, %v1289
        %v1291 = vand.u32 %v1290, 4294901760
        %1292 = vmatmul.mubr.f32.gmra.mrb[0].mxu0 %v1291
        %v1293 = vpop.f32.mrb[0].mxu0
        %v1294 = vadd.f32 %v538, %v1293
        %v1295 = vpop.f32.mrb[0].mxu0
        %v1296 = vand.u32 %v394, 4294901760
        %v1297 = vsub.f32 %v394, %v1296
        %v1298 = vand.u32 %v1297, 4294901760
        %v1299 = vsub.f32 %v1297, %v1298
        %v1300 = vand.u32 %v1299, 4294901760
        %1301 = vmatprep.mubr.f32.mxu0 %v1300
        %v1302 = vand.u32 %v393, 4294901760
        %v1303 = vsub.f32 %v393, %v1302
        %v1304 = vand.u32 %v1303, 4294901760
        %v1305 = vsub.f32 %v1303, %v1304
        %v1306 = vand.u32 %v1305, 4294901760
        %1307 = vmatmul.mubr.f32.gmra.mrb[0].mxu0 %v1306
        %v1308 = vpop.f32.mrb[0].mxu0
        %v1309 = vadd.f32 %v538, %v1308
        %v1310 = vpop.f32.mrb[0].mxu0
        %v1311 = vand.u32 %v398, 4294901760
        %v1312 = vsub.f32 %v398, %v1311
        %v1313 = vand.u32 %v1312, 4294901760
        %v1314 = vsub.f32 %v1312, %v1313
        %v1315 = vand.u32 %v1314, 4294901760
        %1316 = vmatprep.mubr.f32.mxu0 %v1315
        %v1317 = vand.u32 %v397, 4294901760
        %v1318 = vsub.f32 %v397, %v1317
        %v1319 = vand.u32 %v1318, 4294901760
        %v1320 = vsub.f32 %v1318, %v1319
        %v1321 = vand.u32 %v1320, 4294901760
        %1322 = vmatmul.mubr.f32.gmra.mrb[0].mxu0 %v1321
        %v1323 = vpop.f32.mrb[0].mxu0
        %v1324 = vadd.f32 %v538, %v1323
        %v1325 = vpop.f32.mrb[0].mxu0
        %v1326 = vand.u32 %v402, 4294901760
        %v1327 = vsub.f32 %v402, %v1326
        %v1328 = vand.u32 %v1327, 4294901760
        %v1329 = vsub.f32 %v1327, %v1328
        %v1330 = vand.u32 %v1329, 4294901760
        %1331 = vmatprep.mubr.f32.mxu0 %v1330
        %v1332 = vand.u32 %v401, 4294901760
        %v1333 = vsub.f32 %v401, %v1332
        %v1334 = vand.u32 %v1333, 4294901760
        %v1335 = vsub.f32 %v1333, %v1334
        %v1336 = vand.u32 %v1335, 4294901760
        %1337 = vmatmul.mubr.f32.gmra.mrb[0].mxu0 %v1336
        %v1338 = vpop.f32.mrb[0].mxu0
        %v1339 = vadd.f32 %v538, %v1338
        %v1340 = vpop.f32.mrb[0].mxu0
        %v1341 = vand.u32 %v406, 4294901760
        %v1342 = vsub.f32 %v406, %v1341
        %v1343 = vand.u32 %v1342, 4294901760
        %v1344 = vsub.f32 %v1342, %v1343
        %v1345 = vand.u32 %v1344, 4294901760
        %1346 = vmatprep.mubr.f32.mxu0 %v1345
        %v1347 = vand.u32 %v405, 4294901760
        %v1348 = vsub.f32 %v405, %v1347
        %v1349 = vand.u32 %v1348, 4294901760
        %v1350 = vsub.f32 %v1348, %v1349
        %v1351 = vand.u32 %v1350, 4294901760
        %1352 = vmatmul.mubr.f32.gmra.mrb[0].mxu0 %v1351
        %v1353 = vpop.f32.mrb[0].mxu0
        %v1354 = vadd.f32 %v538, %v1353
        %v1355 = vpop.f32.mrb[0].mxu0
        %v1356 = vand.u32 %v410, 4294901760
        %v1357 = vsub.f32 %v410, %v1356
        %v1358 = vand.u32 %v1357, 4294901760
        %v1359 = vsub.f32 %v1357, %v1358
        %v1360 = vand.u32 %v1359, 4294901760
        %1361 = vmatprep.mubr.f32.mxu0 %v1360
        %v1362 = vand.u32 %v409, 4294901760
        %v1363 = vsub.f32 %v409, %v1362
        %v1364 = vand.u32 %v1363, 4294901760
        %v1365 = vsub.f32 %v1363, %v1364
        %v1366 = vand.u32 %v1365, 4294901760
        %1367 = vmatmul.mubr.f32.gmra.mrb[0].mxu0 %v1366
        %v1368 = vpop.f32.mrb[0].mxu0
        %v1369 = vadd.f32 %v538, %v1368
        %v1370 = vpop.f32.mrb[0].mxu0
        %v1371 = vand.u32 %v414, 4294901760
        %v1372 = vsub.f32 %v414, %v1371
        %v1373 = vand.u32 %v1372, 4294901760
        %v1374 = vsub.f32 %v1372, %v1373
        %v1375 = vand.u32 %v1374, 4294901760
        %1376 = vmatprep.mubr.f32.mxu0 %v1375
        %v1377 = vand.u32 %v413, 4294901760
        %v1378 = vsub.f32 %v413, %v1377
        %v1379 = vand.u32 %v1378, 4294901760
        %v1380 = vsub.f32 %v1378, %v1379
        %v1381 = vand.u32 %v1380, 4294901760
        %1382 = vmatmul.mubr.f32.gmra.mrb[0].mxu0 %v1381
        %v1383 = vpop.f32.mrb[0].mxu0
        %v1384 = vadd.f32 %v538, %v1383
        %v1385 = vpop.f32.mrb[0].mxu0
        %v1386 = vand.u32 %v418, 4294901760
        %v1387 = vsub.f32 %v418, %v1386
        %v1388 = vand.u32 %v1387, 4294901760
        %v1389 = vsub.f32 %v1387, %v1388
        %v1390 = vand.u32 %v1389, 4294901760
        %1391 = vmatprep.mubr.f32.mxu0 %v1390
        %v1392 = vand.u32 %v417, 4294901760
        %v1393 = vsub.f32 %v417, %v1392
        %v1394 = vand.u32 %v1393, 4294901760
        %v1395 = vsub.f32 %v1393, %v1394
        %v1396 = vand.u32 %v1395, 4294901760
        %1397 = vmatmul.mubr.f32.gmra.mrb[0].mxu0 %v1396
        %v1398 = vpop.f32.mrb[0].mxu0
        %v1399 = vadd.f32 %v538, %v1398
        %v1400 = vpop.f32.mrb[0].mxu0
        %v1401 = vand.u32 %v422, 4294901760
        %v1402 = vsub.f32 %v422, %v1401
        %v1403 = vand.u32 %v1402, 4294901760
        %v1404 = vsub.f32 %v1402, %v1403
        %v1405 = vand.u32 %v1404, 4294901760
        %1406 = vmatprep.mubr.f32.mxu0 %v1405
        %v1407 = vand.u32 %v421, 4294901760
        %v1408 = vsub.f32 %v421, %v1407
        %v1409 = vand.u32 %v1408, 4294901760
        %v1410 = vsub.f32 %v1408, %v1409
        %v1411 = vand.u32 %v1410, 4294901760
        %1412 = vmatmul.mubr.f32.gmra.mrb[0].mxu0 %v1411
        %v1413 = vpop.f32.mrb[0].mxu0
        %v1414 = vadd.f32 %v538, %v1413
        %v1415 = vpop.f32.mrb[0].mxu0
        %v1416 = vand.u32 %v426, 4294901760
        %v1417 = vsub.f32 %v426, %v1416
        %v1418 = vand.u32 %v1417, 4294901760
        %v1419 = vsub.f32 %v1417, %v1418
        %v1420 = vand.u32 %v1419, 4294901760
        %1421 = vmatprep.mubr.f32.mxu0 %v1420
        %v1422 = vand.u32 %v425, 4294901760
        %v1423 = vsub.f32 %v425, %v1422
        %v1424 = vand.u32 %v1423, 4294901760
        %v1425 = vsub.f32 %v1423, %v1424
        %v1426 = vand.u32 %v1425, 4294901760
        %1427 = vmatmul.mubr.f32.gmra.mrb[0].mxu0 %v1426
        %v1428 = vpop.f32.mrb[0].mxu0
        %v1429 = vadd.f32 %v538, %v1428
        %v1430 = vpop.f32.mrb[0].mxu0
        %v1431 = vand.u32 %v430, 4294901760
        %v1432 = vsub.f32 %v430, %v1431
        %v1433 = vand.u32 %v1432, 4294901760
        %v1434 = vsub.f32 %v1432, %v1433
        %v1435 = vand.u32 %v1434, 4294901760
        %1436 = vmatprep.mubr.f32.mxu0 %v1435
        %v1437 = vand.u32 %v429, 4294901760
        %v1438 = vsub.f32 %v429, %v1437
        %v1439 = vand.u32 %v1438, 4294901760
        %v1440 = vsub.f32 %v1438, %v1439
        %v1441 = vand.u32 %v1440, 4294901760
        %1442 = vmatmul.mubr.f32.gmra.mrb[0].mxu0 %v1441
        %v1443 = vpop.f32.mrb[0].mxu0
        %v1444 = vadd.f32 %v538, %v1443
        %v1445 = vpop.f32.mrb[0].mxu0
        %v1446 = vand.u32 %v434, 4294901760
        %v1447 = vsub.f32 %v434, %v1446
        %v1448 = vand.u32 %v1447, 4294901760
        %v1449 = vsub.f32 %v1447, %v1448
        %v1450 = vand.u32 %v1449, 4294901760
        %1451 = vmatprep.mubr.f32.mxu0 %v1450
        %v1452 = vand.u32 %v433, 4294901760
        %v1453 = vsub.f32 %v433, %v1452
        %v1454 = vand.u32 %v1453, 4294901760
        %v1455 = vsub.f32 %v1453, %v1454
        %v1456 = vand.u32 %v1455, 4294901760
        %1457 = vmatmul.mubr.f32.gmra.mrb[0].mxu0 %v1456
        %v1458 = vpop.f32.mrb[0].mxu0
        %v1459 = vadd.f32 %v538, %v1458
        %v1460 = vpop.f32.mrb[0].mxu0
        %v1461 = vand.u32 %v438, 4294901760
        %v1462 = vsub.f32 %v438, %v1461
        %v1463 = vand.u32 %v1462, 4294901760
        %v1464 = vsub.f32 %v1462, %v1463
        %v1465 = vand.u32 %v1464, 4294901760
        %1466 = vmatprep.mubr.f32.mxu0 %v1465
        %v1467 = vand.u32 %v437, 4294901760
        %v1468 = vsub.f32 %v437, %v1467
        %v1469 = vand.u32 %v1468, 4294901760
        %v1470 = vsub.f32 %v1468, %v1469
        %v1471 = vand.u32 %v1470, 4294901760
        %1472 = vmatmul.mubr.f32.gmra.mrb[0].mxu0 %v1471
        %v1473 = vpop.f32.mrb[0].mxu0
        %v1474 = vadd.f32 %v538, %v1473
        %v1475 = vpop.f32.mrb[0].mxu0
        %v1476 = vand.u32 %v442, 4294901760
        %v1477 = vsub.f32 %v442, %v1476
        %v1478 = vand.u32 %v1477, 4294901760
        %v1479 = vsub.f32 %v1477, %v1478
        %v1480 = vand.u32 %v1479, 4294901760
        %1481 = vmatprep.mubr.f32.mxu0 %v1480
        %v1482 = vand.u32 %v441, 4294901760
        %v1483 = vsub.f32 %v441, %v1482
        %v1484 = vand.u32 %v1483, 4294901760
        %v1485 = vsub.f32 %v1483, %v1484
        %v1486 = vand.u32 %v1485, 4294901760
        %1487 = vmatmul.mubr.f32.gmra.mrb[0].mxu0 %v1486
        %v1488 = vpop.f32.mrb[0].mxu0
        %v1489 = vadd.f32 %v538, %v1488
        %v1490 = vpop.f32.mrb[0].mxu0
        %v1491 = vand.u32 %v446, 4294901760
        %v1492 = vsub.f32 %v446, %v1491
        %v1493 = vand.u32 %v1492, 4294901760
        %v1494 = vsub.f32 %v1492, %v1493
        %v1495 = vand.u32 %v1494, 4294901760
        %1496 = vmatprep.mubr.f32.mxu0 %v1495
        %v1497 = vand.u32 %v445, 4294901760
        %v1498 = vsub.f32 %v445, %v1497
        %v1499 = vand.u32 %v1498, 4294901760
        %v1500 = vsub.f32 %v1498, %v1499
        %v1501 = vand.u32 %v1500, 4294901760
        %1502 = vmatmul.mubr.f32.gmra.mrb[0].mxu0 %v1501
        %v1503 = vpop.f32.mrb[0].mxu0
        %v1504 = vadd.f32 %v538, %v1503
        %v1505 = vpop.f32.mrb[0].mxu0
        %v1506 = vand.u32 %v450, 4294901760
        %v1507 = vsub.f32 %v450, %v1506
        %v1508 = vand.u32 %v1507, 4294901760
        %v1509 = vsub.f32 %v1507, %v1508
        %v1510 = vand.u32 %v1509, 4294901760
        %1511 = vmatprep.mubr.f32.mxu0 %v1510
        %v1512 = vand.u32 %v449, 4294901760
        %v1513 = vsub.f32 %v449, %v1512
        %v1514 = vand.u32 %v1513, 4294901760
        %v1515 = vsub.f32 %v1513, %v1514
        %v1516 = vand.u32 %v1515, 4294901760
        %1517 = vmatmul.mubr.f32.gmra.mrb[0].mxu0 %v1516
        %v1518 = vpop.f32.mrb[0].mxu0
        %v1519 = vadd.f32 %v538, %v1518
        %v1520 = vpop.f32.mrb[0].mxu0
        %v1521 = vand.u32 %v454, 4294901760
        %v1522 = vsub.f32 %v454, %v1521
        %v1523 = vand.u32 %v1522, 4294901760
        %v1524 = vsub.f32 %v1522, %v1523
        %v1525 = vand.u32 %v1524, 4294901760
        %1526 = vmatprep.mubr.f32.mxu0 %v1525
        %v1527 = vand.u32 %v453, 4294901760
        %v1528 = vsub.f32 %v453, %v1527
        %v1529 = vand.u32 %v1528, 4294901760
        %v1530 = vsub.f32 %v1528, %v1529
        %v1531 = vand.u32 %v1530, 4294901760
        %1532 = vmatmul.mubr.f32.gmra.mrb[0].mxu0 %v1531
        %v1533 = vpop.f32.mrb[0].mxu0
        %v1534 = vadd.f32 %v538, %v1533
        %v1535 = vpop.f32.mrb[0].mxu0
        %v1536 = vand.u32 %v458, 4294901760
        %v1537 = vsub.f32 %v458, %v1536
        %v1538 = vand.u32 %v1537, 4294901760
        %v1539 = vsub.f32 %v1537, %v1538
        %v1540 = vand.u32 %v1539, 4294901760
        %1541 = vmatprep.mubr.f32.mxu0 %v1540
        %v1542 = vand.u32 %v457, 4294901760
        %v1543 = vsub.f32 %v457, %v1542
        %v1544 = vand.u32 %v1543, 4294901760
        %v1545 = vsub.f32 %v1543, %v1544
        %v1546 = vand.u32 %v1545, 4294901760
        %1547 = vmatmul.mubr.f32.gmra.mrb[0].mxu0 %v1546
        %v1548 = vpop.f32.mrb[0].mxu0
        %v1549 = vadd.f32 %v538, %v1548
        %v1550 = vpop.f32.mrb[0].mxu0
        %v1551 = vand.u32 %v462, 4294901760
        %v1552 = vsub.f32 %v462, %v1551
        %v1553 = vand.u32 %v1552, 4294901760
        %v1554 = vsub.f32 %v1552, %v1553
        %v1555 = vand.u32 %v1554, 4294901760
        %1556 = vmatprep.mubr.f32.mxu0 %v1555
        %v1557 = vand.u32 %v461, 4294901760
        %v1558 = vsub.f32 %v461, %v1557
        %v1559 = vand.u32 %v1558, 4294901760
        %v1560 = vsub.f32 %v1558, %v1559
        %v1561 = vand.u32 %v1560, 4294901760
        %1562 = vmatmul.mubr.f32.gmra.mrb[0].mxu0 %v1561
        %v1563 = vpop.f32.mrb[0].mxu0
        %v1564 = vadd.f32 %v538, %v1563
        %v1565 = vpop.f32.mrb[0].mxu0
        %v1566 = vand.u32 %v466, 4294901760
        %v1567 = vsub.f32 %v466, %v1566
        %v1568 = vand.u32 %v1567, 4294901760
        %v1569 = vsub.f32 %v1567, %v1568
        %v1570 = vand.u32 %v1569, 4294901760
        %1571 = vmatprep.mubr.f32.mxu0 %v1570
        %v1572 = vand.u32 %v465, 4294901760
        %v1573 = vsub.f32 %v465, %v1572
        %v1574 = vand.u32 %v1573, 4294901760
        %v1575 = vsub.f32 %v1573, %v1574
        %v1576 = vand.u32 %v1575, 4294901760
        %1577 = vmatmul.mubr.f32.gmra.mrb[0].mxu0 %v1576
        %v1578 = vpop.f32.mrb[0].mxu0
        %v1579 = vadd.f32 %v538, %v1578
        %v1580 = vpop.f32.mrb[0].mxu0
        %1581 = vdwg.mxu0
        %1582 = vmatprep.subr.mxu0 0.0
        %v1583 = vand.u32 %v469, 4294901760
        %v1584 = vsub.f32 %v469, %v1583
        %v1585 = vand.u32 %v1584, 4294901760
        %v1586 = vsub.f32 %v1584, %v1585
        %v1587 = vand.u32 %v1586, 4294901760
        %1588 = vmatpush1.msra.mxu0 %v1587
        %1589 = vmatprep.subr.mxu0 0.0
        %v1590 = vand.u32 %v470, 4294901760
        %v1591 = vsub.f32 %v470, %v1590
        %v1592 = vand.u32 %v1591, 4294901760
        %v1593 = vsub.f32 %v1591, %v1592
        %v1594 = vand.u32 %v1593, 4294901760
        %1595 = vmatpush1.msra.mxu0 %v1594
        %1596 = vmatprep.subr.mxu0 0.0
        %v1597 = vand.u32 %v471, 4294901760
        %v1598 = vsub.f32 %v471, %v1597
        %v1599 = vand.u32 %v1598, 4294901760
        %v1600 = vsub.f32 %v1598, %v1599
        %v1601 = vand.u32 %v1600, 4294901760
        %1602 = vmatpush1.msra.mxu0 %v1601
        %1603 = vmatprep.subr.mxu0 0.0
        %v1604 = vand.u32 %v472, 4294901760
        %v1605 = vsub.f32 %v472, %v1604
        %v1606 = vand.u32 %v1605, 4294901760
        %v1607 = vsub.f32 %v1605, %v1606
        %v1608 = vand.u32 %v1607, 4294901760
        %1609 = vmatpush1.msra.mxu0 %v1608
        %1610 = vmatprep.subr.mxu0 0.0
        %v1611 = vand.u32 %v473, 4294901760
        %v1612 = vsub.f32 %v473, %v1611
        %v1613 = vand.u32 %v1612, 4294901760
        %v1614 = vsub.f32 %v1612, %v1613
        %v1615 = vand.u32 %v1614, 4294901760
        %1616 = vmatpush1.msra.mxu0 %v1615
        %1617 = vmatprep.subr.mxu0 0.0
        %v1618 = vand.u32 %v474, 4294901760
        %v1619 = vsub.f32 %v474, %v1618
        %v1620 = vand.u32 %v1619, 4294901760
        %v1621 = vsub.f32 %v1619, %v1620
        %v1622 = vand.u32 %v1621, 4294901760
        %1623 = vmatpush1.msra.mxu0 %v1622
        %1624 = vmatprep.subr.mxu0 0.0
        %v1625 = vand.u32 %v475, 4294901760
        %v1626 = vsub.f32 %v475, %v1625
        %v1627 = vand.u32 %v1626, 4294901760
        %v1628 = vsub.f32 %v1626, %v1627
        %v1629 = vand.u32 %v1628, 4294901760
        %1630 = vmatpush1.msra.mxu0 %v1629
        %1631 = vmatprep.subr.mxu0 0.0
        %v1632 = vand.u32 %v476, 4294901760
        %v1633 = vsub.f32 %v476, %v1632
        %v1634 = vand.u32 %v1633, 4294901760
        %v1635 = vsub.f32 %v1633, %v1634
        %v1636 = vand.u32 %v1635, 4294901760
        %1637 = vmatpush1.msra.mxu0 %v1636
        %1638 = vmatprep.subr.mxu0 0.0
        %v1639 = vand.u32 %v477, 4294901760
        %v1640 = vsub.f32 %v477, %v1639
        %v1641 = vand.u32 %v1640, 4294901760
        %v1642 = vsub.f32 %v1640, %v1641
        %v1643 = vand.u32 %v1642, 4294901760
        %1644 = vmatpush1.msra.mxu0 %v1643
        %1645 = vmatprep.subr.mxu0 0.0
        %v1646 = vand.u32 %v478, 4294901760
        %v1647 = vsub.f32 %v478, %v1646
        %v1648 = vand.u32 %v1647, 4294901760
        %v1649 = vsub.f32 %v1647, %v1648
        %v1650 = vand.u32 %v1649, 4294901760
        %1651 = vmatpush1.msra.mxu0 %v1650
        %1652 = vmatprep.subr.mxu0 0.0
        %v1653 = vand.u32 %v479, 4294901760
        %v1654 = vsub.f32 %v479, %v1653
        %v1655 = vand.u32 %v1654, 4294901760
        %v1656 = vsub.f32 %v1654, %v1655
        %v1657 = vand.u32 %v1656, 4294901760
        %1658 = vmatpush1.msra.mxu0 %v1657
        %1659 = vmatprep.subr.mxu0 0.0
        %v1660 = vand.u32 %v480, 4294901760
        %v1661 = vsub.f32 %v480, %v1660
        %v1662 = vand.u32 %v1661, 4294901760
        %v1663 = vsub.f32 %v1661, %v1662
        %v1664 = vand.u32 %v1663, 4294901760
        %1665 = vmatpush1.msra.mxu0 %v1664
        %1666 = vmatprep.subr.mxu0 0.0
        %v1667 = vand.u32 %v481, 4294901760
        %v1668 = vsub.f32 %v481, %v1667
        %v1669 = vand.u32 %v1668, 4294901760
        %v1670 = vsub.f32 %v1668, %v1669
        %v1671 = vand.u32 %v1670, 4294901760
        %1672 = vmatpush1.msra.mxu0 %v1671
        %1673 = vmatprep.subr.mxu0 0.0
        %v1674 = vand.u32 %v482, 4294901760
        %v1675 = vsub.f32 %v482, %v1674
        %v1676 = vand.u32 %v1675, 4294901760
        %v1677 = vsub.f32 %v1675, %v1676
        %v1678 = vand.u32 %v1677, 4294901760
        %1679 = vmatpush1.msra.mxu0 %v1678
        %1680 = vmatprep.subr.mxu0 0.0
        %v1681 = vand.u32 %v483, 4294901760
        %v1682 = vsub.f32 %v483, %v1681
        %v1683 = vand.u32 %v1682, 4294901760
        %v1684 = vsub.f32 %v1682, %v1683
        %v1685 = vand.u32 %v1684, 4294901760
        %1686 = vmatpush1.msra.mxu0 %v1685
        %1687 = vmatprep.subr.mxu0 0.0
        %v1688 = vand.u32 %v484, 4294901760
        %v1689 = vsub.f32 %v484, %v1688
        %v1690 = vand.u32 %v1689, 4294901760
        %v1691 = vsub.f32 %v1689, %v1690
        %v1692 = vand.u32 %v1691, 4294901760
        %1693 = vmatpush1.msra.mxu0 %v1692
        %1694 = vmatprep.subr.mxu0 0.0
        %v1695 = vand.u32 %v485, 4294901760
        %v1696 = vsub.f32 %v485, %v1695
        %v1697 = vand.u32 %v1696, 4294901760
        %v1698 = vsub.f32 %v1696, %v1697
        %v1699 = vand.u32 %v1698, 4294901760
        %1700 = vmatpush1.msra.mxu0 %v1699
        %1701 = vmatprep.subr.mxu0 0.0
        %v1702 = vand.u32 %v486, 4294901760
        %v1703 = vsub.f32 %v486, %v1702
        %v1704 = vand.u32 %v1703, 4294901760
        %v1705 = vsub.f32 %v1703, %v1704
        %v1706 = vand.u32 %v1705, 4294901760
        %1707 = vmatpush1.msra.mxu0 %v1706
        %1708 = vmatprep.subr.mxu0 0.0
        %v1709 = vand.u32 %v487, 4294901760
        %v1710 = vsub.f32 %v487, %v1709
        %v1711 = vand.u32 %v1710, 4294901760
        %v1712 = vsub.f32 %v1710, %v1711
        %v1713 = vand.u32 %v1712, 4294901760
        %1714 = vmatpush1.msra.mxu0 %v1713
        %1715 = vmatprep.subr.mxu0 0.0
        %v1716 = vand.u32 %v488, 4294901760
        %v1717 = vsub.f32 %v488, %v1716
        %v1718 = vand.u32 %v1717, 4294901760
        %v1719 = vsub.f32 %v1717, %v1718
        %v1720 = vand.u32 %v1719, 4294901760
        %1721 = vmatpush1.msra.mxu0 %v1720
        %1722 = vmatprep.subr.mxu0 0.0
        %v1723 = vand.u32 %v489, 4294901760
        %v1724 = vsub.f32 %v489, %v1723
        %v1725 = vand.u32 %v1724, 4294901760
        %v1726 = vsub.f32 %v1724, %v1725
        %v1727 = vand.u32 %v1726, 4294901760
        %1728 = vmatpush1.msra.mxu0 %v1727
        %1729 = vmatprep.subr.mxu0 0.0
        %v1730 = vand.u32 %v490, 4294901760
        %v1731 = vsub.f32 %v490, %v1730
        %v1732 = vand.u32 %v1731, 4294901760
        %v1733 = vsub.f32 %v1731, %v1732
        %v1734 = vand.u32 %v1733, 4294901760
        %1735 = vmatpush1.msra.mxu0 %v1734
        %1736 = vmatprep.subr.mxu0 0.0
        %v1737 = vand.u32 %v491, 4294901760
        %v1738 = vsub.f32 %v491, %v1737
        %v1739 = vand.u32 %v1738, 4294901760
        %v1740 = vsub.f32 %v1738, %v1739
        %v1741 = vand.u32 %v1740, 4294901760
        %1742 = vmatpush1.msra.mxu0 %v1741
        %1743 = vmatprep.subr.mxu0 0.0
        %v1744 = vand.u32 %v492, 4294901760
        %v1745 = vsub.f32 %v492, %v1744
        %v1746 = vand.u32 %v1745, 4294901760
        %v1747 = vsub.f32 %v1745, %v1746
        %v1748 = vand.u32 %v1747, 4294901760
        %1749 = vmatpush1.msra.mxu0 %v1748
        %1750 = vmatprep.subr.mxu0 0.0
        %v1751 = vand.u32 %v493, 4294901760
        %v1752 = vsub.f32 %v493, %v1751
        %v1753 = vand.u32 %v1752, 4294901760
        %v1754 = vsub.f32 %v1752, %v1753
        %v1755 = vand.u32 %v1754, 4294901760
        %1756 = vmatpush1.msra.mxu0 %v1755
        %1757 = vmatprep.subr.mxu0 0.0
        %v1758 = vand.u32 %v494, 4294901760
        %v1759 = vsub.f32 %v494, %v1758
        %v1760 = vand.u32 %v1759, 4294901760
        %v1761 = vsub.f32 %v1759, %v1760
        %v1762 = vand.u32 %v1761, 4294901760
        %1763 = vmatpush1.msra.mxu0 %v1762
        %1764 = vmatprep.subr.mxu0 0.0
        %v1765 = vand.u32 %v495, 4294901760
        %v1766 = vsub.f32 %v495, %v1765
        %v1767 = vand.u32 %v1766, 4294901760
        %v1768 = vsub.f32 %v1766, %v1767
        %v1769 = vand.u32 %v1768, 4294901760
        %1770 = vmatpush1.msra.mxu0 %v1769
        %1771 = vmatprep.subr.mxu0 0.0
        %v1772 = vand.u32 %v496, 4294901760
        %v1773 = vsub.f32 %v496, %v1772
        %v1774 = vand.u32 %v1773, 4294901760
        %v1775 = vsub.f32 %v1773, %v1774
        %v1776 = vand.u32 %v1775, 4294901760
        %1777 = vmatpush1.msra.mxu0 %v1776
        %1778 = vmatprep.subr.mxu0 0.0
        %v1779 = vand.u32 %v497, 4294901760
        %v1780 = vsub.f32 %v497, %v1779
        %v1781 = vand.u32 %v1780, 4294901760
        %v1782 = vsub.f32 %v1780, %v1781
        %v1783 = vand.u32 %v1782, 4294901760
        %1784 = vmatpush1.msra.mxu0 %v1783
        %1785 = vmatprep.subr.mxu0 0.0
        %v1786 = vand.u32 %v498, 4294901760
        %v1787 = vsub.f32 %v498, %v1786
        %v1788 = vand.u32 %v1787, 4294901760
        %v1789 = vsub.f32 %v1787, %v1788
        %v1790 = vand.u32 %v1789, 4294901760
        %1791 = vmatpush1.msra.mxu0 %v1790
        %1792 = vmatprep.subr.mxu0 0.0
        %v1793 = vand.u32 %v499, 4294901760
        %v1794 = vsub.f32 %v499, %v1793
        %v1795 = vand.u32 %v1794, 4294901760
        %v1796 = vsub.f32 %v1794, %v1795
        %v1797 = vand.u32 %v1796, 4294901760
        %1798 = vmatpush1.msra.mxu0 %v1797
        %1799 = vmatprep.subr.mxu0 0.0
        %v1800 = vand.u32 %v500, 4294901760
        %v1801 = vsub.f32 %v500, %v1800
        %v1802 = vand.u32 %v1801, 4294901760
        %v1803 = vsub.f32 %v1801, %v1802
        %v1804 = vand.u32 %v1803, 4294901760
        %1805 = vmatpush1.msra.mxu0 %v1804
        %v1806 = vand.u32 %v218, 4294901760
        %1807 = vmatprep.mubr.f32.mxu0 %v1806
        %v1808 = vand.u32 %v217, 4294901760
        %1809 = vmatmul.mubr.f32.gmra.mrb[0].mxu0 %v1808
        %v1810 = vpop.f32.mrb[0].mxu0
        %v1811 = vadd.f32 %v649, %v1810
        %v1812 = vpop.f32.mrb[0].mxu0
        %v1813 = vand.u32 %v222, 4294901760
        %1814 = vmatprep.mubr.f32.mxu0 %v1813
        %v1815 = vand.u32 %v221, 4294901760
        %1816 = vmatmul.mubr.f32.gmra.mrb[0].mxu0 %v1815
        %v1817 = vpop.f32.mrb[0].mxu0
        %v1818 = vadd.f32 %v664, %v1817
        %v1819 = vpop.f32.mrb[0].mxu0
        %v1820 = vand.u32 %v226, 4294901760
        %1821 = vmatprep.mubr.f32.mxu0 %v1820
        %v1822 = vand.u32 %v225, 4294901760
        %1823 = vmatmul.mubr.f32.gmra.mrb[0].mxu0 %v1822
        %v1824 = vpop.f32.mrb[0].mxu0
        %v1825 = vadd.f32 %v679, %v1824
        %v1826 = vpop.f32.mrb[0].mxu0
        %v1827 = vand.u32 %v230, 4294901760
        %1828 = vmatprep.mubr.f32.mxu0 %v1827
        %v1829 = vand.u32 %v229, 4294901760
        %1830 = vmatmul.mubr.f32.gmra.mrb[0].mxu0 %v1829
        %v1831 = vpop.f32.mrb[0].mxu0
        %v1832 = vadd.f32 %v694, %v1831
        %v1833 = vpop.f32.mrb[0].mxu0
        %v1834 = vand.u32 %v234, 4294901760
        %1835 = vmatprep.mubr.f32.mxu0 %v1834
        %v1836 = vand.u32 %v233, 4294901760
        %1837 = vmatmul.mubr.f32.gmra.mrb[0].mxu0 %v1836
        %v1838 = vpop.f32.mrb[0].mxu0
        %v1839 = vadd.f32 %v709, %v1838
        %v1840 = vpop.f32.mrb[0].mxu0
        %v1841 = vand.u32 %v238, 4294901760
        %1842 = vmatprep.mubr.f32.mxu0 %v1841
        %v1843 = vand.u32 %v237, 4294901760
        %1844 = vmatmul.mubr.f32.gmra.mrb[0].mxu0 %v1843
        %v1845 = vpop.f32.mrb[0].mxu0
        %v1846 = vadd.f32 %v724, %v1845
        %v1847 = vpop.f32.mrb[0].mxu0
        %v1848 = vand.u32 %v242, 4294901760
        %1849 = vmatprep.mubr.f32.mxu0 %v1848
        %v1850 = vand.u32 %v241, 4294901760
        %1851 = vmatmul.mubr.f32.gmra.mrb[0].mxu0 %v1850
        %v1852 = vpop.f32.mrb[0].mxu0
        %v1853 = vadd.f32 %v739, %v1852
        %v1854 = vpop.f32.mrb[0].mxu0
        %v1855 = vand.u32 %v246, 4294901760
        %1856 = vmatprep.mubr.f32.mxu0 %v1855
        %v1857 = vand.u32 %v245, 4294901760
        %1858 = vmatmul.mubr.f32.gmra.mrb[0].mxu0 %v1857
        %v1859 = vpop.f32.mrb[0].mxu0
        %v1860 = vadd.f32 %v754, %v1859
        %v1861 = vpop.f32.mrb[0].mxu0
        %v1862 = vand.u32 %v250, 4294901760
        %1863 = vmatprep.mubr.f32.mxu0 %v1862
        %v1864 = vand.u32 %v249, 4294901760
        %1865 = vmatmul.mubr.f32.gmra.mrb[0].mxu0 %v1864
        %v1866 = vpop.f32.mrb[0].mxu0
        %v1867 = vadd.f32 %v769, %v1866
        %v1868 = vpop.f32.mrb[0].mxu0
        %v1869 = vand.u32 %v254, 4294901760
        %1870 = vmatprep.mubr.f32.mxu0 %v1869
        %v1871 = vand.u32 %v253, 4294901760
        %1872 = vmatmul.mubr.f32.gmra.mrb[0].mxu0 %v1871
        %v1873 = vpop.f32.mrb[0].mxu0
        %v1874 = vadd.f32 %v784, %v1873
        %v1875 = vpop.f32.mrb[0].mxu0
        %v1876 = vand.u32 %v258, 4294901760
        %1877 = vmatprep.mubr.f32.mxu0 %v1876
        %v1878 = vand.u32 %v257, 4294901760
        %1879 = vmatmul.mubr.f32.gmra.mrb[0].mxu0 %v1878
        %v1880 = vpop.f32.mrb[0].mxu0
        %v1881 = vadd.f32 %v799, %v1880
        %v1882 = vpop.f32.mrb[0].mxu0
        %v1883 = vand.u32 %v262, 4294901760
        %1884 = vmatprep.mubr.f32.mxu0 %v1883
        %v1885 = vand.u32 %v261, 4294901760
        %1886 = vmatmul.mubr.f32.gmra.mrb[0].mxu0 %v1885
        %v1887 = vpop.f32.mrb[0].mxu0
        %v1888 = vadd.f32 %v814, %v1887
        %v1889 = vpop.f32.mrb[0].mxu0
        %v1890 = vand.u32 %v266, 4294901760
        %1891 = vmatprep.mubr.f32.mxu0 %v1890
        %v1892 = vand.u32 %v265, 4294901760
        %1893 = vmatmul.mubr.f32.gmra.mrb[0].mxu0 %v1892
        %v1894 = vpop.f32.mrb[0].mxu0
        %v1895 = vadd.f32 %v829, %v1894
        %v1896 = vpop.f32.mrb[0].mxu0
        %v1897 = vand.u32 %v270, 4294901760
        %1898 = vmatprep.mubr.f32.mxu0 %v1897
        %v1899 = vand.u32 %v269, 4294901760
        %1900 = vmatmul.mubr.f32.gmra.mrb[0].mxu0 %v1899
        %v1901 = vpop.f32.mrb[0].mxu0
        %v1902 = vadd.f32 %v844, %v1901
        %v1903 = vpop.f32.mrb[0].mxu0
        %v1904 = vand.u32 %v274, 4294901760
        %1905 = vmatprep.mubr.f32.mxu0 %v1904
        %v1906 = vand.u32 %v273, 4294901760
        %1907 = vmatmul.mubr.f32.gmra.mrb[0].mxu0 %v1906
        %v1908 = vpop.f32.mrb[0].mxu0
        %v1909 = vadd.f32 %v859, %v1908
        %v1910 = vpop.f32.mrb[0].mxu0
        %v1911 = vand.u32 %v278, 4294901760
        %1912 = vmatprep.mubr.f32.mxu0 %v1911
        %v1913 = vand.u32 %v277, 4294901760
        %1914 = vmatmul.mubr.f32.gmra.mrb[0].mxu0 %v1913
        %v1915 = vpop.f32.mrb[0].mxu0
        %v1916 = vadd.f32 %v874, %v1915
        %v1917 = vpop.f32.mrb[0].mxu0
        %v1918 = vand.u32 %v282, 4294901760
        %1919 = vmatprep.mubr.f32.mxu0 %v1918
        %v1920 = vand.u32 %v281, 4294901760
        %1921 = vmatmul.mubr.f32.gmra.mrb[0].mxu0 %v1920
        %v1922 = vpop.f32.mrb[0].mxu0
        %v1923 = vadd.f32 %v889, %v1922
        %v1924 = vpop.f32.mrb[0].mxu0
        %v1925 = vand.u32 %v286, 4294901760
        %1926 = vmatprep.mubr.f32.mxu0 %v1925
        %v1927 = vand.u32 %v285, 4294901760
        %1928 = vmatmul.mubr.f32.gmra.mrb[0].mxu0 %v1927
        %v1929 = vpop.f32.mrb[0].mxu0
        %v1930 = vadd.f32 %v904, %v1929
        %v1931 = vpop.f32.mrb[0].mxu0
        %v1932 = vand.u32 %v290, 4294901760
        %1933 = vmatprep.mubr.f32.mxu0 %v1932
        %v1934 = vand.u32 %v289, 4294901760
        %1935 = vmatmul.mubr.f32.gmra.mrb[0].mxu0 %v1934
        %v1936 = vpop.f32.mrb[0].mxu0
        %v1937 = vadd.f32 %v919, %v1936
        %v1938 = vpop.f32.mrb[0].mxu0
        %v1939 = vand.u32 %v294, 4294901760
        %1940 = vmatprep.mubr.f32.mxu0 %v1939
        %v1941 = vand.u32 %v293, 4294901760
        %1942 = vmatmul.mubr.f32.gmra.mrb[0].mxu0 %v1941
        %v1943 = vpop.f32.mrb[0].mxu0
        %v1944 = vadd.f32 %v934, %v1943
        %v1945 = vpop.f32.mrb[0].mxu0
        %v1946 = vand.u32 %v298, 4294901760
        %1947 = vmatprep.mubr.f32.mxu0 %v1946
        %v1948 = vand.u32 %v297, 4294901760
        %1949 = vmatmul.mubr.f32.gmra.mrb[0].mxu0 %v1948
        %v1950 = vpop.f32.mrb[0].mxu0
        %v1951 = vadd.f32 %v949, %v1950
        %v1952 = vpop.f32.mrb[0].mxu0
        %v1953 = vand.u32 %v302, 4294901760
        %1954 = vmatprep.mubr.f32.mxu0 %v1953
        %v1955 = vand.u32 %v301, 4294901760
        %1956 = vmatmul.mubr.f32.gmra.mrb[0].mxu0 %v1955
        %v1957 = vpop.f32.mrb[0].mxu0
        %v1958 = vadd.f32 %v964, %v1957
        %v1959 = vpop.f32.mrb[0].mxu0
        %v1960 = vand.u32 %v306, 4294901760
        %1961 = vmatprep.mubr.f32.mxu0 %v1960
        %v1962 = vand.u32 %v305, 4294901760
        %1963 = vmatmul.mubr.f32.gmra.mrb[0].mxu0 %v1962
        %v1964 = vpop.f32.mrb[0].mxu0
        %v1965 = vadd.f32 %v979, %v1964
        %v1966 = vpop.f32.mrb[0].mxu0
        %v1967 = vand.u32 %v310, 4294901760
        %1968 = vmatprep.mubr.f32.mxu0 %v1967
        %v1969 = vand.u32 %v309, 4294901760
        %1970 = vmatmul.mubr.f32.gmra.mrb[0].mxu0 %v1969
        %v1971 = vpop.f32.mrb[0].mxu0
        %v1972 = vadd.f32 %v994, %v1971
        %v1973 = vpop.f32.mrb[0].mxu0
        %v1974 = vand.u32 %v314, 4294901760
        %1975 = vmatprep.mubr.f32.mxu0 %v1974
        %v1976 = vand.u32 %v313, 4294901760
        %1977 = vmatmul.mubr.f32.gmra.mrb[0].mxu0 %v1976
        %v1978 = vpop.f32.mrb[0].mxu0
        %v1979 = vadd.f32 %v1009, %v1978
        %v1980 = vpop.f32.mrb[0].mxu0
        %v1981 = vand.u32 %v318, 4294901760
        %1982 = vmatprep.mubr.f32.mxu0 %v1981
        %v1983 = vand.u32 %v317, 4294901760
        %1984 = vmatmul.mubr.f32.gmra.mrb[0].mxu0 %v1983
        %v1985 = vpop.f32.mrb[0].mxu0
        %v1986 = vadd.f32 %v1024, %v1985
        %v1987 = vpop.f32.mrb[0].mxu0
        %v1988 = vand.u32 %v322, 4294901760
        %1989 = vmatprep.mubr.f32.mxu0 %v1988
        %v1990 = vand.u32 %v321, 4294901760
        %1991 = vmatmul.mubr.f32.gmra.mrb[0].mxu0 %v1990
        %v1992 = vpop.f32.mrb[0].mxu0
        %v1993 = vadd.f32 %v1039, %v1992
        %v1994 = vpop.f32.mrb[0].mxu0
        %v1995 = vand.u32 %v326, 4294901760
        %1996 = vmatprep.mubr.f32.mxu0 %v1995
        %v1997 = vand.u32 %v325, 4294901760
        %1998 = vmatmul.mubr.f32.gmra.mrb[0].mxu0 %v1997
        %v1999 = vpop.f32.mrb[0].mxu0
        %v2000 = vadd.f32 %v1054, %v1999
        %v2001 = vpop.f32.mrb[0].mxu0
        %v2002 = vand.u32 %v330, 4294901760
        %2003 = vmatprep.mubr.f32.mxu0 %v2002
        %v2004 = vand.u32 %v329, 4294901760
        %2005 = vmatmul.mubr.f32.gmra.mrb[0].mxu0 %v2004
        %v2006 = vpop.f32.mrb[0].mxu0
        %v2007 = vadd.f32 %v1069, %v2006
        %v2008 = vpop.f32.mrb[0].mxu0
        %v2009 = vand.u32 %v334, 4294901760
        %2010 = vmatprep.mubr.f32.mxu0 %v2009
        %v2011 = vand.u32 %v333, 4294901760
        %2012 = vmatmul.mubr.f32.gmra.mrb[0].mxu0 %v2011
        %v2013 = vpop.f32.mrb[0].mxu0
        %v2014 = vadd.f32 %v1084, %v2013
        %v2015 = vpop.f32.mrb[0].mxu0
        %v2016 = vand.u32 %v338, 4294901760
        %2017 = vmatprep.mubr.f32.mxu0 %v2016
        %v2018 = vand.u32 %v337, 4294901760
        %2019 = vmatmul.mubr.f32.gmra.mrb[0].mxu0 %v2018
        %v2020 = vpop.f32.mrb[0].mxu0
        %v2021 = vadd.f32 %v1099, %v2020
        %v2022 = vpop.f32.mrb[0].mxu0
        %v2023 = vand.u32 %v342, 4294901760
        %2024 = vmatprep.mubr.f32.mxu0 %v2023
        %v2025 = vand.u32 %v341, 4294901760
        %2026 = vmatmul.mubr.f32.gmra.mrb[0].mxu0 %v2025
        %v2027 = vpop.f32.mrb[0].mxu0
        %v2028 = vadd.f32 %v1114, %v2027
        %v2029 = vpop.f32.mrb[0].mxu0
        %v2030 = vand.u32 %v346, 4294901760
        %2031 = vmatprep.mubr.f32.mxu0 %v2030
        %v2032 = vand.u32 %v345, 4294901760
        %2033 = vmatmul.mubr.f32.gmra.mrb[0].mxu0 %v2032
        %v2034 = vpop.f32.mrb[0].mxu0
        %v2035 = vadd.f32 %v1129, %v2034
        %v2036 = vpop.f32.mrb[0].mxu0
        %v2037 = vand.u32 %v350, 4294901760
        %2038 = vmatprep.mubr.f32.mxu0 %v2037
        %v2039 = vand.u32 %v349, 4294901760
        %2040 = vmatmul.mubr.f32.gmra.mrb[0].mxu0 %v2039
        %v2041 = vpop.f32.mrb[0].mxu0
        %v2042 = vadd.f32 %v1144, %v2041
        %v2043 = vpop.f32.mrb[0].mxu0
        %v2044 = vand.u32 %v354, 4294901760
        %2045 = vmatprep.mubr.f32.mxu0 %v2044
        %v2046 = vand.u32 %v353, 4294901760
        %2047 = vmatmul.mubr.f32.gmra.mrb[0].mxu0 %v2046
        %v2048 = vpop.f32.mrb[0].mxu0
        %v2049 = vadd.f32 %v1159, %v2048
        %v2050 = vpop.f32.mrb[0].mxu0
        %v2051 = vand.u32 %v358, 4294901760
        %2052 = vmatprep.mubr.f32.mxu0 %v2051
        %v2053 = vand.u32 %v357, 4294901760
        %2054 = vmatmul.mubr.f32.gmra.mrb[0].mxu0 %v2053
        %v2055 = vpop.f32.mrb[0].mxu0
        %v2056 = vadd.f32 %v1174, %v2055
        %v2057 = vpop.f32.mrb[0].mxu0
        %v2058 = vand.u32 %v362, 4294901760
        %2059 = vmatprep.mubr.f32.mxu0 %v2058
        %v2060 = vand.u32 %v361, 4294901760
        %2061 = vmatmul.mubr.f32.gmra.mrb[0].mxu0 %v2060
        %v2062 = vpop.f32.mrb[0].mxu0
        %v2063 = vadd.f32 %v1189, %v2062
        %v2064 = vpop.f32.mrb[0].mxu0
        %v2065 = vand.u32 %v366, 4294901760
        %2066 = vmatprep.mubr.f32.mxu0 %v2065
        %v2067 = vand.u32 %v365, 4294901760
        %2068 = vmatmul.mubr.f32.gmra.mrb[0].mxu0 %v2067
        %v2069 = vpop.f32.mrb[0].mxu0
        %v2070 = vadd.f32 %v1204, %v2069
        %v2071 = vpop.f32.mrb[0].mxu0
        %v2072 = vand.u32 %v370, 4294901760
        %2073 = vmatprep.mubr.f32.mxu0 %v2072
        %v2074 = vand.u32 %v369, 4294901760
        %2075 = vmatmul.mubr.f32.gmra.mrb[0].mxu0 %v2074
        %v2076 = vpop.f32.mrb[0].mxu0
        %v2077 = vadd.f32 %v1219, %v2076
        %v2078 = vpop.f32.mrb[0].mxu0
        %v2079 = vand.u32 %v374, 4294901760
        %2080 = vmatprep.mubr.f32.mxu0 %v2079
        %v2081 = vand.u32 %v373, 4294901760
        %2082 = vmatmul.mubr.f32.gmra.mrb[0].mxu0 %v2081
        %v2083 = vpop.f32.mrb[0].mxu0
        %v2084 = vadd.f32 %v1234, %v2083
        %v2085 = vpop.f32.mrb[0].mxu0
        %v2086 = vand.u32 %v378, 4294901760
        %2087 = vmatprep.mubr.f32.mxu0 %v2086
        %v2088 = vand.u32 %v377, 4294901760
        %2089 = vmatmul.mubr.f32.gmra.mrb[0].mxu0 %v2088
        %v2090 = vpop.f32.mrb[0].mxu0
        %v2091 = vadd.f32 %v1249, %v2090
        %v2092 = vpop.f32.mrb[0].mxu0
        %v2093 = vand.u32 %v382, 4294901760
        %2094 = vmatprep.mubr.f32.mxu0 %v2093
        %v2095 = vand.u32 %v381, 4294901760
        %2096 = vmatmul.mubr.f32.gmra.mrb[0].mxu0 %v2095
        %v2097 = vpop.f32.mrb[0].mxu0
        %v2098 = vadd.f32 %v1264, %v2097
        %v2099 = vpop.f32.mrb[0].mxu0
        %v2100 = vand.u32 %v386, 4294901760
        %2101 = vmatprep.mubr.f32.mxu0 %v2100
        %v2102 = vand.u32 %v385, 4294901760
        %2103 = vmatmul.mubr.f32.gmra.mrb[0].mxu0 %v2102
        %v2104 = vpop.f32.mrb[0].mxu0
        %v2105 = vadd.f32 %v1279, %v2104
        %v2106 = vpop.f32.mrb[0].mxu0
        %v2107 = vand.u32 %v390, 4294901760
        %2108 = vmatprep.mubr.f32.mxu0 %v2107
        %v2109 = vand.u32 %v389, 4294901760
        %2110 = vmatmul.mubr.f32.gmra.mrb[0].mxu0 %v2109
        %v2111 = vpop.f32.mrb[0].mxu0
        %v2112 = vadd.f32 %v1294, %v2111
        %v2113 = vpop.f32.mrb[0].mxu0
        %v2114 = vand.u32 %v394, 4294901760
        %2115 = vmatprep.mubr.f32.mxu0 %v2114
        %v2116 = vand.u32 %v393, 4294901760
        %2117 = vmatmul.mubr.f32.gmra.mrb[0].mxu0 %v2116
        %v2118 = vpop.f32.mrb[0].mxu0
        %v2119 = vadd.f32 %v1309, %v2118
        %v2120 = vpop.f32.mrb[0].mxu0
        %v2121 = vand.u32 %v398, 4294901760
        %2122 = vmatprep.mubr.f32.mxu0 %v2121
        %v2123 = vand.u32 %v397, 4294901760
        %2124 = vmatmul.mubr.f32.gmra.mrb[0].mxu0 %v2123
        %v2125 = vpop.f32.mrb[0].mxu0
        %v2126 = vadd.f32 %v1324, %v2125
        %v2127 = vpop.f32.mrb[0].mxu0
        %v2128 = vand.u32 %v402, 4294901760
        %2129 = vmatprep.mubr.f32.mxu0 %v2128
        %v2130 = vand.u32 %v401, 4294901760
        %2131 = vmatmul.mubr.f32.gmra.mrb[0].mxu0 %v2130
        %v2132 = vpop.f32.mrb[0].mxu0
        %v2133 = vadd.f32 %v1339, %v2132
        %v2134 = vpop.f32.mrb[0].mxu0
        %v2135 = vand.u32 %v406, 4294901760
        %2136 = vmatprep.mubr.f32.mxu0 %v2135
        %v2137 = vand.u32 %v405, 4294901760
        %2138 = vmatmul.mubr.f32.gmra.mrb[0].mxu0 %v2137
        %v2139 = vpop.f32.mrb[0].mxu0
        %v2140 = vadd.f32 %v1354, %v2139
        %v2141 = vpop.f32.mrb[0].mxu0
        %v2142 = vand.u32 %v410, 4294901760
        %2143 = vmatprep.mubr.f32.mxu0 %v2142
        %v2144 = vand.u32 %v409, 4294901760
        %2145 = vmatmul.mubr.f32.gmra.mrb[0].mxu0 %v2144
        %v2146 = vpop.f32.mrb[0].mxu0
        %v2147 = vadd.f32 %v1369, %v2146
        %v2148 = vpop.f32.mrb[0].mxu0
        %v2149 = vand.u32 %v414, 4294901760
        %2150 = vmatprep.mubr.f32.mxu0 %v2149
        %v2151 = vand.u32 %v413, 4294901760
        %2152 = vmatmul.mubr.f32.gmra.mrb[0].mxu0 %v2151
        %v2153 = vpop.f32.mrb[0].mxu0
        %v2154 = vadd.f32 %v1384, %v2153
        %v2155 = vpop.f32.mrb[0].mxu0
        %v2156 = vand.u32 %v418, 4294901760
        %2157 = vmatprep.mubr.f32.mxu0 %v2156
        %v2158 = vand.u32 %v417, 4294901760
        %2159 = vmatmul.mubr.f32.gmra.mrb[0].mxu0 %v2158
        %v2160 = vpop.f32.mrb[0].mxu0
        %v2161 = vadd.f32 %v1399, %v2160
        %v2162 = vpop.f32.mrb[0].mxu0
        %v2163 = vand.u32 %v422, 4294901760
        %2164 = vmatprep.mubr.f32.mxu0 %v2163
        %v2165 = vand.u32 %v421, 4294901760
        %2166 = vmatmul.mubr.f32.gmra.mrb[0].mxu0 %v2165
        %v2167 = vpop.f32.mrb[0].mxu0
        %v2168 = vadd.f32 %v1414, %v2167
        %v2169 = vpop.f32.mrb[0].mxu0
        %v2170 = vand.u32 %v426, 4294901760
        %2171 = vmatprep.mubr.f32.mxu0 %v2170
        %v2172 = vand.u32 %v425, 4294901760
        %2173 = vmatmul.mubr.f32.gmra.mrb[0].mxu0 %v2172
        %v2174 = vpop.f32.mrb[0].mxu0
        %v2175 = vadd.f32 %v1429, %v2174
        %v2176 = vpop.f32.mrb[0].mxu0
        %v2177 = vand.u32 %v430, 4294901760
        %2178 = vmatprep.mubr.f32.mxu0 %v2177
        %v2179 = vand.u32 %v429, 4294901760
        %2180 = vmatmul.mubr.f32.gmra.mrb[0].mxu0 %v2179
        %v2181 = vpop.f32.mrb[0].mxu0
        %v2182 = vadd.f32 %v1444, %v2181
        %v2183 = vpop.f32.mrb[0].mxu0
        %v2184 = vand.u32 %v434, 4294901760
        %2185 = vmatprep.mubr.f32.mxu0 %v2184
        %v2186 = vand.u32 %v433, 4294901760
        %2187 = vmatmul.mubr.f32.gmra.mrb[0].mxu0 %v2186
        %v2188 = vpop.f32.mrb[0].mxu0
        %v2189 = vadd.f32 %v1459, %v2188
        %v2190 = vpop.f32.mrb[0].mxu0
        %v2191 = vand.u32 %v438, 4294901760
        %2192 = vmatprep.mubr.f32.mxu0 %v2191
        %v2193 = vand.u32 %v437, 4294901760
        %2194 = vmatmul.mubr.f32.gmra.mrb[0].mxu0 %v2193
        %v2195 = vpop.f32.mrb[0].mxu0
        %v2196 = vadd.f32 %v1474, %v2195
        %v2197 = vpop.f32.mrb[0].mxu0
        %v2198 = vand.u32 %v442, 4294901760
        %2199 = vmatprep.mubr.f32.mxu0 %v2198
        %v2200 = vand.u32 %v441, 4294901760
        %2201 = vmatmul.mubr.f32.gmra.mrb[0].mxu0 %v2200
        %v2202 = vpop.f32.mrb[0].mxu0
        %v2203 = vadd.f32 %v1489, %v2202
        %v2204 = vpop.f32.mrb[0].mxu0
        %v2205 = vand.u32 %v446, 4294901760
        %2206 = vmatprep.mubr.f32.mxu0 %v2205
        %v2207 = vand.u32 %v445, 4294901760
        %2208 = vmatmul.mubr.f32.gmra.mrb[0].mxu0 %v2207
        %v2209 = vpop.f32.mrb[0].mxu0
        %v2210 = vadd.f32 %v1504, %v2209
        %v2211 = vpop.f32.mrb[0].mxu0
        %v2212 = vand.u32 %v450, 4294901760
        %2213 = vmatprep.mubr.f32.mxu0 %v2212
        %v2214 = vand.u32 %v449, 4294901760
        %2215 = vmatmul.mubr.f32.gmra.mrb[0].mxu0 %v2214
        %v2216 = vpop.f32.mrb[0].mxu0
        %v2217 = vadd.f32 %v1519, %v2216
        %v2218 = vpop.f32.mrb[0].mxu0
        %v2219 = vand.u32 %v454, 4294901760
        %2220 = vmatprep.mubr.f32.mxu0 %v2219
        %v2221 = vand.u32 %v453, 4294901760
        %2222 = vmatmul.mubr.f32.gmra.mrb[0].mxu0 %v2221
        %v2223 = vpop.f32.mrb[0].mxu0
        %v2224 = vadd.f32 %v1534, %v2223
        %v2225 = vpop.f32.mrb[0].mxu0
        %v2226 = vand.u32 %v458, 4294901760
        %2227 = vmatprep.mubr.f32.mxu0 %v2226
        %v2228 = vand.u32 %v457, 4294901760
        %2229 = vmatmul.mubr.f32.gmra.mrb[0].mxu0 %v2228
        %v2230 = vpop.f32.mrb[0].mxu0
        %v2231 = vadd.f32 %v1549, %v2230
        %v2232 = vpop.f32.mrb[0].mxu0
        %v2233 = vand.u32 %v462, 4294901760
        %2234 = vmatprep.mubr.f32.mxu0 %v2233
        %v2235 = vand.u32 %v461, 4294901760
        %2236 = vmatmul.mubr.f32.gmra.mrb[0].mxu0 %v2235
        %v2237 = vpop.f32.mrb[0].mxu0
        %v2238 = vadd.f32 %v1564, %v2237
        %v2239 = vpop.f32.mrb[0].mxu0
        %v2240 = vand.u32 %v466, 4294901760
        %2241 = vmatprep.mubr.f32.mxu0 %v2240
        %v2242 = vand.u32 %v465, 4294901760
        %2243 = vmatmul.mubr.f32.gmra.mrb[0].mxu0 %v2242
        %v2244 = vpop.f32.mrb[0].mxu0
        %v2245 = vadd.f32 %v1579, %v2244
        %v2246 = vpop.f32.mrb[0].mxu0
        %2247 = vdwg.mxu0
        %2248 = vmatprep.subr.mxu0 0.0
        %v2249 = vand.u32 %v469, 4294901760
        %v2250 = vsub.f32 %v469, %v2249
        %2251 = vmatpush1.msra.mxu0 %v2250
        %2252 = vmatprep.subr.mxu0 0.0
        %v2253 = vand.u32 %v470, 4294901760
        %v2254 = vsub.f32 %v470, %v2253
        %2255 = vmatpush1.msra.mxu0 %v2254
        %2256 = vmatprep.subr.mxu0 0.0
        %v2257 = vand.u32 %v471, 4294901760
        %v2258 = vsub.f32 %v471, %v2257
        %2259 = vmatpush1.msra.mxu0 %v2258
        %2260 = vmatprep.subr.mxu0 0.0
        %v2261 = vand.u32 %v472, 4294901760
        %v2262 = vsub.f32 %v472, %v2261
        %2263 = vmatpush1.msra.mxu0 %v2262
        %2264 = vmatprep.subr.mxu0 0.0
        %v2265 = vand.u32 %v473, 4294901760
        %v2266 = vsub.f32 %v473, %v2265
        %2267 = vmatpush1.msra.mxu0 %v2266
        %2268 = vmatprep.subr.mxu0 0.0
        %v2269 = vand.u32 %v474, 4294901760
        %v2270 = vsub.f32 %v474, %v2269
        %2271 = vmatpush1.msra.mxu0 %v2270
        %2272 = vmatprep.subr.mxu0 0.0
        %v2273 = vand.u32 %v475, 4294901760
        %v2274 = vsub.f32 %v475, %v2273
        %2275 = vmatpush1.msra.mxu0 %v2274
        %2276 = vmatprep.subr.mxu0 0.0
        %v2277 = vand.u32 %v476, 4294901760
        %v2278 = vsub.f32 %v476, %v2277
        %2279 = vmatpush1.msra.mxu0 %v2278
        %2280 = vmatprep.subr.mxu0 0.0
        %v2281 = vand.u32 %v477, 4294901760
        %v2282 = vsub.f32 %v477, %v2281
        %2283 = vmatpush1.msra.mxu0 %v2282
        %2284 = vmatprep.subr.mxu0 0.0
        %v2285 = vand.u32 %v478, 4294901760
        %v2286 = vsub.f32 %v478, %v2285
        %2287 = vmatpush1.msra.mxu0 %v2286
        %2288 = vmatprep.subr.mxu0 0.0
        %v2289 = vand.u32 %v479, 4294901760
        %v2290 = vsub.f32 %v479, %v2289
        %2291 = vmatpush1.msra.mxu0 %v2290
        %2292 = vmatprep.subr.mxu0 0.0
        %v2293 = vand.u32 %v480, 4294901760
        %v2294 = vsub.f32 %v480, %v2293
        %2295 = vmatpush1.msra.mxu0 %v2294
        %2296 = vmatprep.subr.mxu0 0.0
        %v2297 = vand.u32 %v481, 4294901760
        %v2298 = vsub.f32 %v481, %v2297
        %2299 = vmatpush1.msra.mxu0 %v2298
        %2300 = vmatprep.subr.mxu0 0.0
        %v2301 = vand.u32 %v482, 4294901760
        %v2302 = vsub.f32 %v482, %v2301
        %2303 = vmatpush1.msra.mxu0 %v2302
        %2304 = vmatprep.subr.mxu0 0.0
        %v2305 = vand.u32 %v483, 4294901760
        %v2306 = vsub.f32 %v483, %v2305
        %2307 = vmatpush1.msra.mxu0 %v2306
        %2308 = vmatprep.subr.mxu0 0.0
        %v2309 = vand.u32 %v484, 4294901760
        %v2310 = vsub.f32 %v484, %v2309
        %2311 = vmatpush1.msra.mxu0 %v2310
        %2312 = vmatprep.subr.mxu0 0.0
        %v2313 = vand.u32 %v485, 4294901760
        %v2314 = vsub.f32 %v485, %v2313
        %2315 = vmatpush1.msra.mxu0 %v2314
        %2316 = vmatprep.subr.mxu0 0.0
        %v2317 = vand.u32 %v486, 4294901760
        %v2318 = vsub.f32 %v486, %v2317
        %2319 = vmatpush1.msra.mxu0 %v2318
        %2320 = vmatprep.subr.mxu0 0.0
        %v2321 = vand.u32 %v487, 4294901760
        %v2322 = vsub.f32 %v487, %v2321
        %2323 = vmatpush1.msra.mxu0 %v2322
        %2324 = vmatprep.subr.mxu0 0.0
        %v2325 = vand.u32 %v488, 4294901760
        %v2326 = vsub.f32 %v488, %v2325
        %2327 = vmatpush1.msra.mxu0 %v2326
        %2328 = vmatprep.subr.mxu0 0.0
        %v2329 = vand.u32 %v489, 4294901760
        %v2330 = vsub.f32 %v489, %v2329
        %2331 = vmatpush1.msra.mxu0 %v2330
        %2332 = vmatprep.subr.mxu0 0.0
        %v2333 = vand.u32 %v490, 4294901760
        %v2334 = vsub.f32 %v490, %v2333
        %2335 = vmatpush1.msra.mxu0 %v2334
        %2336 = vmatprep.subr.mxu0 0.0
        %v2337 = vand.u32 %v491, 4294901760
        %v2338 = vsub.f32 %v491, %v2337
        %2339 = vmatpush1.msra.mxu0 %v2338
        %2340 = vmatprep.subr.mxu0 0.0
        %v2341 = vand.u32 %v492, 4294901760
        %v2342 = vsub.f32 %v492, %v2341
        %2343 = vmatpush1.msra.mxu0 %v2342
        %2344 = vmatprep.subr.mxu0 0.0
        %v2345 = vand.u32 %v493, 4294901760
        %v2346 = vsub.f32 %v493, %v2345
        %2347 = vmatpush1.msra.mxu0 %v2346
        %2348 = vmatprep.subr.mxu0 0.0
        %v2349 = vand.u32 %v494, 4294901760
        %v2350 = vsub.f32 %v494, %v2349
        %2351 = vmatpush1.msra.mxu0 %v2350
        %2352 = vmatprep.subr.mxu0 0.0
        %v2353 = vand.u32 %v495, 4294901760
        %v2354 = vsub.f32 %v495, %v2353
        %2355 = vmatpush1.msra.mxu0 %v2354
        %2356 = vmatprep.subr.mxu0 0.0
        %v2357 = vand.u32 %v496, 4294901760
        %v2358 = vsub.f32 %v496, %v2357
        %2359 = vmatpush1.msra.mxu0 %v2358
        %2360 = vmatprep.subr.mxu0 0.0
        %v2361 = vand.u32 %v497, 4294901760
        %v2362 = vsub.f32 %v497, %v2361
        %2363 = vmatpush1.msra.mxu0 %v2362
        %2364 = vmatprep.subr.mxu0 0.0
        %v2365 = vand.u32 %v498, 4294901760
        %v2366 = vsub.f32 %v498, %v2365
        %2367 = vmatpush1.msra.mxu0 %v2366
        %2368 = vmatprep.subr.mxu0 0.0
        %v2369 = vand.u32 %v499, 4294901760
        %v2370 = vsub.f32 %v499, %v2369
        %2371 = vmatpush1.msra.mxu0 %v2370
        %2372 = vmatprep.subr.mxu0 0.0
        %v2373 = vand.u32 %v500, 4294901760
        %v2374 = vsub.f32 %v500, %v2373
        %2375 = vmatpush1.msra.mxu0 %v2374
        %v2376 = vand.u32 %v218, 4294901760
        %v2377 = vsub.f32 %v218, %v2376
        %2378 = vmatprep.mubr.f32.mxu0 %v2377
        %v2379 = vand.u32 %v217, 4294901760
        %v2380 = vsub.f32 %v217, %v2379
        %2381 = vmatmul.mubr.f32.gmra.mrb[0].mxu0 %v2380
        %v2382 = vpop.f32.mrb[0].mxu0
        %v2383 = vadd.f32 %v1811, %v2382
        %v2384 = vpop.f32.mrb[0].mxu0
        %v2385 = vand.u32 %v222, 4294901760
        %v2386 = vsub.f32 %v222, %v2385
        %2387 = vmatprep.mubr.f32.mxu0 %v2386
        %v2388 = vand.u32 %v221, 4294901760
        %v2389 = vsub.f32 %v221, %v2388
        %2390 = vmatmul.mubr.f32.gmra.mrb[0].mxu0 %v2389
        %v2391 = vpop.f32.mrb[0].mxu0
        %v2392 = vadd.f32 %v1818, %v2391
        %v2393 = vpop.f32.mrb[0].mxu0
        %v2394 = vand.u32 %v226, 4294901760
        %v2395 = vsub.f32 %v226, %v2394
        %2396 = vmatprep.mubr.f32.mxu0 %v2395
        %v2397 = vand.u32 %v225, 4294901760
        %v2398 = vsub.f32 %v225, %v2397
        %2399 = vmatmul.mubr.f32.gmra.mrb[0].mxu0 %v2398
        %v2400 = vpop.f32.mrb[0].mxu0
        %v2401 = vadd.f32 %v1825, %v2400
        %v2402 = vpop.f32.mrb[0].mxu0
        %v2403 = vand.u32 %v230, 4294901760
        %v2404 = vsub.f32 %v230, %v2403
        %2405 = vmatprep.mubr.f32.mxu0 %v2404
        %v2406 = vand.u32 %v229, 4294901760
        %v2407 = vsub.f32 %v229, %v2406
        %2408 = vmatmul.mubr.f32.gmra.mrb[0].mxu0 %v2407
        %v2409 = vpop.f32.mrb[0].mxu0
        %v2410 = vadd.f32 %v1832, %v2409
        %v2411 = vpop.f32.mrb[0].mxu0
        %v2412 = vand.u32 %v234, 4294901760
        %v2413 = vsub.f32 %v234, %v2412
        %2414 = vmatprep.mubr.f32.mxu0 %v2413
        %v2415 = vand.u32 %v233, 4294901760
        %v2416 = vsub.f32 %v233, %v2415
        %2417 = vmatmul.mubr.f32.gmra.mrb[0].mxu0 %v2416
        %v2418 = vpop.f32.mrb[0].mxu0
        %v2419 = vadd.f32 %v1839, %v2418
        %v2420 = vpop.f32.mrb[0].mxu0
        %v2421 = vand.u32 %v238, 4294901760
        %v2422 = vsub.f32 %v238, %v2421
        %2423 = vmatprep.mubr.f32.mxu0 %v2422
        %v2424 = vand.u32 %v237, 4294901760
        %v2425 = vsub.f32 %v237, %v2424
        %2426 = vmatmul.mubr.f32.gmra.mrb[0].mxu0 %v2425
        %v2427 = vpop.f32.mrb[0].mxu0
        %v2428 = vadd.f32 %v1846, %v2427
        %v2429 = vpop.f32.mrb[0].mxu0
        %v2430 = vand.u32 %v242, 4294901760
        %v2431 = vsub.f32 %v242, %v2430
        %2432 = vmatprep.mubr.f32.mxu0 %v2431
        %v2433 = vand.u32 %v241, 4294901760
        %v2434 = vsub.f32 %v241, %v2433
        %2435 = vmatmul.mubr.f32.gmra.mrb[0].mxu0 %v2434
        %v2436 = vpop.f32.mrb[0].mxu0
        %v2437 = vadd.f32 %v1853, %v2436
        %v2438 = vpop.f32.mrb[0].mxu0
        %v2439 = vand.u32 %v246, 4294901760
        %v2440 = vsub.f32 %v246, %v2439
        %2441 = vmatprep.mubr.f32.mxu0 %v2440
        %v2442 = vand.u32 %v245, 4294901760
        %v2443 = vsub.f32 %v245, %v2442
        %2444 = vmatmul.mubr.f32.gmra.mrb[0].mxu0 %v2443
        %v2445 = vpop.f32.mrb[0].mxu0
        %v2446 = vadd.f32 %v1860, %v2445
        %v2447 = vpop.f32.mrb[0].mxu0
        %v2448 = vand.u32 %v250, 4294901760
        %v2449 = vsub.f32 %v250, %v2448
        %2450 = vmatprep.mubr.f32.mxu0 %v2449
        %v2451 = vand.u32 %v249, 4294901760
        %v2452 = vsub.f32 %v249, %v2451
        %2453 = vmatmul.mubr.f32.gmra.mrb[0].mxu0 %v2452
        %v2454 = vpop.f32.mrb[0].mxu0
        %v2455 = vadd.f32 %v1867, %v2454
        %v2456 = vpop.f32.mrb[0].mxu0
        %v2457 = vand.u32 %v254, 4294901760
        %v2458 = vsub.f32 %v254, %v2457
        %2459 = vmatprep.mubr.f32.mxu0 %v2458
        %v2460 = vand.u32 %v253, 4294901760
        %v2461 = vsub.f32 %v253, %v2460
        %2462 = vmatmul.mubr.f32.gmra.mrb[0].mxu0 %v2461
        %v2463 = vpop.f32.mrb[0].mxu0
        %v2464 = vadd.f32 %v1874, %v2463
        %v2465 = vpop.f32.mrb[0].mxu0
        %v2466 = vand.u32 %v258, 4294901760
        %v2467 = vsub.f32 %v258, %v2466
        %2468 = vmatprep.mubr.f32.mxu0 %v2467
        %v2469 = vand.u32 %v257, 4294901760
        %v2470 = vsub.f32 %v257, %v2469
        %2471 = vmatmul.mubr.f32.gmra.mrb[0].mxu0 %v2470
        %v2472 = vpop.f32.mrb[0].mxu0
        %v2473 = vadd.f32 %v1881, %v2472
        %v2474 = vpop.f32.mrb[0].mxu0
        %v2475 = vand.u32 %v262, 4294901760
        %v2476 = vsub.f32 %v262, %v2475
        %2477 = vmatprep.mubr.f32.mxu0 %v2476
        %v2478 = vand.u32 %v261, 4294901760
        %v2479 = vsub.f32 %v261, %v2478
        %2480 = vmatmul.mubr.f32.gmra.mrb[0].mxu0 %v2479
        %v2481 = vpop.f32.mrb[0].mxu0
        %v2482 = vadd.f32 %v1888, %v2481
        %v2483 = vpop.f32.mrb[0].mxu0
        %v2484 = vand.u32 %v266, 4294901760
        %v2485 = vsub.f32 %v266, %v2484
        %2486 = vmatprep.mubr.f32.mxu0 %v2485
        %v2487 = vand.u32 %v265, 4294901760
        %v2488 = vsub.f32 %v265, %v2487
        %2489 = vmatmul.mubr.f32.gmra.mrb[0].mxu0 %v2488
        %v2490 = vpop.f32.mrb[0].mxu0
        %v2491 = vadd.f32 %v1895, %v2490
        %v2492 = vpop.f32.mrb[0].mxu0
        %v2493 = vand.u32 %v270, 4294901760
        %v2494 = vsub.f32 %v270, %v2493
        %2495 = vmatprep.mubr.f32.mxu0 %v2494
        %v2496 = vand.u32 %v269, 4294901760
        %v2497 = vsub.f32 %v269, %v2496
        %2498 = vmatmul.mubr.f32.gmra.mrb[0].mxu0 %v2497
        %v2499 = vpop.f32.mrb[0].mxu0
        %v2500 = vadd.f32 %v1902, %v2499
        %v2501 = vpop.f32.mrb[0].mxu0
        %v2502 = vand.u32 %v274, 4294901760
        %v2503 = vsub.f32 %v274, %v2502
        %2504 = vmatprep.mubr.f32.mxu0 %v2503
        %v2505 = vand.u32 %v273, 4294901760
        %v2506 = vsub.f32 %v273, %v2505
        %2507 = vmatmul.mubr.f32.gmra.mrb[0].mxu0 %v2506
        %v2508 = vpop.f32.mrb[0].mxu0
        %v2509 = vadd.f32 %v1909, %v2508
        %v2510 = vpop.f32.mrb[0].mxu0
        %v2511 = vand.u32 %v278, 4294901760
        %v2512 = vsub.f32 %v278, %v2511
        %2513 = vmatprep.mubr.f32.mxu0 %v2512
        %v2514 = vand.u32 %v277, 4294901760
        %v2515 = vsub.f32 %v277, %v2514
        %2516 = vmatmul.mubr.f32.gmra.mrb[0].mxu0 %v2515
        %v2517 = vpop.f32.mrb[0].mxu0
        %v2518 = vadd.f32 %v1916, %v2517
        %v2519 = vpop.f32.mrb[0].mxu0
        %v2520 = vand.u32 %v282, 4294901760
        %v2521 = vsub.f32 %v282, %v2520
        %2522 = vmatprep.mubr.f32.mxu0 %v2521
        %v2523 = vand.u32 %v281, 4294901760
        %v2524 = vsub.f32 %v281, %v2523
        %2525 = vmatmul.mubr.f32.gmra.mrb[0].mxu0 %v2524
        %v2526 = vpop.f32.mrb[0].mxu0
        %v2527 = vadd.f32 %v1923, %v2526
        %v2528 = vpop.f32.mrb[0].mxu0
        %v2529 = vand.u32 %v286, 4294901760
        %v2530 = vsub.f32 %v286, %v2529
        %2531 = vmatprep.mubr.f32.mxu0 %v2530
        %v2532 = vand.u32 %v285, 4294901760
        %v2533 = vsub.f32 %v285, %v2532
        %2534 = vmatmul.mubr.f32.gmra.mrb[0].mxu0 %v2533
        %v2535 = vpop.f32.mrb[0].mxu0
        %v2536 = vadd.f32 %v1930, %v2535
        %v2537 = vpop.f32.mrb[0].mxu0
        %v2538 = vand.u32 %v290, 4294901760
        %v2539 = vsub.f32 %v290, %v2538
        %2540 = vmatprep.mubr.f32.mxu0 %v2539
        %v2541 = vand.u32 %v289, 4294901760
        %v2542 = vsub.f32 %v289, %v2541
        %2543 = vmatmul.mubr.f32.gmra.mrb[0].mxu0 %v2542
        %v2544 = vpop.f32.mrb[0].mxu0
        %v2545 = vadd.f32 %v1937, %v2544
        %v2546 = vpop.f32.mrb[0].mxu0
        %v2547 = vand.u32 %v294, 4294901760
        %v2548 = vsub.f32 %v294, %v2547
        %2549 = vmatprep.mubr.f32.mxu0 %v2548
        %v2550 = vand.u32 %v293, 4294901760
        %v2551 = vsub.f32 %v293, %v2550
        %2552 = vmatmul.mubr.f32.gmra.mrb[0].mxu0 %v2551
        %v2553 = vpop.f32.mrb[0].mxu0
        %v2554 = vadd.f32 %v1944, %v2553
        %v2555 = vpop.f32.mrb[0].mxu0
        %v2556 = vand.u32 %v298, 4294901760
        %v2557 = vsub.f32 %v298, %v2556
        %2558 = vmatprep.mubr.f32.mxu0 %v2557
        %v2559 = vand.u32 %v297, 4294901760
        %v2560 = vsub.f32 %v297, %v2559
        %2561 = vmatmul.mubr.f32.gmra.mrb[0].mxu0 %v2560
        %v2562 = vpop.f32.mrb[0].mxu0
        %v2563 = vadd.f32 %v1951, %v2562
        %v2564 = vpop.f32.mrb[0].mxu0
        %v2565 = vand.u32 %v302, 4294901760
        %v2566 = vsub.f32 %v302, %v2565
        %2567 = vmatprep.mubr.f32.mxu0 %v2566
        %v2568 = vand.u32 %v301, 4294901760
        %v2569 = vsub.f32 %v301, %v2568
        %2570 = vmatmul.mubr.f32.gmra.mrb[0].mxu0 %v2569
        %v2571 = vpop.f32.mrb[0].mxu0
        %v2572 = vadd.f32 %v1958, %v2571
        %v2573 = vpop.f32.mrb[0].mxu0
        %v2574 = vand.u32 %v306, 4294901760
        %v2575 = vsub.f32 %v306, %v2574
        %2576 = vmatprep.mubr.f32.mxu0 %v2575
        %v2577 = vand.u32 %v305, 4294901760
        %v2578 = vsub.f32 %v305, %v2577
        %2579 = vmatmul.mubr.f32.gmra.mrb[0].mxu0 %v2578
        %v2580 = vpop.f32.mrb[0].mxu0
        %v2581 = vadd.f32 %v1965, %v2580
        %v2582 = vpop.f32.mrb[0].mxu0
        %v2583 = vand.u32 %v310, 4294901760
        %v2584 = vsub.f32 %v310, %v2583
        %2585 = vmatprep.mubr.f32.mxu0 %v2584
        %v2586 = vand.u32 %v309, 4294901760
        %v2587 = vsub.f32 %v309, %v2586
        %2588 = vmatmul.mubr.f32.gmra.mrb[0].mxu0 %v2587
        %v2589 = vpop.f32.mrb[0].mxu0
        %v2590 = vadd.f32 %v1972, %v2589
        %v2591 = vpop.f32.mrb[0].mxu0
        %v2592 = vand.u32 %v314, 4294901760
        %v2593 = vsub.f32 %v314, %v2592
        %2594 = vmatprep.mubr.f32.mxu0 %v2593
        %v2595 = vand.u32 %v313, 4294901760
        %v2596 = vsub.f32 %v313, %v2595
        %2597 = vmatmul.mubr.f32.gmra.mrb[0].mxu0 %v2596
        %v2598 = vpop.f32.mrb[0].mxu0
        %v2599 = vadd.f32 %v1979, %v2598
        %v2600 = vpop.f32.mrb[0].mxu0
        %v2601 = vand.u32 %v318, 4294901760
        %v2602 = vsub.f32 %v318, %v2601
        %2603 = vmatprep.mubr.f32.mxu0 %v2602
        %v2604 = vand.u32 %v317, 4294901760
        %v2605 = vsub.f32 %v317, %v2604
        %2606 = vmatmul.mubr.f32.gmra.mrb[0].mxu0 %v2605
        %v2607 = vpop.f32.mrb[0].mxu0
        %v2608 = vadd.f32 %v1986, %v2607
        %v2609 = vpop.f32.mrb[0].mxu0
        %v2610 = vand.u32 %v322, 4294901760
        %v2611 = vsub.f32 %v322, %v2610
        %2612 = vmatprep.mubr.f32.mxu0 %v2611
        %v2613 = vand.u32 %v321, 4294901760
        %v2614 = vsub.f32 %v321, %v2613
        %2615 = vmatmul.mubr.f32.gmra.mrb[0].mxu0 %v2614
        %v2616 = vpop.f32.mrb[0].mxu0
        %v2617 = vadd.f32 %v1993, %v2616
        %v2618 = vpop.f32.mrb[0].mxu0
        %v2619 = vand.u32 %v326, 4294901760
        %v2620 = vsub.f32 %v326, %v2619
        %2621 = vmatprep.mubr.f32.mxu0 %v2620
        %v2622 = vand.u32 %v325, 4294901760
        %v2623 = vsub.f32 %v325, %v2622
        %2624 = vmatmul.mubr.f32.gmra.mrb[0].mxu0 %v2623
        %v2625 = vpop.f32.mrb[0].mxu0
        %v2626 = vadd.f32 %v2000, %v2625
        %v2627 = vpop.f32.mrb[0].mxu0
        %v2628 = vand.u32 %v330, 4294901760
        %v2629 = vsub.f32 %v330, %v2628
        %2630 = vmatprep.mubr.f32.mxu0 %v2629
        %v2631 = vand.u32 %v329, 4294901760
        %v2632 = vsub.f32 %v329, %v2631
        %2633 = vmatmul.mubr.f32.gmra.mrb[0].mxu0 %v2632
        %v2634 = vpop.f32.mrb[0].mxu0
        %v2635 = vadd.f32 %v2007, %v2634
        %v2636 = vpop.f32.mrb[0].mxu0
        %v2637 = vand.u32 %v334, 4294901760
        %v2638 = vsub.f32 %v334, %v2637
        %2639 = vmatprep.mubr.f32.mxu0 %v2638
        %v2640 = vand.u32 %v333, 4294901760
        %v2641 = vsub.f32 %v333, %v2640
        %2642 = vmatmul.mubr.f32.gmra.mrb[0].mxu0 %v2641
        %v2643 = vpop.f32.mrb[0].mxu0
        %v2644 = vadd.f32 %v2014, %v2643
        %v2645 = vpop.f32.mrb[0].mxu0
        %v2646 = vand.u32 %v338, 4294901760
        %v2647 = vsub.f32 %v338, %v2646
        %2648 = vmatprep.mubr.f32.mxu0 %v2647
        %v2649 = vand.u32 %v337, 4294901760
        %v2650 = vsub.f32 %v337, %v2649
        %2651 = vmatmul.mubr.f32.gmra.mrb[0].mxu0 %v2650
        %v2652 = vpop.f32.mrb[0].mxu0
        %v2653 = vadd.f32 %v2021, %v2652
        %v2654 = vpop.f32.mrb[0].mxu0
        %v2655 = vand.u32 %v342, 4294901760
        %v2656 = vsub.f32 %v342, %v2655
        %2657 = vmatprep.mubr.f32.mxu0 %v2656
        %v2658 = vand.u32 %v341, 4294901760
        %v2659 = vsub.f32 %v341, %v2658
        %2660 = vmatmul.mubr.f32.gmra.mrb[0].mxu0 %v2659
        %v2661 = vpop.f32.mrb[0].mxu0
        %v2662 = vadd.f32 %v2028, %v2661
        %v2663 = vpop.f32.mrb[0].mxu0
        %v2664 = vand.u32 %v346, 4294901760
        %v2665 = vsub.f32 %v346, %v2664
        %2666 = vmatprep.mubr.f32.mxu0 %v2665
        %v2667 = vand.u32 %v345, 4294901760
        %v2668 = vsub.f32 %v345, %v2667
        %2669 = vmatmul.mubr.f32.gmra.mrb[0].mxu0 %v2668
        %v2670 = vpop.f32.mrb[0].mxu0
        %v2671 = vadd.f32 %v2035, %v2670
        %v2672 = vpop.f32.mrb[0].mxu0
        %v2673 = vand.u32 %v350, 4294901760
        %v2674 = vsub.f32 %v350, %v2673
        %2675 = vmatprep.mubr.f32.mxu0 %v2674
        %v2676 = vand.u32 %v349, 4294901760
        %v2677 = vsub.f32 %v349, %v2676
        %2678 = vmatmul.mubr.f32.gmra.mrb[0].mxu0 %v2677
        %v2679 = vpop.f32.mrb[0].mxu0
        %v2680 = vadd.f32 %v2042, %v2679
        %v2681 = vpop.f32.mrb[0].mxu0
        %v2682 = vand.u32 %v354, 4294901760
        %v2683 = vsub.f32 %v354, %v2682
        %2684 = vmatprep.mubr.f32.mxu0 %v2683
        %v2685 = vand.u32 %v353, 4294901760
        %v2686 = vsub.f32 %v353, %v2685
        %2687 = vmatmul.mubr.f32.gmra.mrb[0].mxu0 %v2686
        %v2688 = vpop.f32.mrb[0].mxu0
        %v2689 = vadd.f32 %v2049, %v2688
        %v2690 = vpop.f32.mrb[0].mxu0
        %v2691 = vand.u32 %v358, 4294901760
        %v2692 = vsub.f32 %v358, %v2691
        %2693 = vmatprep.mubr.f32.mxu0 %v2692
        %v2694 = vand.u32 %v357, 4294901760
        %v2695 = vsub.f32 %v357, %v2694
        %2696 = vmatmul.mubr.f32.gmra.mrb[0].mxu0 %v2695
        %v2697 = vpop.f32.mrb[0].mxu0
        %v2698 = vadd.f32 %v2056, %v2697
        %v2699 = vpop.f32.mrb[0].mxu0
        %v2700 = vand.u32 %v362, 4294901760
        %v2701 = vsub.f32 %v362, %v2700
        %2702 = vmatprep.mubr.f32.mxu0 %v2701
        %v2703 = vand.u32 %v361, 4294901760
        %v2704 = vsub.f32 %v361, %v2703
        %2705 = vmatmul.mubr.f32.gmra.mrb[0].mxu0 %v2704
        %v2706 = vpop.f32.mrb[0].mxu0
        %v2707 = vadd.f32 %v2063, %v2706
        %v2708 = vpop.f32.mrb[0].mxu0
        %v2709 = vand.u32 %v366, 4294901760
        %v2710 = vsub.f32 %v366, %v2709
        %2711 = vmatprep.mubr.f32.mxu0 %v2710
        %v2712 = vand.u32 %v365, 4294901760
        %v2713 = vsub.f32 %v365, %v2712
        %2714 = vmatmul.mubr.f32.gmra.mrb[0].mxu0 %v2713
        %v2715 = vpop.f32.mrb[0].mxu0
        %v2716 = vadd.f32 %v2070, %v2715
        %v2717 = vpop.f32.mrb[0].mxu0
        %v2718 = vand.u32 %v370, 4294901760
        %v2719 = vsub.f32 %v370, %v2718
        %2720 = vmatprep.mubr.f32.mxu0 %v2719
        %v2721 = vand.u32 %v369, 4294901760
        %v2722 = vsub.f32 %v369, %v2721
        %2723 = vmatmul.mubr.f32.gmra.mrb[0].mxu0 %v2722
        %v2724 = vpop.f32.mrb[0].mxu0
        %v2725 = vadd.f32 %v2077, %v2724
        %v2726 = vpop.f32.mrb[0].mxu0
        %v2727 = vand.u32 %v374, 4294901760
        %v2728 = vsub.f32 %v374, %v2727
        %2729 = vmatprep.mubr.f32.mxu0 %v2728
        %v2730 = vand.u32 %v373, 4294901760
        %v2731 = vsub.f32 %v373, %v2730
        %2732 = vmatmul.mubr.f32.gmra.mrb[0].mxu0 %v2731
        %v2733 = vpop.f32.mrb[0].mxu0
        %v2734 = vadd.f32 %v2084, %v2733
        %v2735 = vpop.f32.mrb[0].mxu0
        %v2736 = vand.u32 %v378, 4294901760
        %v2737 = vsub.f32 %v378, %v2736
        %2738 = vmatprep.mubr.f32.mxu0 %v2737
        %v2739 = vand.u32 %v377, 4294901760
        %v2740 = vsub.f32 %v377, %v2739
        %2741 = vmatmul.mubr.f32.gmra.mrb[0].mxu0 %v2740
        %v2742 = vpop.f32.mrb[0].mxu0
        %v2743 = vadd.f32 %v2091, %v2742
        %v2744 = vpop.f32.mrb[0].mxu0
        %v2745 = vand.u32 %v382, 4294901760
        %v2746 = vsub.f32 %v382, %v2745
        %2747 = vmatprep.mubr.f32.mxu0 %v2746
        %v2748 = vand.u32 %v381, 4294901760
        %v2749 = vsub.f32 %v381, %v2748
        %2750 = vmatmul.mubr.f32.gmra.mrb[0].mxu0 %v2749
        %v2751 = vpop.f32.mrb[0].mxu0
        %v2752 = vadd.f32 %v2098, %v2751
        %v2753 = vpop.f32.mrb[0].mxu0
        %v2754 = vand.u32 %v386, 4294901760
        %v2755 = vsub.f32 %v386, %v2754
        %2756 = vmatprep.mubr.f32.mxu0 %v2755
        %v2757 = vand.u32 %v385, 4294901760
        %v2758 = vsub.f32 %v385, %v2757
        %2759 = vmatmul.mubr.f32.gmra.mrb[0].mxu0 %v2758
        %v2760 = vpop.f32.mrb[0].mxu0
        %v2761 = vadd.f32 %v2105, %v2760
        %v2762 = vpop.f32.mrb[0].mxu0
        %v2763 = vand.u32 %v390, 4294901760
        %v2764 = vsub.f32 %v390, %v2763
        %2765 = vmatprep.mubr.f32.mxu0 %v2764
        %v2766 = vand.u32 %v389, 4294901760
        %v2767 = vsub.f32 %v389, %v2766
        %2768 = vmatmul.mubr.f32.gmra.mrb[0].mxu0 %v2767
        %v2769 = vpop.f32.mrb[0].mxu0
        %v2770 = vadd.f32 %v2112, %v2769
        %v2771 = vpop.f32.mrb[0].mxu0
        %v2772 = vand.u32 %v394, 4294901760
        %v2773 = vsub.f32 %v394, %v2772
        %2774 = vmatprep.mubr.f32.mxu0 %v2773
        %v2775 = vand.u32 %v393, 4294901760
        %v2776 = vsub.f32 %v393, %v2775
        %2777 = vmatmul.mubr.f32.gmra.mrb[0].mxu0 %v2776
        %v2778 = vpop.f32.mrb[0].mxu0
        %v2779 = vadd.f32 %v2119, %v2778
        %v2780 = vpop.f32.mrb[0].mxu0
        %v2781 = vand.u32 %v398, 4294901760
        %v2782 = vsub.f32 %v398, %v2781
        %2783 = vmatprep.mubr.f32.mxu0 %v2782
        %v2784 = vand.u32 %v397, 4294901760
        %v2785 = vsub.f32 %v397, %v2784
        %2786 = vmatmul.mubr.f32.gmra.mrb[0].mxu0 %v2785
        %v2787 = vpop.f32.mrb[0].mxu0
        %v2788 = vadd.f32 %v2126, %v2787
        %v2789 = vpop.f32.mrb[0].mxu0
        %v2790 = vand.u32 %v402, 4294901760
        %v2791 = vsub.f32 %v402, %v2790
        %2792 = vmatprep.mubr.f32.mxu0 %v2791
        %v2793 = vand.u32 %v401, 4294901760
        %v2794 = vsub.f32 %v401, %v2793
        %2795 = vmatmul.mubr.f32.gmra.mrb[0].mxu0 %v2794
        %v2796 = vpop.f32.mrb[0].mxu0
        %v2797 = vadd.f32 %v2133, %v2796
        %v2798 = vpop.f32.mrb[0].mxu0
        %v2799 = vand.u32 %v406, 4294901760
        %v2800 = vsub.f32 %v406, %v2799
        %2801 = vmatprep.mubr.f32.mxu0 %v2800
        %v2802 = vand.u32 %v405, 4294901760
        %v2803 = vsub.f32 %v405, %v2802
        %2804 = vmatmul.mubr.f32.gmra.mrb[0].mxu0 %v2803
        %v2805 = vpop.f32.mrb[0].mxu0
        %v2806 = vadd.f32 %v2140, %v2805
        %v2807 = vpop.f32.mrb[0].mxu0
        %v2808 = vand.u32 %v410, 4294901760
        %v2809 = vsub.f32 %v410, %v2808
        %2810 = vmatprep.mubr.f32.mxu0 %v2809
        %v2811 = vand.u32 %v409, 4294901760
        %v2812 = vsub.f32 %v409, %v2811
        %2813 = vmatmul.mubr.f32.gmra.mrb[0].mxu0 %v2812
        %v2814 = vpop.f32.mrb[0].mxu0
        %v2815 = vadd.f32 %v2147, %v2814
        %v2816 = vpop.f32.mrb[0].mxu0
        %v2817 = vand.u32 %v414, 4294901760
        %v2818 = vsub.f32 %v414, %v2817
        %2819 = vmatprep.mubr.f32.mxu0 %v2818
        %v2820 = vand.u32 %v413, 4294901760
        %v2821 = vsub.f32 %v413, %v2820
        %2822 = vmatmul.mubr.f32.gmra.mrb[0].mxu0 %v2821
        %v2823 = vpop.f32.mrb[0].mxu0
        %v2824 = vadd.f32 %v2154, %v2823
        %v2825 = vpop.f32.mrb[0].mxu0
        %v2826 = vand.u32 %v418, 4294901760
        %v2827 = vsub.f32 %v418, %v2826
        %2828 = vmatprep.mubr.f32.mxu0 %v2827
        %v2829 = vand.u32 %v417, 4294901760
        %v2830 = vsub.f32 %v417, %v2829
        %2831 = vmatmul.mubr.f32.gmra.mrb[0].mxu0 %v2830
        %v2832 = vpop.f32.mrb[0].mxu0
        %v2833 = vadd.f32 %v2161, %v2832
        %v2834 = vpop.f32.mrb[0].mxu0
        %v2835 = vand.u32 %v422, 4294901760
        %v2836 = vsub.f32 %v422, %v2835
        %2837 = vmatprep.mubr.f32.mxu0 %v2836
        %v2838 = vand.u32 %v421, 4294901760
        %v2839 = vsub.f32 %v421, %v2838
        %2840 = vmatmul.mubr.f32.gmra.mrb[0].mxu0 %v2839
        %v2841 = vpop.f32.mrb[0].mxu0
        %v2842 = vadd.f32 %v2168, %v2841
        %v2843 = vpop.f32.mrb[0].mxu0
        %v2844 = vand.u32 %v426, 4294901760
        %v2845 = vsub.f32 %v426, %v2844
        %2846 = vmatprep.mubr.f32.mxu0 %v2845
        %v2847 = vand.u32 %v425, 4294901760
        %v2848 = vsub.f32 %v425, %v2847
        %2849 = vmatmul.mubr.f32.gmra.mrb[0].mxu0 %v2848
        %v2850 = vpop.f32.mrb[0].mxu0
        %v2851 = vadd.f32 %v2175, %v2850
        %v2852 = vpop.f32.mrb[0].mxu0
        %v2853 = vand.u32 %v430, 4294901760
        %v2854 = vsub.f32 %v430, %v2853
        %2855 = vmatprep.mubr.f32.mxu0 %v2854
        %v2856 = vand.u32 %v429, 4294901760
        %v2857 = vsub.f32 %v429, %v2856
        %2858 = vmatmul.mubr.f32.gmra.mrb[0].mxu0 %v2857
        %v2859 = vpop.f32.mrb[0].mxu0
        %v2860 = vadd.f32 %v2182, %v2859
        %v2861 = vpop.f32.mrb[0].mxu0
        %v2862 = vand.u32 %v434, 4294901760
        %v2863 = vsub.f32 %v434, %v2862
        %2864 = vmatprep.mubr.f32.mxu0 %v2863
        %v2865 = vand.u32 %v433, 4294901760
        %v2866 = vsub.f32 %v433, %v2865
        %2867 = vmatmul.mubr.f32.gmra.mrb[0].mxu0 %v2866
        %v2868 = vpop.f32.mrb[0].mxu0
        %v2869 = vadd.f32 %v2189, %v2868
        %v2870 = vpop.f32.mrb[0].mxu0
        %v2871 = vand.u32 %v438, 4294901760
        %v2872 = vsub.f32 %v438, %v2871
        %2873 = vmatprep.mubr.f32.mxu0 %v2872
        %v2874 = vand.u32 %v437, 4294901760
        %v2875 = vsub.f32 %v437, %v2874
        %2876 = vmatmul.mubr.f32.gmra.mrb[0].mxu0 %v2875
        %v2877 = vpop.f32.mrb[0].mxu0
        %v2878 = vadd.f32 %v2196, %v2877
        %v2879 = vpop.f32.mrb[0].mxu0
        %v2880 = vand.u32 %v442, 4294901760
        %v2881 = vsub.f32 %v442, %v2880
        %2882 = vmatprep.mubr.f32.mxu0 %v2881
        %v2883 = vand.u32 %v441, 4294901760
        %v2884 = vsub.f32 %v441, %v2883
        %2885 = vmatmul.mubr.f32.gmra.mrb[0].mxu0 %v2884
        %v2886 = vpop.f32.mrb[0].mxu0
        %v2887 = vadd.f32 %v2203, %v2886
        %v2888 = vpop.f32.mrb[0].mxu0
        %v2889 = vand.u32 %v446, 4294901760
        %v2890 = vsub.f32 %v446, %v2889
        %2891 = vmatprep.mubr.f32.mxu0 %v2890
        %v2892 = vand.u32 %v445, 4294901760
        %v2893 = vsub.f32 %v445, %v2892
        %2894 = vmatmul.mubr.f32.gmra.mrb[0].mxu0 %v2893
        %v2895 = vpop.f32.mrb[0].mxu0
        %v2896 = vadd.f32 %v2210, %v2895
        %v2897 = vpop.f32.mrb[0].mxu0
        %v2898 = vand.u32 %v450, 4294901760
        %v2899 = vsub.f32 %v450, %v2898
        %2900 = vmatprep.mubr.f32.mxu0 %v2899
        %v2901 = vand.u32 %v449, 4294901760
        %v2902 = vsub.f32 %v449, %v2901
        %2903 = vmatmul.mubr.f32.gmra.mrb[0].mxu0 %v2902
        %v2904 = vpop.f32.mrb[0].mxu0
        %v2905 = vadd.f32 %v2217, %v2904
        %v2906 = vpop.f32.mrb[0].mxu0
        %v2907 = vand.u32 %v454, 4294901760
        %v2908 = vsub.f32 %v454, %v2907
        %2909 = vmatprep.mubr.f32.mxu0 %v2908
        %v2910 = vand.u32 %v453, 4294901760
        %v2911 = vsub.f32 %v453, %v2910
        %2912 = vmatmul.mubr.f32.gmra.mrb[0].mxu0 %v2911
        %v2913 = vpop.f32.mrb[0].mxu0
        %v2914 = vadd.f32 %v2224, %v2913
        %v2915 = vpop.f32.mrb[0].mxu0
        %v2916 = vand.u32 %v458, 4294901760
        %v2917 = vsub.f32 %v458, %v2916
        %2918 = vmatprep.mubr.f32.mxu0 %v2917
        %v2919 = vand.u32 %v457, 4294901760
        %v2920 = vsub.f32 %v457, %v2919
        %2921 = vmatmul.mubr.f32.gmra.mrb[0].mxu0 %v2920
        %v2922 = vpop.f32.mrb[0].mxu0
        %v2923 = vadd.f32 %v2231, %v2922
        %v2924 = vpop.f32.mrb[0].mxu0
        %v2925 = vand.u32 %v462, 4294901760
        %v2926 = vsub.f32 %v462, %v2925
        %2927 = vmatprep.mubr.f32.mxu0 %v2926
        %v2928 = vand.u32 %v461, 4294901760
        %v2929 = vsub.f32 %v461, %v2928
        %2930 = vmatmul.mubr.f32.gmra.mrb[0].mxu0 %v2929
        %v2931 = vpop.f32.mrb[0].mxu0
        %v2932 = vadd.f32 %v2238, %v2931
        %v2933 = vpop.f32.mrb[0].mxu0
        %v2934 = vand.u32 %v466, 4294901760
        %v2935 = vsub.f32 %v466, %v2934
        %2936 = vmatprep.mubr.f32.mxu0 %v2935
        %v2937 = vand.u32 %v465, 4294901760
        %v2938 = vsub.f32 %v465, %v2937
        %2939 = vmatmul.mubr.f32.gmra.mrb[0].mxu0 %v2938
        %v2940 = vpop.f32.mrb[0].mxu0
        %v2941 = vadd.f32 %v2245, %v2940
        %v2942 = vpop.f32.mrb[0].mxu0
        %2943 = vdwg.mxu0
        %2944 = vmatprep.subr.mxu0 0.0
        %v2945 = vand.u32 %v469, 4294901760
        %2946 = vmatpush1.msra.mxu0 %v2945
        %2947 = vmatprep.subr.mxu0 0.0
        %v2948 = vand.u32 %v470, 4294901760
        %2949 = vmatpush1.msra.mxu0 %v2948
        %2950 = vmatprep.subr.mxu0 0.0
        %v2951 = vand.u32 %v471, 4294901760
        %2952 = vmatpush1.msra.mxu0 %v2951
        %2953 = vmatprep.subr.mxu0 0.0
        %v2954 = vand.u32 %v472, 4294901760
        %2955 = vmatpush1.msra.mxu0 %v2954
        %2956 = vmatprep.subr.mxu0 0.0
        %v2957 = vand.u32 %v473, 4294901760
        %2958 = vmatpush1.msra.mxu0 %v2957
        %2959 = vmatprep.subr.mxu0 0.0
        %v2960 = vand.u32 %v474, 4294901760
        %2961 = vmatpush1.msra.mxu0 %v2960
        %2962 = vmatprep.subr.mxu0 0.0
        %v2963 = vand.u32 %v475, 4294901760
        %2964 = vmatpush1.msra.mxu0 %v2963
        %2965 = vmatprep.subr.mxu0 0.0
        %v2966 = vand.u32 %v476, 4294901760
        %2967 = vmatpush1.msra.mxu0 %v2966
        %2968 = vmatprep.subr.mxu0 0.0
        %v2969 = vand.u32 %v477, 4294901760
        %2970 = vmatpush1.msra.mxu0 %v2969
        %2971 = vmatprep.subr.mxu0 0.0
        %v2972 = vand.u32 %v478, 4294901760
        %2973 = vmatpush1.msra.mxu0 %v2972
        %2974 = vmatprep.subr.mxu0 0.0
        %v2975 = vand.u32 %v479, 4294901760
        %2976 = vmatpush1.msra.mxu0 %v2975
        %2977 = vmatprep.subr.mxu0 0.0
        %v2978 = vand.u32 %v480, 4294901760
        %2979 = vmatpush1.msra.mxu0 %v2978
        %2980 = vmatprep.subr.mxu0 0.0
        %v2981 = vand.u32 %v481, 4294901760
        %2982 = vmatpush1.msra.mxu0 %v2981
        %2983 = vmatprep.subr.mxu0 0.0
        %v2984 = vand.u32 %v482, 4294901760
        %2985 = vmatpush1.msra.mxu0 %v2984
        %2986 = vmatprep.subr.mxu0 0.0
        %v2987 = vand.u32 %v483, 4294901760
        %2988 = vmatpush1.msra.mxu0 %v2987
        %2989 = vmatprep.subr.mxu0 0.0
        %v2990 = vand.u32 %v484, 4294901760
        %2991 = vmatpush1.msra.mxu0 %v2990
        %2992 = vmatprep.subr.mxu0 0.0
        %v2993 = vand.u32 %v485, 4294901760
        %2994 = vmatpush1.msra.mxu0 %v2993
        %2995 = vmatprep.subr.mxu0 0.0
        %v2996 = vand.u32 %v486, 4294901760
        %2997 = vmatpush1.msra.mxu0 %v2996
        %2998 = vmatprep.subr.mxu0 0.0
        %v2999 = vand.u32 %v487, 4294901760
        %3000 = vmatpush1.msra.mxu0 %v2999
        %3001 = vmatprep.subr.mxu0 0.0
        %v3002 = vand.u32 %v488, 4294901760
        %3003 = vmatpush1.msra.mxu0 %v3002
        %3004 = vmatprep.subr.mxu0 0.0
        %v3005 = vand.u32 %v489, 4294901760
        %3006 = vmatpush1.msra.mxu0 %v3005
        %3007 = vmatprep.subr.mxu0 0.0
        %v3008 = vand.u32 %v490, 4294901760
        %3009 = vmatpush1.msra.mxu0 %v3008
        %3010 = vmatprep.subr.mxu0 0.0
        %v3011 = vand.u32 %v491, 4294901760
        %3012 = vmatpush1.msra.mxu0 %v3011
        %3013 = vmatprep.subr.mxu0 0.0
        %v3014 = vand.u32 %v492, 4294901760
        %3015 = vmatpush1.msra.mxu0 %v3014
        %3016 = vmatprep.subr.mxu0 0.0
        %v3017 = vand.u32 %v493, 4294901760
        %3018 = vmatpush1.msra.mxu0 %v3017
        %3019 = vmatprep.subr.mxu0 0.0
        %v3020 = vand.u32 %v494, 4294901760
        %3021 = vmatpush1.msra.mxu0 %v3020
        %3022 = vmatprep.subr.mxu0 0.0
        %v3023 = vand.u32 %v495, 4294901760
        %3024 = vmatpush1.msra.mxu0 %v3023
        %3025 = vmatprep.subr.mxu0 0.0
        %v3026 = vand.u32 %v496, 4294901760
        %3027 = vmatpush1.msra.mxu0 %v3026
        %3028 = vmatprep.subr.mxu0 0.0
        %v3029 = vand.u32 %v497, 4294901760
        %3030 = vmatpush1.msra.mxu0 %v3029
        %3031 = vmatprep.subr.mxu0 0.0
        %v3032 = vand.u32 %v498, 4294901760
        %3033 = vmatpush1.msra.mxu0 %v3032
        %3034 = vmatprep.subr.mxu0 0.0
        %v3035 = vand.u32 %v499, 4294901760
        %3036 = vmatpush1.msra.mxu0 %v3035
        %3037 = vmatprep.subr.mxu0 0.0
        %v3038 = vand.u32 %v500, 4294901760
        %3039 = vmatpush1.msra.mxu0 %v3038
        %v3040 = vand.u32 %v218, 4294901760
        %v3041 = vsub.f32 %v218, %v3040
        %v3042 = vand.u32 %v3041, 4294901760
        %3043 = vmatprep.mubr.f32.mxu0 %v3042
        %v3044 = vand.u32 %v217, 4294901760
        %v3045 = vsub.f32 %v217, %v3044
        %v3046 = vand.u32 %v3045, 4294901760
        %3047 = vmatmul.mubr.f32.gmra.mrb[0].mxu0 %v3046
        %v3048 = vpop.f32.mrb[0].mxu0
        %v3049 = vadd.f32 %v2383, %v3048
        %v3050 = vpop.f32.mrb[0].mxu0
        %v3051 = vand.u32 %v222, 4294901760
        %v3052 = vsub.f32 %v222, %v3051
        %v3053 = vand.u32 %v3052, 4294901760
        %3054 = vmatprep.mubr.f32.mxu0 %v3053
        %v3055 = vand.u32 %v221, 4294901760
        %v3056 = vsub.f32 %v221, %v3055
        %v3057 = vand.u32 %v3056, 4294901760
        %3058 = vmatmul.mubr.f32.gmra.mrb[0].mxu0 %v3057
        %v3059 = vpop.f32.mrb[0].mxu0
        %v3060 = vadd.f32 %v2392, %v3059
        %v3061 = vpop.f32.mrb[0].mxu0
        %v3062 = vand.u32 %v226, 4294901760
        %v3063 = vsub.f32 %v226, %v3062
        %v3064 = vand.u32 %v3063, 4294901760
        %3065 = vmatprep.mubr.f32.mxu0 %v3064
        %v3066 = vand.u32 %v225, 4294901760
        %v3067 = vsub.f32 %v225, %v3066
        %v3068 = vand.u32 %v3067, 4294901760
        %3069 = vmatmul.mubr.f32.gmra.mrb[0].mxu0 %v3068
        %v3070 = vpop.f32.mrb[0].mxu0
        %v3071 = vadd.f32 %v2401, %v3070
        %v3072 = vpop.f32.mrb[0].mxu0
        %v3073 = vand.u32 %v230, 4294901760
        %v3074 = vsub.f32 %v230, %v3073
        %v3075 = vand.u32 %v3074, 4294901760
        %3076 = vmatprep.mubr.f32.mxu0 %v3075
        %v3077 = vand.u32 %v229, 4294901760
        %v3078 = vsub.f32 %v229, %v3077
        %v3079 = vand.u32 %v3078, 4294901760
        %3080 = vmatmul.mubr.f32.gmra.mrb[0].mxu0 %v3079
        %v3081 = vpop.f32.mrb[0].mxu0
        %v3082 = vadd.f32 %v2410, %v3081
        %v3083 = vpop.f32.mrb[0].mxu0
        %v3084 = vand.u32 %v234, 4294901760
        %v3085 = vsub.f32 %v234, %v3084
        %v3086 = vand.u32 %v3085, 4294901760
        %3087 = vmatprep.mubr.f32.mxu0 %v3086
        %v3088 = vand.u32 %v233, 4294901760
        %v3089 = vsub.f32 %v233, %v3088
        %v3090 = vand.u32 %v3089, 4294901760
        %3091 = vmatmul.mubr.f32.gmra.mrb[0].mxu0 %v3090
        %v3092 = vpop.f32.mrb[0].mxu0
        %v3093 = vadd.f32 %v2419, %v3092
        %v3094 = vpop.f32.mrb[0].mxu0
        %v3095 = vand.u32 %v238, 4294901760
        %v3096 = vsub.f32 %v238, %v3095
        %v3097 = vand.u32 %v3096, 4294901760
        %3098 = vmatprep.mubr.f32.mxu0 %v3097
        %v3099 = vand.u32 %v237, 4294901760
        %v3100 = vsub.f32 %v237, %v3099
        %v3101 = vand.u32 %v3100, 4294901760
        %3102 = vmatmul.mubr.f32.gmra.mrb[0].mxu0 %v3101
        %v3103 = vpop.f32.mrb[0].mxu0
        %v3104 = vadd.f32 %v2428, %v3103
        %v3105 = vpop.f32.mrb[0].mxu0
        %v3106 = vand.u32 %v242, 4294901760
        %v3107 = vsub.f32 %v242, %v3106
        %v3108 = vand.u32 %v3107, 4294901760
        %3109 = vmatprep.mubr.f32.mxu0 %v3108
        %v3110 = vand.u32 %v241, 4294901760
        %v3111 = vsub.f32 %v241, %v3110
        %v3112 = vand.u32 %v3111, 4294901760
        %3113 = vmatmul.mubr.f32.gmra.mrb[0].mxu0 %v3112
        %v3114 = vpop.f32.mrb[0].mxu0
        %v3115 = vadd.f32 %v2437, %v3114
        %v3116 = vpop.f32.mrb[0].mxu0
        %v3117 = vand.u32 %v246, 4294901760
        %v3118 = vsub.f32 %v246, %v3117
        %v3119 = vand.u32 %v3118, 4294901760
        %3120 = vmatprep.mubr.f32.mxu0 %v3119
        %v3121 = vand.u32 %v245, 4294901760
        %v3122 = vsub.f32 %v245, %v3121
        %v3123 = vand.u32 %v3122, 4294901760
        %3124 = vmatmul.mubr.f32.gmra.mrb[0].mxu0 %v3123
        %v3125 = vpop.f32.mrb[0].mxu0
        %v3126 = vadd.f32 %v2446, %v3125
        %v3127 = vpop.f32.mrb[0].mxu0
        %v3128 = vand.u32 %v250, 4294901760
        %v3129 = vsub.f32 %v250, %v3128
        %v3130 = vand.u32 %v3129, 4294901760
        %3131 = vmatprep.mubr.f32.mxu0 %v3130
        %v3132 = vand.u32 %v249, 4294901760
        %v3133 = vsub.f32 %v249, %v3132
        %v3134 = vand.u32 %v3133, 4294901760
        %3135 = vmatmul.mubr.f32.gmra.mrb[0].mxu0 %v3134
        %v3136 = vpop.f32.mrb[0].mxu0
        %v3137 = vadd.f32 %v2455, %v3136
        %v3138 = vpop.f32.mrb[0].mxu0
        %v3139 = vand.u32 %v254, 4294901760
        %v3140 = vsub.f32 %v254, %v3139
        %v3141 = vand.u32 %v3140, 4294901760
        %3142 = vmatprep.mubr.f32.mxu0 %v3141
        %v3143 = vand.u32 %v253, 4294901760
        %v3144 = vsub.f32 %v253, %v3143
        %v3145 = vand.u32 %v3144, 4294901760
        %3146 = vmatmul.mubr.f32.gmra.mrb[0].mxu0 %v3145
        %v3147 = vpop.f32.mrb[0].mxu0
        %v3148 = vadd.f32 %v2464, %v3147
        %v3149 = vpop.f32.mrb[0].mxu0
        %v3150 = vand.u32 %v258, 4294901760
        %v3151 = vsub.f32 %v258, %v3150
        %v3152 = vand.u32 %v3151, 4294901760
        %3153 = vmatprep.mubr.f32.mxu0 %v3152
        %v3154 = vand.u32 %v257, 4294901760
        %v3155 = vsub.f32 %v257, %v3154
        %v3156 = vand.u32 %v3155, 4294901760
        %3157 = vmatmul.mubr.f32.gmra.mrb[0].mxu0 %v3156
        %v3158 = vpop.f32.mrb[0].mxu0
        %v3159 = vadd.f32 %v2473, %v3158
        %v3160 = vpop.f32.mrb[0].mxu0
        %v3161 = vand.u32 %v262, 4294901760
        %v3162 = vsub.f32 %v262, %v3161
        %v3163 = vand.u32 %v3162, 4294901760
        %3164 = vmatprep.mubr.f32.mxu0 %v3163
        %v3165 = vand.u32 %v261, 4294901760
        %v3166 = vsub.f32 %v261, %v3165
        %v3167 = vand.u32 %v3166, 4294901760
        %3168 = vmatmul.mubr.f32.gmra.mrb[0].mxu0 %v3167
        %v3169 = vpop.f32.mrb[0].mxu0
        %v3170 = vadd.f32 %v2482, %v3169
        %v3171 = vpop.f32.mrb[0].mxu0
        %v3172 = vand.u32 %v266, 4294901760
        %v3173 = vsub.f32 %v266, %v3172
        %v3174 = vand.u32 %v3173, 4294901760
        %3175 = vmatprep.mubr.f32.mxu0 %v3174
        %v3176 = vand.u32 %v265, 4294901760
        %v3177 = vsub.f32 %v265, %v3176
        %v3178 = vand.u32 %v3177, 4294901760
        %3179 = vmatmul.mubr.f32.gmra.mrb[0].mxu0 %v3178
        %v3180 = vpop.f32.mrb[0].mxu0
        %v3181 = vadd.f32 %v2491, %v3180
        %v3182 = vpop.f32.mrb[0].mxu0
        %v3183 = vand.u32 %v270, 4294901760
        %v3184 = vsub.f32 %v270, %v3183
        %v3185 = vand.u32 %v3184, 4294901760
        %3186 = vmatprep.mubr.f32.mxu0 %v3185
        %v3187 = vand.u32 %v269, 4294901760
        %v3188 = vsub.f32 %v269, %v3187
        %v3189 = vand.u32 %v3188, 4294901760
        %3190 = vmatmul.mubr.f32.gmra.mrb[0].mxu0 %v3189
        %v3191 = vpop.f32.mrb[0].mxu0
        %v3192 = vadd.f32 %v2500, %v3191
        %v3193 = vpop.f32.mrb[0].mxu0
        %v3194 = vand.u32 %v274, 4294901760
        %v3195 = vsub.f32 %v274, %v3194
        %v3196 = vand.u32 %v3195, 4294901760
        %3197 = vmatprep.mubr.f32.mxu0 %v3196
        %v3198 = vand.u32 %v273, 4294901760
        %v3199 = vsub.f32 %v273, %v3198
        %v3200 = vand.u32 %v3199, 4294901760
        %3201 = vmatmul.mubr.f32.gmra.mrb[0].mxu0 %v3200
        %v3202 = vpop.f32.mrb[0].mxu0
        %v3203 = vadd.f32 %v2509, %v3202
        %v3204 = vpop.f32.mrb[0].mxu0
        %v3205 = vand.u32 %v278, 4294901760
        %v3206 = vsub.f32 %v278, %v3205
        %v3207 = vand.u32 %v3206, 4294901760
        %3208 = vmatprep.mubr.f32.mxu0 %v3207
        %v3209 = vand.u32 %v277, 4294901760
        %v3210 = vsub.f32 %v277, %v3209
        %v3211 = vand.u32 %v3210, 4294901760
        %3212 = vmatmul.mubr.f32.gmra.mrb[0].mxu0 %v3211
        %v3213 = vpop.f32.mrb[0].mxu0
        %v3214 = vadd.f32 %v2518, %v3213
        %v3215 = vpop.f32.mrb[0].mxu0
        %v3216 = vand.u32 %v282, 4294901760
        %v3217 = vsub.f32 %v282, %v3216
        %v3218 = vand.u32 %v3217, 4294901760
        %3219 = vmatprep.mubr.f32.mxu0 %v3218
        %v3220 = vand.u32 %v281, 4294901760
        %v3221 = vsub.f32 %v281, %v3220
        %v3222 = vand.u32 %v3221, 4294901760
        %3223 = vmatmul.mubr.f32.gmra.mrb[0].mxu0 %v3222
        %v3224 = vpop.f32.mrb[0].mxu0
        %v3225 = vadd.f32 %v2527, %v3224
        %v3226 = vpop.f32.mrb[0].mxu0
        %v3227 = vand.u32 %v286, 4294901760
        %v3228 = vsub.f32 %v286, %v3227
        %v3229 = vand.u32 %v3228, 4294901760
        %3230 = vmatprep.mubr.f32.mxu0 %v3229
        %v3231 = vand.u32 %v285, 4294901760
        %v3232 = vsub.f32 %v285, %v3231
        %v3233 = vand.u32 %v3232, 4294901760
        %3234 = vmatmul.mubr.f32.gmra.mrb[0].mxu0 %v3233
        %v3235 = vpop.f32.mrb[0].mxu0
        %v3236 = vadd.f32 %v2536, %v3235
        %v3237 = vpop.f32.mrb[0].mxu0
        %v3238 = vand.u32 %v290, 4294901760
        %v3239 = vsub.f32 %v290, %v3238
        %v3240 = vand.u32 %v3239, 4294901760
        %3241 = vmatprep.mubr.f32.mxu0 %v3240
        %v3242 = vand.u32 %v289, 4294901760
        %v3243 = vsub.f32 %v289, %v3242
        %v3244 = vand.u32 %v3243, 4294901760
        %3245 = vmatmul.mubr.f32.gmra.mrb[0].mxu0 %v3244
        %v3246 = vpop.f32.mrb[0].mxu0
        %v3247 = vadd.f32 %v2545, %v3246
        %v3248 = vpop.f32.mrb[0].mxu0
        %v3249 = vand.u32 %v294, 4294901760
        %v3250 = vsub.f32 %v294, %v3249
        %v3251 = vand.u32 %v3250, 4294901760
        %3252 = vmatprep.mubr.f32.mxu0 %v3251
        %v3253 = vand.u32 %v293, 4294901760
        %v3254 = vsub.f32 %v293, %v3253
        %v3255 = vand.u32 %v3254, 4294901760
        %3256 = vmatmul.mubr.f32.gmra.mrb[0].mxu0 %v3255
        %v3257 = vpop.f32.mrb[0].mxu0
        %v3258 = vadd.f32 %v2554, %v3257
        %v3259 = vpop.f32.mrb[0].mxu0
        %v3260 = vand.u32 %v298, 4294901760
        %v3261 = vsub.f32 %v298, %v3260
        %v3262 = vand.u32 %v3261, 4294901760
        %3263 = vmatprep.mubr.f32.mxu0 %v3262
        %v3264 = vand.u32 %v297, 4294901760
        %v3265 = vsub.f32 %v297, %v3264
        %v3266 = vand.u32 %v3265, 4294901760
        %3267 = vmatmul.mubr.f32.gmra.mrb[0].mxu0 %v3266
        %v3268 = vpop.f32.mrb[0].mxu0
        %v3269 = vadd.f32 %v2563, %v3268
        %v3270 = vpop.f32.mrb[0].mxu0
        %v3271 = vand.u32 %v302, 4294901760
        %v3272 = vsub.f32 %v302, %v3271
        %v3273 = vand.u32 %v3272, 4294901760
        %3274 = vmatprep.mubr.f32.mxu0 %v3273
        %v3275 = vand.u32 %v301, 4294901760
        %v3276 = vsub.f32 %v301, %v3275
        %v3277 = vand.u32 %v3276, 4294901760
        %3278 = vmatmul.mubr.f32.gmra.mrb[0].mxu0 %v3277
        %v3279 = vpop.f32.mrb[0].mxu0
        %v3280 = vadd.f32 %v2572, %v3279
        %v3281 = vpop.f32.mrb[0].mxu0
        %v3282 = vand.u32 %v306, 4294901760
        %v3283 = vsub.f32 %v306, %v3282
        %v3284 = vand.u32 %v3283, 4294901760
        %3285 = vmatprep.mubr.f32.mxu0 %v3284
        %v3286 = vand.u32 %v305, 4294901760
        %v3287 = vsub.f32 %v305, %v3286
        %v3288 = vand.u32 %v3287, 4294901760
        %3289 = vmatmul.mubr.f32.gmra.mrb[0].mxu0 %v3288
        %v3290 = vpop.f32.mrb[0].mxu0
        %v3291 = vadd.f32 %v2581, %v3290
        %v3292 = vpop.f32.mrb[0].mxu0
        %v3293 = vand.u32 %v310, 4294901760
        %v3294 = vsub.f32 %v310, %v3293
        %v3295 = vand.u32 %v3294, 4294901760
        %3296 = vmatprep.mubr.f32.mxu0 %v3295
        %v3297 = vand.u32 %v309, 4294901760
        %v3298 = vsub.f32 %v309, %v3297
        %v3299 = vand.u32 %v3298, 4294901760
        %3300 = vmatmul.mubr.f32.gmra.mrb[0].mxu0 %v3299
        %v3301 = vpop.f32.mrb[0].mxu0
        %v3302 = vadd.f32 %v2590, %v3301
        %v3303 = vpop.f32.mrb[0].mxu0
        %v3304 = vand.u32 %v314, 4294901760
        %v3305 = vsub.f32 %v314, %v3304
        %v3306 = vand.u32 %v3305, 4294901760
        %3307 = vmatprep.mubr.f32.mxu0 %v3306
        %v3308 = vand.u32 %v313, 4294901760
        %v3309 = vsub.f32 %v313, %v3308
        %v3310 = vand.u32 %v3309, 4294901760
        %3311 = vmatmul.mubr.f32.gmra.mrb[0].mxu0 %v3310
        %v3312 = vpop.f32.mrb[0].mxu0
        %v3313 = vadd.f32 %v2599, %v3312
        %v3314 = vpop.f32.mrb[0].mxu0
        %v3315 = vand.u32 %v318, 4294901760
        %v3316 = vsub.f32 %v318, %v3315
        %v3317 = vand.u32 %v3316, 4294901760
        %3318 = vmatprep.mubr.f32.mxu0 %v3317
        %v3319 = vand.u32 %v317, 4294901760
        %v3320 = vsub.f32 %v317, %v3319
        %v3321 = vand.u32 %v3320, 4294901760
        %3322 = vmatmul.mubr.f32.gmra.mrb[0].mxu0 %v3321
        %v3323 = vpop.f32.mrb[0].mxu0
        %v3324 = vadd.f32 %v2608, %v3323
        %v3325 = vpop.f32.mrb[0].mxu0
        %v3326 = vand.u32 %v322, 4294901760
        %v3327 = vsub.f32 %v322, %v3326
        %v3328 = vand.u32 %v3327, 4294901760
        %3329 = vmatprep.mubr.f32.mxu0 %v3328
        %v3330 = vand.u32 %v321, 4294901760
        %v3331 = vsub.f32 %v321, %v3330
        %v3332 = vand.u32 %v3331, 4294901760
        %3333 = vmatmul.mubr.f32.gmra.mrb[0].mxu0 %v3332
        %v3334 = vpop.f32.mrb[0].mxu0
        %v3335 = vadd.f32 %v2617, %v3334
        %v3336 = vpop.f32.mrb[0].mxu0
        %v3337 = vand.u32 %v326, 4294901760
        %v3338 = vsub.f32 %v326, %v3337
        %v3339 = vand.u32 %v3338, 4294901760
        %3340 = vmatprep.mubr.f32.mxu0 %v3339
        %v3341 = vand.u32 %v325, 4294901760
        %v3342 = vsub.f32 %v325, %v3341
        %v3343 = vand.u32 %v3342, 4294901760
        %3344 = vmatmul.mubr.f32.gmra.mrb[0].mxu0 %v3343
        %v3345 = vpop.f32.mrb[0].mxu0
        %v3346 = vadd.f32 %v2626, %v3345
        %v3347 = vpop.f32.mrb[0].mxu0
        %v3348 = vand.u32 %v330, 4294901760
        %v3349 = vsub.f32 %v330, %v3348
        %v3350 = vand.u32 %v3349, 4294901760
        %3351 = vmatprep.mubr.f32.mxu0 %v3350
        %v3352 = vand.u32 %v329, 4294901760
        %v3353 = vsub.f32 %v329, %v3352
        %v3354 = vand.u32 %v3353, 4294901760
        %3355 = vmatmul.mubr.f32.gmra.mrb[0].mxu0 %v3354
        %v3356 = vpop.f32.mrb[0].mxu0
        %v3357 = vadd.f32 %v2635, %v3356
        %v3358 = vpop.f32.mrb[0].mxu0
        %v3359 = vand.u32 %v334, 4294901760
        %v3360 = vsub.f32 %v334, %v3359
        %v3361 = vand.u32 %v3360, 4294901760
        %3362 = vmatprep.mubr.f32.mxu0 %v3361
        %v3363 = vand.u32 %v333, 4294901760
        %v3364 = vsub.f32 %v333, %v3363
        %v3365 = vand.u32 %v3364, 4294901760
        %3366 = vmatmul.mubr.f32.gmra.mrb[0].mxu0 %v3365
        %v3367 = vpop.f32.mrb[0].mxu0
        %v3368 = vadd.f32 %v2644, %v3367
        %v3369 = vpop.f32.mrb[0].mxu0
        %v3370 = vand.u32 %v338, 4294901760
        %v3371 = vsub.f32 %v338, %v3370
        %v3372 = vand.u32 %v3371, 4294901760
        %3373 = vmatprep.mubr.f32.mxu0 %v3372
        %v3374 = vand.u32 %v337, 4294901760
        %v3375 = vsub.f32 %v337, %v3374
        %v3376 = vand.u32 %v3375, 4294901760
        %3377 = vmatmul.mubr.f32.gmra.mrb[0].mxu0 %v3376
        %v3378 = vpop.f32.mrb[0].mxu0
        %v3379 = vadd.f32 %v2653, %v3378
        %v3380 = vpop.f32.mrb[0].mxu0
        %v3381 = vand.u32 %v342, 4294901760
        %v3382 = vsub.f32 %v342, %v3381
        %v3383 = vand.u32 %v3382, 4294901760
        %3384 = vmatprep.mubr.f32.mxu0 %v3383
        %v3385 = vand.u32 %v341, 4294901760
        %v3386 = vsub.f32 %v341, %v3385
        %v3387 = vand.u32 %v3386, 4294901760
        %3388 = vmatmul.mubr.f32.gmra.mrb[0].mxu0 %v3387
        %v3389 = vpop.f32.mrb[0].mxu0
        %v3390 = vadd.f32 %v2662, %v3389
        %v3391 = vpop.f32.mrb[0].mxu0
        %v3392 = vand.u32 %v346, 4294901760
        %v3393 = vsub.f32 %v346, %v3392
        %v3394 = vand.u32 %v3393, 4294901760
        %3395 = vmatprep.mubr.f32.mxu0 %v3394
        %v3396 = vand.u32 %v345, 4294901760
        %v3397 = vsub.f32 %v345, %v3396
        %v3398 = vand.u32 %v3397, 4294901760
        %3399 = vmatmul.mubr.f32.gmra.mrb[0].mxu0 %v3398
        %v3400 = vpop.f32.mrb[0].mxu0
        %v3401 = vadd.f32 %v2671, %v3400
        %v3402 = vpop.f32.mrb[0].mxu0
        %v3403 = vand.u32 %v350, 4294901760
        %v3404 = vsub.f32 %v350, %v3403
        %v3405 = vand.u32 %v3404, 4294901760
        %3406 = vmatprep.mubr.f32.mxu0 %v3405
        %v3407 = vand.u32 %v349, 4294901760
        %v3408 = vsub.f32 %v349, %v3407
        %v3409 = vand.u32 %v3408, 4294901760
        %3410 = vmatmul.mubr.f32.gmra.mrb[0].mxu0 %v3409
        %v3411 = vpop.f32.mrb[0].mxu0
        %v3412 = vadd.f32 %v2680, %v3411
        %v3413 = vpop.f32.mrb[0].mxu0
        %v3414 = vand.u32 %v354, 4294901760
        %v3415 = vsub.f32 %v354, %v3414
        %v3416 = vand.u32 %v3415, 4294901760
        %3417 = vmatprep.mubr.f32.mxu0 %v3416
        %v3418 = vand.u32 %v353, 4294901760
        %v3419 = vsub.f32 %v353, %v3418
        %v3420 = vand.u32 %v3419, 4294901760
        %3421 = vmatmul.mubr.f32.gmra.mrb[0].mxu0 %v3420
        %v3422 = vpop.f32.mrb[0].mxu0
        %v3423 = vadd.f32 %v2689, %v3422
        %v3424 = vpop.f32.mrb[0].mxu0
        %v3425 = vand.u32 %v358, 4294901760
        %v3426 = vsub.f32 %v358, %v3425
        %v3427 = vand.u32 %v3426, 4294901760
        %3428 = vmatprep.mubr.f32.mxu0 %v3427
        %v3429 = vand.u32 %v357, 4294901760
        %v3430 = vsub.f32 %v357, %v3429
        %v3431 = vand.u32 %v3430, 4294901760
        %3432 = vmatmul.mubr.f32.gmra.mrb[0].mxu0 %v3431
        %v3433 = vpop.f32.mrb[0].mxu0
        %v3434 = vadd.f32 %v2698, %v3433
        %v3435 = vpop.f32.mrb[0].mxu0
        %v3436 = vand.u32 %v362, 4294901760
        %v3437 = vsub.f32 %v362, %v3436
        %v3438 = vand.u32 %v3437, 4294901760
        %3439 = vmatprep.mubr.f32.mxu0 %v3438
        %v3440 = vand.u32 %v361, 4294901760
        %v3441 = vsub.f32 %v361, %v3440
        %v3442 = vand.u32 %v3441, 4294901760
        %3443 = vmatmul.mubr.f32.gmra.mrb[0].mxu0 %v3442
        %v3444 = vpop.f32.mrb[0].mxu0
        %v3445 = vadd.f32 %v2707, %v3444
        %v3446 = vpop.f32.mrb[0].mxu0
        %v3447 = vand.u32 %v366, 4294901760
        %v3448 = vsub.f32 %v366, %v3447
        %v3449 = vand.u32 %v3448, 4294901760
        %3450 = vmatprep.mubr.f32.mxu0 %v3449
        %v3451 = vand.u32 %v365, 4294901760
        %v3452 = vsub.f32 %v365, %v3451
        %v3453 = vand.u32 %v3452, 4294901760
        %3454 = vmatmul.mubr.f32.gmra.mrb[0].mxu0 %v3453
        %v3455 = vpop.f32.mrb[0].mxu0
        %v3456 = vadd.f32 %v2716, %v3455
        %v3457 = vpop.f32.mrb[0].mxu0
        %v3458 = vand.u32 %v370, 4294901760
        %v3459 = vsub.f32 %v370, %v3458
        %v3460 = vand.u32 %v3459, 4294901760
        %3461 = vmatprep.mubr.f32.mxu0 %v3460
        %v3462 = vand.u32 %v369, 4294901760
        %v3463 = vsub.f32 %v369, %v3462
        %v3464 = vand.u32 %v3463, 4294901760
        %3465 = vmatmul.mubr.f32.gmra.mrb[0].mxu0 %v3464
        %v3466 = vpop.f32.mrb[0].mxu0
        %v3467 = vadd.f32 %v2725, %v3466
        %v3468 = vpop.f32.mrb[0].mxu0
        %v3469 = vand.u32 %v374, 4294901760
        %v3470 = vsub.f32 %v374, %v3469
        %v3471 = vand.u32 %v3470, 4294901760
        %3472 = vmatprep.mubr.f32.mxu0 %v3471
        %v3473 = vand.u32 %v373, 4294901760
        %v3474 = vsub.f32 %v373, %v3473
        %v3475 = vand.u32 %v3474, 4294901760
        %3476 = vmatmul.mubr.f32.gmra.mrb[0].mxu0 %v3475
        %v3477 = vpop.f32.mrb[0].mxu0
        %v3478 = vadd.f32 %v2734, %v3477
        %v3479 = vpop.f32.mrb[0].mxu0
        %v3480 = vand.u32 %v378, 4294901760
        %v3481 = vsub.f32 %v378, %v3480
        %v3482 = vand.u32 %v3481, 4294901760
        %3483 = vmatprep.mubr.f32.mxu0 %v3482
        %v3484 = vand.u32 %v377, 4294901760
        %v3485 = vsub.f32 %v377, %v3484
        %v3486 = vand.u32 %v3485, 4294901760
        %3487 = vmatmul.mubr.f32.gmra.mrb[0].mxu0 %v3486
        %v3488 = vpop.f32.mrb[0].mxu0
        %v3489 = vadd.f32 %v2743, %v3488
        %v3490 = vpop.f32.mrb[0].mxu0
        %v3491 = vand.u32 %v382, 4294901760
        %v3492 = vsub.f32 %v382, %v3491
        %v3493 = vand.u32 %v3492, 4294901760
        %3494 = vmatprep.mubr.f32.mxu0 %v3493
        %v3495 = vand.u32 %v381, 4294901760
        %v3496 = vsub.f32 %v381, %v3495
        %v3497 = vand.u32 %v3496, 4294901760
        %3498 = vmatmul.mubr.f32.gmra.mrb[0].mxu0 %v3497
        %v3499 = vpop.f32.mrb[0].mxu0
        %v3500 = vadd.f32 %v2752, %v3499
        %v3501 = vpop.f32.mrb[0].mxu0
        %v3502 = vand.u32 %v386, 4294901760
        %v3503 = vsub.f32 %v386, %v3502
        %v3504 = vand.u32 %v3503, 4294901760
        %3505 = vmatprep.mubr.f32.mxu0 %v3504
        %v3506 = vand.u32 %v385, 4294901760
        %v3507 = vsub.f32 %v385, %v3506
        %v3508 = vand.u32 %v3507, 4294901760
        %3509 = vmatmul.mubr.f32.gmra.mrb[0].mxu0 %v3508
        %v3510 = vpop.f32.mrb[0].mxu0
        %v3511 = vadd.f32 %v2761, %v3510
        %v3512 = vpop.f32.mrb[0].mxu0
        %v3513 = vand.u32 %v390, 4294901760
        %v3514 = vsub.f32 %v390, %v3513
        %v3515 = vand.u32 %v3514, 4294901760
        %3516 = vmatprep.mubr.f32.mxu0 %v3515
        %v3517 = vand.u32 %v389, 4294901760
        %v3518 = vsub.f32 %v389, %v3517
        %v3519 = vand.u32 %v3518, 4294901760
        %3520 = vmatmul.mubr.f32.gmra.mrb[0].mxu0 %v3519
        %v3521 = vpop.f32.mrb[0].mxu0
        %v3522 = vadd.f32 %v2770, %v3521
        %v3523 = vpop.f32.mrb[0].mxu0
        %v3524 = vand.u32 %v394, 4294901760
        %v3525 = vsub.f32 %v394, %v3524
        %v3526 = vand.u32 %v3525, 4294901760
        %3527 = vmatprep.mubr.f32.mxu0 %v3526
        %v3528 = vand.u32 %v393, 4294901760
        %v3529 = vsub.f32 %v393, %v3528
        %v3530 = vand.u32 %v3529, 4294901760
        %3531 = vmatmul.mubr.f32.gmra.mrb[0].mxu0 %v3530
        %v3532 = vpop.f32.mrb[0].mxu0
        %v3533 = vadd.f32 %v2779, %v3532
        %v3534 = vpop.f32.mrb[0].mxu0
        %v3535 = vand.u32 %v398, 4294901760
        %v3536 = vsub.f32 %v398, %v3535
        %v3537 = vand.u32 %v3536, 4294901760
        %3538 = vmatprep.mubr.f32.mxu0 %v3537
        %v3539 = vand.u32 %v397, 4294901760
        %v3540 = vsub.f32 %v397, %v3539
        %v3541 = vand.u32 %v3540, 4294901760
        %3542 = vmatmul.mubr.f32.gmra.mrb[0].mxu0 %v3541
        %v3543 = vpop.f32.mrb[0].mxu0
        %v3544 = vadd.f32 %v2788, %v3543
        %v3545 = vpop.f32.mrb[0].mxu0
        %v3546 = vand.u32 %v402, 4294901760
        %v3547 = vsub.f32 %v402, %v3546
        %v3548 = vand.u32 %v3547, 4294901760
        %3549 = vmatprep.mubr.f32.mxu0 %v3548
        %v3550 = vand.u32 %v401, 4294901760
        %v3551 = vsub.f32 %v401, %v3550
        %v3552 = vand.u32 %v3551, 4294901760
        %3553 = vmatmul.mubr.f32.gmra.mrb[0].mxu0 %v3552
        %v3554 = vpop.f32.mrb[0].mxu0
        %v3555 = vadd.f32 %v2797, %v3554
        %v3556 = vpop.f32.mrb[0].mxu0
        %v3557 = vand.u32 %v406, 4294901760
        %v3558 = vsub.f32 %v406, %v3557
        %v3559 = vand.u32 %v3558, 4294901760
        %3560 = vmatprep.mubr.f32.mxu0 %v3559
        %v3561 = vand.u32 %v405, 4294901760
        %v3562 = vsub.f32 %v405, %v3561
        %v3563 = vand.u32 %v3562, 4294901760
        %3564 = vmatmul.mubr.f32.gmra.mrb[0].mxu0 %v3563
        %v3565 = vpop.f32.mrb[0].mxu0
        %v3566 = vadd.f32 %v2806, %v3565
        %v3567 = vpop.f32.mrb[0].mxu0
        %v3568 = vand.u32 %v410, 4294901760
        %v3569 = vsub.f32 %v410, %v3568
        %v3570 = vand.u32 %v3569, 4294901760
        %3571 = vmatprep.mubr.f32.mxu0 %v3570
        %v3572 = vand.u32 %v409, 4294901760
        %v3573 = vsub.f32 %v409, %v3572
        %v3574 = vand.u32 %v3573, 4294901760
        %3575 = vmatmul.mubr.f32.gmra.mrb[0].mxu0 %v3574
        %v3576 = vpop.f32.mrb[0].mxu0
        %v3577 = vadd.f32 %v2815, %v3576
        %v3578 = vpop.f32.mrb[0].mxu0
        %v3579 = vand.u32 %v414, 4294901760
        %v3580 = vsub.f32 %v414, %v3579
        %v3581 = vand.u32 %v3580, 4294901760
        %3582 = vmatprep.mubr.f32.mxu0 %v3581
        %v3583 = vand.u32 %v413, 4294901760
        %v3584 = vsub.f32 %v413, %v3583
        %v3585 = vand.u32 %v3584, 4294901760
        %3586 = vmatmul.mubr.f32.gmra.mrb[0].mxu0 %v3585
        %v3587 = vpop.f32.mrb[0].mxu0
        %v3588 = vadd.f32 %v2824, %v3587
        %v3589 = vpop.f32.mrb[0].mxu0
        %v3590 = vand.u32 %v418, 4294901760
        %v3591 = vsub.f32 %v418, %v3590
        %v3592 = vand.u32 %v3591, 4294901760
        %3593 = vmatprep.mubr.f32.mxu0 %v3592
        %v3594 = vand.u32 %v417, 4294901760
        %v3595 = vsub.f32 %v417, %v3594
        %v3596 = vand.u32 %v3595, 4294901760
        %3597 = vmatmul.mubr.f32.gmra.mrb[0].mxu0 %v3596
        %v3598 = vpop.f32.mrb[0].mxu0
        %v3599 = vadd.f32 %v2833, %v3598
        %v3600 = vpop.f32.mrb[0].mxu0
        %v3601 = vand.u32 %v422, 4294901760
        %v3602 = vsub.f32 %v422, %v3601
        %v3603 = vand.u32 %v3602, 4294901760
        %3604 = vmatprep.mubr.f32.mxu0 %v3603
        %v3605 = vand.u32 %v421, 4294901760
        %v3606 = vsub.f32 %v421, %v3605
        %v3607 = vand.u32 %v3606, 4294901760
        %3608 = vmatmul.mubr.f32.gmra.mrb[0].mxu0 %v3607
        %v3609 = vpop.f32.mrb[0].mxu0
        %v3610 = vadd.f32 %v2842, %v3609
        %v3611 = vpop.f32.mrb[0].mxu0
        %v3612 = vand.u32 %v426, 4294901760
        %v3613 = vsub.f32 %v426, %v3612
        %v3614 = vand.u32 %v3613, 4294901760
        %3615 = vmatprep.mubr.f32.mxu0 %v3614
        %v3616 = vand.u32 %v425, 4294901760
        %v3617 = vsub.f32 %v425, %v3616
        %v3618 = vand.u32 %v3617, 4294901760
        %3619 = vmatmul.mubr.f32.gmra.mrb[0].mxu0 %v3618
        %v3620 = vpop.f32.mrb[0].mxu0
        %v3621 = vadd.f32 %v2851, %v3620
        %v3622 = vpop.f32.mrb[0].mxu0
        %v3623 = vand.u32 %v430, 4294901760
        %v3624 = vsub.f32 %v430, %v3623
        %v3625 = vand.u32 %v3624, 4294901760
        %3626 = vmatprep.mubr.f32.mxu0 %v3625
        %v3627 = vand.u32 %v429, 4294901760
        %v3628 = vsub.f32 %v429, %v3627
        %v3629 = vand.u32 %v3628, 4294901760
        %3630 = vmatmul.mubr.f32.gmra.mrb[0].mxu0 %v3629
        %v3631 = vpop.f32.mrb[0].mxu0
        %v3632 = vadd.f32 %v2860, %v3631
        %v3633 = vpop.f32.mrb[0].mxu0
        %v3634 = vand.u32 %v434, 4294901760
        %v3635 = vsub.f32 %v434, %v3634
        %v3636 = vand.u32 %v3635, 4294901760
        %3637 = vmatprep.mubr.f32.mxu0 %v3636
        %v3638 = vand.u32 %v433, 4294901760
        %v3639 = vsub.f32 %v433, %v3638
        %v3640 = vand.u32 %v3639, 4294901760
        %3641 = vmatmul.mubr.f32.gmra.mrb[0].mxu0 %v3640
        %v3642 = vpop.f32.mrb[0].mxu0
        %v3643 = vadd.f32 %v2869, %v3642
        %v3644 = vpop.f32.mrb[0].mxu0
        %v3645 = vand.u32 %v438, 4294901760
        %v3646 = vsub.f32 %v438, %v3645
        %v3647 = vand.u32 %v3646, 4294901760
        %3648 = vmatprep.mubr.f32.mxu0 %v3647
        %v3649 = vand.u32 %v437, 4294901760
        %v3650 = vsub.f32 %v437, %v3649
        %v3651 = vand.u32 %v3650, 4294901760
        %3652 = vmatmul.mubr.f32.gmra.mrb[0].mxu0 %v3651
        %v3653 = vpop.f32.mrb[0].mxu0
        %v3654 = vadd.f32 %v2878, %v3653
        %v3655 = vpop.f32.mrb[0].mxu0
        %v3656 = vand.u32 %v442, 4294901760
        %v3657 = vsub.f32 %v442, %v3656
        %v3658 = vand.u32 %v3657, 4294901760
        %3659 = vmatprep.mubr.f32.mxu0 %v3658
        %v3660 = vand.u32 %v441, 4294901760
        %v3661 = vsub.f32 %v441, %v3660
        %v3662 = vand.u32 %v3661, 4294901760
        %3663 = vmatmul.mubr.f32.gmra.mrb[0].mxu0 %v3662
        %v3664 = vpop.f32.mrb[0].mxu0
        %v3665 = vadd.f32 %v2887, %v3664
        %v3666 = vpop.f32.mrb[0].mxu0
        %v3667 = vand.u32 %v446, 4294901760
        %v3668 = vsub.f32 %v446, %v3667
        %v3669 = vand.u32 %v3668, 4294901760
        %3670 = vmatprep.mubr.f32.mxu0 %v3669
        %v3671 = vand.u32 %v445, 4294901760
        %v3672 = vsub.f32 %v445, %v3671
        %v3673 = vand.u32 %v3672, 4294901760
        %3674 = vmatmul.mubr.f32.gmra.mrb[0].mxu0 %v3673
        %v3675 = vpop.f32.mrb[0].mxu0
        %v3676 = vadd.f32 %v2896, %v3675
        %v3677 = vpop.f32.mrb[0].mxu0
        %v3678 = vand.u32 %v450, 4294901760
        %v3679 = vsub.f32 %v450, %v3678
        %v3680 = vand.u32 %v3679, 4294901760
        %3681 = vmatprep.mubr.f32.mxu0 %v3680
        %v3682 = vand.u32 %v449, 4294901760
        %v3683 = vsub.f32 %v449, %v3682
        %v3684 = vand.u32 %v3683, 4294901760
        %3685 = vmatmul.mubr.f32.gmra.mrb[0].mxu0 %v3684
        %v3686 = vpop.f32.mrb[0].mxu0
        %v3687 = vadd.f32 %v2905, %v3686
        %v3688 = vpop.f32.mrb[0].mxu0
        %v3689 = vand.u32 %v454, 4294901760
        %v3690 = vsub.f32 %v454, %v3689
        %v3691 = vand.u32 %v3690, 4294901760
        %3692 = vmatprep.mubr.f32.mxu0 %v3691
        %v3693 = vand.u32 %v453, 4294901760
        %v3694 = vsub.f32 %v453, %v3693
        %v3695 = vand.u32 %v3694, 4294901760
        %3696 = vmatmul.mubr.f32.gmra.mrb[0].mxu0 %v3695
        %v3697 = vpop.f32.mrb[0].mxu0
        %v3698 = vadd.f32 %v2914, %v3697
        %v3699 = vpop.f32.mrb[0].mxu0
        %v3700 = vand.u32 %v458, 4294901760
        %v3701 = vsub.f32 %v458, %v3700
        %v3702 = vand.u32 %v3701, 4294901760
        %3703 = vmatprep.mubr.f32.mxu0 %v3702
        %v3704 = vand.u32 %v457, 4294901760
        %v3705 = vsub.f32 %v457, %v3704
        %v3706 = vand.u32 %v3705, 4294901760
        %3707 = vmatmul.mubr.f32.gmra.mrb[0].mxu0 %v3706
        %v3708 = vpop.f32.mrb[0].mxu0
        %v3709 = vadd.f32 %v2923, %v3708
        %v3710 = vpop.f32.mrb[0].mxu0
        %v3711 = vand.u32 %v462, 4294901760
        %v3712 = vsub.f32 %v462, %v3711
        %v3713 = vand.u32 %v3712, 4294901760
        %3714 = vmatprep.mubr.f32.mxu0 %v3713
        %v3715 = vand.u32 %v461, 4294901760
        %v3716 = vsub.f32 %v461, %v3715
        %v3717 = vand.u32 %v3716, 4294901760
        %3718 = vmatmul.mubr.f32.gmra.mrb[0].mxu0 %v3717
        %v3719 = vpop.f32.mrb[0].mxu0
        %v3720 = vadd.f32 %v2932, %v3719
        %v3721 = vpop.f32.mrb[0].mxu0
        %v3722 = vand.u32 %v466, 4294901760
        %v3723 = vsub.f32 %v466, %v3722
        %v3724 = vand.u32 %v3723, 4294901760
        %3725 = vmatprep.mubr.f32.mxu0 %v3724
        %v3726 = vand.u32 %v465, 4294901760
        %v3727 = vsub.f32 %v465, %v3726
        %v3728 = vand.u32 %v3727, 4294901760
        %3729 = vmatmul.mubr.f32.gmra.mrb[0].mxu0 %v3728
        %v3730 = vpop.f32.mrb[0].mxu0
        %v3731 = vadd.f32 %v2941, %v3730
        %v3732 = vpop.f32.mrb[0].mxu0
        %3733 = vdwg.mxu0
        %3734 = vmatprep.subr.mxu0 0.0
        %v3735 = vand.u32 %v469, 4294901760
        %v3736 = vsub.f32 %v469, %v3735
        %v3737 = vand.u32 %v3736, 4294901760
        %3738 = vmatpush1.msra.mxu0 %v3737
        %3739 = vmatprep.subr.mxu0 0.0
        %v3740 = vand.u32 %v470, 4294901760
        %v3741 = vsub.f32 %v470, %v3740
        %v3742 = vand.u32 %v3741, 4294901760
        %3743 = vmatpush1.msra.mxu0 %v3742
        %3744 = vmatprep.subr.mxu0 0.0
        %v3745 = vand.u32 %v471, 4294901760
        %v3746 = vsub.f32 %v471, %v3745
        %v3747 = vand.u32 %v3746, 4294901760
        %3748 = vmatpush1.msra.mxu0 %v3747
        %3749 = vmatprep.subr.mxu0 0.0
        %v3750 = vand.u32 %v472, 4294901760
        %v3751 = vsub.f32 %v472, %v3750
        %v3752 = vand.u32 %v3751, 4294901760
        %3753 = vmatpush1.msra.mxu0 %v3752
        %3754 = vmatprep.subr.mxu0 0.0
        %v3755 = vand.u32 %v473, 4294901760
        %v3756 = vsub.f32 %v473, %v3755
        %v3757 = vand.u32 %v3756, 4294901760
        %3758 = vmatpush1.msra.mxu0 %v3757
        %3759 = vmatprep.subr.mxu0 0.0
        %v3760 = vand.u32 %v474, 4294901760
        %v3761 = vsub.f32 %v474, %v3760
        %v3762 = vand.u32 %v3761, 4294901760
        %3763 = vmatpush1.msra.mxu0 %v3762
        %3764 = vmatprep.subr.mxu0 0.0
        %v3765 = vand.u32 %v475, 4294901760
        %v3766 = vsub.f32 %v475, %v3765
        %v3767 = vand.u32 %v3766, 4294901760
        %3768 = vmatpush1.msra.mxu0 %v3767
        %3769 = vmatprep.subr.mxu0 0.0
        %v3770 = vand.u32 %v476, 4294901760
        %v3771 = vsub.f32 %v476, %v3770
        %v3772 = vand.u32 %v3771, 4294901760
        %3773 = vmatpush1.msra.mxu0 %v3772
        %3774 = vmatprep.subr.mxu0 0.0
        %v3775 = vand.u32 %v477, 4294901760
        %v3776 = vsub.f32 %v477, %v3775
        %v3777 = vand.u32 %v3776, 4294901760
        %3778 = vmatpush1.msra.mxu0 %v3777
        %3779 = vmatprep.subr.mxu0 0.0
        %v3780 = vand.u32 %v478, 4294901760
        %v3781 = vsub.f32 %v478, %v3780
        %v3782 = vand.u32 %v3781, 4294901760
        %3783 = vmatpush1.msra.mxu0 %v3782
        %3784 = vmatprep.subr.mxu0 0.0
        %v3785 = vand.u32 %v479, 4294901760
        %v3786 = vsub.f32 %v479, %v3785
        %v3787 = vand.u32 %v3786, 4294901760
        %3788 = vmatpush1.msra.mxu0 %v3787
        %3789 = vmatprep.subr.mxu0 0.0
        %v3790 = vand.u32 %v480, 4294901760
        %v3791 = vsub.f32 %v480, %v3790
        %v3792 = vand.u32 %v3791, 4294901760
        %3793 = vmatpush1.msra.mxu0 %v3792
        %3794 = vmatprep.subr.mxu0 0.0
        %v3795 = vand.u32 %v481, 4294901760
        %v3796 = vsub.f32 %v481, %v3795
        %v3797 = vand.u32 %v3796, 4294901760
        %3798 = vmatpush1.msra.mxu0 %v3797
        %3799 = vmatprep.subr.mxu0 0.0
        %v3800 = vand.u32 %v482, 4294901760
        %v3801 = vsub.f32 %v482, %v3800
        %v3802 = vand.u32 %v3801, 4294901760
        %3803 = vmatpush1.msra.mxu0 %v3802
        %3804 = vmatprep.subr.mxu0 0.0
        %v3805 = vand.u32 %v483, 4294901760
        %v3806 = vsub.f32 %v483, %v3805
        %v3807 = vand.u32 %v3806, 4294901760
        %3808 = vmatpush1.msra.mxu0 %v3807
        %3809 = vmatprep.subr.mxu0 0.0
        %v3810 = vand.u32 %v484, 4294901760
        %v3811 = vsub.f32 %v484, %v3810
        %v3812 = vand.u32 %v3811, 4294901760
        %3813 = vmatpush1.msra.mxu0 %v3812
        %3814 = vmatprep.subr.mxu0 0.0
        %v3815 = vand.u32 %v485, 4294901760
        %v3816 = vsub.f32 %v485, %v3815
        %v3817 = vand.u32 %v3816, 4294901760
        %3818 = vmatpush1.msra.mxu0 %v3817
        %3819 = vmatprep.subr.mxu0 0.0
        %v3820 = vand.u32 %v486, 4294901760
        %v3821 = vsub.f32 %v486, %v3820
        %v3822 = vand.u32 %v3821, 4294901760
        %3823 = vmatpush1.msra.mxu0 %v3822
        %3824 = vmatprep.subr.mxu0 0.0
        %v3825 = vand.u32 %v487, 4294901760
        %v3826 = vsub.f32 %v487, %v3825
        %v3827 = vand.u32 %v3826, 4294901760
        %3828 = vmatpush1.msra.mxu0 %v3827
        %3829 = vmatprep.subr.mxu0 0.0
        %v3830 = vand.u32 %v488, 4294901760
        %v3831 = vsub.f32 %v488, %v3830
        %v3832 = vand.u32 %v3831, 4294901760
        %3833 = vmatpush1.msra.mxu0 %v3832
        %3834 = vmatprep.subr.mxu0 0.0
        %v3835 = vand.u32 %v489, 4294901760
        %v3836 = vsub.f32 %v489, %v3835
        %v3837 = vand.u32 %v3836, 4294901760
        %3838 = vmatpush1.msra.mxu0 %v3837
        %3839 = vmatprep.subr.mxu0 0.0
        %v3840 = vand.u32 %v490, 4294901760
        %v3841 = vsub.f32 %v490, %v3840
        %v3842 = vand.u32 %v3841, 4294901760
        %3843 = vmatpush1.msra.mxu0 %v3842
        %3844 = vmatprep.subr.mxu0 0.0
        %v3845 = vand.u32 %v491, 4294901760
        %v3846 = vsub.f32 %v491, %v3845
        %v3847 = vand.u32 %v3846, 4294901760
        %3848 = vmatpush1.msra.mxu0 %v3847
        %3849 = vmatprep.subr.mxu0 0.0
        %v3850 = vand.u32 %v492, 4294901760
        %v3851 = vsub.f32 %v492, %v3850
        %v3852 = vand.u32 %v3851, 4294901760
        %3853 = vmatpush1.msra.mxu0 %v3852
        %3854 = vmatprep.subr.mxu0 0.0
        %v3855 = vand.u32 %v493, 4294901760
        %v3856 = vsub.f32 %v493, %v3855
        %v3857 = vand.u32 %v3856, 4294901760
        %3858 = vmatpush1.msra.mxu0 %v3857
        %3859 = vmatprep.subr.mxu0 0.0
        %v3860 = vand.u32 %v494, 4294901760
        %v3861 = vsub.f32 %v494, %v3860
        %v3862 = vand.u32 %v3861, 4294901760
        %3863 = vmatpush1.msra.mxu0 %v3862
        %3864 = vmatprep.subr.mxu0 0.0
        %v3865 = vand.u32 %v495, 4294901760
        %v3866 = vsub.f32 %v495, %v3865
        %v3867 = vand.u32 %v3866, 4294901760
        %3868 = vmatpush1.msra.mxu0 %v3867
        %3869 = vmatprep.subr.mxu0 0.0
        %v3870 = vand.u32 %v496, 4294901760
        %v3871 = vsub.f32 %v496, %v3870
        %v3872 = vand.u32 %v3871, 4294901760
        %3873 = vmatpush1.msra.mxu0 %v3872
        %3874 = vmatprep.subr.mxu0 0.0
        %v3875 = vand.u32 %v497, 4294901760
        %v3876 = vsub.f32 %v497, %v3875
        %v3877 = vand.u32 %v3876, 4294901760
        %3878 = vmatpush1.msra.mxu0 %v3877
        %3879 = vmatprep.subr.mxu0 0.0
        %v3880 = vand.u32 %v498, 4294901760
        %v3881 = vsub.f32 %v498, %v3880
        %v3882 = vand.u32 %v3881, 4294901760
        %3883 = vmatpush1.msra.mxu0 %v3882
        %3884 = vmatprep.subr.mxu0 0.0
        %v3885 = vand.u32 %v499, 4294901760
        %v3886 = vsub.f32 %v499, %v3885
        %v3887 = vand.u32 %v3886, 4294901760
        %3888 = vmatpush1.msra.mxu0 %v3887
        %3889 = vmatprep.subr.mxu0 0.0
        %v3890 = vand.u32 %v500, 4294901760
        %v3891 = vsub.f32 %v500, %v3890
        %v3892 = vand.u32 %v3891, 4294901760
        %3893 = vmatpush1.msra.mxu0 %v3892
        %v3894 = vand.u32 %v218, 4294901760
        %3895 = vmatprep.mubr.f32.mxu0 %v3894
        %v3896 = vand.u32 %v217, 4294901760
        %3897 = vmatmul.mubr.f32.gmra.mrb[0].mxu0 %v3896
        %v3898 = vpop.f32.mrb[0].mxu0
        %v3899 = vadd.f32 %v3049, %v3898
        %v3900 = vpop.f32.mrb[0].mxu0
        %v3901 = vand.u32 %v222, 4294901760
        %3902 = vmatprep.mubr.f32.mxu0 %v3901
        %v3903 = vand.u32 %v221, 4294901760
        %3904 = vmatmul.mubr.f32.gmra.mrb[0].mxu0 %v3903
        %v3905 = vpop.f32.mrb[0].mxu0
        %v3906 = vadd.f32 %v3060, %v3905
        %v3907 = vpop.f32.mrb[0].mxu0
        %v3908 = vand.u32 %v226, 4294901760
        %3909 = vmatprep.mubr.f32.mxu0 %v3908
        %v3910 = vand.u32 %v225, 4294901760
        %3911 = vmatmul.mubr.f32.gmra.mrb[0].mxu0 %v3910
        %v3912 = vpop.f32.mrb[0].mxu0
        %v3913 = vadd.f32 %v3071, %v3912
        %v3914 = vpop.f32.mrb[0].mxu0
        %v3915 = vand.u32 %v230, 4294901760
        %3916 = vmatprep.mubr.f32.mxu0 %v3915
        %v3917 = vand.u32 %v229, 4294901760
        %3918 = vmatmul.mubr.f32.gmra.mrb[0].mxu0 %v3917
        %v3919 = vpop.f32.mrb[0].mxu0
        %v3920 = vadd.f32 %v3082, %v3919
        %v3921 = vpop.f32.mrb[0].mxu0
        %v3922 = vand.u32 %v234, 4294901760
        %3923 = vmatprep.mubr.f32.mxu0 %v3922
        %v3924 = vand.u32 %v233, 4294901760
        %3925 = vmatmul.mubr.f32.gmra.mrb[0].mxu0 %v3924
        %v3926 = vpop.f32.mrb[0].mxu0
        %v3927 = vadd.f32 %v3093, %v3926
        %v3928 = vpop.f32.mrb[0].mxu0
        %v3929 = vand.u32 %v238, 4294901760
        %3930 = vmatprep.mubr.f32.mxu0 %v3929
        %v3931 = vand.u32 %v237, 4294901760
        %3932 = vmatmul.mubr.f32.gmra.mrb[0].mxu0 %v3931
        %v3933 = vpop.f32.mrb[0].mxu0
        %v3934 = vadd.f32 %v3104, %v3933
        %v3935 = vpop.f32.mrb[0].mxu0
        %v3936 = vand.u32 %v242, 4294901760
        %3937 = vmatprep.mubr.f32.mxu0 %v3936
        %v3938 = vand.u32 %v241, 4294901760
        %3939 = vmatmul.mubr.f32.gmra.mrb[0].mxu0 %v3938
        %v3940 = vpop.f32.mrb[0].mxu0
        %v3941 = vadd.f32 %v3115, %v3940
        %v3942 = vpop.f32.mrb[0].mxu0
        %v3943 = vand.u32 %v246, 4294901760
        %3944 = vmatprep.mubr.f32.mxu0 %v3943
        %v3945 = vand.u32 %v245, 4294901760
        %3946 = vmatmul.mubr.f32.gmra.mrb[0].mxu0 %v3945
        %v3947 = vpop.f32.mrb[0].mxu0
        %v3948 = vadd.f32 %v3126, %v3947
        %v3949 = vpop.f32.mrb[0].mxu0
        %v3950 = vand.u32 %v250, 4294901760
        %3951 = vmatprep.mubr.f32.mxu0 %v3950
        %v3952 = vand.u32 %v249, 4294901760
        %3953 = vmatmul.mubr.f32.gmra.mrb[0].mxu0 %v3952
        %v3954 = vpop.f32.mrb[0].mxu0
        %v3955 = vadd.f32 %v3137, %v3954
        %v3956 = vpop.f32.mrb[0].mxu0
        %v3957 = vand.u32 %v254, 4294901760
        %3958 = vmatprep.mubr.f32.mxu0 %v3957
        %v3959 = vand.u32 %v253, 4294901760
        %3960 = vmatmul.mubr.f32.gmra.mrb[0].mxu0 %v3959
        %v3961 = vpop.f32.mrb[0].mxu0
        %v3962 = vadd.f32 %v3148, %v3961
        %v3963 = vpop.f32.mrb[0].mxu0
        %v3964 = vand.u32 %v258, 4294901760
        %3965 = vmatprep.mubr.f32.mxu0 %v3964
        %v3966 = vand.u32 %v257, 4294901760
        %3967 = vmatmul.mubr.f32.gmra.mrb[0].mxu0 %v3966
        %v3968 = vpop.f32.mrb[0].mxu0
        %v3969 = vadd.f32 %v3159, %v3968
        %v3970 = vpop.f32.mrb[0].mxu0
        %v3971 = vand.u32 %v262, 4294901760
        %3972 = vmatprep.mubr.f32.mxu0 %v3971
        %v3973 = vand.u32 %v261, 4294901760
        %3974 = vmatmul.mubr.f32.gmra.mrb[0].mxu0 %v3973
        %v3975 = vpop.f32.mrb[0].mxu0
        %v3976 = vadd.f32 %v3170, %v3975
        %v3977 = vpop.f32.mrb[0].mxu0
        %v3978 = vand.u32 %v266, 4294901760
        %3979 = vmatprep.mubr.f32.mxu0 %v3978
        %v3980 = vand.u32 %v265, 4294901760
        %3981 = vmatmul.mubr.f32.gmra.mrb[0].mxu0 %v3980
        %v3982 = vpop.f32.mrb[0].mxu0
        %v3983 = vadd.f32 %v3181, %v3982
        %v3984 = vpop.f32.mrb[0].mxu0
        %v3985 = vand.u32 %v270, 4294901760
        %3986 = vmatprep.mubr.f32.mxu0 %v3985
        %v3987 = vand.u32 %v269, 4294901760
        %3988 = vmatmul.mubr.f32.gmra.mrb[0].mxu0 %v3987
        %v3989 = vpop.f32.mrb[0].mxu0
        %v3990 = vadd.f32 %v3192, %v3989
        %v3991 = vpop.f32.mrb[0].mxu0
        %v3992 = vand.u32 %v274, 4294901760
        %3993 = vmatprep.mubr.f32.mxu0 %v3992
        %v3994 = vand.u32 %v273, 4294901760
        %3995 = vmatmul.mubr.f32.gmra.mrb[0].mxu0 %v3994
        %v3996 = vpop.f32.mrb[0].mxu0
        %v3997 = vadd.f32 %v3203, %v3996
        %v3998 = vpop.f32.mrb[0].mxu0
        %v3999 = vand.u32 %v278, 4294901760
        %4000 = vmatprep.mubr.f32.mxu0 %v3999
        %v4001 = vand.u32 %v277, 4294901760
        %4002 = vmatmul.mubr.f32.gmra.mrb[0].mxu0 %v4001
        %v4003 = vpop.f32.mrb[0].mxu0
        %v4004 = vadd.f32 %v3214, %v4003
        %v4005 = vpop.f32.mrb[0].mxu0
        %v4006 = vand.u32 %v282, 4294901760
        %4007 = vmatprep.mubr.f32.mxu0 %v4006
        %v4008 = vand.u32 %v281, 4294901760
        %4009 = vmatmul.mubr.f32.gmra.mrb[0].mxu0 %v4008
        %v4010 = vpop.f32.mrb[0].mxu0
        %v4011 = vadd.f32 %v3225, %v4010
        %v4012 = vpop.f32.mrb[0].mxu0
        %v4013 = vand.u32 %v286, 4294901760
        %4014 = vmatprep.mubr.f32.mxu0 %v4013
        %v4015 = vand.u32 %v285, 4294901760
        %4016 = vmatmul.mubr.f32.gmra.mrb[0].mxu0 %v4015
        %v4017 = vpop.f32.mrb[0].mxu0
        %v4018 = vadd.f32 %v3236, %v4017
        %v4019 = vpop.f32.mrb[0].mxu0
        %v4020 = vand.u32 %v290, 4294901760
        %4021 = vmatprep.mubr.f32.mxu0 %v4020
        %v4022 = vand.u32 %v289, 4294901760
        %4023 = vmatmul.mubr.f32.gmra.mrb[0].mxu0 %v4022
        %v4024 = vpop.f32.mrb[0].mxu0
        %v4025 = vadd.f32 %v3247, %v4024
        %v4026 = vpop.f32.mrb[0].mxu0
        %v4027 = vand.u32 %v294, 4294901760
        %4028 = vmatprep.mubr.f32.mxu0 %v4027
        %v4029 = vand.u32 %v293, 4294901760
        %4030 = vmatmul.mubr.f32.gmra.mrb[0].mxu0 %v4029
        %v4031 = vpop.f32.mrb[0].mxu0
        %v4032 = vadd.f32 %v3258, %v4031
        %v4033 = vpop.f32.mrb[0].mxu0
        %v4034 = vand.u32 %v298, 4294901760
        %4035 = vmatprep.mubr.f32.mxu0 %v4034
        %v4036 = vand.u32 %v297, 4294901760
        %4037 = vmatmul.mubr.f32.gmra.mrb[0].mxu0 %v4036
        %v4038 = vpop.f32.mrb[0].mxu0
        %v4039 = vadd.f32 %v3269, %v4038
        %v4040 = vpop.f32.mrb[0].mxu0
        %v4041 = vand.u32 %v302, 4294901760
        %4042 = vmatprep.mubr.f32.mxu0 %v4041
        %v4043 = vand.u32 %v301, 4294901760
        %4044 = vmatmul.mubr.f32.gmra.mrb[0].mxu0 %v4043
        %v4045 = vpop.f32.mrb[0].mxu0
        %v4046 = vadd.f32 %v3280, %v4045
        %v4047 = vpop.f32.mrb[0].mxu0
        %v4048 = vand.u32 %v306, 4294901760
        %4049 = vmatprep.mubr.f32.mxu0 %v4048
        %v4050 = vand.u32 %v305, 4294901760
        %4051 = vmatmul.mubr.f32.gmra.mrb[0].mxu0 %v4050
        %v4052 = vpop.f32.mrb[0].mxu0
        %v4053 = vadd.f32 %v3291, %v4052
        %v4054 = vpop.f32.mrb[0].mxu0
        %v4055 = vand.u32 %v310, 4294901760
        %4056 = vmatprep.mubr.f32.mxu0 %v4055
        %v4057 = vand.u32 %v309, 4294901760
        %4058 = vmatmul.mubr.f32.gmra.mrb[0].mxu0 %v4057
        %v4059 = vpop.f32.mrb[0].mxu0
        %v4060 = vadd.f32 %v3302, %v4059
        %v4061 = vpop.f32.mrb[0].mxu0
        %v4062 = vand.u32 %v314, 4294901760
        %4063 = vmatprep.mubr.f32.mxu0 %v4062
        %v4064 = vand.u32 %v313, 4294901760
        %4065 = vmatmul.mubr.f32.gmra.mrb[0].mxu0 %v4064
        %v4066 = vpop.f32.mrb[0].mxu0
        %v4067 = vadd.f32 %v3313, %v4066
        %v4068 = vpop.f32.mrb[0].mxu0
        %v4069 = vand.u32 %v318, 4294901760
        %4070 = vmatprep.mubr.f32.mxu0 %v4069
        %v4071 = vand.u32 %v317, 4294901760
        %4072 = vmatmul.mubr.f32.gmra.mrb[0].mxu0 %v4071
        %v4073 = vpop.f32.mrb[0].mxu0
        %v4074 = vadd.f32 %v3324, %v4073
        %v4075 = vpop.f32.mrb[0].mxu0
        %v4076 = vand.u32 %v322, 4294901760
        %4077 = vmatprep.mubr.f32.mxu0 %v4076
        %v4078 = vand.u32 %v321, 4294901760
        %4079 = vmatmul.mubr.f32.gmra.mrb[0].mxu0 %v4078
        %v4080 = vpop.f32.mrb[0].mxu0
        %v4081 = vadd.f32 %v3335, %v4080
        %v4082 = vpop.f32.mrb[0].mxu0
        %v4083 = vand.u32 %v326, 4294901760
        %4084 = vmatprep.mubr.f32.mxu0 %v4083
        %v4085 = vand.u32 %v325, 4294901760
        %4086 = vmatmul.mubr.f32.gmra.mrb[0].mxu0 %v4085
        %v4087 = vpop.f32.mrb[0].mxu0
        %v4088 = vadd.f32 %v3346, %v4087
        %v4089 = vpop.f32.mrb[0].mxu0
        %v4090 = vand.u32 %v330, 4294901760
        %4091 = vmatprep.mubr.f32.mxu0 %v4090
        %v4092 = vand.u32 %v329, 4294901760
        %4093 = vmatmul.mubr.f32.gmra.mrb[0].mxu0 %v4092
        %v4094 = vpop.f32.mrb[0].mxu0
        %v4095 = vadd.f32 %v3357, %v4094
        %v4096 = vpop.f32.mrb[0].mxu0
        %v4097 = vand.u32 %v334, 4294901760
        %4098 = vmatprep.mubr.f32.mxu0 %v4097
        %v4099 = vand.u32 %v333, 4294901760
        %4100 = vmatmul.mubr.f32.gmra.mrb[0].mxu0 %v4099
        %v4101 = vpop.f32.mrb[0].mxu0
        %v4102 = vadd.f32 %v3368, %v4101
        %v4103 = vpop.f32.mrb[0].mxu0
        %v4104 = vand.u32 %v338, 4294901760
        %4105 = vmatprep.mubr.f32.mxu0 %v4104
        %v4106 = vand.u32 %v337, 4294901760
        %4107 = vmatmul.mubr.f32.gmra.mrb[0].mxu0 %v4106
        %v4108 = vpop.f32.mrb[0].mxu0
        %v4109 = vadd.f32 %v3379, %v4108
        %v4110 = vpop.f32.mrb[0].mxu0
        %v4111 = vand.u32 %v342, 4294901760
        %4112 = vmatprep.mubr.f32.mxu0 %v4111
        %v4113 = vand.u32 %v341, 4294901760
        %4114 = vmatmul.mubr.f32.gmra.mrb[0].mxu0 %v4113
        %v4115 = vpop.f32.mrb[0].mxu0
        %v4116 = vadd.f32 %v3390, %v4115
        %v4117 = vpop.f32.mrb[0].mxu0
        %v4118 = vand.u32 %v346, 4294901760
        %4119 = vmatprep.mubr.f32.mxu0 %v4118
        %v4120 = vand.u32 %v345, 4294901760
        %4121 = vmatmul.mubr.f32.gmra.mrb[0].mxu0 %v4120
        %v4122 = vpop.f32.mrb[0].mxu0
        %v4123 = vadd.f32 %v3401, %v4122
        %v4124 = vpop.f32.mrb[0].mxu0
        %v4125 = vand.u32 %v350, 4294901760
        %4126 = vmatprep.mubr.f32.mxu0 %v4125
        %v4127 = vand.u32 %v349, 4294901760
        %4128 = vmatmul.mubr.f32.gmra.mrb[0].mxu0 %v4127
        %v4129 = vpop.f32.mrb[0].mxu0
        %v4130 = vadd.f32 %v3412, %v4129
        %v4131 = vpop.f32.mrb[0].mxu0
        %v4132 = vand.u32 %v354, 4294901760
        %4133 = vmatprep.mubr.f32.mxu0 %v4132
        %v4134 = vand.u32 %v353, 4294901760
        %4135 = vmatmul.mubr.f32.gmra.mrb[0].mxu0 %v4134
        %v4136 = vpop.f32.mrb[0].mxu0
        %v4137 = vadd.f32 %v3423, %v4136
        %v4138 = vpop.f32.mrb[0].mxu0
        %v4139 = vand.u32 %v358, 4294901760
        %4140 = vmatprep.mubr.f32.mxu0 %v4139
        %v4141 = vand.u32 %v357, 4294901760
        %4142 = vmatmul.mubr.f32.gmra.mrb[0].mxu0 %v4141
        %v4143 = vpop.f32.mrb[0].mxu0
        %v4144 = vadd.f32 %v3434, %v4143
        %v4145 = vpop.f32.mrb[0].mxu0
        %v4146 = vand.u32 %v362, 4294901760
        %4147 = vmatprep.mubr.f32.mxu0 %v4146
        %v4148 = vand.u32 %v361, 4294901760
        %4149 = vmatmul.mubr.f32.gmra.mrb[0].mxu0 %v4148
        %v4150 = vpop.f32.mrb[0].mxu0
        %v4151 = vadd.f32 %v3445, %v4150
        %v4152 = vpop.f32.mrb[0].mxu0
        %v4153 = vand.u32 %v366, 4294901760
        %4154 = vmatprep.mubr.f32.mxu0 %v4153
        %v4155 = vand.u32 %v365, 4294901760
        %4156 = vmatmul.mubr.f32.gmra.mrb[0].mxu0 %v4155
        %v4157 = vpop.f32.mrb[0].mxu0
        %v4158 = vadd.f32 %v3456, %v4157
        %v4159 = vpop.f32.mrb[0].mxu0
        %v4160 = vand.u32 %v370, 4294901760
        %4161 = vmatprep.mubr.f32.mxu0 %v4160
        %v4162 = vand.u32 %v369, 4294901760
        %4163 = vmatmul.mubr.f32.gmra.mrb[0].mxu0 %v4162
        %v4164 = vpop.f32.mrb[0].mxu0
        %v4165 = vadd.f32 %v3467, %v4164
        %v4166 = vpop.f32.mrb[0].mxu0
        %v4167 = vand.u32 %v374, 4294901760
        %4168 = vmatprep.mubr.f32.mxu0 %v4167
        %v4169 = vand.u32 %v373, 4294901760
        %4170 = vmatmul.mubr.f32.gmra.mrb[0].mxu0 %v4169
        %v4171 = vpop.f32.mrb[0].mxu0
        %v4172 = vadd.f32 %v3478, %v4171
        %v4173 = vpop.f32.mrb[0].mxu0
        %v4174 = vand.u32 %v378, 4294901760
        %4175 = vmatprep.mubr.f32.mxu0 %v4174
        %v4176 = vand.u32 %v377, 4294901760
        %4177 = vmatmul.mubr.f32.gmra.mrb[0].mxu0 %v4176
        %v4178 = vpop.f32.mrb[0].mxu0
        %v4179 = vadd.f32 %v3489, %v4178
        %v4180 = vpop.f32.mrb[0].mxu0
        %v4181 = vand.u32 %v382, 4294901760
        %4182 = vmatprep.mubr.f32.mxu0 %v4181
        %v4183 = vand.u32 %v381, 4294901760
        %4184 = vmatmul.mubr.f32.gmra.mrb[0].mxu0 %v4183
        %v4185 = vpop.f32.mrb[0].mxu0
        %v4186 = vadd.f32 %v3500, %v4185
        %v4187 = vpop.f32.mrb[0].mxu0
        %v4188 = vand.u32 %v386, 4294901760
        %4189 = vmatprep.mubr.f32.mxu0 %v4188
        %v4190 = vand.u32 %v385, 4294901760
        %4191 = vmatmul.mubr.f32.gmra.mrb[0].mxu0 %v4190
        %v4192 = vpop.f32.mrb[0].mxu0
        %v4193 = vadd.f32 %v3511, %v4192
        %v4194 = vpop.f32.mrb[0].mxu0
        %v4195 = vand.u32 %v390, 4294901760
        %4196 = vmatprep.mubr.f32.mxu0 %v4195
        %v4197 = vand.u32 %v389, 4294901760
        %4198 = vmatmul.mubr.f32.gmra.mrb[0].mxu0 %v4197
        %v4199 = vpop.f32.mrb[0].mxu0
        %v4200 = vadd.f32 %v3522, %v4199
        %v4201 = vpop.f32.mrb[0].mxu0
        %v4202 = vand.u32 %v394, 4294901760
        %4203 = vmatprep.mubr.f32.mxu0 %v4202
        %v4204 = vand.u32 %v393, 4294901760
        %4205 = vmatmul.mubr.f32.gmra.mrb[0].mxu0 %v4204
        %v4206 = vpop.f32.mrb[0].mxu0
        %v4207 = vadd.f32 %v3533, %v4206
        %v4208 = vpop.f32.mrb[0].mxu0
        %v4209 = vand.u32 %v398, 4294901760
        %4210 = vmatprep.mubr.f32.mxu0 %v4209
        %v4211 = vand.u32 %v397, 4294901760
        %4212 = vmatmul.mubr.f32.gmra.mrb[0].mxu0 %v4211
        %v4213 = vpop.f32.mrb[0].mxu0
        %v4214 = vadd.f32 %v3544, %v4213
        %v4215 = vpop.f32.mrb[0].mxu0
        %v4216 = vand.u32 %v402, 4294901760
        %4217 = vmatprep.mubr.f32.mxu0 %v4216
        %v4218 = vand.u32 %v401, 4294901760
        %4219 = vmatmul.mubr.f32.gmra.mrb[0].mxu0 %v4218
        %v4220 = vpop.f32.mrb[0].mxu0
        %v4221 = vadd.f32 %v3555, %v4220
        %v4222 = vpop.f32.mrb[0].mxu0
        %v4223 = vand.u32 %v406, 4294901760
        %4224 = vmatprep.mubr.f32.mxu0 %v4223
        %v4225 = vand.u32 %v405, 4294901760
        %4226 = vmatmul.mubr.f32.gmra.mrb[0].mxu0 %v4225
        %v4227 = vpop.f32.mrb[0].mxu0
        %v4228 = vadd.f32 %v3566, %v4227
        %v4229 = vpop.f32.mrb[0].mxu0
        %v4230 = vand.u32 %v410, 4294901760
        %4231 = vmatprep.mubr.f32.mxu0 %v4230
        %v4232 = vand.u32 %v409, 4294901760
        %4233 = vmatmul.mubr.f32.gmra.mrb[0].mxu0 %v4232
        %v4234 = vpop.f32.mrb[0].mxu0
        %v4235 = vadd.f32 %v3577, %v4234
        %v4236 = vpop.f32.mrb[0].mxu0
        %v4237 = vand.u32 %v414, 4294901760
        %4238 = vmatprep.mubr.f32.mxu0 %v4237
        %v4239 = vand.u32 %v413, 4294901760
        %4240 = vmatmul.mubr.f32.gmra.mrb[0].mxu0 %v4239
        %v4241 = vpop.f32.mrb[0].mxu0
        %v4242 = vadd.f32 %v3588, %v4241
        %v4243 = vpop.f32.mrb[0].mxu0
        %v4244 = vand.u32 %v418, 4294901760
        %4245 = vmatprep.mubr.f32.mxu0 %v4244
        %v4246 = vand.u32 %v417, 4294901760
        %4247 = vmatmul.mubr.f32.gmra.mrb[0].mxu0 %v4246
        %v4248 = vpop.f32.mrb[0].mxu0
        %v4249 = vadd.f32 %v3599, %v4248
        %v4250 = vpop.f32.mrb[0].mxu0
        %v4251 = vand.u32 %v422, 4294901760
        %4252 = vmatprep.mubr.f32.mxu0 %v4251
        %v4253 = vand.u32 %v421, 4294901760
        %4254 = vmatmul.mubr.f32.gmra.mrb[0].mxu0 %v4253
        %v4255 = vpop.f32.mrb[0].mxu0
        %v4256 = vadd.f32 %v3610, %v4255
        %v4257 = vpop.f32.mrb[0].mxu0
        %v4258 = vand.u32 %v426, 4294901760
        %4259 = vmatprep.mubr.f32.mxu0 %v4258
        %v4260 = vand.u32 %v425, 4294901760
        %4261 = vmatmul.mubr.f32.gmra.mrb[0].mxu0 %v4260
        %v4262 = vpop.f32.mrb[0].mxu0
        %v4263 = vadd.f32 %v3621, %v4262
        %v4264 = vpop.f32.mrb[0].mxu0
        %v4265 = vand.u32 %v430, 4294901760
        %4266 = vmatprep.mubr.f32.mxu0 %v4265
        %v4267 = vand.u32 %v429, 4294901760
        %4268 = vmatmul.mubr.f32.gmra.mrb[0].mxu0 %v4267
        %v4269 = vpop.f32.mrb[0].mxu0
        %v4270 = vadd.f32 %v3632, %v4269
        %v4271 = vpop.f32.mrb[0].mxu0
        %v4272 = vand.u32 %v434, 4294901760
        %4273 = vmatprep.mubr.f32.mxu0 %v4272
        %v4274 = vand.u32 %v433, 4294901760
        %4275 = vmatmul.mubr.f32.gmra.mrb[0].mxu0 %v4274
        %v4276 = vpop.f32.mrb[0].mxu0
        %v4277 = vadd.f32 %v3643, %v4276
        %v4278 = vpop.f32.mrb[0].mxu0
        %v4279 = vand.u32 %v438, 4294901760
        %4280 = vmatprep.mubr.f32.mxu0 %v4279
        %v4281 = vand.u32 %v437, 4294901760
        %4282 = vmatmul.mubr.f32.gmra.mrb[0].mxu0 %v4281
        %v4283 = vpop.f32.mrb[0].mxu0
        %v4284 = vadd.f32 %v3654, %v4283
        %v4285 = vpop.f32.mrb[0].mxu0
        %v4286 = vand.u32 %v442, 4294901760
        %4287 = vmatprep.mubr.f32.mxu0 %v4286
        %v4288 = vand.u32 %v441, 4294901760
        %4289 = vmatmul.mubr.f32.gmra.mrb[0].mxu0 %v4288
        %v4290 = vpop.f32.mrb[0].mxu0
        %v4291 = vadd.f32 %v3665, %v4290
        %v4292 = vpop.f32.mrb[0].mxu0
        %v4293 = vand.u32 %v446, 4294901760
        %4294 = vmatprep.mubr.f32.mxu0 %v4293
        %v4295 = vand.u32 %v445, 4294901760
        %4296 = vmatmul.mubr.f32.gmra.mrb[0].mxu0 %v4295
        %v4297 = vpop.f32.mrb[0].mxu0
        %v4298 = vadd.f32 %v3676, %v4297
        %v4299 = vpop.f32.mrb[0].mxu0
        %v4300 = vand.u32 %v450, 4294901760
        %4301 = vmatprep.mubr.f32.mxu0 %v4300
        %v4302 = vand.u32 %v449, 4294901760
        %4303 = vmatmul.mubr.f32.gmra.mrb[0].mxu0 %v4302
        %v4304 = vpop.f32.mrb[0].mxu0
        %v4305 = vadd.f32 %v3687, %v4304
        %v4306 = vpop.f32.mrb[0].mxu0
        %v4307 = vand.u32 %v454, 4294901760
        %4308 = vmatprep.mubr.f32.mxu0 %v4307
        %v4309 = vand.u32 %v453, 4294901760
        %4310 = vmatmul.mubr.f32.gmra.mrb[0].mxu0 %v4309
        %v4311 = vpop.f32.mrb[0].mxu0
        %v4312 = vadd.f32 %v3698, %v4311
        %v4313 = vpop.f32.mrb[0].mxu0
        %v4314 = vand.u32 %v458, 4294901760
        %4315 = vmatprep.mubr.f32.mxu0 %v4314
        %v4316 = vand.u32 %v457, 4294901760
        %4317 = vmatmul.mubr.f32.gmra.mrb[0].mxu0 %v4316
        %v4318 = vpop.f32.mrb[0].mxu0
        %v4319 = vadd.f32 %v3709, %v4318
        %v4320 = vpop.f32.mrb[0].mxu0
        %v4321 = vand.u32 %v462, 4294901760
        %4322 = vmatprep.mubr.f32.mxu0 %v4321
        %v4323 = vand.u32 %v461, 4294901760
        %4324 = vmatmul.mubr.f32.gmra.mrb[0].mxu0 %v4323
        %v4325 = vpop.f32.mrb[0].mxu0
        %v4326 = vadd.f32 %v3720, %v4325
        %v4327 = vpop.f32.mrb[0].mxu0
        %v4328 = vand.u32 %v466, 4294901760
        %4329 = vmatprep.mubr.f32.mxu0 %v4328
        %v4330 = vand.u32 %v465, 4294901760
        %4331 = vmatmul.mubr.f32.gmra.mrb[0].mxu0 %v4330
        %v4332 = vpop.f32.mrb[0].mxu0
        %v4333 = vadd.f32 %v3731, %v4332
        %v4334 = vpop.f32.mrb[0].mxu0
        %4335 = vdwg.mxu0
        %4336 = vmatprep.subr.mxu0 0.0
        %v4337 = vand.u32 %v469, 4294901760
        %4338 = vmatpush1.msra.mxu0 %v4337
        %4339 = vmatprep.subr.mxu0 0.0
        %v4340 = vand.u32 %v470, 4294901760
        %4341 = vmatpush1.msra.mxu0 %v4340
        %4342 = vmatprep.subr.mxu0 0.0
        %v4343 = vand.u32 %v471, 4294901760
        %4344 = vmatpush1.msra.mxu0 %v4343
        %4345 = vmatprep.subr.mxu0 0.0
        %v4346 = vand.u32 %v472, 4294901760
        %4347 = vmatpush1.msra.mxu0 %v4346
        %4348 = vmatprep.subr.mxu0 0.0
        %v4349 = vand.u32 %v473, 4294901760
        %4350 = vmatpush1.msra.mxu0 %v4349
        %4351 = vmatprep.subr.mxu0 0.0
        %v4352 = vand.u32 %v474, 4294901760
        %4353 = vmatpush1.msra.mxu0 %v4352
        %4354 = vmatprep.subr.mxu0 0.0
        %v4355 = vand.u32 %v475, 4294901760
        %4356 = vmatpush1.msra.mxu0 %v4355
        %4357 = vmatprep.subr.mxu0 0.0
        %v4358 = vand.u32 %v476, 4294901760
        %4359 = vmatpush1.msra.mxu0 %v4358
        %4360 = vmatprep.subr.mxu0 0.0
        %v4361 = vand.u32 %v477, 4294901760
        %4362 = vmatpush1.msra.mxu0 %v4361
        %4363 = vmatprep.subr.mxu0 0.0
        %v4364 = vand.u32 %v478, 4294901760
        %4365 = vmatpush1.msra.mxu0 %v4364
        %4366 = vmatprep.subr.mxu0 0.0
        %v4367 = vand.u32 %v479, 4294901760
        %4368 = vmatpush1.msra.mxu0 %v4367
        %4369 = vmatprep.subr.mxu0 0.0
        %v4370 = vand.u32 %v480, 4294901760
        %4371 = vmatpush1.msra.mxu0 %v4370
        %4372 = vmatprep.subr.mxu0 0.0
        %v4373 = vand.u32 %v481, 4294901760
        %4374 = vmatpush1.msra.mxu0 %v4373
        %4375 = vmatprep.subr.mxu0 0.0
        %v4376 = vand.u32 %v482, 4294901760
        %4377 = vmatpush1.msra.mxu0 %v4376
        %4378 = vmatprep.subr.mxu0 0.0
        %v4379 = vand.u32 %v483, 4294901760
        %4380 = vmatpush1.msra.mxu0 %v4379
        %4381 = vmatprep.subr.mxu0 0.0
        %v4382 = vand.u32 %v484, 4294901760
        %4383 = vmatpush1.msra.mxu0 %v4382
        %4384 = vmatprep.subr.mxu0 0.0
        %v4385 = vand.u32 %v485, 4294901760
        %4386 = vmatpush1.msra.mxu0 %v4385
        %4387 = vmatprep.subr.mxu0 0.0
        %v4388 = vand.u32 %v486, 4294901760
        %4389 = vmatpush1.msra.mxu0 %v4388
        %4390 = vmatprep.subr.mxu0 0.0
        %v4391 = vand.u32 %v487, 4294901760
        %4392 = vmatpush1.msra.mxu0 %v4391
        %4393 = vmatprep.subr.mxu0 0.0
        %v4394 = vand.u32 %v488, 4294901760
        %4395 = vmatpush1.msra.mxu0 %v4394
        %4396 = vmatprep.subr.mxu0 0.0
        %v4397 = vand.u32 %v489, 4294901760
        %4398 = vmatpush1.msra.mxu0 %v4397
        %4399 = vmatprep.subr.mxu0 0.0
        %v4400 = vand.u32 %v490, 4294901760
        %4401 = vmatpush1.msra.mxu0 %v4400
        %4402 = vmatprep.subr.mxu0 0.0
        %v4403 = vand.u32 %v491, 4294901760
        %4404 = vmatpush1.msra.mxu0 %v4403
        %4405 = vmatprep.subr.mxu0 0.0
        %v4406 = vand.u32 %v492, 4294901760
        %4407 = vmatpush1.msra.mxu0 %v4406
        %4408 = vmatprep.subr.mxu0 0.0
        %v4409 = vand.u32 %v493, 4294901760
        %4410 = vmatpush1.msra.mxu0 %v4409
        %4411 = vmatprep.subr.mxu0 0.0
        %v4412 = vand.u32 %v494, 4294901760
        %4413 = vmatpush1.msra.mxu0 %v4412
        %4414 = vmatprep.subr.mxu0 0.0
        %v4415 = vand.u32 %v495, 4294901760
        %4416 = vmatpush1.msra.mxu0 %v4415
        %4417 = vmatprep.subr.mxu0 0.0
        %v4418 = vand.u32 %v496, 4294901760
        %4419 = vmatpush1.msra.mxu0 %v4418
        %4420 = vmatprep.subr.mxu0 0.0
        %v4421 = vand.u32 %v497, 4294901760
        %4422 = vmatpush1.msra.mxu0 %v4421
        %4423 = vmatprep.subr.mxu0 0.0
        %v4424 = vand.u32 %v498, 4294901760
        %4425 = vmatpush1.msra.mxu0 %v4424
        %4426 = vmatprep.subr.mxu0 0.0
        %v4427 = vand.u32 %v499, 4294901760
        %4428 = vmatpush1.msra.mxu0 %v4427
        %4429 = vmatprep.subr.mxu0 0.0
        %v4430 = vand.u32 %v500, 4294901760
        %4431 = vmatpush1.msra.mxu0 %v4430
        %v4432 = vand.u32 %v218, 4294901760
        %4433 = vmatprep.mubr.f32.mxu0 %v4432
        %v4434 = vand.u32 %v217, 4294901760
        %4435 = vmatmul.mubr.f32.gmra.mrb[0].mxu0 %v4434
        %v4436 = vpop.f32.mrb[0].mxu0
        %v4437 = vadd.f32 %v3899, %v4436
        %v4438 = vpop.f32.mrb[0].mxu0
        %v4439 = vand.u32 %v222, 4294901760
        %4440 = vmatprep.mubr.f32.mxu0 %v4439
        %v4441 = vand.u32 %v221, 4294901760
        %4442 = vmatmul.mubr.f32.gmra.mrb[0].mxu0 %v4441
        %v4443 = vpop.f32.mrb[0].mxu0
        %v4444 = vadd.f32 %v3906, %v4443
        %v4445 = vpop.f32.mrb[0].mxu0
        %v4446 = vand.u32 %v226, 4294901760
        %4447 = vmatprep.mubr.f32.mxu0 %v4446
        %v4448 = vand.u32 %v225, 4294901760
        %4449 = vmatmul.mubr.f32.gmra.mrb[0].mxu0 %v4448
        %v4450 = vpop.f32.mrb[0].mxu0
        %v4451 = vadd.f32 %v3913, %v4450
        %v4452 = vpop.f32.mrb[0].mxu0
        %v4453 = vand.u32 %v230, 4294901760
        %4454 = vmatprep.mubr.f32.mxu0 %v4453
        %v4455 = vand.u32 %v229, 4294901760
        %4456 = vmatmul.mubr.f32.gmra.mrb[0].mxu0 %v4455
        %v4457 = vpop.f32.mrb[0].mxu0
        %v4458 = vadd.f32 %v3920, %v4457
        %v4459 = vpop.f32.mrb[0].mxu0
        %v4460 = vand.u32 %v234, 4294901760
        %4461 = vmatprep.mubr.f32.mxu0 %v4460
        %v4462 = vand.u32 %v233, 4294901760
        %4463 = vmatmul.mubr.f32.gmra.mrb[0].mxu0 %v4462
        %v4464 = vpop.f32.mrb[0].mxu0
        %v4465 = vadd.f32 %v3927, %v4464
        %v4466 = vpop.f32.mrb[0].mxu0
        %v4467 = vand.u32 %v238, 4294901760
        %4468 = vmatprep.mubr.f32.mxu0 %v4467
        %v4469 = vand.u32 %v237, 4294901760
        %4470 = vmatmul.mubr.f32.gmra.mrb[0].mxu0 %v4469
        %v4471 = vpop.f32.mrb[0].mxu0
        %v4472 = vadd.f32 %v3934, %v4471
        %v4473 = vpop.f32.mrb[0].mxu0
        %v4474 = vand.u32 %v242, 4294901760
        %4475 = vmatprep.mubr.f32.mxu0 %v4474
        %v4476 = vand.u32 %v241, 4294901760
        %4477 = vmatmul.mubr.f32.gmra.mrb[0].mxu0 %v4476
        %v4478 = vpop.f32.mrb[0].mxu0
        %v4479 = vadd.f32 %v3941, %v4478
        %v4480 = vpop.f32.mrb[0].mxu0
        %v4481 = vand.u32 %v246, 4294901760
        %4482 = vmatprep.mubr.f32.mxu0 %v4481
        %v4483 = vand.u32 %v245, 4294901760
        %4484 = vmatmul.mubr.f32.gmra.mrb[0].mxu0 %v4483
        %v4485 = vpop.f32.mrb[0].mxu0
        %v4486 = vadd.f32 %v3948, %v4485
        %v4487 = vpop.f32.mrb[0].mxu0
        %v4488 = vand.u32 %v250, 4294901760
        %4489 = vmatprep.mubr.f32.mxu0 %v4488
        %v4490 = vand.u32 %v249, 4294901760
        %4491 = vmatmul.mubr.f32.gmra.mrb[0].mxu0 %v4490
        %v4492 = vpop.f32.mrb[0].mxu0
        %v4493 = vadd.f32 %v3955, %v4492
        %v4494 = vpop.f32.mrb[0].mxu0
        %v4495 = vand.u32 %v254, 4294901760
        %4496 = vmatprep.mubr.f32.mxu0 %v4495
        %v4497 = vand.u32 %v253, 4294901760
        %4498 = vmatmul.mubr.f32.gmra.mrb[0].mxu0 %v4497
        %v4499 = vpop.f32.mrb[0].mxu0
        %v4500 = vadd.f32 %v3962, %v4499
        %v4501 = vpop.f32.mrb[0].mxu0
        %v4502 = vand.u32 %v258, 4294901760
        %4503 = vmatprep.mubr.f32.mxu0 %v4502
        %v4504 = vand.u32 %v257, 4294901760
        %4505 = vmatmul.mubr.f32.gmra.mrb[0].mxu0 %v4504
        %v4506 = vpop.f32.mrb[0].mxu0
        %v4507 = vadd.f32 %v3969, %v4506
        %v4508 = vpop.f32.mrb[0].mxu0
        %v4509 = vand.u32 %v262, 4294901760
        %4510 = vmatprep.mubr.f32.mxu0 %v4509
        %v4511 = vand.u32 %v261, 4294901760
        %4512 = vmatmul.mubr.f32.gmra.mrb[0].mxu0 %v4511
        %v4513 = vpop.f32.mrb[0].mxu0
        %v4514 = vadd.f32 %v3976, %v4513
        %v4515 = vpop.f32.mrb[0].mxu0
        %v4516 = vand.u32 %v266, 4294901760
        %4517 = vmatprep.mubr.f32.mxu0 %v4516
        %v4518 = vand.u32 %v265, 4294901760
        %4519 = vmatmul.mubr.f32.gmra.mrb[0].mxu0 %v4518
        %v4520 = vpop.f32.mrb[0].mxu0
        %v4521 = vadd.f32 %v3983, %v4520
        %v4522 = vpop.f32.mrb[0].mxu0
        %v4523 = vand.u32 %v270, 4294901760
        %4524 = vmatprep.mubr.f32.mxu0 %v4523
        %v4525 = vand.u32 %v269, 4294901760
        %4526 = vmatmul.mubr.f32.gmra.mrb[0].mxu0 %v4525
        %v4527 = vpop.f32.mrb[0].mxu0
        %v4528 = vadd.f32 %v3990, %v4527
        %v4529 = vpop.f32.mrb[0].mxu0
        %v4530 = vand.u32 %v274, 4294901760
        %4531 = vmatprep.mubr.f32.mxu0 %v4530
        %v4532 = vand.u32 %v273, 4294901760
        %4533 = vmatmul.mubr.f32.gmra.mrb[0].mxu0 %v4532
        %v4534 = vpop.f32.mrb[0].mxu0
        %v4535 = vadd.f32 %v3997, %v4534
        %v4536 = vpop.f32.mrb[0].mxu0
        %v4537 = vand.u32 %v278, 4294901760
        %4538 = vmatprep.mubr.f32.mxu0 %v4537
        %v4539 = vand.u32 %v277, 4294901760
        %4540 = vmatmul.mubr.f32.gmra.mrb[0].mxu0 %v4539
        %v4541 = vpop.f32.mrb[0].mxu0
        %v4542 = vadd.f32 %v4004, %v4541
        %v4543 = vpop.f32.mrb[0].mxu0
        %v4544 = vand.u32 %v282, 4294901760
        %4545 = vmatprep.mubr.f32.mxu0 %v4544
        %v4546 = vand.u32 %v281, 4294901760
        %4547 = vmatmul.mubr.f32.gmra.mrb[0].mxu0 %v4546
        %v4548 = vpop.f32.mrb[0].mxu0
        %v4549 = vadd.f32 %v4011, %v4548
        %v4550 = vpop.f32.mrb[0].mxu0
        %v4551 = vand.u32 %v286, 4294901760
        %4552 = vmatprep.mubr.f32.mxu0 %v4551
        %v4553 = vand.u32 %v285, 4294901760
        %4554 = vmatmul.mubr.f32.gmra.mrb[0].mxu0 %v4553
        %v4555 = vpop.f32.mrb[0].mxu0
        %v4556 = vadd.f32 %v4018, %v4555
        %v4557 = vpop.f32.mrb[0].mxu0
        %v4558 = vand.u32 %v290, 4294901760
        %4559 = vmatprep.mubr.f32.mxu0 %v4558
        %v4560 = vand.u32 %v289, 4294901760
        %4561 = vmatmul.mubr.f32.gmra.mrb[0].mxu0 %v4560
        %v4562 = vpop.f32.mrb[0].mxu0
        %v4563 = vadd.f32 %v4025, %v4562
        %v4564 = vpop.f32.mrb[0].mxu0
        %v4565 = vand.u32 %v294, 4294901760
        %4566 = vmatprep.mubr.f32.mxu0 %v4565
        %v4567 = vand.u32 %v293, 4294901760
        %4568 = vmatmul.mubr.f32.gmra.mrb[0].mxu0 %v4567
        %v4569 = vpop.f32.mrb[0].mxu0
        %v4570 = vadd.f32 %v4032, %v4569
        %v4571 = vpop.f32.mrb[0].mxu0
        %v4572 = vand.u32 %v298, 4294901760
        %4573 = vmatprep.mubr.f32.mxu0 %v4572
        %v4574 = vand.u32 %v297, 4294901760
        %4575 = vmatmul.mubr.f32.gmra.mrb[0].mxu0 %v4574
        %v4576 = vpop.f32.mrb[0].mxu0
        %v4577 = vadd.f32 %v4039, %v4576
        %v4578 = vpop.f32.mrb[0].mxu0
        %v4579 = vand.u32 %v302, 4294901760
        %4580 = vmatprep.mubr.f32.mxu0 %v4579
        %v4581 = vand.u32 %v301, 4294901760
        %4582 = vmatmul.mubr.f32.gmra.mrb[0].mxu0 %v4581
        %v4583 = vpop.f32.mrb[0].mxu0
        %v4584 = vadd.f32 %v4046, %v4583
        %v4585 = vpop.f32.mrb[0].mxu0
        %v4586 = vand.u32 %v306, 4294901760
        %4587 = vmatprep.mubr.f32.mxu0 %v4586
        %v4588 = vand.u32 %v305, 4294901760
        %4589 = vmatmul.mubr.f32.gmra.mrb[0].mxu0 %v4588
        %v4590 = vpop.f32.mrb[0].mxu0
        %v4591 = vadd.f32 %v4053, %v4590
        %v4592 = vpop.f32.mrb[0].mxu0
        %v4593 = vand.u32 %v310, 4294901760
        %4594 = vmatprep.mubr.f32.mxu0 %v4593
        %v4595 = vand.u32 %v309, 4294901760
        %4596 = vmatmul.mubr.f32.gmra.mrb[0].mxu0 %v4595
        %v4597 = vpop.f32.mrb[0].mxu0
        %v4598 = vadd.f32 %v4060, %v4597
        %v4599 = vpop.f32.mrb[0].mxu0
        %v4600 = vand.u32 %v314, 4294901760
        %4601 = vmatprep.mubr.f32.mxu0 %v4600
        %v4602 = vand.u32 %v313, 4294901760
        %4603 = vmatmul.mubr.f32.gmra.mrb[0].mxu0 %v4602
        %v4604 = vpop.f32.mrb[0].mxu0
        %v4605 = vadd.f32 %v4067, %v4604
        %v4606 = vpop.f32.mrb[0].mxu0
        %v4607 = vand.u32 %v318, 4294901760
        %4608 = vmatprep.mubr.f32.mxu0 %v4607
        %v4609 = vand.u32 %v317, 4294901760
        %4610 = vmatmul.mubr.f32.gmra.mrb[0].mxu0 %v4609
        %v4611 = vpop.f32.mrb[0].mxu0
        %v4612 = vadd.f32 %v4074, %v4611
        %v4613 = vpop.f32.mrb[0].mxu0
        %v4614 = vand.u32 %v322, 4294901760
        %4615 = vmatprep.mubr.f32.mxu0 %v4614
        %v4616 = vand.u32 %v321, 4294901760
        %4617 = vmatmul.mubr.f32.gmra.mrb[0].mxu0 %v4616
        %v4618 = vpop.f32.mrb[0].mxu0
        %v4619 = vadd.f32 %v4081, %v4618
        %v4620 = vpop.f32.mrb[0].mxu0
        %v4621 = vand.u32 %v326, 4294901760
        %4622 = vmatprep.mubr.f32.mxu0 %v4621
        %v4623 = vand.u32 %v325, 4294901760
        %4624 = vmatmul.mubr.f32.gmra.mrb[0].mxu0 %v4623
        %v4625 = vpop.f32.mrb[0].mxu0
        %v4626 = vadd.f32 %v4088, %v4625
        %v4627 = vpop.f32.mrb[0].mxu0
        %v4628 = vand.u32 %v330, 4294901760
        %4629 = vmatprep.mubr.f32.mxu0 %v4628
        %v4630 = vand.u32 %v329, 4294901760
        %4631 = vmatmul.mubr.f32.gmra.mrb[0].mxu0 %v4630
        %v4632 = vpop.f32.mrb[0].mxu0
        %v4633 = vadd.f32 %v4095, %v4632
        %v4634 = vpop.f32.mrb[0].mxu0
        %v4635 = vand.u32 %v334, 4294901760
        %4636 = vmatprep.mubr.f32.mxu0 %v4635
        %v4637 = vand.u32 %v333, 4294901760
        %4638 = vmatmul.mubr.f32.gmra.mrb[0].mxu0 %v4637
        %v4639 = vpop.f32.mrb[0].mxu0
        %v4640 = vadd.f32 %v4102, %v4639
        %v4641 = vpop.f32.mrb[0].mxu0
        %v4642 = vand.u32 %v338, 4294901760
        %4643 = vmatprep.mubr.f32.mxu0 %v4642
        %v4644 = vand.u32 %v337, 4294901760
        %4645 = vmatmul.mubr.f32.gmra.mrb[0].mxu0 %v4644
        %v4646 = vpop.f32.mrb[0].mxu0
        %v4647 = vadd.f32 %v4109, %v4646
        %v4648 = vpop.f32.mrb[0].mxu0
        %v4649 = vand.u32 %v342, 4294901760
        %4650 = vmatprep.mubr.f32.mxu0 %v4649
        %v4651 = vand.u32 %v341, 4294901760
        %4652 = vmatmul.mubr.f32.gmra.mrb[0].mxu0 %v4651
        %v4653 = vpop.f32.mrb[0].mxu0
        %v4654 = vadd.f32 %v4116, %v4653
        %v4655 = vpop.f32.mrb[0].mxu0
        %v4656 = vand.u32 %v346, 4294901760
        %4657 = vmatprep.mubr.f32.mxu0 %v4656
        %v4658 = vand.u32 %v345, 4294901760
        %4659 = vmatmul.mubr.f32.gmra.mrb[0].mxu0 %v4658
        %v4660 = vpop.f32.mrb[0].mxu0
        %v4661 = vadd.f32 %v4123, %v4660
        %v4662 = vpop.f32.mrb[0].mxu0
        %v4663 = vand.u32 %v350, 4294901760
        %4664 = vmatprep.mubr.f32.mxu0 %v4663
        %v4665 = vand.u32 %v349, 4294901760
        %4666 = vmatmul.mubr.f32.gmra.mrb[0].mxu0 %v4665
        %v4667 = vpop.f32.mrb[0].mxu0
        %v4668 = vadd.f32 %v4130, %v4667
        %v4669 = vpop.f32.mrb[0].mxu0
        %v4670 = vand.u32 %v354, 4294901760
        %4671 = vmatprep.mubr.f32.mxu0 %v4670
        %v4672 = vand.u32 %v353, 4294901760
        %4673 = vmatmul.mubr.f32.gmra.mrb[0].mxu0 %v4672
        %v4674 = vpop.f32.mrb[0].mxu0
        %v4675 = vadd.f32 %v4137, %v4674
        %v4676 = vpop.f32.mrb[0].mxu0
        %v4677 = vand.u32 %v358, 4294901760
        %4678 = vmatprep.mubr.f32.mxu0 %v4677
        %v4679 = vand.u32 %v357, 4294901760
        %4680 = vmatmul.mubr.f32.gmra.mrb[0].mxu0 %v4679
        %v4681 = vpop.f32.mrb[0].mxu0
        %v4682 = vadd.f32 %v4144, %v4681
        %v4683 = vpop.f32.mrb[0].mxu0
        %v4684 = vand.u32 %v362, 4294901760
        %4685 = vmatprep.mubr.f32.mxu0 %v4684
        %v4686 = vand.u32 %v361, 4294901760
        %4687 = vmatmul.mubr.f32.gmra.mrb[0].mxu0 %v4686
        %v4688 = vpop.f32.mrb[0].mxu0
        %v4689 = vadd.f32 %v4151, %v4688
        %v4690 = vpop.f32.mrb[0].mxu0
        %v4691 = vand.u32 %v366, 4294901760
        %4692 = vmatprep.mubr.f32.mxu0 %v4691
        %v4693 = vand.u32 %v365, 4294901760
        %4694 = vmatmul.mubr.f32.gmra.mrb[0].mxu0 %v4693
        %v4695 = vpop.f32.mrb[0].mxu0
        %v4696 = vadd.f32 %v4158, %v4695
        %v4697 = vpop.f32.mrb[0].mxu0
        %v4698 = vand.u32 %v370, 4294901760
        %4699 = vmatprep.mubr.f32.mxu0 %v4698
        %v4700 = vand.u32 %v369, 4294901760
        %4701 = vmatmul.mubr.f32.gmra.mrb[0].mxu0 %v4700
        %v4702 = vpop.f32.mrb[0].mxu0
        %v4703 = vadd.f32 %v4165, %v4702
        %v4704 = vpop.f32.mrb[0].mxu0
        %v4705 = vand.u32 %v374, 4294901760
        %4706 = vmatprep.mubr.f32.mxu0 %v4705
        %v4707 = vand.u32 %v373, 4294901760
        %4708 = vmatmul.mubr.f32.gmra.mrb[0].mxu0 %v4707
        %v4709 = vpop.f32.mrb[0].mxu0
        %v4710 = vadd.f32 %v4172, %v4709
        %v4711 = vpop.f32.mrb[0].mxu0
        %v4712 = vand.u32 %v378, 4294901760
        %4713 = vmatprep.mubr.f32.mxu0 %v4712
        %v4714 = vand.u32 %v377, 4294901760
        %4715 = vmatmul.mubr.f32.gmra.mrb[0].mxu0 %v4714
        %v4716 = vpop.f32.mrb[0].mxu0
        %v4717 = vadd.f32 %v4179, %v4716
        %v4718 = vpop.f32.mrb[0].mxu0
        %v4719 = vand.u32 %v382, 4294901760
        %4720 = vmatprep.mubr.f32.mxu0 %v4719
        %v4721 = vand.u32 %v381, 4294901760
        %4722 = vmatmul.mubr.f32.gmra.mrb[0].mxu0 %v4721
        %v4723 = vpop.f32.mrb[0].mxu0
        %v4724 = vadd.f32 %v4186, %v4723
        %v4725 = vpop.f32.mrb[0].mxu0
        %v4726 = vand.u32 %v386, 4294901760
        %4727 = vmatprep.mubr.f32.mxu0 %v4726
        %v4728 = vand.u32 %v385, 4294901760
        %4729 = vmatmul.mubr.f32.gmra.mrb[0].mxu0 %v4728
        %v4730 = vpop.f32.mrb[0].mxu0
        %v4731 = vadd.f32 %v4193, %v4730
        %v4732 = vpop.f32.mrb[0].mxu0
        %v4733 = vand.u32 %v390, 4294901760
        %4734 = vmatprep.mubr.f32.mxu0 %v4733
        %v4735 = vand.u32 %v389, 4294901760
        %4736 = vmatmul.mubr.f32.gmra.mrb[0].mxu0 %v4735
        %v4737 = vpop.f32.mrb[0].mxu0
        %v4738 = vadd.f32 %v4200, %v4737
        %v4739 = vpop.f32.mrb[0].mxu0
        %v4740 = vand.u32 %v394, 4294901760
        %4741 = vmatprep.mubr.f32.mxu0 %v4740
        %v4742 = vand.u32 %v393, 4294901760
        %4743 = vmatmul.mubr.f32.gmra.mrb[0].mxu0 %v4742
        %v4744 = vpop.f32.mrb[0].mxu0
        %v4745 = vadd.f32 %v4207, %v4744
        %v4746 = vpop.f32.mrb[0].mxu0
        %v4747 = vand.u32 %v398, 4294901760
        %4748 = vmatprep.mubr.f32.mxu0 %v4747
        %v4749 = vand.u32 %v397, 4294901760
        %4750 = vmatmul.mubr.f32.gmra.mrb[0].mxu0 %v4749
        %v4751 = vpop.f32.mrb[0].mxu0
        %v4752 = vadd.f32 %v4214, %v4751
        %v4753 = vpop.f32.mrb[0].mxu0
        %v4754 = vand.u32 %v402, 4294901760
        %4755 = vmatprep.mubr.f32.mxu0 %v4754
        %v4756 = vand.u32 %v401, 4294901760
        %4757 = vmatmul.mubr.f32.gmra.mrb[0].mxu0 %v4756
        %v4758 = vpop.f32.mrb[0].mxu0
        %v4759 = vadd.f32 %v4221, %v4758
        %v4760 = vpop.f32.mrb[0].mxu0
        %v4761 = vand.u32 %v406, 4294901760
        %4762 = vmatprep.mubr.f32.mxu0 %v4761
        %v4763 = vand.u32 %v405, 4294901760
        %4764 = vmatmul.mubr.f32.gmra.mrb[0].mxu0 %v4763
        %v4765 = vpop.f32.mrb[0].mxu0
        %v4766 = vadd.f32 %v4228, %v4765
        %v4767 = vpop.f32.mrb[0].mxu0
        %v4768 = vand.u32 %v410, 4294901760
        %4769 = vmatprep.mubr.f32.mxu0 %v4768
        %v4770 = vand.u32 %v409, 4294901760
        %4771 = vmatmul.mubr.f32.gmra.mrb[0].mxu0 %v4770
        %v4772 = vpop.f32.mrb[0].mxu0
        %v4773 = vadd.f32 %v4235, %v4772
        %v4774 = vpop.f32.mrb[0].mxu0
        %v4775 = vand.u32 %v414, 4294901760
        %4776 = vmatprep.mubr.f32.mxu0 %v4775
        %v4777 = vand.u32 %v413, 4294901760
        %4778 = vmatmul.mubr.f32.gmra.mrb[0].mxu0 %v4777
        %v4779 = vpop.f32.mrb[0].mxu0
        %v4780 = vadd.f32 %v4242, %v4779
        %v4781 = vpop.f32.mrb[0].mxu0
        %v4782 = vand.u32 %v418, 4294901760
        %4783 = vmatprep.mubr.f32.mxu0 %v4782
        %v4784 = vand.u32 %v417, 4294901760
        %4785 = vmatmul.mubr.f32.gmra.mrb[0].mxu0 %v4784
        %v4786 = vpop.f32.mrb[0].mxu0
        %v4787 = vadd.f32 %v4249, %v4786
        %v4788 = vpop.f32.mrb[0].mxu0
        %v4789 = vand.u32 %v422, 4294901760
        %4790 = vmatprep.mubr.f32.mxu0 %v4789
        %v4791 = vand.u32 %v421, 4294901760
        %4792 = vmatmul.mubr.f32.gmra.mrb[0].mxu0 %v4791
        %v4793 = vpop.f32.mrb[0].mxu0
        %v4794 = vadd.f32 %v4256, %v4793
        %v4795 = vpop.f32.mrb[0].mxu0
        %v4796 = vand.u32 %v426, 4294901760
        %4797 = vmatprep.mubr.f32.mxu0 %v4796
        %v4798 = vand.u32 %v425, 4294901760
        %4799 = vmatmul.mubr.f32.gmra.mrb[0].mxu0 %v4798
        %v4800 = vpop.f32.mrb[0].mxu0
        %v4801 = vadd.f32 %v4263, %v4800
        %v4802 = vpop.f32.mrb[0].mxu0
        %v4803 = vand.u32 %v430, 4294901760
        %4804 = vmatprep.mubr.f32.mxu0 %v4803
        %v4805 = vand.u32 %v429, 4294901760
        %4806 = vmatmul.mubr.f32.gmra.mrb[0].mxu0 %v4805
        %v4807 = vpop.f32.mrb[0].mxu0
        %v4808 = vadd.f32 %v4270, %v4807
        %v4809 = vpop.f32.mrb[0].mxu0
        %v4810 = vand.u32 %v434, 4294901760
        %4811 = vmatprep.mubr.f32.mxu0 %v4810
        %v4812 = vand.u32 %v433, 4294901760
        %4813 = vmatmul.mubr.f32.gmra.mrb[0].mxu0 %v4812
        %v4814 = vpop.f32.mrb[0].mxu0
        %v4815 = vadd.f32 %v4277, %v4814
        %v4816 = vpop.f32.mrb[0].mxu0
        %v4817 = vand.u32 %v438, 4294901760
        %4818 = vmatprep.mubr.f32.mxu0 %v4817
        %v4819 = vand.u32 %v437, 4294901760
        %4820 = vmatmul.mubr.f32.gmra.mrb[0].mxu0 %v4819
        %v4821 = vpop.f32.mrb[0].mxu0
        %v4822 = vadd.f32 %v4284, %v4821
        %v4823 = vpop.f32.mrb[0].mxu0
        %v4824 = vand.u32 %v442, 4294901760
        %4825 = vmatprep.mubr.f32.mxu0 %v4824
        %v4826 = vand.u32 %v441, 4294901760
        %4827 = vmatmul.mubr.f32.gmra.mrb[0].mxu0 %v4826
        %v4828 = vpop.f32.mrb[0].mxu0
        %v4829 = vadd.f32 %v4291, %v4828
        %v4830 = vpop.f32.mrb[0].mxu0
        %v4831 = vand.u32 %v446, 4294901760
        %4832 = vmatprep.mubr.f32.mxu0 %v4831
        %v4833 = vand.u32 %v445, 4294901760
        %4834 = vmatmul.mubr.f32.gmra.mrb[0].mxu0 %v4833
        %v4835 = vpop.f32.mrb[0].mxu0
        %v4836 = vadd.f32 %v4298, %v4835
        %v4837 = vpop.f32.mrb[0].mxu0
        %v4838 = vand.u32 %v450, 4294901760
        %4839 = vmatprep.mubr.f32.mxu0 %v4838
        %v4840 = vand.u32 %v449, 4294901760
        %4841 = vmatmul.mubr.f32.gmra.mrb[0].mxu0 %v4840
        %v4842 = vpop.f32.mrb[0].mxu0
        %v4843 = vadd.f32 %v4305, %v4842
        %v4844 = vpop.f32.mrb[0].mxu0
        %v4845 = vand.u32 %v454, 4294901760
        %4846 = vmatprep.mubr.f32.mxu0 %v4845
        %v4847 = vand.u32 %v453, 4294901760
        %4848 = vmatmul.mubr.f32.gmra.mrb[0].mxu0 %v4847
        %v4849 = vpop.f32.mrb[0].mxu0
        %v4850 = vadd.f32 %v4312, %v4849
        %v4851 = vpop.f32.mrb[0].mxu0
        %v4852 = vand.u32 %v458, 4294901760
        %4853 = vmatprep.mubr.f32.mxu0 %v4852
        %v4854 = vand.u32 %v457, 4294901760
        %4855 = vmatmul.mubr.f32.gmra.mrb[0].mxu0 %v4854
        %v4856 = vpop.f32.mrb[0].mxu0
        %v4857 = vadd.f32 %v4319, %v4856
        %v4858 = vpop.f32.mrb[0].mxu0
        %v4859 = vand.u32 %v462, 4294901760
        %4860 = vmatprep.mubr.f32.mxu0 %v4859
        %v4861 = vand.u32 %v461, 4294901760
        %4862 = vmatmul.mubr.f32.gmra.mrb[0].mxu0 %v4861
        %v4863 = vpop.f32.mrb[0].mxu0
        %v4864 = vadd.f32 %v4326, %v4863
        %v4865 = vpop.f32.mrb[0].mxu0
        %v4866 = vand.u32 %v466, 4294901760
        %4867 = vmatprep.mubr.f32.mxu0 %v4866
        %v4868 = vand.u32 %v465, 4294901760
        %4869 = vmatmul.mubr.f32.gmra.mrb[0].mxu0 %v4868
        %v4870 = vpop.f32.mrb[0].mxu0
        %v4871 = vadd.f32 %v4333, %v4870
        %v4872 = vpop.f32.mrb[0].mxu0
        %4873 = vdwg.mxu0
        %4874 = vmatprep.subr.mxu0 0.0
        %v4875 = vand.u32 %v501, 4294901760
        %4876 = vmatpush1.msra.mxu0 %v4875
        %4877 = vmatprep.subr.mxu0 0.0
        %v4878 = vand.u32 %v502, 4294901760
        %4879 = vmatpush1.msra.mxu0 %v4878
        %4880 = vmatprep.subr.mxu0 0.0
        %v4881 = vand.u32 %v503, 4294901760
        %4882 = vmatpush1.msra.mxu0 %v4881
        %4883 = vmatprep.subr.mxu0 0.0
        %v4884 = vand.u32 %v504, 4294901760
        %4885 = vmatpush1.msra.mxu0 %v4884
        %4886 = vmatprep.subr.mxu0 0.0
        %v4887 = vand.u32 %v505, 4294901760
        %4888 = vmatpush1.msra.mxu0 %v4887
        %4889 = vmatprep.subr.mxu0 0.0
        %v4890 = vand.u32 %v506, 4294901760
        %4891 = vmatpush1.msra.mxu0 %v4890
        %4892 = vmatprep.subr.mxu0 0.0
        %v4893 = vand.u32 %v507, 4294901760
        %4894 = vmatpush1.msra.mxu0 %v4893
        %4895 = vmatprep.subr.mxu0 0.0
        %v4896 = vand.u32 %v508, 4294901760
        %4897 = vmatpush1.msra.mxu0 %v4896
        %4898 = vmatprep.subr.mxu0 0.0
        %v4899 = vand.u32 %v509, 4294901760
        %4900 = vmatpush1.msra.mxu0 %v4899
        %4901 = vmatprep.subr.mxu0 0.0
        %v4902 = vand.u32 %v510, 4294901760
        %4903 = vmatpush1.msra.mxu0 %v4902
        %4904 = vmatprep.subr.mxu0 0.0
        %v4905 = vand.u32 %v511, 4294901760
        %4906 = vmatpush1.msra.mxu0 %v4905
        %4907 = vmatprep.subr.mxu0 0.0
        %v4908 = vand.u32 %v512, 4294901760
        %4909 = vmatpush1.msra.mxu0 %v4908
        %4910 = vmatprep.subr.mxu0 0.0
        %v4911 = vand.u32 %v513, 4294901760
        %4912 = vmatpush1.msra.mxu0 %v4911
        %4913 = vmatprep.subr.mxu0 0.0
        %v4914 = vand.u32 %v514, 4294901760
        %4915 = vmatpush1.msra.mxu0 %v4914
        %4916 = vmatprep.subr.mxu0 0.0
        %v4917 = vand.u32 %v515, 4294901760
        %4918 = vmatpush1.msra.mxu0 %v4917
        %4919 = vmatprep.subr.mxu0 0.0
        %v4920 = vand.u32 %v516, 4294901760
        %4921 = vmatpush1.msra.mxu0 %v4920
        %4922 = vmatprep.subr.mxu0 0.0
        %v4923 = vand.u32 %v517, 4294901760
        %4924 = vmatpush1.msra.mxu0 %v4923
        %4925 = vmatprep.subr.mxu0 0.0
        %v4926 = vand.u32 %v518, 4294901760
        %4927 = vmatpush1.msra.mxu0 %v4926
        %4928 = vmatprep.subr.mxu0 0.0
        %v4929 = vand.u32 %v519, 4294901760
        %4930 = vmatpush1.msra.mxu0 %v4929
        %4931 = vmatprep.subr.mxu0 0.0
        %v4932 = vand.u32 %v520, 4294901760
        %4933 = vmatpush1.msra.mxu0 %v4932
        %4934 = vmatprep.subr.mxu0 0.0
        %v4935 = vand.u32 %v521, 4294901760
        %4936 = vmatpush1.msra.mxu0 %v4935
        %4937 = vmatprep.subr.mxu0 0.0
        %v4938 = vand.u32 %v522, 4294901760
        %4939 = vmatpush1.msra.mxu0 %v4938
        %4940 = vmatprep.subr.mxu0 0.0
        %v4941 = vand.u32 %v523, 4294901760
        %4942 = vmatpush1.msra.mxu0 %v4941
        %4943 = vmatprep.subr.mxu0 0.0
        %v4944 = vand.u32 %v524, 4294901760
        %4945 = vmatpush1.msra.mxu0 %v4944
        %4946 = vmatprep.subr.mxu0 0.0
        %v4947 = vand.u32 %v525, 4294901760
        %4948 = vmatpush1.msra.mxu0 %v4947
        %4949 = vmatprep.subr.mxu0 0.0
        %v4950 = vand.u32 %v526, 4294901760
        %4951 = vmatpush1.msra.mxu0 %v4950
        %4952 = vmatprep.subr.mxu0 0.0
        %v4953 = vand.u32 %v527, 4294901760
        %4954 = vmatpush1.msra.mxu0 %v4953
        %4955 = vmatprep.subr.mxu0 0.0
        %v4956 = vand.u32 %v528, 4294901760
        %4957 = vmatpush1.msra.mxu0 %v4956
        %4958 = vmatprep.subr.mxu0 0.0
        %v4959 = vand.u32 %v529, 4294901760
        %4960 = vmatpush1.msra.mxu0 %v4959
        %4961 = vmatprep.subr.mxu0 0.0
        %v4962 = vand.u32 %v530, 4294901760
        %4963 = vmatpush1.msra.mxu0 %v4962
        %4964 = vmatprep.subr.mxu0 0.0
        %v4965 = vand.u32 %v531, 4294901760
        %4966 = vmatpush1.msra.mxu0 %v4965
        %4967 = vmatprep.subr.mxu0 0.0
        %v4968 = vand.u32 %v532, 4294901760
        %4969 = vmatpush1.msra.mxu0 %v4968
        %v4970 = vand.u32 %v220, 4294901760
        %v4971 = vsub.f32 %v220, %v4970
        %v4972 = vand.u32 %v4971, 4294901760
        %v4973 = vsub.f32 %v4971, %v4972
        %v4974 = vand.u32 %v4973, 4294901760
        %4975 = vmatprep.mubr.f32.mxu0 %v4974
        %v4976 = vand.u32 %v219, 4294901760
        %v4977 = vsub.f32 %v219, %v4976
        %v4978 = vand.u32 %v4977, 4294901760
        %v4979 = vsub.f32 %v4977, %v4978
        %v4980 = vand.u32 %v4979, 4294901760
        %4981 = vmatmul.mubr.f32.gmra.mrb[0].mxu0 %v4980
        %v4982 = vpop.f32.mrb[0].mxu0
        %v4983 = vadd.f32 %v4437, %v4982
        %v4984 = vpop.f32.mrb[0].mxu0
        %v4985 = vand.u32 %v224, 4294901760
        %v4986 = vsub.f32 %v224, %v4985
        %v4987 = vand.u32 %v4986, 4294901760
        %v4988 = vsub.f32 %v4986, %v4987
        %v4989 = vand.u32 %v4988, 4294901760
        %4990 = vmatprep.mubr.f32.mxu0 %v4989
        %v4991 = vand.u32 %v223, 4294901760
        %v4992 = vsub.f32 %v223, %v4991
        %v4993 = vand.u32 %v4992, 4294901760
        %v4994 = vsub.f32 %v4992, %v4993
        %v4995 = vand.u32 %v4994, 4294901760
        %4996 = vmatmul.mubr.f32.gmra.mrb[0].mxu0 %v4995
        %v4997 = vpop.f32.mrb[0].mxu0
        %v4998 = vadd.f32 %v4444, %v4997
        %v4999 = vpop.f32.mrb[0].mxu0
        %v5000 = vand.u32 %v228, 4294901760
        %v5001 = vsub.f32 %v228, %v5000
        %v5002 = vand.u32 %v5001, 4294901760
        %v5003 = vsub.f32 %v5001, %v5002
        %v5004 = vand.u32 %v5003, 4294901760
        %5005 = vmatprep.mubr.f32.mxu0 %v5004
        %v5006 = vand.u32 %v227, 4294901760
        %v5007 = vsub.f32 %v227, %v5006
        %v5008 = vand.u32 %v5007, 4294901760
        %v5009 = vsub.f32 %v5007, %v5008
        %v5010 = vand.u32 %v5009, 4294901760
        %5011 = vmatmul.mubr.f32.gmra.mrb[0].mxu0 %v5010
        %v5012 = vpop.f32.mrb[0].mxu0
        %v5013 = vadd.f32 %v4451, %v5012
        %v5014 = vpop.f32.mrb[0].mxu0
        %v5015 = vand.u32 %v232, 4294901760
        %v5016 = vsub.f32 %v232, %v5015
        %v5017 = vand.u32 %v5016, 4294901760
        %v5018 = vsub.f32 %v5016, %v5017
        %v5019 = vand.u32 %v5018, 4294901760
        %5020 = vmatprep.mubr.f32.mxu0 %v5019
        %v5021 = vand.u32 %v231, 4294901760
        %v5022 = vsub.f32 %v231, %v5021
        %v5023 = vand.u32 %v5022, 4294901760
        %v5024 = vsub.f32 %v5022, %v5023
        %v5025 = vand.u32 %v5024, 4294901760
        %5026 = vmatmul.mubr.f32.gmra.mrb[0].mxu0 %v5025
        %v5027 = vpop.f32.mrb[0].mxu0
        %v5028 = vadd.f32 %v4458, %v5027
        %v5029 = vpop.f32.mrb[0].mxu0
        %v5030 = vand.u32 %v236, 4294901760
        %v5031 = vsub.f32 %v236, %v5030
        %v5032 = vand.u32 %v5031, 4294901760
        %v5033 = vsub.f32 %v5031, %v5032
        %v5034 = vand.u32 %v5033, 4294901760
        %5035 = vmatprep.mubr.f32.mxu0 %v5034
        %v5036 = vand.u32 %v235, 4294901760
        %v5037 = vsub.f32 %v235, %v5036
        %v5038 = vand.u32 %v5037, 4294901760
        %v5039 = vsub.f32 %v5037, %v5038
        %v5040 = vand.u32 %v5039, 4294901760
        %5041 = vmatmul.mubr.f32.gmra.mrb[0].mxu0 %v5040
        %v5042 = vpop.f32.mrb[0].mxu0
        %v5043 = vadd.f32 %v4465, %v5042
        %v5044 = vpop.f32.mrb[0].mxu0
        %v5045 = vand.u32 %v240, 4294901760
        %v5046 = vsub.f32 %v240, %v5045
        %v5047 = vand.u32 %v5046, 4294901760
        %v5048 = vsub.f32 %v5046, %v5047
        %v5049 = vand.u32 %v5048, 4294901760
        %5050 = vmatprep.mubr.f32.mxu0 %v5049
        %v5051 = vand.u32 %v239, 4294901760
        %v5052 = vsub.f32 %v239, %v5051
        %v5053 = vand.u32 %v5052, 4294901760
        %v5054 = vsub.f32 %v5052, %v5053
        %v5055 = vand.u32 %v5054, 4294901760
        %5056 = vmatmul.mubr.f32.gmra.mrb[0].mxu0 %v5055
        %v5057 = vpop.f32.mrb[0].mxu0
        %v5058 = vadd.f32 %v4472, %v5057
        %v5059 = vpop.f32.mrb[0].mxu0
        %v5060 = vand.u32 %v244, 4294901760
        %v5061 = vsub.f32 %v244, %v5060
        %v5062 = vand.u32 %v5061, 4294901760
        %v5063 = vsub.f32 %v5061, %v5062
        %v5064 = vand.u32 %v5063, 4294901760
        %5065 = vmatprep.mubr.f32.mxu0 %v5064
        %v5066 = vand.u32 %v243, 4294901760
        %v5067 = vsub.f32 %v243, %v5066
        %v5068 = vand.u32 %v5067, 4294901760
        %v5069 = vsub.f32 %v5067, %v5068
        %v5070 = vand.u32 %v5069, 4294901760
        %5071 = vmatmul.mubr.f32.gmra.mrb[0].mxu0 %v5070
        %v5072 = vpop.f32.mrb[0].mxu0
        %v5073 = vadd.f32 %v4479, %v5072
        %v5074 = vpop.f32.mrb[0].mxu0
        %v5075 = vand.u32 %v248, 4294901760
        %v5076 = vsub.f32 %v248, %v5075
        %v5077 = vand.u32 %v5076, 4294901760
        %v5078 = vsub.f32 %v5076, %v5077
        %v5079 = vand.u32 %v5078, 4294901760
        %5080 = vmatprep.mubr.f32.mxu0 %v5079
        %v5081 = vand.u32 %v247, 4294901760
        %v5082 = vsub.f32 %v247, %v5081
        %v5083 = vand.u32 %v5082, 4294901760
        %v5084 = vsub.f32 %v5082, %v5083
        %v5085 = vand.u32 %v5084, 4294901760
        %5086 = vmatmul.mubr.f32.gmra.mrb[0].mxu0 %v5085
        %v5087 = vpop.f32.mrb[0].mxu0
        %v5088 = vadd.f32 %v4486, %v5087
        %v5089 = vpop.f32.mrb[0].mxu0
        %v5090 = vand.u32 %v252, 4294901760
        %v5091 = vsub.f32 %v252, %v5090
        %v5092 = vand.u32 %v5091, 4294901760
        %v5093 = vsub.f32 %v5091, %v5092
        %v5094 = vand.u32 %v5093, 4294901760
        %5095 = vmatprep.mubr.f32.mxu0 %v5094
        %v5096 = vand.u32 %v251, 4294901760
        %v5097 = vsub.f32 %v251, %v5096
        %v5098 = vand.u32 %v5097, 4294901760
        %v5099 = vsub.f32 %v5097, %v5098
        %v5100 = vand.u32 %v5099, 4294901760
        %5101 = vmatmul.mubr.f32.gmra.mrb[0].mxu0 %v5100
        %v5102 = vpop.f32.mrb[0].mxu0
        %v5103 = vadd.f32 %v4493, %v5102
        %v5104 = vpop.f32.mrb[0].mxu0
        %v5105 = vand.u32 %v256, 4294901760
        %v5106 = vsub.f32 %v256, %v5105
        %v5107 = vand.u32 %v5106, 4294901760
        %v5108 = vsub.f32 %v5106, %v5107
        %v5109 = vand.u32 %v5108, 4294901760
        %5110 = vmatprep.mubr.f32.mxu0 %v5109
        %v5111 = vand.u32 %v255, 4294901760
        %v5112 = vsub.f32 %v255, %v5111
        %v5113 = vand.u32 %v5112, 4294901760
        %v5114 = vsub.f32 %v5112, %v5113
        %v5115 = vand.u32 %v5114, 4294901760
        %5116 = vmatmul.mubr.f32.gmra.mrb[0].mxu0 %v5115
        %v5117 = vpop.f32.mrb[0].mxu0
        %v5118 = vadd.f32 %v4500, %v5117
        %v5119 = vpop.f32.mrb[0].mxu0
        %v5120 = vand.u32 %v260, 4294901760
        %v5121 = vsub.f32 %v260, %v5120
        %v5122 = vand.u32 %v5121, 4294901760
        %v5123 = vsub.f32 %v5121, %v5122
        %v5124 = vand.u32 %v5123, 4294901760
        %5125 = vmatprep.mubr.f32.mxu0 %v5124
        %v5126 = vand.u32 %v259, 4294901760
        %v5127 = vsub.f32 %v259, %v5126
        %v5128 = vand.u32 %v5127, 4294901760
        %v5129 = vsub.f32 %v5127, %v5128
        %v5130 = vand.u32 %v5129, 4294901760
        %5131 = vmatmul.mubr.f32.gmra.mrb[0].mxu0 %v5130
        %v5132 = vpop.f32.mrb[0].mxu0
        %v5133 = vadd.f32 %v4507, %v5132
        %v5134 = vpop.f32.mrb[0].mxu0
        %v5135 = vand.u32 %v264, 4294901760
        %v5136 = vsub.f32 %v264, %v5135
        %v5137 = vand.u32 %v5136, 4294901760
        %v5138 = vsub.f32 %v5136, %v5137
        %v5139 = vand.u32 %v5138, 4294901760
        %5140 = vmatprep.mubr.f32.mxu0 %v5139
        %v5141 = vand.u32 %v263, 4294901760
        %v5142 = vsub.f32 %v263, %v5141
        %v5143 = vand.u32 %v5142, 4294901760
        %v5144 = vsub.f32 %v5142, %v5143
        %v5145 = vand.u32 %v5144, 4294901760
        %5146 = vmatmul.mubr.f32.gmra.mrb[0].mxu0 %v5145
        %v5147 = vpop.f32.mrb[0].mxu0
        %v5148 = vadd.f32 %v4514, %v5147
        %v5149 = vpop.f32.mrb[0].mxu0
        %v5150 = vand.u32 %v268, 4294901760
        %v5151 = vsub.f32 %v268, %v5150
        %v5152 = vand.u32 %v5151, 4294901760
        %v5153 = vsub.f32 %v5151, %v5152
        %v5154 = vand.u32 %v5153, 4294901760
        %5155 = vmatprep.mubr.f32.mxu0 %v5154
        %v5156 = vand.u32 %v267, 4294901760
        %v5157 = vsub.f32 %v267, %v5156
        %v5158 = vand.u32 %v5157, 4294901760
        %v5159 = vsub.f32 %v5157, %v5158
        %v5160 = vand.u32 %v5159, 4294901760
        %5161 = vmatmul.mubr.f32.gmra.mrb[0].mxu0 %v5160
        %v5162 = vpop.f32.mrb[0].mxu0
        %v5163 = vadd.f32 %v4521, %v5162
        %v5164 = vpop.f32.mrb[0].mxu0
        %v5165 = vand.u32 %v272, 4294901760
        %v5166 = vsub.f32 %v272, %v5165
        %v5167 = vand.u32 %v5166, 4294901760
        %v5168 = vsub.f32 %v5166, %v5167
        %v5169 = vand.u32 %v5168, 4294901760
        %5170 = vmatprep.mubr.f32.mxu0 %v5169
        %v5171 = vand.u32 %v271, 4294901760
        %v5172 = vsub.f32 %v271, %v5171
        %v5173 = vand.u32 %v5172, 4294901760
        %v5174 = vsub.f32 %v5172, %v5173
        %v5175 = vand.u32 %v5174, 4294901760
        %5176 = vmatmul.mubr.f32.gmra.mrb[0].mxu0 %v5175
        %v5177 = vpop.f32.mrb[0].mxu0
        %v5178 = vadd.f32 %v4528, %v5177
        %v5179 = vpop.f32.mrb[0].mxu0
        %v5180 = vand.u32 %v276, 4294901760
        %v5181 = vsub.f32 %v276, %v5180
        %v5182 = vand.u32 %v5181, 4294901760
        %v5183 = vsub.f32 %v5181, %v5182
        %v5184 = vand.u32 %v5183, 4294901760
        %5185 = vmatprep.mubr.f32.mxu0 %v5184
        %v5186 = vand.u32 %v275, 4294901760
        %v5187 = vsub.f32 %v275, %v5186
        %v5188 = vand.u32 %v5187, 4294901760
        %v5189 = vsub.f32 %v5187, %v5188
        %v5190 = vand.u32 %v5189, 4294901760
        %5191 = vmatmul.mubr.f32.gmra.mrb[0].mxu0 %v5190
        %v5192 = vpop.f32.mrb[0].mxu0
        %v5193 = vadd.f32 %v4535, %v5192
        %v5194 = vpop.f32.mrb[0].mxu0
        %v5195 = vand.u32 %v280, 4294901760
        %v5196 = vsub.f32 %v280, %v5195
        %v5197 = vand.u32 %v5196, 4294901760
        %v5198 = vsub.f32 %v5196, %v5197
        %v5199 = vand.u32 %v5198, 4294901760
        %5200 = vmatprep.mubr.f32.mxu0 %v5199
        %v5201 = vand.u32 %v279, 4294901760
        %v5202 = vsub.f32 %v279, %v5201
        %v5203 = vand.u32 %v5202, 4294901760
        %v5204 = vsub.f32 %v5202, %v5203
        %v5205 = vand.u32 %v5204, 4294901760
        %5206 = vmatmul.mubr.f32.gmra.mrb[0].mxu0 %v5205
        %v5207 = vpop.f32.mrb[0].mxu0
        %v5208 = vadd.f32 %v4542, %v5207
        %v5209 = vpop.f32.mrb[0].mxu0
        %v5210 = vand.u32 %v284, 4294901760
        %v5211 = vsub.f32 %v284, %v5210
        %v5212 = vand.u32 %v5211, 4294901760
        %v5213 = vsub.f32 %v5211, %v5212
        %v5214 = vand.u32 %v5213, 4294901760
        %5215 = vmatprep.mubr.f32.mxu0 %v5214
        %v5216 = vand.u32 %v283, 4294901760
        %v5217 = vsub.f32 %v283, %v5216
        %v5218 = vand.u32 %v5217, 4294901760
        %v5219 = vsub.f32 %v5217, %v5218
        %v5220 = vand.u32 %v5219, 4294901760
        %5221 = vmatmul.mubr.f32.gmra.mrb[0].mxu0 %v5220
        %v5222 = vpop.f32.mrb[0].mxu0
        %v5223 = vadd.f32 %v4549, %v5222
        %v5224 = vpop.f32.mrb[0].mxu0
        %v5225 = vand.u32 %v288, 4294901760
        %v5226 = vsub.f32 %v288, %v5225
        %v5227 = vand.u32 %v5226, 4294901760
        %v5228 = vsub.f32 %v5226, %v5227
        %v5229 = vand.u32 %v5228, 4294901760
        %5230 = vmatprep.mubr.f32.mxu0 %v5229
        %v5231 = vand.u32 %v287, 4294901760
        %v5232 = vsub.f32 %v287, %v5231
        %v5233 = vand.u32 %v5232, 4294901760
        %v5234 = vsub.f32 %v5232, %v5233
        %v5235 = vand.u32 %v5234, 4294901760
        %5236 = vmatmul.mubr.f32.gmra.mrb[0].mxu0 %v5235
        %v5237 = vpop.f32.mrb[0].mxu0
        %v5238 = vadd.f32 %v4556, %v5237
        %v5239 = vpop.f32.mrb[0].mxu0
        %v5240 = vand.u32 %v292, 4294901760
        %v5241 = vsub.f32 %v292, %v5240
        %v5242 = vand.u32 %v5241, 4294901760
        %v5243 = vsub.f32 %v5241, %v5242
        %v5244 = vand.u32 %v5243, 4294901760
        %5245 = vmatprep.mubr.f32.mxu0 %v5244
        %v5246 = vand.u32 %v291, 4294901760
        %v5247 = vsub.f32 %v291, %v5246
        %v5248 = vand.u32 %v5247, 4294901760
        %v5249 = vsub.f32 %v5247, %v5248
        %v5250 = vand.u32 %v5249, 4294901760
        %5251 = vmatmul.mubr.f32.gmra.mrb[0].mxu0 %v5250
        %v5252 = vpop.f32.mrb[0].mxu0
        %v5253 = vadd.f32 %v4563, %v5252
        %v5254 = vpop.f32.mrb[0].mxu0
        %v5255 = vand.u32 %v296, 4294901760
        %v5256 = vsub.f32 %v296, %v5255
        %v5257 = vand.u32 %v5256, 4294901760
        %v5258 = vsub.f32 %v5256, %v5257
        %v5259 = vand.u32 %v5258, 4294901760
        %5260 = vmatprep.mubr.f32.mxu0 %v5259
        %v5261 = vand.u32 %v295, 4294901760
        %v5262 = vsub.f32 %v295, %v5261
        %v5263 = vand.u32 %v5262, 4294901760
        %v5264 = vsub.f32 %v5262, %v5263
        %v5265 = vand.u32 %v5264, 4294901760
        %5266 = vmatmul.mubr.f32.gmra.mrb[0].mxu0 %v5265
        %v5267 = vpop.f32.mrb[0].mxu0
        %v5268 = vadd.f32 %v4570, %v5267
        %v5269 = vpop.f32.mrb[0].mxu0
        %v5270 = vand.u32 %v300, 4294901760
        %v5271 = vsub.f32 %v300, %v5270
        %v5272 = vand.u32 %v5271, 4294901760
        %v5273 = vsub.f32 %v5271, %v5272
        %v5274 = vand.u32 %v5273, 4294901760
        %5275 = vmatprep.mubr.f32.mxu0 %v5274
        %v5276 = vand.u32 %v299, 4294901760
        %v5277 = vsub.f32 %v299, %v5276
        %v5278 = vand.u32 %v5277, 4294901760
        %v5279 = vsub.f32 %v5277, %v5278
        %v5280 = vand.u32 %v5279, 4294901760
        %5281 = vmatmul.mubr.f32.gmra.mrb[0].mxu0 %v5280
        %v5282 = vpop.f32.mrb[0].mxu0
        %v5283 = vadd.f32 %v4577, %v5282
        %v5284 = vpop.f32.mrb[0].mxu0
        %v5285 = vand.u32 %v304, 4294901760
        %v5286 = vsub.f32 %v304, %v5285
        %v5287 = vand.u32 %v5286, 4294901760
        %v5288 = vsub.f32 %v5286, %v5287
        %v5289 = vand.u32 %v5288, 4294901760
        %5290 = vmatprep.mubr.f32.mxu0 %v5289
        %v5291 = vand.u32 %v303, 4294901760
        %v5292 = vsub.f32 %v303, %v5291
        %v5293 = vand.u32 %v5292, 4294901760
        %v5294 = vsub.f32 %v5292, %v5293
        %v5295 = vand.u32 %v5294, 4294901760
        %5296 = vmatmul.mubr.f32.gmra.mrb[0].mxu0 %v5295
        %v5297 = vpop.f32.mrb[0].mxu0
        %v5298 = vadd.f32 %v4584, %v5297
        %v5299 = vpop.f32.mrb[0].mxu0
        %v5300 = vand.u32 %v308, 4294901760
        %v5301 = vsub.f32 %v308, %v5300
        %v5302 = vand.u32 %v5301, 4294901760
        %v5303 = vsub.f32 %v5301, %v5302
        %v5304 = vand.u32 %v5303, 4294901760
        %5305 = vmatprep.mubr.f32.mxu0 %v5304
        %v5306 = vand.u32 %v307, 4294901760
        %v5307 = vsub.f32 %v307, %v5306
        %v5308 = vand.u32 %v5307, 4294901760
        %v5309 = vsub.f32 %v5307, %v5308
        %v5310 = vand.u32 %v5309, 4294901760
        %5311 = vmatmul.mubr.f32.gmra.mrb[0].mxu0 %v5310
        %v5312 = vpop.f32.mrb[0].mxu0
        %v5313 = vadd.f32 %v4591, %v5312
        %v5314 = vpop.f32.mrb[0].mxu0
        %v5315 = vand.u32 %v312, 4294901760
        %v5316 = vsub.f32 %v312, %v5315
        %v5317 = vand.u32 %v5316, 4294901760
        %v5318 = vsub.f32 %v5316, %v5317
        %v5319 = vand.u32 %v5318, 4294901760
        %5320 = vmatprep.mubr.f32.mxu0 %v5319
        %v5321 = vand.u32 %v311, 4294901760
        %v5322 = vsub.f32 %v311, %v5321
        %v5323 = vand.u32 %v5322, 4294901760
        %v5324 = vsub.f32 %v5322, %v5323
        %v5325 = vand.u32 %v5324, 4294901760
        %5326 = vmatmul.mubr.f32.gmra.mrb[0].mxu0 %v5325
        %v5327 = vpop.f32.mrb[0].mxu0
        %v5328 = vadd.f32 %v4598, %v5327
        %v5329 = vpop.f32.mrb[0].mxu0
        %v5330 = vand.u32 %v316, 4294901760
        %v5331 = vsub.f32 %v316, %v5330
        %v5332 = vand.u32 %v5331, 4294901760
        %v5333 = vsub.f32 %v5331, %v5332
        %v5334 = vand.u32 %v5333, 4294901760
        %5335 = vmatprep.mubr.f32.mxu0 %v5334
        %v5336 = vand.u32 %v315, 4294901760
        %v5337 = vsub.f32 %v315, %v5336
        %v5338 = vand.u32 %v5337, 4294901760
        %v5339 = vsub.f32 %v5337, %v5338
        %v5340 = vand.u32 %v5339, 4294901760
        %5341 = vmatmul.mubr.f32.gmra.mrb[0].mxu0 %v5340
        %v5342 = vpop.f32.mrb[0].mxu0
        %v5343 = vadd.f32 %v4605, %v5342
        %v5344 = vpop.f32.mrb[0].mxu0
        %v5345 = vand.u32 %v320, 4294901760
        %v5346 = vsub.f32 %v320, %v5345
        %v5347 = vand.u32 %v5346, 4294901760
        %v5348 = vsub.f32 %v5346, %v5347
        %v5349 = vand.u32 %v5348, 4294901760
        %5350 = vmatprep.mubr.f32.mxu0 %v5349
        %v5351 = vand.u32 %v319, 4294901760
        %v5352 = vsub.f32 %v319, %v5351
        %v5353 = vand.u32 %v5352, 4294901760
        %v5354 = vsub.f32 %v5352, %v5353
        %v5355 = vand.u32 %v5354, 4294901760
        %5356 = vmatmul.mubr.f32.gmra.mrb[0].mxu0 %v5355
        %v5357 = vpop.f32.mrb[0].mxu0
        %v5358 = vadd.f32 %v4612, %v5357
        %v5359 = vpop.f32.mrb[0].mxu0
        %v5360 = vand.u32 %v324, 4294901760
        %v5361 = vsub.f32 %v324, %v5360
        %v5362 = vand.u32 %v5361, 4294901760
        %v5363 = vsub.f32 %v5361, %v5362
        %v5364 = vand.u32 %v5363, 4294901760
        %5365 = vmatprep.mubr.f32.mxu0 %v5364
        %v5366 = vand.u32 %v323, 4294901760
        %v5367 = vsub.f32 %v323, %v5366
        %v5368 = vand.u32 %v5367, 4294901760
        %v5369 = vsub.f32 %v5367, %v5368
        %v5370 = vand.u32 %v5369, 4294901760
        %5371 = vmatmul.mubr.f32.gmra.mrb[0].mxu0 %v5370
        %v5372 = vpop.f32.mrb[0].mxu0
        %v5373 = vadd.f32 %v4619, %v5372
        %v5374 = vpop.f32.mrb[0].mxu0
        %v5375 = vand.u32 %v328, 4294901760
        %v5376 = vsub.f32 %v328, %v5375
        %v5377 = vand.u32 %v5376, 4294901760
        %v5378 = vsub.f32 %v5376, %v5377
        %v5379 = vand.u32 %v5378, 4294901760
        %5380 = vmatprep.mubr.f32.mxu0 %v5379
        %v5381 = vand.u32 %v327, 4294901760
        %v5382 = vsub.f32 %v327, %v5381
        %v5383 = vand.u32 %v5382, 4294901760
        %v5384 = vsub.f32 %v5382, %v5383
        %v5385 = vand.u32 %v5384, 4294901760
        %5386 = vmatmul.mubr.f32.gmra.mrb[0].mxu0 %v5385
        %v5387 = vpop.f32.mrb[0].mxu0
        %v5388 = vadd.f32 %v4626, %v5387
        %v5389 = vpop.f32.mrb[0].mxu0
        %v5390 = vand.u32 %v332, 4294901760
        %v5391 = vsub.f32 %v332, %v5390
        %v5392 = vand.u32 %v5391, 4294901760
        %v5393 = vsub.f32 %v5391, %v5392
        %v5394 = vand.u32 %v5393, 4294901760
        %5395 = vmatprep.mubr.f32.mxu0 %v5394
        %v5396 = vand.u32 %v331, 4294901760
        %v5397 = vsub.f32 %v331, %v5396
        %v5398 = vand.u32 %v5397, 4294901760
        %v5399 = vsub.f32 %v5397, %v5398
        %v5400 = vand.u32 %v5399, 4294901760
        %5401 = vmatmul.mubr.f32.gmra.mrb[0].mxu0 %v5400
        %v5402 = vpop.f32.mrb[0].mxu0
        %v5403 = vadd.f32 %v4633, %v5402
        %v5404 = vpop.f32.mrb[0].mxu0
        %v5405 = vand.u32 %v336, 4294901760
        %v5406 = vsub.f32 %v336, %v5405
        %v5407 = vand.u32 %v5406, 4294901760
        %v5408 = vsub.f32 %v5406, %v5407
        %v5409 = vand.u32 %v5408, 4294901760
        %5410 = vmatprep.mubr.f32.mxu0 %v5409
        %v5411 = vand.u32 %v335, 4294901760
        %v5412 = vsub.f32 %v335, %v5411
        %v5413 = vand.u32 %v5412, 4294901760
        %v5414 = vsub.f32 %v5412, %v5413
        %v5415 = vand.u32 %v5414, 4294901760
        %5416 = vmatmul.mubr.f32.gmra.mrb[0].mxu0 %v5415
        %v5417 = vpop.f32.mrb[0].mxu0
        %v5418 = vadd.f32 %v4640, %v5417
        %v5419 = vpop.f32.mrb[0].mxu0
        %v5420 = vand.u32 %v340, 4294901760
        %v5421 = vsub.f32 %v340, %v5420
        %v5422 = vand.u32 %v5421, 4294901760
        %v5423 = vsub.f32 %v5421, %v5422
        %v5424 = vand.u32 %v5423, 4294901760
        %5425 = vmatprep.mubr.f32.mxu0 %v5424
        %v5426 = vand.u32 %v339, 4294901760
        %v5427 = vsub.f32 %v339, %v5426
        %v5428 = vand.u32 %v5427, 4294901760
        %v5429 = vsub.f32 %v5427, %v5428
        %v5430 = vand.u32 %v5429, 4294901760
        %5431 = vmatmul.mubr.f32.gmra.mrb[0].mxu0 %v5430
        %v5432 = vpop.f32.mrb[0].mxu0
        %v5433 = vadd.f32 %v4647, %v5432
        %v5434 = vpop.f32.mrb[0].mxu0
        %v5435 = vand.u32 %v344, 4294901760
        %v5436 = vsub.f32 %v344, %v5435
        %v5437 = vand.u32 %v5436, 4294901760
        %v5438 = vsub.f32 %v5436, %v5437
        %v5439 = vand.u32 %v5438, 4294901760
        %5440 = vmatprep.mubr.f32.mxu0 %v5439
        %v5441 = vand.u32 %v343, 4294901760
        %v5442 = vsub.f32 %v343, %v5441
        %v5443 = vand.u32 %v5442, 4294901760
        %v5444 = vsub.f32 %v5442, %v5443
        %v5445 = vand.u32 %v5444, 4294901760
        %5446 = vmatmul.mubr.f32.gmra.mrb[0].mxu0 %v5445
        %v5447 = vpop.f32.mrb[0].mxu0
        %v5448 = vadd.f32 %v4654, %v5447
        %v5449 = vpop.f32.mrb[0].mxu0
        %v5450 = vand.u32 %v348, 4294901760
        %v5451 = vsub.f32 %v348, %v5450
        %v5452 = vand.u32 %v5451, 4294901760
        %v5453 = vsub.f32 %v5451, %v5452
        %v5454 = vand.u32 %v5453, 4294901760
        %5455 = vmatprep.mubr.f32.mxu0 %v5454
        %v5456 = vand.u32 %v347, 4294901760
        %v5457 = vsub.f32 %v347, %v5456
        %v5458 = vand.u32 %v5457, 4294901760
        %v5459 = vsub.f32 %v5457, %v5458
        %v5460 = vand.u32 %v5459, 4294901760
        %5461 = vmatmul.mubr.f32.gmra.mrb[0].mxu0 %v5460
        %v5462 = vpop.f32.mrb[0].mxu0
        %v5463 = vadd.f32 %v4661, %v5462
        %v5464 = vpop.f32.mrb[0].mxu0
        %v5465 = vand.u32 %v352, 4294901760
        %v5466 = vsub.f32 %v352, %v5465
        %v5467 = vand.u32 %v5466, 4294901760
        %v5468 = vsub.f32 %v5466, %v5467
        %v5469 = vand.u32 %v5468, 4294901760
        %5470 = vmatprep.mubr.f32.mxu0 %v5469
        %v5471 = vand.u32 %v351, 4294901760
        %v5472 = vsub.f32 %v351, %v5471
        %v5473 = vand.u32 %v5472, 4294901760
        %v5474 = vsub.f32 %v5472, %v5473
        %v5475 = vand.u32 %v5474, 4294901760
        %5476 = vmatmul.mubr.f32.gmra.mrb[0].mxu0 %v5475
        %v5477 = vpop.f32.mrb[0].mxu0
        %v5478 = vadd.f32 %v4668, %v5477
        %v5479 = vpop.f32.mrb[0].mxu0
        %v5480 = vand.u32 %v356, 4294901760
        %v5481 = vsub.f32 %v356, %v5480
        %v5482 = vand.u32 %v5481, 4294901760
        %v5483 = vsub.f32 %v5481, %v5482
        %v5484 = vand.u32 %v5483, 4294901760
        %5485 = vmatprep.mubr.f32.mxu0 %v5484
        %v5486 = vand.u32 %v355, 4294901760
        %v5487 = vsub.f32 %v355, %v5486
        %v5488 = vand.u32 %v5487, 4294901760
        %v5489 = vsub.f32 %v5487, %v5488
        %v5490 = vand.u32 %v5489, 4294901760
        %5491 = vmatmul.mubr.f32.gmra.mrb[0].mxu0 %v5490
        %v5492 = vpop.f32.mrb[0].mxu0
        %v5493 = vadd.f32 %v4675, %v5492
        %v5494 = vpop.f32.mrb[0].mxu0
        %v5495 = vand.u32 %v360, 4294901760
        %v5496 = vsub.f32 %v360, %v5495
        %v5497 = vand.u32 %v5496, 4294901760
        %v5498 = vsub.f32 %v5496, %v5497
        %v5499 = vand.u32 %v5498, 4294901760
        %5500 = vmatprep.mubr.f32.mxu0 %v5499
        %v5501 = vand.u32 %v359, 4294901760
        %v5502 = vsub.f32 %v359, %v5501
        %v5503 = vand.u32 %v5502, 4294901760
        %v5504 = vsub.f32 %v5502, %v5503
        %v5505 = vand.u32 %v5504, 4294901760
        %5506 = vmatmul.mubr.f32.gmra.mrb[0].mxu0 %v5505
        %v5507 = vpop.f32.mrb[0].mxu0
        %v5508 = vadd.f32 %v4682, %v5507
        %v5509 = vpop.f32.mrb[0].mxu0
        %v5510 = vand.u32 %v364, 4294901760
        %v5511 = vsub.f32 %v364, %v5510
        %v5512 = vand.u32 %v5511, 4294901760
        %v5513 = vsub.f32 %v5511, %v5512
        %v5514 = vand.u32 %v5513, 4294901760
        %5515 = vmatprep.mubr.f32.mxu0 %v5514
        %v5516 = vand.u32 %v363, 4294901760
        %v5517 = vsub.f32 %v363, %v5516
        %v5518 = vand.u32 %v5517, 4294901760
        %v5519 = vsub.f32 %v5517, %v5518
        %v5520 = vand.u32 %v5519, 4294901760
        %5521 = vmatmul.mubr.f32.gmra.mrb[0].mxu0 %v5520
        %v5522 = vpop.f32.mrb[0].mxu0
        %v5523 = vadd.f32 %v4689, %v5522
        %v5524 = vpop.f32.mrb[0].mxu0
        %v5525 = vand.u32 %v368, 4294901760
        %v5526 = vsub.f32 %v368, %v5525
        %v5527 = vand.u32 %v5526, 4294901760
        %v5528 = vsub.f32 %v5526, %v5527
        %v5529 = vand.u32 %v5528, 4294901760
        %5530 = vmatprep.mubr.f32.mxu0 %v5529
        %v5531 = vand.u32 %v367, 4294901760
        %v5532 = vsub.f32 %v367, %v5531
        %v5533 = vand.u32 %v5532, 4294901760
        %v5534 = vsub.f32 %v5532, %v5533
        %v5535 = vand.u32 %v5534, 4294901760
        %5536 = vmatmul.mubr.f32.gmra.mrb[0].mxu0 %v5535
        %v5537 = vpop.f32.mrb[0].mxu0
        %v5538 = vadd.f32 %v4696, %v5537
        %v5539 = vpop.f32.mrb[0].mxu0
        %v5540 = vand.u32 %v372, 4294901760
        %v5541 = vsub.f32 %v372, %v5540
        %v5542 = vand.u32 %v5541, 4294901760
        %v5543 = vsub.f32 %v5541, %v5542
        %v5544 = vand.u32 %v5543, 4294901760
        %5545 = vmatprep.mubr.f32.mxu0 %v5544
        %v5546 = vand.u32 %v371, 4294901760
        %v5547 = vsub.f32 %v371, %v5546
        %v5548 = vand.u32 %v5547, 4294901760
        %v5549 = vsub.f32 %v5547, %v5548
        %v5550 = vand.u32 %v5549, 4294901760
        %5551 = vmatmul.mubr.f32.gmra.mrb[0].mxu0 %v5550
        %v5552 = vpop.f32.mrb[0].mxu0
        %v5553 = vadd.f32 %v4703, %v5552
        %v5554 = vpop.f32.mrb[0].mxu0
        %v5555 = vand.u32 %v376, 4294901760
        %v5556 = vsub.f32 %v376, %v5555
        %v5557 = vand.u32 %v5556, 4294901760
        %v5558 = vsub.f32 %v5556, %v5557
        %v5559 = vand.u32 %v5558, 4294901760
        %5560 = vmatprep.mubr.f32.mxu0 %v5559
        %v5561 = vand.u32 %v375, 4294901760
        %v5562 = vsub.f32 %v375, %v5561
        %v5563 = vand.u32 %v5562, 4294901760
        %v5564 = vsub.f32 %v5562, %v5563
        %v5565 = vand.u32 %v5564, 4294901760
        %5566 = vmatmul.mubr.f32.gmra.mrb[0].mxu0 %v5565
        %v5567 = vpop.f32.mrb[0].mxu0
        %v5568 = vadd.f32 %v4710, %v5567
        %v5569 = vpop.f32.mrb[0].mxu0
        %v5570 = vand.u32 %v380, 4294901760
        %v5571 = vsub.f32 %v380, %v5570
        %v5572 = vand.u32 %v5571, 4294901760
        %v5573 = vsub.f32 %v5571, %v5572
        %v5574 = vand.u32 %v5573, 4294901760
        %5575 = vmatprep.mubr.f32.mxu0 %v5574
        %v5576 = vand.u32 %v379, 4294901760
        %v5577 = vsub.f32 %v379, %v5576
        %v5578 = vand.u32 %v5577, 4294901760
        %v5579 = vsub.f32 %v5577, %v5578
        %v5580 = vand.u32 %v5579, 4294901760
        %5581 = vmatmul.mubr.f32.gmra.mrb[0].mxu0 %v5580
        %v5582 = vpop.f32.mrb[0].mxu0
        %v5583 = vadd.f32 %v4717, %v5582
        %v5584 = vpop.f32.mrb[0].mxu0
        %v5585 = vand.u32 %v384, 4294901760
        %v5586 = vsub.f32 %v384, %v5585
        %v5587 = vand.u32 %v5586, 4294901760
        %v5588 = vsub.f32 %v5586, %v5587
        %v5589 = vand.u32 %v5588, 4294901760
        %5590 = vmatprep.mubr.f32.mxu0 %v5589
        %v5591 = vand.u32 %v383, 4294901760
        %v5592 = vsub.f32 %v383, %v5591
        %v5593 = vand.u32 %v5592, 4294901760
        %v5594 = vsub.f32 %v5592, %v5593
        %v5595 = vand.u32 %v5594, 4294901760
        %5596 = vmatmul.mubr.f32.gmra.mrb[0].mxu0 %v5595
        %v5597 = vpop.f32.mrb[0].mxu0
        %v5598 = vadd.f32 %v4724, %v5597
        %v5599 = vpop.f32.mrb[0].mxu0
        %v5600 = vand.u32 %v388, 4294901760
        %v5601 = vsub.f32 %v388, %v5600
        %v5602 = vand.u32 %v5601, 4294901760
        %v5603 = vsub.f32 %v5601, %v5602
        %v5604 = vand.u32 %v5603, 4294901760
        %5605 = vmatprep.mubr.f32.mxu0 %v5604
        %v5606 = vand.u32 %v387, 4294901760
        %v5607 = vsub.f32 %v387, %v5606
        %v5608 = vand.u32 %v5607, 4294901760
        %v5609 = vsub.f32 %v5607, %v5608
        %v5610 = vand.u32 %v5609, 4294901760
        %5611 = vmatmul.mubr.f32.gmra.mrb[0].mxu0 %v5610
        %v5612 = vpop.f32.mrb[0].mxu0
        %v5613 = vadd.f32 %v4731, %v5612
        %v5614 = vpop.f32.mrb[0].mxu0
        %v5615 = vand.u32 %v392, 4294901760
        %v5616 = vsub.f32 %v392, %v5615
        %v5617 = vand.u32 %v5616, 4294901760
        %v5618 = vsub.f32 %v5616, %v5617
        %v5619 = vand.u32 %v5618, 4294901760
        %5620 = vmatprep.mubr.f32.mxu0 %v5619
        %v5621 = vand.u32 %v391, 4294901760
        %v5622 = vsub.f32 %v391, %v5621
        %v5623 = vand.u32 %v5622, 4294901760
        %v5624 = vsub.f32 %v5622, %v5623
        %v5625 = vand.u32 %v5624, 4294901760
        %5626 = vmatmul.mubr.f32.gmra.mrb[0].mxu0 %v5625
        %v5627 = vpop.f32.mrb[0].mxu0
        %v5628 = vadd.f32 %v4738, %v5627
        %v5629 = vpop.f32.mrb[0].mxu0
        %v5630 = vand.u32 %v396, 4294901760
        %v5631 = vsub.f32 %v396, %v5630
        %v5632 = vand.u32 %v5631, 4294901760
        %v5633 = vsub.f32 %v5631, %v5632
        %v5634 = vand.u32 %v5633, 4294901760
        %5635 = vmatprep.mubr.f32.mxu0 %v5634
        %v5636 = vand.u32 %v395, 4294901760
        %v5637 = vsub.f32 %v395, %v5636
        %v5638 = vand.u32 %v5637, 4294901760
        %v5639 = vsub.f32 %v5637, %v5638
        %v5640 = vand.u32 %v5639, 4294901760
        %5641 = vmatmul.mubr.f32.gmra.mrb[0].mxu0 %v5640
        %v5642 = vpop.f32.mrb[0].mxu0
        %v5643 = vadd.f32 %v4745, %v5642
        %v5644 = vpop.f32.mrb[0].mxu0
        %v5645 = vand.u32 %v400, 4294901760
        %v5646 = vsub.f32 %v400, %v5645
        %v5647 = vand.u32 %v5646, 4294901760
        %v5648 = vsub.f32 %v5646, %v5647
        %v5649 = vand.u32 %v5648, 4294901760
        %5650 = vmatprep.mubr.f32.mxu0 %v5649
        %v5651 = vand.u32 %v399, 4294901760
        %v5652 = vsub.f32 %v399, %v5651
        %v5653 = vand.u32 %v5652, 4294901760
        %v5654 = vsub.f32 %v5652, %v5653
        %v5655 = vand.u32 %v5654, 4294901760
        %5656 = vmatmul.mubr.f32.gmra.mrb[0].mxu0 %v5655
        %v5657 = vpop.f32.mrb[0].mxu0
        %v5658 = vadd.f32 %v4752, %v5657
        %v5659 = vpop.f32.mrb[0].mxu0
        %v5660 = vand.u32 %v404, 4294901760
        %v5661 = vsub.f32 %v404, %v5660
        %v5662 = vand.u32 %v5661, 4294901760
        %v5663 = vsub.f32 %v5661, %v5662
        %v5664 = vand.u32 %v5663, 4294901760
        %5665 = vmatprep.mubr.f32.mxu0 %v5664
        %v5666 = vand.u32 %v403, 4294901760
        %v5667 = vsub.f32 %v403, %v5666
        %v5668 = vand.u32 %v5667, 4294901760
        %v5669 = vsub.f32 %v5667, %v5668
        %v5670 = vand.u32 %v5669, 4294901760
        %5671 = vmatmul.mubr.f32.gmra.mrb[0].mxu0 %v5670
        %v5672 = vpop.f32.mrb[0].mxu0
        %v5673 = vadd.f32 %v4759, %v5672
        %v5674 = vpop.f32.mrb[0].mxu0
        %v5675 = vand.u32 %v408, 4294901760
        %v5676 = vsub.f32 %v408, %v5675
        %v5677 = vand.u32 %v5676, 4294901760
        %v5678 = vsub.f32 %v5676, %v5677
        %v5679 = vand.u32 %v5678, 4294901760
        %5680 = vmatprep.mubr.f32.mxu0 %v5679
        %v5681 = vand.u32 %v407, 4294901760
        %v5682 = vsub.f32 %v407, %v5681
        %v5683 = vand.u32 %v5682, 4294901760
        %v5684 = vsub.f32 %v5682, %v5683
        %v5685 = vand.u32 %v5684, 4294901760
        %5686 = vmatmul.mubr.f32.gmra.mrb[0].mxu0 %v5685
        %v5687 = vpop.f32.mrb[0].mxu0
        %v5688 = vadd.f32 %v4766, %v5687
        %v5689 = vpop.f32.mrb[0].mxu0
        %v5690 = vand.u32 %v412, 4294901760
        %v5691 = vsub.f32 %v412, %v5690
        %v5692 = vand.u32 %v5691, 4294901760
        %v5693 = vsub.f32 %v5691, %v5692
        %v5694 = vand.u32 %v5693, 4294901760
        %5695 = vmatprep.mubr.f32.mxu0 %v5694
        %v5696 = vand.u32 %v411, 4294901760
        %v5697 = vsub.f32 %v411, %v5696
        %v5698 = vand.u32 %v5697, 4294901760
        %v5699 = vsub.f32 %v5697, %v5698
        %v5700 = vand.u32 %v5699, 4294901760
        %5701 = vmatmul.mubr.f32.gmra.mrb[0].mxu0 %v5700
        %v5702 = vpop.f32.mrb[0].mxu0
        %v5703 = vadd.f32 %v4773, %v5702
        %v5704 = vpop.f32.mrb[0].mxu0
        %v5705 = vand.u32 %v416, 4294901760
        %v5706 = vsub.f32 %v416, %v5705
        %v5707 = vand.u32 %v5706, 4294901760
        %v5708 = vsub.f32 %v5706, %v5707
        %v5709 = vand.u32 %v5708, 4294901760
        %5710 = vmatprep.mubr.f32.mxu0 %v5709
        %v5711 = vand.u32 %v415, 4294901760
        %v5712 = vsub.f32 %v415, %v5711
        %v5713 = vand.u32 %v5712, 4294901760
        %v5714 = vsub.f32 %v5712, %v5713
        %v5715 = vand.u32 %v5714, 4294901760
        %5716 = vmatmul.mubr.f32.gmra.mrb[0].mxu0 %v5715
        %v5717 = vpop.f32.mrb[0].mxu0
        %v5718 = vadd.f32 %v4780, %v5717
        %v5719 = vpop.f32.mrb[0].mxu0
        %v5720 = vand.u32 %v420, 4294901760
        %v5721 = vsub.f32 %v420, %v5720
        %v5722 = vand.u32 %v5721, 4294901760
        %v5723 = vsub.f32 %v5721, %v5722
        %v5724 = vand.u32 %v5723, 4294901760
        %5725 = vmatprep.mubr.f32.mxu0 %v5724
        %v5726 = vand.u32 %v419, 4294901760
        %v5727 = vsub.f32 %v419, %v5726
        %v5728 = vand.u32 %v5727, 4294901760
        %v5729 = vsub.f32 %v5727, %v5728
        %v5730 = vand.u32 %v5729, 4294901760
        %5731 = vmatmul.mubr.f32.gmra.mrb[0].mxu0 %v5730
        %v5732 = vpop.f32.mrb[0].mxu0
        %v5733 = vadd.f32 %v4787, %v5732
        %v5734 = vpop.f32.mrb[0].mxu0
        %v5735 = vand.u32 %v424, 4294901760
        %v5736 = vsub.f32 %v424, %v5735
        %v5737 = vand.u32 %v5736, 4294901760
        %v5738 = vsub.f32 %v5736, %v5737
        %v5739 = vand.u32 %v5738, 4294901760
        %5740 = vmatprep.mubr.f32.mxu0 %v5739
        %v5741 = vand.u32 %v423, 4294901760
        %v5742 = vsub.f32 %v423, %v5741
        %v5743 = vand.u32 %v5742, 4294901760
        %v5744 = vsub.f32 %v5742, %v5743
        %v5745 = vand.u32 %v5744, 4294901760
        %5746 = vmatmul.mubr.f32.gmra.mrb[0].mxu0 %v5745
        %v5747 = vpop.f32.mrb[0].mxu0
        %v5748 = vadd.f32 %v4794, %v5747
        %v5749 = vpop.f32.mrb[0].mxu0
        %v5750 = vand.u32 %v428, 4294901760
        %v5751 = vsub.f32 %v428, %v5750
        %v5752 = vand.u32 %v5751, 4294901760
        %v5753 = vsub.f32 %v5751, %v5752
        %v5754 = vand.u32 %v5753, 4294901760
        %5755 = vmatprep.mubr.f32.mxu0 %v5754
        %v5756 = vand.u32 %v427, 4294901760
        %v5757 = vsub.f32 %v427, %v5756
        %v5758 = vand.u32 %v5757, 4294901760
        %v5759 = vsub.f32 %v5757, %v5758
        %v5760 = vand.u32 %v5759, 4294901760
        %5761 = vmatmul.mubr.f32.gmra.mrb[0].mxu0 %v5760
        %v5762 = vpop.f32.mrb[0].mxu0
        %v5763 = vadd.f32 %v4801, %v5762
        %v5764 = vpop.f32.mrb[0].mxu0
        %v5765 = vand.u32 %v432, 4294901760
        %v5766 = vsub.f32 %v432, %v5765
        %v5767 = vand.u32 %v5766, 4294901760
        %v5768 = vsub.f32 %v5766, %v5767
        %v5769 = vand.u32 %v5768, 4294901760
        %5770 = vmatprep.mubr.f32.mxu0 %v5769
        %v5771 = vand.u32 %v431, 4294901760
        %v5772 = vsub.f32 %v431, %v5771
        %v5773 = vand.u32 %v5772, 4294901760
        %v5774 = vsub.f32 %v5772, %v5773
        %v5775 = vand.u32 %v5774, 4294901760
        %5776 = vmatmul.mubr.f32.gmra.mrb[0].mxu0 %v5775
        %v5777 = vpop.f32.mrb[0].mxu0
        %v5778 = vadd.f32 %v4808, %v5777
        %v5779 = vpop.f32.mrb[0].mxu0
        %v5780 = vand.u32 %v436, 4294901760
        %v5781 = vsub.f32 %v436, %v5780
        %v5782 = vand.u32 %v5781, 4294901760
        %v5783 = vsub.f32 %v5781, %v5782
        %v5784 = vand.u32 %v5783, 4294901760
        %5785 = vmatprep.mubr.f32.mxu0 %v5784
        %v5786 = vand.u32 %v435, 4294901760
        %v5787 = vsub.f32 %v435, %v5786
        %v5788 = vand.u32 %v5787, 4294901760
        %v5789 = vsub.f32 %v5787, %v5788
        %v5790 = vand.u32 %v5789, 4294901760
        %5791 = vmatmul.mubr.f32.gmra.mrb[0].mxu0 %v5790
        %v5792 = vpop.f32.mrb[0].mxu0
        %v5793 = vadd.f32 %v4815, %v5792
        %v5794 = vpop.f32.mrb[0].mxu0
        %v5795 = vand.u32 %v440, 4294901760
        %v5796 = vsub.f32 %v440, %v5795
        %v5797 = vand.u32 %v5796, 4294901760
        %v5798 = vsub.f32 %v5796, %v5797
        %v5799 = vand.u32 %v5798, 4294901760
        %5800 = vmatprep.mubr.f32.mxu0 %v5799
        %v5801 = vand.u32 %v439, 4294901760
        %v5802 = vsub.f32 %v439, %v5801
        %v5803 = vand.u32 %v5802, 4294901760
        %v5804 = vsub.f32 %v5802, %v5803
        %v5805 = vand.u32 %v5804, 4294901760
        %5806 = vmatmul.mubr.f32.gmra.mrb[0].mxu0 %v5805
        %v5807 = vpop.f32.mrb[0].mxu0
        %v5808 = vadd.f32 %v4822, %v5807
        %v5809 = vpop.f32.mrb[0].mxu0
        %v5810 = vand.u32 %v444, 4294901760
        %v5811 = vsub.f32 %v444, %v5810
        %v5812 = vand.u32 %v5811, 4294901760
        %v5813 = vsub.f32 %v5811, %v5812
        %v5814 = vand.u32 %v5813, 4294901760
        %5815 = vmatprep.mubr.f32.mxu0 %v5814
        %v5816 = vand.u32 %v443, 4294901760
        %v5817 = vsub.f32 %v443, %v5816
        %v5818 = vand.u32 %v5817, 4294901760
        %v5819 = vsub.f32 %v5817, %v5818
        %v5820 = vand.u32 %v5819, 4294901760
        %5821 = vmatmul.mubr.f32.gmra.mrb[0].mxu0 %v5820
        %v5822 = vpop.f32.mrb[0].mxu0
        %v5823 = vadd.f32 %v4829, %v5822
        %v5824 = vpop.f32.mrb[0].mxu0
        %v5825 = vand.u32 %v448, 4294901760
        %v5826 = vsub.f32 %v448, %v5825
        %v5827 = vand.u32 %v5826, 4294901760
        %v5828 = vsub.f32 %v5826, %v5827
        %v5829 = vand.u32 %v5828, 4294901760
        %5830 = vmatprep.mubr.f32.mxu0 %v5829
        %v5831 = vand.u32 %v447, 4294901760
        %v5832 = vsub.f32 %v447, %v5831
        %v5833 = vand.u32 %v5832, 4294901760
        %v5834 = vsub.f32 %v5832, %v5833
        %v5835 = vand.u32 %v5834, 4294901760
        %5836 = vmatmul.mubr.f32.gmra.mrb[0].mxu0 %v5835
        %v5837 = vpop.f32.mrb[0].mxu0
        %v5838 = vadd.f32 %v4836, %v5837
        %v5839 = vpop.f32.mrb[0].mxu0
        %v5840 = vand.u32 %v452, 4294901760
        %v5841 = vsub.f32 %v452, %v5840
        %v5842 = vand.u32 %v5841, 4294901760
        %v5843 = vsub.f32 %v5841, %v5842
        %v5844 = vand.u32 %v5843, 4294901760
        %5845 = vmatprep.mubr.f32.mxu0 %v5844
        %v5846 = vand.u32 %v451, 4294901760
        %v5847 = vsub.f32 %v451, %v5846
        %v5848 = vand.u32 %v5847, 4294901760
        %v5849 = vsub.f32 %v5847, %v5848
        %v5850 = vand.u32 %v5849, 4294901760
        %5851 = vmatmul.mubr.f32.gmra.mrb[0].mxu0 %v5850
        %v5852 = vpop.f32.mrb[0].mxu0
        %v5853 = vadd.f32 %v4843, %v5852
        %v5854 = vpop.f32.mrb[0].mxu0
        %v5855 = vand.u32 %v456, 4294901760
        %v5856 = vsub.f32 %v456, %v5855
        %v5857 = vand.u32 %v5856, 4294901760
        %v5858 = vsub.f32 %v5856, %v5857
        %v5859 = vand.u32 %v5858, 4294901760
        %5860 = vmatprep.mubr.f32.mxu0 %v5859
        %v5861 = vand.u32 %v455, 4294901760
        %v5862 = vsub.f32 %v455, %v5861
        %v5863 = vand.u32 %v5862, 4294901760
        %v5864 = vsub.f32 %v5862, %v5863
        %v5865 = vand.u32 %v5864, 4294901760
        %5866 = vmatmul.mubr.f32.gmra.mrb[0].mxu0 %v5865
        %v5867 = vpop.f32.mrb[0].mxu0
        %v5868 = vadd.f32 %v4850, %v5867
        %v5869 = vpop.f32.mrb[0].mxu0
        %v5870 = vand.u32 %v460, 4294901760
        %v5871 = vsub.f32 %v460, %v5870
        %v5872 = vand.u32 %v5871, 4294901760
        %v5873 = vsub.f32 %v5871, %v5872
        %v5874 = vand.u32 %v5873, 4294901760
        %5875 = vmatprep.mubr.f32.mxu0 %v5874
        %v5876 = vand.u32 %v459, 4294901760
        %v5877 = vsub.f32 %v459, %v5876
        %v5878 = vand.u32 %v5877, 4294901760
        %v5879 = vsub.f32 %v5877, %v5878
        %v5880 = vand.u32 %v5879, 4294901760
        %5881 = vmatmul.mubr.f32.gmra.mrb[0].mxu0 %v5880
        %v5882 = vpop.f32.mrb[0].mxu0
        %v5883 = vadd.f32 %v4857, %v5882
        %v5884 = vpop.f32.mrb[0].mxu0
        %v5885 = vand.u32 %v464, 4294901760
        %v5886 = vsub.f32 %v464, %v5885
        %v5887 = vand.u32 %v5886, 4294901760
        %v5888 = vsub.f32 %v5886, %v5887
        %v5889 = vand.u32 %v5888, 4294901760
        %5890 = vmatprep.mubr.f32.mxu0 %v5889
        %v5891 = vand.u32 %v463, 4294901760
        %v5892 = vsub.f32 %v463, %v5891
        %v5893 = vand.u32 %v5892, 4294901760
        %v5894 = vsub.f32 %v5892, %v5893
        %v5895 = vand.u32 %v5894, 4294901760
        %5896 = vmatmul.mubr.f32.gmra.mrb[0].mxu0 %v5895
        %v5897 = vpop.f32.mrb[0].mxu0
        %v5898 = vadd.f32 %v4864, %v5897
        %v5899 = vpop.f32.mrb[0].mxu0
        %v5900 = vand.u32 %v468, 4294901760
        %v5901 = vsub.f32 %v468, %v5900
        %v5902 = vand.u32 %v5901, 4294901760
        %v5903 = vsub.f32 %v5901, %v5902
        %v5904 = vand.u32 %v5903, 4294901760
        %5905 = vmatprep.mubr.f32.mxu0 %v5904
        %v5906 = vand.u32 %v467, 4294901760
        %v5907 = vsub.f32 %v467, %v5906
        %v5908 = vand.u32 %v5907, 4294901760
        %v5909 = vsub.f32 %v5907, %v5908
        %v5910 = vand.u32 %v5909, 4294901760
        %5911 = vmatmul.mubr.f32.gmra.mrb[0].mxu0 %v5910
        %v5912 = vpop.f32.mrb[0].mxu0
        %v5913 = vadd.f32 %v4871, %v5912
        %v5914 = vpop.f32.mrb[0].mxu0
        %5915 = vdwg.mxu0
        %5916 = vmatprep.subr.mxu0 0.0
        %v5917 = vand.u32 %v501, 4294901760
        %v5918 = vsub.f32 %v501, %v5917
        %v5919 = vand.u32 %v5918, 4294901760
        %v5920 = vsub.f32 %v5918, %v5919
        %v5921 = vand.u32 %v5920, 4294901760
        %5922 = vmatpush1.msra.mxu0 %v5921
        %5923 = vmatprep.subr.mxu0 0.0
        %v5924 = vand.u32 %v502, 4294901760
        %v5925 = vsub.f32 %v502, %v5924
        %v5926 = vand.u32 %v5925, 4294901760
        %v5927 = vsub.f32 %v5925, %v5926
        %v5928 = vand.u32 %v5927, 4294901760
        %5929 = vmatpush1.msra.mxu0 %v5928
        %5930 = vmatprep.subr.mxu0 0.0
        %v5931 = vand.u32 %v503, 4294901760
        %v5932 = vsub.f32 %v503, %v5931
        %v5933 = vand.u32 %v5932, 4294901760
        %v5934 = vsub.f32 %v5932, %v5933
        %v5935 = vand.u32 %v5934, 4294901760
        %5936 = vmatpush1.msra.mxu0 %v5935
        %5937 = vmatprep.subr.mxu0 0.0
        %v5938 = vand.u32 %v504, 4294901760
        %v5939 = vsub.f32 %v504, %v5938
        %v5940 = vand.u32 %v5939, 4294901760
        %v5941 = vsub.f32 %v5939, %v5940
        %v5942 = vand.u32 %v5941, 4294901760
        %5943 = vmatpush1.msra.mxu0 %v5942
        %5944 = vmatprep.subr.mxu0 0.0
        %v5945 = vand.u32 %v505, 4294901760
        %v5946 = vsub.f32 %v505, %v5945
        %v5947 = vand.u32 %v5946, 4294901760
        %v5948 = vsub.f32 %v5946, %v5947
        %v5949 = vand.u32 %v5948, 4294901760
        %5950 = vmatpush1.msra.mxu0 %v5949
        %5951 = vmatprep.subr.mxu0 0.0
        %v5952 = vand.u32 %v506, 4294901760
        %v5953 = vsub.f32 %v506, %v5952
        %v5954 = vand.u32 %v5953, 4294901760
        %v5955 = vsub.f32 %v5953, %v5954
        %v5956 = vand.u32 %v5955, 4294901760
        %5957 = vmatpush1.msra.mxu0 %v5956
        %5958 = vmatprep.subr.mxu0 0.0
        %v5959 = vand.u32 %v507, 4294901760
        %v5960 = vsub.f32 %v507, %v5959
        %v5961 = vand.u32 %v5960, 4294901760
        %v5962 = vsub.f32 %v5960, %v5961
        %v5963 = vand.u32 %v5962, 4294901760
        %5964 = vmatpush1.msra.mxu0 %v5963
        %5965 = vmatprep.subr.mxu0 0.0
        %v5966 = vand.u32 %v508, 4294901760
        %v5967 = vsub.f32 %v508, %v5966
        %v5968 = vand.u32 %v5967, 4294901760
        %v5969 = vsub.f32 %v5967, %v5968
        %v5970 = vand.u32 %v5969, 4294901760
        %5971 = vmatpush1.msra.mxu0 %v5970
        %5972 = vmatprep.subr.mxu0 0.0
        %v5973 = vand.u32 %v509, 4294901760
        %v5974 = vsub.f32 %v509, %v5973
        %v5975 = vand.u32 %v5974, 4294901760
        %v5976 = vsub.f32 %v5974, %v5975
        %v5977 = vand.u32 %v5976, 4294901760
        %5978 = vmatpush1.msra.mxu0 %v5977
        %5979 = vmatprep.subr.mxu0 0.0
        %v5980 = vand.u32 %v510, 4294901760
        %v5981 = vsub.f32 %v510, %v5980
        %v5982 = vand.u32 %v5981, 4294901760
        %v5983 = vsub.f32 %v5981, %v5982
        %v5984 = vand.u32 %v5983, 4294901760
        %5985 = vmatpush1.msra.mxu0 %v5984
        %5986 = vmatprep.subr.mxu0 0.0
        %v5987 = vand.u32 %v511, 4294901760
        %v5988 = vsub.f32 %v511, %v5987
        %v5989 = vand.u32 %v5988, 4294901760
        %v5990 = vsub.f32 %v5988, %v5989
        %v5991 = vand.u32 %v5990, 4294901760
        %5992 = vmatpush1.msra.mxu0 %v5991
        %5993 = vmatprep.subr.mxu0 0.0
        %v5994 = vand.u32 %v512, 4294901760
        %v5995 = vsub.f32 %v512, %v5994
        %v5996 = vand.u32 %v5995, 4294901760
        %v5997 = vsub.f32 %v5995, %v5996
        %v5998 = vand.u32 %v5997, 4294901760
        %5999 = vmatpush1.msra.mxu0 %v5998
        %6000 = vmatprep.subr.mxu0 0.0
        %v6001 = vand.u32 %v513, 4294901760
        %v6002 = vsub.f32 %v513, %v6001
        %v6003 = vand.u32 %v6002, 4294901760
        %v6004 = vsub.f32 %v6002, %v6003
        %v6005 = vand.u32 %v6004, 4294901760
        %6006 = vmatpush1.msra.mxu0 %v6005
        %6007 = vmatprep.subr.mxu0 0.0
        %v6008 = vand.u32 %v514, 4294901760
        %v6009 = vsub.f32 %v514, %v6008
        %v6010 = vand.u32 %v6009, 4294901760
        %v6011 = vsub.f32 %v6009, %v6010
        %v6012 = vand.u32 %v6011, 4294901760
        %6013 = vmatpush1.msra.mxu0 %v6012
        %6014 = vmatprep.subr.mxu0 0.0
        %v6015 = vand.u32 %v515, 4294901760
        %v6016 = vsub.f32 %v515, %v6015
        %v6017 = vand.u32 %v6016, 4294901760
        %v6018 = vsub.f32 %v6016, %v6017
        %v6019 = vand.u32 %v6018, 4294901760
        %6020 = vmatpush1.msra.mxu0 %v6019
        %6021 = vmatprep.subr.mxu0 0.0
        %v6022 = vand.u32 %v516, 4294901760
        %v6023 = vsub.f32 %v516, %v6022
        %v6024 = vand.u32 %v6023, 4294901760
        %v6025 = vsub.f32 %v6023, %v6024
        %v6026 = vand.u32 %v6025, 4294901760
        %6027 = vmatpush1.msra.mxu0 %v6026
        %6028 = vmatprep.subr.mxu0 0.0
        %v6029 = vand.u32 %v517, 4294901760
        %v6030 = vsub.f32 %v517, %v6029
        %v6031 = vand.u32 %v6030, 4294901760
        %v6032 = vsub.f32 %v6030, %v6031
        %v6033 = vand.u32 %v6032, 4294901760
        %6034 = vmatpush1.msra.mxu0 %v6033
        %6035 = vmatprep.subr.mxu0 0.0
        %v6036 = vand.u32 %v518, 4294901760
        %v6037 = vsub.f32 %v518, %v6036
        %v6038 = vand.u32 %v6037, 4294901760
        %v6039 = vsub.f32 %v6037, %v6038
        %v6040 = vand.u32 %v6039, 4294901760
        %6041 = vmatpush1.msra.mxu0 %v6040
        %6042 = vmatprep.subr.mxu0 0.0
        %v6043 = vand.u32 %v519, 4294901760
        %v6044 = vsub.f32 %v519, %v6043
        %v6045 = vand.u32 %v6044, 4294901760
        %v6046 = vsub.f32 %v6044, %v6045
        %v6047 = vand.u32 %v6046, 4294901760
        %6048 = vmatpush1.msra.mxu0 %v6047
        %6049 = vmatprep.subr.mxu0 0.0
        %v6050 = vand.u32 %v520, 4294901760
        %v6051 = vsub.f32 %v520, %v6050
        %v6052 = vand.u32 %v6051, 4294901760
        %v6053 = vsub.f32 %v6051, %v6052
        %v6054 = vand.u32 %v6053, 4294901760
        %6055 = vmatpush1.msra.mxu0 %v6054
        %6056 = vmatprep.subr.mxu0 0.0
        %v6057 = vand.u32 %v521, 4294901760
        %v6058 = vsub.f32 %v521, %v6057
        %v6059 = vand.u32 %v6058, 4294901760
        %v6060 = vsub.f32 %v6058, %v6059
        %v6061 = vand.u32 %v6060, 4294901760
        %6062 = vmatpush1.msra.mxu0 %v6061
        %6063 = vmatprep.subr.mxu0 0.0
        %v6064 = vand.u32 %v522, 4294901760
        %v6065 = vsub.f32 %v522, %v6064
        %v6066 = vand.u32 %v6065, 4294901760
        %v6067 = vsub.f32 %v6065, %v6066
        %v6068 = vand.u32 %v6067, 4294901760
        %6069 = vmatpush1.msra.mxu0 %v6068
        %6070 = vmatprep.subr.mxu0 0.0
        %v6071 = vand.u32 %v523, 4294901760
        %v6072 = vsub.f32 %v523, %v6071
        %v6073 = vand.u32 %v6072, 4294901760
        %v6074 = vsub.f32 %v6072, %v6073
        %v6075 = vand.u32 %v6074, 4294901760
        %6076 = vmatpush1.msra.mxu0 %v6075
        %6077 = vmatprep.subr.mxu0 0.0
        %v6078 = vand.u32 %v524, 4294901760
        %v6079 = vsub.f32 %v524, %v6078
        %v6080 = vand.u32 %v6079, 4294901760
        %v6081 = vsub.f32 %v6079, %v6080
        %v6082 = vand.u32 %v6081, 4294901760
        %6083 = vmatpush1.msra.mxu0 %v6082
        %6084 = vmatprep.subr.mxu0 0.0
        %v6085 = vand.u32 %v525, 4294901760
        %v6086 = vsub.f32 %v525, %v6085
        %v6087 = vand.u32 %v6086, 4294901760
        %v6088 = vsub.f32 %v6086, %v6087
        %v6089 = vand.u32 %v6088, 4294901760
        %6090 = vmatpush1.msra.mxu0 %v6089
        %6091 = vmatprep.subr.mxu0 0.0
        %v6092 = vand.u32 %v526, 4294901760
        %v6093 = vsub.f32 %v526, %v6092
        %v6094 = vand.u32 %v6093, 4294901760
        %v6095 = vsub.f32 %v6093, %v6094
        %v6096 = vand.u32 %v6095, 4294901760
        %6097 = vmatpush1.msra.mxu0 %v6096
        %6098 = vmatprep.subr.mxu0 0.0
        %v6099 = vand.u32 %v527, 4294901760
        %v6100 = vsub.f32 %v527, %v6099
        %v6101 = vand.u32 %v6100, 4294901760
        %v6102 = vsub.f32 %v6100, %v6101
        %v6103 = vand.u32 %v6102, 4294901760
        %6104 = vmatpush1.msra.mxu0 %v6103
        %6105 = vmatprep.subr.mxu0 0.0
        %v6106 = vand.u32 %v528, 4294901760
        %v6107 = vsub.f32 %v528, %v6106
        %v6108 = vand.u32 %v6107, 4294901760
        %v6109 = vsub.f32 %v6107, %v6108
        %v6110 = vand.u32 %v6109, 4294901760
        %6111 = vmatpush1.msra.mxu0 %v6110
        %6112 = vmatprep.subr.mxu0 0.0
        %v6113 = vand.u32 %v529, 4294901760
        %v6114 = vsub.f32 %v529, %v6113
        %v6115 = vand.u32 %v6114, 4294901760
        %v6116 = vsub.f32 %v6114, %v6115
        %v6117 = vand.u32 %v6116, 4294901760
        %6118 = vmatpush1.msra.mxu0 %v6117
        %6119 = vmatprep.subr.mxu0 0.0
        %v6120 = vand.u32 %v530, 4294901760
        %v6121 = vsub.f32 %v530, %v6120
        %v6122 = vand.u32 %v6121, 4294901760
        %v6123 = vsub.f32 %v6121, %v6122
        %v6124 = vand.u32 %v6123, 4294901760
        %6125 = vmatpush1.msra.mxu0 %v6124
        %6126 = vmatprep.subr.mxu0 0.0
        %v6127 = vand.u32 %v531, 4294901760
        %v6128 = vsub.f32 %v531, %v6127
        %v6129 = vand.u32 %v6128, 4294901760
        %v6130 = vsub.f32 %v6128, %v6129
        %v6131 = vand.u32 %v6130, 4294901760
        %6132 = vmatpush1.msra.mxu0 %v6131
        %6133 = vmatprep.subr.mxu0 0.0
        %v6134 = vand.u32 %v532, 4294901760
        %v6135 = vsub.f32 %v532, %v6134
        %v6136 = vand.u32 %v6135, 4294901760
        %v6137 = vsub.f32 %v6135, %v6136
        %v6138 = vand.u32 %v6137, 4294901760
        %6139 = vmatpush1.msra.mxu0 %v6138
        %v6140 = vand.u32 %v220, 4294901760
        %6141 = vmatprep.mubr.f32.mxu0 %v6140
        %v6142 = vand.u32 %v219, 4294901760
        %6143 = vmatmul.mubr.f32.gmra.mrb[0].mxu0 %v6142
        %v6144 = vpop.f32.mrb[0].mxu0
        %v6145 = vadd.f32 %v4983, %v6144
        %v6146 = vpop.f32.mrb[0].mxu0
        %v6147 = vand.u32 %v224, 4294901760
        %6148 = vmatprep.mubr.f32.mxu0 %v6147
        %v6149 = vand.u32 %v223, 4294901760
        %6150 = vmatmul.mubr.f32.gmra.mrb[0].mxu0 %v6149
        %v6151 = vpop.f32.mrb[0].mxu0
        %v6152 = vadd.f32 %v4998, %v6151
        %v6153 = vpop.f32.mrb[0].mxu0
        %v6154 = vand.u32 %v228, 4294901760
        %6155 = vmatprep.mubr.f32.mxu0 %v6154
        %v6156 = vand.u32 %v227, 4294901760
        %6157 = vmatmul.mubr.f32.gmra.mrb[0].mxu0 %v6156
        %v6158 = vpop.f32.mrb[0].mxu0
        %v6159 = vadd.f32 %v5013, %v6158
        %v6160 = vpop.f32.mrb[0].mxu0
        %v6161 = vand.u32 %v232, 4294901760
        %6162 = vmatprep.mubr.f32.mxu0 %v6161
        %v6163 = vand.u32 %v231, 4294901760
        %6164 = vmatmul.mubr.f32.gmra.mrb[0].mxu0 %v6163
        %v6165 = vpop.f32.mrb[0].mxu0
        %v6166 = vadd.f32 %v5028, %v6165
        %v6167 = vpop.f32.mrb[0].mxu0
        %v6168 = vand.u32 %v236, 4294901760
        %6169 = vmatprep.mubr.f32.mxu0 %v6168
        %v6170 = vand.u32 %v235, 4294901760
        %6171 = vmatmul.mubr.f32.gmra.mrb[0].mxu0 %v6170
        %v6172 = vpop.f32.mrb[0].mxu0
        %v6173 = vadd.f32 %v5043, %v6172
        %v6174 = vpop.f32.mrb[0].mxu0
        %v6175 = vand.u32 %v240, 4294901760
        %6176 = vmatprep.mubr.f32.mxu0 %v6175
        %v6177 = vand.u32 %v239, 4294901760
        %6178 = vmatmul.mubr.f32.gmra.mrb[0].mxu0 %v6177
        %v6179 = vpop.f32.mrb[0].mxu0
        %v6180 = vadd.f32 %v5058, %v6179
        %v6181 = vpop.f32.mrb[0].mxu0
        %v6182 = vand.u32 %v244, 4294901760
        %6183 = vmatprep.mubr.f32.mxu0 %v6182
        %v6184 = vand.u32 %v243, 4294901760
        %6185 = vmatmul.mubr.f32.gmra.mrb[0].mxu0 %v6184
        %v6186 = vpop.f32.mrb[0].mxu0
        %v6187 = vadd.f32 %v5073, %v6186
        %v6188 = vpop.f32.mrb[0].mxu0
        %v6189 = vand.u32 %v248, 4294901760
        %6190 = vmatprep.mubr.f32.mxu0 %v6189
        %v6191 = vand.u32 %v247, 4294901760
        %6192 = vmatmul.mubr.f32.gmra.mrb[0].mxu0 %v6191
        %v6193 = vpop.f32.mrb[0].mxu0
        %v6194 = vadd.f32 %v5088, %v6193
        %v6195 = vpop.f32.mrb[0].mxu0
        %v6196 = vand.u32 %v252, 4294901760
        %6197 = vmatprep.mubr.f32.mxu0 %v6196
        %v6198 = vand.u32 %v251, 4294901760
        %6199 = vmatmul.mubr.f32.gmra.mrb[0].mxu0 %v6198
        %v6200 = vpop.f32.mrb[0].mxu0
        %v6201 = vadd.f32 %v5103, %v6200
        %v6202 = vpop.f32.mrb[0].mxu0
        %v6203 = vand.u32 %v256, 4294901760
        %6204 = vmatprep.mubr.f32.mxu0 %v6203
        %v6205 = vand.u32 %v255, 4294901760
        %6206 = vmatmul.mubr.f32.gmra.mrb[0].mxu0 %v6205
        %v6207 = vpop.f32.mrb[0].mxu0
        %v6208 = vadd.f32 %v5118, %v6207
        %v6209 = vpop.f32.mrb[0].mxu0
        %v6210 = vand.u32 %v260, 4294901760
        %6211 = vmatprep.mubr.f32.mxu0 %v6210
        %v6212 = vand.u32 %v259, 4294901760
        %6213 = vmatmul.mubr.f32.gmra.mrb[0].mxu0 %v6212
        %v6214 = vpop.f32.mrb[0].mxu0
        %v6215 = vadd.f32 %v5133, %v6214
        %v6216 = vpop.f32.mrb[0].mxu0
        %v6217 = vand.u32 %v264, 4294901760
        %6218 = vmatprep.mubr.f32.mxu0 %v6217
        %v6219 = vand.u32 %v263, 4294901760
        %6220 = vmatmul.mubr.f32.gmra.mrb[0].mxu0 %v6219
        %v6221 = vpop.f32.mrb[0].mxu0
        %v6222 = vadd.f32 %v5148, %v6221
        %v6223 = vpop.f32.mrb[0].mxu0
        %v6224 = vand.u32 %v268, 4294901760
        %6225 = vmatprep.mubr.f32.mxu0 %v6224
        %v6226 = vand.u32 %v267, 4294901760
        %6227 = vmatmul.mubr.f32.gmra.mrb[0].mxu0 %v6226
        %v6228 = vpop.f32.mrb[0].mxu0
        %v6229 = vadd.f32 %v5163, %v6228
        %v6230 = vpop.f32.mrb[0].mxu0
        %v6231 = vand.u32 %v272, 4294901760
        %6232 = vmatprep.mubr.f32.mxu0 %v6231
        %v6233 = vand.u32 %v271, 4294901760
        %6234 = vmatmul.mubr.f32.gmra.mrb[0].mxu0 %v6233
        %v6235 = vpop.f32.mrb[0].mxu0
        %v6236 = vadd.f32 %v5178, %v6235
        %v6237 = vpop.f32.mrb[0].mxu0
        %v6238 = vand.u32 %v276, 4294901760
        %6239 = vmatprep.mubr.f32.mxu0 %v6238
        %v6240 = vand.u32 %v275, 4294901760
        %6241 = vmatmul.mubr.f32.gmra.mrb[0].mxu0 %v6240
        %v6242 = vpop.f32.mrb[0].mxu0
        %v6243 = vadd.f32 %v5193, %v6242
        %v6244 = vpop.f32.mrb[0].mxu0
        %v6245 = vand.u32 %v280, 4294901760
        %6246 = vmatprep.mubr.f32.mxu0 %v6245
        %v6247 = vand.u32 %v279, 4294901760
        %6248 = vmatmul.mubr.f32.gmra.mrb[0].mxu0 %v6247
        %v6249 = vpop.f32.mrb[0].mxu0
        %v6250 = vadd.f32 %v5208, %v6249
        %v6251 = vpop.f32.mrb[0].mxu0
        %v6252 = vand.u32 %v284, 4294901760
        %6253 = vmatprep.mubr.f32.mxu0 %v6252
        %v6254 = vand.u32 %v283, 4294901760
        %6255 = vmatmul.mubr.f32.gmra.mrb[0].mxu0 %v6254
        %v6256 = vpop.f32.mrb[0].mxu0
        %v6257 = vadd.f32 %v5223, %v6256
        %v6258 = vpop.f32.mrb[0].mxu0
        %v6259 = vand.u32 %v288, 4294901760
        %6260 = vmatprep.mubr.f32.mxu0 %v6259
        %v6261 = vand.u32 %v287, 4294901760
        %6262 = vmatmul.mubr.f32.gmra.mrb[0].mxu0 %v6261
        %v6263 = vpop.f32.mrb[0].mxu0
        %v6264 = vadd.f32 %v5238, %v6263
        %v6265 = vpop.f32.mrb[0].mxu0
        %v6266 = vand.u32 %v292, 4294901760
        %6267 = vmatprep.mubr.f32.mxu0 %v6266
        %v6268 = vand.u32 %v291, 4294901760
        %6269 = vmatmul.mubr.f32.gmra.mrb[0].mxu0 %v6268
        %v6270 = vpop.f32.mrb[0].mxu0
        %v6271 = vadd.f32 %v5253, %v6270
        %v6272 = vpop.f32.mrb[0].mxu0
        %v6273 = vand.u32 %v296, 4294901760
        %6274 = vmatprep.mubr.f32.mxu0 %v6273
        %v6275 = vand.u32 %v295, 4294901760
        %6276 = vmatmul.mubr.f32.gmra.mrb[0].mxu0 %v6275
        %v6277 = vpop.f32.mrb[0].mxu0
        %v6278 = vadd.f32 %v5268, %v6277
        %v6279 = vpop.f32.mrb[0].mxu0
        %v6280 = vand.u32 %v300, 4294901760
        %6281 = vmatprep.mubr.f32.mxu0 %v6280
        %v6282 = vand.u32 %v299, 4294901760
        %6283 = vmatmul.mubr.f32.gmra.mrb[0].mxu0 %v6282
        %v6284 = vpop.f32.mrb[0].mxu0
        %v6285 = vadd.f32 %v5283, %v6284
        %v6286 = vpop.f32.mrb[0].mxu0
        %v6287 = vand.u32 %v304, 4294901760
        %6288 = vmatprep.mubr.f32.mxu0 %v6287
        %v6289 = vand.u32 %v303, 4294901760
        %6290 = vmatmul.mubr.f32.gmra.mrb[0].mxu0 %v6289
        %v6291 = vpop.f32.mrb[0].mxu0
        %v6292 = vadd.f32 %v5298, %v6291
        %v6293 = vpop.f32.mrb[0].mxu0
        %v6294 = vand.u32 %v308, 4294901760
        %6295 = vmatprep.mubr.f32.mxu0 %v6294
        %v6296 = vand.u32 %v307, 4294901760
        %6297 = vmatmul.mubr.f32.gmra.mrb[0].mxu0 %v6296
        %v6298 = vpop.f32.mrb[0].mxu0
        %v6299 = vadd.f32 %v5313, %v6298
        %v6300 = vpop.f32.mrb[0].mxu0
        %v6301 = vand.u32 %v312, 4294901760
        %6302 = vmatprep.mubr.f32.mxu0 %v6301
        %v6303 = vand.u32 %v311, 4294901760
        %6304 = vmatmul.mubr.f32.gmra.mrb[0].mxu0 %v6303
        %v6305 = vpop.f32.mrb[0].mxu0
        %v6306 = vadd.f32 %v5328, %v6305
        %v6307 = vpop.f32.mrb[0].mxu0
        %v6308 = vand.u32 %v316, 4294901760
        %6309 = vmatprep.mubr.f32.mxu0 %v6308
        %v6310 = vand.u32 %v315, 4294901760
        %6311 = vmatmul.mubr.f32.gmra.mrb[0].mxu0 %v6310
        %v6312 = vpop.f32.mrb[0].mxu0
        %v6313 = vadd.f32 %v5343, %v6312
        %v6314 = vpop.f32.mrb[0].mxu0
        %v6315 = vand.u32 %v320, 4294901760
        %6316 = vmatprep.mubr.f32.mxu0 %v6315
        %v6317 = vand.u32 %v319, 4294901760
        %6318 = vmatmul.mubr.f32.gmra.mrb[0].mxu0 %v6317
        %v6319 = vpop.f32.mrb[0].mxu0
        %v6320 = vadd.f32 %v5358, %v6319
        %v6321 = vpop.f32.mrb[0].mxu0
        %v6322 = vand.u32 %v324, 4294901760
        %6323 = vmatprep.mubr.f32.mxu0 %v6322
        %v6324 = vand.u32 %v323, 4294901760
        %6325 = vmatmul.mubr.f32.gmra.mrb[0].mxu0 %v6324
        %v6326 = vpop.f32.mrb[0].mxu0
        %v6327 = vadd.f32 %v5373, %v6326
        %v6328 = vpop.f32.mrb[0].mxu0
        %v6329 = vand.u32 %v328, 4294901760
        %6330 = vmatprep.mubr.f32.mxu0 %v6329
        %v6331 = vand.u32 %v327, 4294901760
        %6332 = vmatmul.mubr.f32.gmra.mrb[0].mxu0 %v6331
        %v6333 = vpop.f32.mrb[0].mxu0
        %v6334 = vadd.f32 %v5388, %v6333
        %v6335 = vpop.f32.mrb[0].mxu0
        %v6336 = vand.u32 %v332, 4294901760
        %6337 = vmatprep.mubr.f32.mxu0 %v6336
        %v6338 = vand.u32 %v331, 4294901760
        %6339 = vmatmul.mubr.f32.gmra.mrb[0].mxu0 %v6338
        %v6340 = vpop.f32.mrb[0].mxu0
        %v6341 = vadd.f32 %v5403, %v6340
        %v6342 = vpop.f32.mrb[0].mxu0
        %v6343 = vand.u32 %v336, 4294901760
        %6344 = vmatprep.mubr.f32.mxu0 %v6343
        %v6345 = vand.u32 %v335, 4294901760
        %6346 = vmatmul.mubr.f32.gmra.mrb[0].mxu0 %v6345
        %v6347 = vpop.f32.mrb[0].mxu0
        %v6348 = vadd.f32 %v5418, %v6347
        %v6349 = vpop.f32.mrb[0].mxu0
        %v6350 = vand.u32 %v340, 4294901760
        %6351 = vmatprep.mubr.f32.mxu0 %v6350
        %v6352 = vand.u32 %v339, 4294901760
        %6353 = vmatmul.mubr.f32.gmra.mrb[0].mxu0 %v6352
        %v6354 = vpop.f32.mrb[0].mxu0
        %v6355 = vadd.f32 %v5433, %v6354
        %v6356 = vpop.f32.mrb[0].mxu0
        %v6357 = vand.u32 %v344, 4294901760
        %6358 = vmatprep.mubr.f32.mxu0 %v6357
        %v6359 = vand.u32 %v343, 4294901760
        %6360 = vmatmul.mubr.f32.gmra.mrb[0].mxu0 %v6359
        %v6361 = vpop.f32.mrb[0].mxu0
        %v6362 = vadd.f32 %v5448, %v6361
        %v6363 = vpop.f32.mrb[0].mxu0
        %v6364 = vand.u32 %v348, 4294901760
        %6365 = vmatprep.mubr.f32.mxu0 %v6364
        %v6366 = vand.u32 %v347, 4294901760
        %6367 = vmatmul.mubr.f32.gmra.mrb[0].mxu0 %v6366
        %v6368 = vpop.f32.mrb[0].mxu0
        %v6369 = vadd.f32 %v5463, %v6368
        %v6370 = vpop.f32.mrb[0].mxu0
        %v6371 = vand.u32 %v352, 4294901760
        %6372 = vmatprep.mubr.f32.mxu0 %v6371
        %v6373 = vand.u32 %v351, 4294901760
        %6374 = vmatmul.mubr.f32.gmra.mrb[0].mxu0 %v6373
        %v6375 = vpop.f32.mrb[0].mxu0
        %v6376 = vadd.f32 %v5478, %v6375
        %v6377 = vpop.f32.mrb[0].mxu0
        %v6378 = vand.u32 %v356, 4294901760
        %6379 = vmatprep.mubr.f32.mxu0 %v6378
        %v6380 = vand.u32 %v355, 4294901760
        %6381 = vmatmul.mubr.f32.gmra.mrb[0].mxu0 %v6380
        %v6382 = vpop.f32.mrb[0].mxu0
        %v6383 = vadd.f32 %v5493, %v6382
        %v6384 = vpop.f32.mrb[0].mxu0
        %v6385 = vand.u32 %v360, 4294901760
        %6386 = vmatprep.mubr.f32.mxu0 %v6385
        %v6387 = vand.u32 %v359, 4294901760
        %6388 = vmatmul.mubr.f32.gmra.mrb[0].mxu0 %v6387
        %v6389 = vpop.f32.mrb[0].mxu0
        %v6390 = vadd.f32 %v5508, %v6389
        %v6391 = vpop.f32.mrb[0].mxu0
        %v6392 = vand.u32 %v364, 4294901760
        %6393 = vmatprep.mubr.f32.mxu0 %v6392
        %v6394 = vand.u32 %v363, 4294901760
        %6395 = vmatmul.mubr.f32.gmra.mrb[0].mxu0 %v6394
        %v6396 = vpop.f32.mrb[0].mxu0
        %v6397 = vadd.f32 %v5523, %v6396
        %v6398 = vpop.f32.mrb[0].mxu0
        %v6399 = vand.u32 %v368, 4294901760
        %6400 = vmatprep.mubr.f32.mxu0 %v6399
        %v6401 = vand.u32 %v367, 4294901760
        %6402 = vmatmul.mubr.f32.gmra.mrb[0].mxu0 %v6401
        %v6403 = vpop.f32.mrb[0].mxu0
        %v6404 = vadd.f32 %v5538, %v6403
        %v6405 = vpop.f32.mrb[0].mxu0
        %v6406 = vand.u32 %v372, 4294901760
        %6407 = vmatprep.mubr.f32.mxu0 %v6406
        %v6408 = vand.u32 %v371, 4294901760
        %6409 = vmatmul.mubr.f32.gmra.mrb[0].mxu0 %v6408
        %v6410 = vpop.f32.mrb[0].mxu0
        %v6411 = vadd.f32 %v5553, %v6410
        %v6412 = vpop.f32.mrb[0].mxu0
        %v6413 = vand.u32 %v376, 4294901760
        %6414 = vmatprep.mubr.f32.mxu0 %v6413
        %v6415 = vand.u32 %v375, 4294901760
        %6416 = vmatmul.mubr.f32.gmra.mrb[0].mxu0 %v6415
        %v6417 = vpop.f32.mrb[0].mxu0
        %v6418 = vadd.f32 %v5568, %v6417
        %v6419 = vpop.f32.mrb[0].mxu0
        %v6420 = vand.u32 %v380, 4294901760
        %6421 = vmatprep.mubr.f32.mxu0 %v6420
        %v6422 = vand.u32 %v379, 4294901760
        %6423 = vmatmul.mubr.f32.gmra.mrb[0].mxu0 %v6422
        %v6424 = vpop.f32.mrb[0].mxu0
        %v6425 = vadd.f32 %v5583, %v6424
        %v6426 = vpop.f32.mrb[0].mxu0
        %v6427 = vand.u32 %v384, 4294901760
        %6428 = vmatprep.mubr.f32.mxu0 %v6427
        %v6429 = vand.u32 %v383, 4294901760
        %6430 = vmatmul.mubr.f32.gmra.mrb[0].mxu0 %v6429
        %v6431 = vpop.f32.mrb[0].mxu0
        %v6432 = vadd.f32 %v5598, %v6431
        %v6433 = vpop.f32.mrb[0].mxu0
        %v6434 = vand.u32 %v388, 4294901760
        %6435 = vmatprep.mubr.f32.mxu0 %v6434
        %v6436 = vand.u32 %v387, 4294901760
        %6437 = vmatmul.mubr.f32.gmra.mrb[0].mxu0 %v6436
        %v6438 = vpop.f32.mrb[0].mxu0
        %v6439 = vadd.f32 %v5613, %v6438
        %v6440 = vpop.f32.mrb[0].mxu0
        %v6441 = vand.u32 %v392, 4294901760
        %6442 = vmatprep.mubr.f32.mxu0 %v6441
        %v6443 = vand.u32 %v391, 4294901760
        %6444 = vmatmul.mubr.f32.gmra.mrb[0].mxu0 %v6443
        %v6445 = vpop.f32.mrb[0].mxu0
        %v6446 = vadd.f32 %v5628, %v6445
        %v6447 = vpop.f32.mrb[0].mxu0
        %v6448 = vand.u32 %v396, 4294901760
        %6449 = vmatprep.mubr.f32.mxu0 %v6448
        %v6450 = vand.u32 %v395, 4294901760
        %6451 = vmatmul.mubr.f32.gmra.mrb[0].mxu0 %v6450
        %v6452 = vpop.f32.mrb[0].mxu0
        %v6453 = vadd.f32 %v5643, %v6452
        %v6454 = vpop.f32.mrb[0].mxu0
        %v6455 = vand.u32 %v400, 4294901760
        %6456 = vmatprep.mubr.f32.mxu0 %v6455
        %v6457 = vand.u32 %v399, 4294901760
        %6458 = vmatmul.mubr.f32.gmra.mrb[0].mxu0 %v6457
        %v6459 = vpop.f32.mrb[0].mxu0
        %v6460 = vadd.f32 %v5658, %v6459
        %v6461 = vpop.f32.mrb[0].mxu0
        %v6462 = vand.u32 %v404, 4294901760
        %6463 = vmatprep.mubr.f32.mxu0 %v6462
        %v6464 = vand.u32 %v403, 4294901760
        %6465 = vmatmul.mubr.f32.gmra.mrb[0].mxu0 %v6464
        %v6466 = vpop.f32.mrb[0].mxu0
        %v6467 = vadd.f32 %v5673, %v6466
        %v6468 = vpop.f32.mrb[0].mxu0
        %v6469 = vand.u32 %v408, 4294901760
        %6470 = vmatprep.mubr.f32.mxu0 %v6469
        %v6471 = vand.u32 %v407, 4294901760
        %6472 = vmatmul.mubr.f32.gmra.mrb[0].mxu0 %v6471
        %v6473 = vpop.f32.mrb[0].mxu0
        %v6474 = vadd.f32 %v5688, %v6473
        %v6475 = vpop.f32.mrb[0].mxu0
        %v6476 = vand.u32 %v412, 4294901760
        %6477 = vmatprep.mubr.f32.mxu0 %v6476
        %v6478 = vand.u32 %v411, 4294901760
        %6479 = vmatmul.mubr.f32.gmra.mrb[0].mxu0 %v6478
        %v6480 = vpop.f32.mrb[0].mxu0
        %v6481 = vadd.f32 %v5703, %v6480
        %v6482 = vpop.f32.mrb[0].mxu0
        %v6483 = vand.u32 %v416, 4294901760
        %6484 = vmatprep.mubr.f32.mxu0 %v6483
        %v6485 = vand.u32 %v415, 4294901760
        %6486 = vmatmul.mubr.f32.gmra.mrb[0].mxu0 %v6485
        %v6487 = vpop.f32.mrb[0].mxu0
        %v6488 = vadd.f32 %v5718, %v6487
        %v6489 = vpop.f32.mrb[0].mxu0
        %v6490 = vand.u32 %v420, 4294901760
        %6491 = vmatprep.mubr.f32.mxu0 %v6490
        %v6492 = vand.u32 %v419, 4294901760
        %6493 = vmatmul.mubr.f32.gmra.mrb[0].mxu0 %v6492
        %v6494 = vpop.f32.mrb[0].mxu0
        %v6495 = vadd.f32 %v5733, %v6494
        %v6496 = vpop.f32.mrb[0].mxu0
        %v6497 = vand.u32 %v424, 4294901760
        %6498 = vmatprep.mubr.f32.mxu0 %v6497
        %v6499 = vand.u32 %v423, 4294901760
        %6500 = vmatmul.mubr.f32.gmra.mrb[0].mxu0 %v6499
        %v6501 = vpop.f32.mrb[0].mxu0
        %v6502 = vadd.f32 %v5748, %v6501
        %v6503 = vpop.f32.mrb[0].mxu0
        %v6504 = vand.u32 %v428, 4294901760
        %6505 = vmatprep.mubr.f32.mxu0 %v6504
        %v6506 = vand.u32 %v427, 4294901760
        %6507 = vmatmul.mubr.f32.gmra.mrb[0].mxu0 %v6506
        %v6508 = vpop.f32.mrb[0].mxu0
        %v6509 = vadd.f32 %v5763, %v6508
        %v6510 = vpop.f32.mrb[0].mxu0
        %v6511 = vand.u32 %v432, 4294901760
        %6512 = vmatprep.mubr.f32.mxu0 %v6511
        %v6513 = vand.u32 %v431, 4294901760
        %6514 = vmatmul.mubr.f32.gmra.mrb[0].mxu0 %v6513
        %v6515 = vpop.f32.mrb[0].mxu0
        %v6516 = vadd.f32 %v5778, %v6515
        %v6517 = vpop.f32.mrb[0].mxu0
        %v6518 = vand.u32 %v436, 4294901760
        %6519 = vmatprep.mubr.f32.mxu0 %v6518
        %v6520 = vand.u32 %v435, 4294901760
        %6521 = vmatmul.mubr.f32.gmra.mrb[0].mxu0 %v6520
        %v6522 = vpop.f32.mrb[0].mxu0
        %v6523 = vadd.f32 %v5793, %v6522
        %v6524 = vpop.f32.mrb[0].mxu0
        %v6525 = vand.u32 %v440, 4294901760
        %6526 = vmatprep.mubr.f32.mxu0 %v6525
        %v6527 = vand.u32 %v439, 4294901760
        %6528 = vmatmul.mubr.f32.gmra.mrb[0].mxu0 %v6527
        %v6529 = vpop.f32.mrb[0].mxu0
        %v6530 = vadd.f32 %v5808, %v6529
        %v6531 = vpop.f32.mrb[0].mxu0
        %v6532 = vand.u32 %v444, 4294901760
        %6533 = vmatprep.mubr.f32.mxu0 %v6532
        %v6534 = vand.u32 %v443, 4294901760
        %6535 = vmatmul.mubr.f32.gmra.mrb[0].mxu0 %v6534
        %v6536 = vpop.f32.mrb[0].mxu0
        %v6537 = vadd.f32 %v5823, %v6536
        %v6538 = vpop.f32.mrb[0].mxu0
        %v6539 = vand.u32 %v448, 4294901760
        %6540 = vmatprep.mubr.f32.mxu0 %v6539
        %v6541 = vand.u32 %v447, 4294901760
        %6542 = vmatmul.mubr.f32.gmra.mrb[0].mxu0 %v6541
        %v6543 = vpop.f32.mrb[0].mxu0
        %v6544 = vadd.f32 %v5838, %v6543
        %v6545 = vpop.f32.mrb[0].mxu0
        %v6546 = vand.u32 %v452, 4294901760
        %6547 = vmatprep.mubr.f32.mxu0 %v6546
        %v6548 = vand.u32 %v451, 4294901760
        %6549 = vmatmul.mubr.f32.gmra.mrb[0].mxu0 %v6548
        %v6550 = vpop.f32.mrb[0].mxu0
        %v6551 = vadd.f32 %v5853, %v6550
        %v6552 = vpop.f32.mrb[0].mxu0
        %v6553 = vand.u32 %v456, 4294901760
        %6554 = vmatprep.mubr.f32.mxu0 %v6553
        %v6555 = vand.u32 %v455, 4294901760
        %6556 = vmatmul.mubr.f32.gmra.mrb[0].mxu0 %v6555
        %v6557 = vpop.f32.mrb[0].mxu0
        %v6558 = vadd.f32 %v5868, %v6557
        %v6559 = vpop.f32.mrb[0].mxu0
        %v6560 = vand.u32 %v460, 4294901760
        %6561 = vmatprep.mubr.f32.mxu0 %v6560
        %v6562 = vand.u32 %v459, 4294901760
        %6563 = vmatmul.mubr.f32.gmra.mrb[0].mxu0 %v6562
        %v6564 = vpop.f32.mrb[0].mxu0
        %v6565 = vadd.f32 %v5883, %v6564
        %v6566 = vpop.f32.mrb[0].mxu0
        %v6567 = vand.u32 %v464, 4294901760
        %6568 = vmatprep.mubr.f32.mxu0 %v6567
        %v6569 = vand.u32 %v463, 4294901760
        %6570 = vmatmul.mubr.f32.gmra.mrb[0].mxu0 %v6569
        %v6571 = vpop.f32.mrb[0].mxu0
        %v6572 = vadd.f32 %v5898, %v6571
        %v6573 = vpop.f32.mrb[0].mxu0
        %v6574 = vand.u32 %v468, 4294901760
        %6575 = vmatprep.mubr.f32.mxu0 %v6574
        %v6576 = vand.u32 %v467, 4294901760
        %6577 = vmatmul.mubr.f32.gmra.mrb[0].mxu0 %v6576
        %v6578 = vpop.f32.mrb[0].mxu0
        %v6579 = vadd.f32 %v5913, %v6578
        %v6580 = vpop.f32.mrb[0].mxu0
        %6581 = vdwg.mxu0
        %6582 = vmatprep.subr.mxu0 0.0
        %v6583 = vand.u32 %v501, 4294901760
        %v6584 = vsub.f32 %v501, %v6583
        %6585 = vmatpush1.msra.mxu0 %v6584
        %6586 = vmatprep.subr.mxu0 0.0
        %v6587 = vand.u32 %v502, 4294901760
        %v6588 = vsub.f32 %v502, %v6587
        %6589 = vmatpush1.msra.mxu0 %v6588
        %6590 = vmatprep.subr.mxu0 0.0
        %v6591 = vand.u32 %v503, 4294901760
        %v6592 = vsub.f32 %v503, %v6591
        %6593 = vmatpush1.msra.mxu0 %v6592
        %6594 = vmatprep.subr.mxu0 0.0
        %v6595 = vand.u32 %v504, 4294901760
        %v6596 = vsub.f32 %v504, %v6595
        %6597 = vmatpush1.msra.mxu0 %v6596
        %6598 = vmatprep.subr.mxu0 0.0
        %v6599 = vand.u32 %v505, 4294901760
        %v6600 = vsub.f32 %v505, %v6599
        %6601 = vmatpush1.msra.mxu0 %v6600
        %6602 = vmatprep.subr.mxu0 0.0
        %v6603 = vand.u32 %v506, 4294901760
        %v6604 = vsub.f32 %v506, %v6603
        %6605 = vmatpush1.msra.mxu0 %v6604
        %6606 = vmatprep.subr.mxu0 0.0
        %v6607 = vand.u32 %v507, 4294901760
        %v6608 = vsub.f32 %v507, %v6607
        %6609 = vmatpush1.msra.mxu0 %v6608
        %6610 = vmatprep.subr.mxu0 0.0
        %v6611 = vand.u32 %v508, 4294901760
        %v6612 = vsub.f32 %v508, %v6611
        %6613 = vmatpush1.msra.mxu0 %v6612
        %6614 = vmatprep.subr.mxu0 0.0
        %v6615 = vand.u32 %v509, 4294901760
        %v6616 = vsub.f32 %v509, %v6615
        %6617 = vmatpush1.msra.mxu0 %v6616
        %6618 = vmatprep.subr.mxu0 0.0
        %v6619 = vand.u32 %v510, 4294901760
        %v6620 = vsub.f32 %v510, %v6619
        %6621 = vmatpush1.msra.mxu0 %v6620
        %6622 = vmatprep.subr.mxu0 0.0
        %v6623 = vand.u32 %v511, 4294901760
        %v6624 = vsub.f32 %v511, %v6623
        %6625 = vmatpush1.msra.mxu0 %v6624
        %6626 = vmatprep.subr.mxu0 0.0
        %v6627 = vand.u32 %v512, 4294901760
        %v6628 = vsub.f32 %v512, %v6627
        %6629 = vmatpush1.msra.mxu0 %v6628
        %6630 = vmatprep.subr.mxu0 0.0
        %v6631 = vand.u32 %v513, 4294901760
        %v6632 = vsub.f32 %v513, %v6631
        %6633 = vmatpush1.msra.mxu0 %v6632
        %6634 = vmatprep.subr.mxu0 0.0
        %v6635 = vand.u32 %v514, 4294901760
        %v6636 = vsub.f32 %v514, %v6635
        %6637 = vmatpush1.msra.mxu0 %v6636
        %6638 = vmatprep.subr.mxu0 0.0
        %v6639 = vand.u32 %v515, 4294901760
        %v6640 = vsub.f32 %v515, %v6639
        %6641 = vmatpush1.msra.mxu0 %v6640
        %6642 = vmatprep.subr.mxu0 0.0
        %v6643 = vand.u32 %v516, 4294901760
        %v6644 = vsub.f32 %v516, %v6643
        %6645 = vmatpush1.msra.mxu0 %v6644
        %6646 = vmatprep.subr.mxu0 0.0
        %v6647 = vand.u32 %v517, 4294901760
        %v6648 = vsub.f32 %v517, %v6647
        %6649 = vmatpush1.msra.mxu0 %v6648
        %6650 = vmatprep.subr.mxu0 0.0
        %v6651 = vand.u32 %v518, 4294901760
        %v6652 = vsub.f32 %v518, %v6651
        %6653 = vmatpush1.msra.mxu0 %v6652
        %6654 = vmatprep.subr.mxu0 0.0
        %v6655 = vand.u32 %v519, 4294901760
        %v6656 = vsub.f32 %v519, %v6655
        %6657 = vmatpush1.msra.mxu0 %v6656
        %6658 = vmatprep.subr.mxu0 0.0
        %v6659 = vand.u32 %v520, 4294901760
        %v6660 = vsub.f32 %v520, %v6659
        %6661 = vmatpush1.msra.mxu0 %v6660
        %6662 = vmatprep.subr.mxu0 0.0
        %v6663 = vand.u32 %v521, 4294901760
        %v6664 = vsub.f32 %v521, %v6663
        %6665 = vmatpush1.msra.mxu0 %v6664
        %6666 = vmatprep.subr.mxu0 0.0
        %v6667 = vand.u32 %v522, 4294901760
        %v6668 = vsub.f32 %v522, %v6667
        %6669 = vmatpush1.msra.mxu0 %v6668
        %6670 = vmatprep.subr.mxu0 0.0
        %v6671 = vand.u32 %v523, 4294901760
        %v6672 = vsub.f32 %v523, %v6671
        %6673 = vmatpush1.msra.mxu0 %v6672
        %6674 = vmatprep.subr.mxu0 0.0
        %v6675 = vand.u32 %v524, 4294901760
        %v6676 = vsub.f32 %v524, %v6675
        %6677 = vmatpush1.msra.mxu0 %v6676
        %6678 = vmatprep.subr.mxu0 0.0
        %v6679 = vand.u32 %v525, 4294901760
        %v6680 = vsub.f32 %v525, %v6679
        %6681 = vmatpush1.msra.mxu0 %v6680
        %6682 = vmatprep.subr.mxu0 0.0
        %v6683 = vand.u32 %v526, 4294901760
        %v6684 = vsub.f32 %v526, %v6683
        %6685 = vmatpush1.msra.mxu0 %v6684
        %6686 = vmatprep.subr.mxu0 0.0
        %v6687 = vand.u32 %v527, 4294901760
        %v6688 = vsub.f32 %v527, %v6687
        %6689 = vmatpush1.msra.mxu0 %v6688
        %6690 = vmatprep.subr.mxu0 0.0
        %v6691 = vand.u32 %v528, 4294901760
        %v6692 = vsub.f32 %v528, %v6691
        %6693 = vmatpush1.msra.mxu0 %v6692
        %6694 = vmatprep.subr.mxu0 0.0
        %v6695 = vand.u32 %v529, 4294901760
        %v6696 = vsub.f32 %v529, %v6695
        %6697 = vmatpush1.msra.mxu0 %v6696
        %6698 = vmatprep.subr.mxu0 0.0
        %v6699 = vand.u32 %v530, 4294901760
        %v6700 = vsub.f32 %v530, %v6699
        %6701 = vmatpush1.msra.mxu0 %v6700
        %6702 = vmatprep.subr.mxu0 0.0
        %v6703 = vand.u32 %v531, 4294901760
        %v6704 = vsub.f32 %v531, %v6703
        %6705 = vmatpush1.msra.mxu0 %v6704
        %6706 = vmatprep.subr.mxu0 0.0
        %v6707 = vand.u32 %v532, 4294901760
        %v6708 = vsub.f32 %v532, %v6707
        %6709 = vmatpush1.msra.mxu0 %v6708
        %v6710 = vand.u32 %v220, 4294901760
        %v6711 = vsub.f32 %v220, %v6710
        %6712 = vmatprep.mubr.f32.mxu0 %v6711
        %v6713 = vand.u32 %v219, 4294901760
        %v6714 = vsub.f32 %v219, %v6713
        %6715 = vmatmul.mubr.f32.gmra.mrb[0].mxu0 %v6714
        %v6716 = vpop.f32.mrb[0].mxu0
        %v6717 = vadd.f32 %v6145, %v6716
        %v6718 = vpop.f32.mrb[0].mxu0
        %v6719 = vand.u32 %v224, 4294901760
        %v6720 = vsub.f32 %v224, %v6719
        %6721 = vmatprep.mubr.f32.mxu0 %v6720
        %v6722 = vand.u32 %v223, 4294901760
        %v6723 = vsub.f32 %v223, %v6722
        %6724 = vmatmul.mubr.f32.gmra.mrb[0].mxu0 %v6723
        %v6725 = vpop.f32.mrb[0].mxu0
        %v6726 = vadd.f32 %v6152, %v6725
        %v6727 = vpop.f32.mrb[0].mxu0
        %v6728 = vand.u32 %v228, 4294901760
        %v6729 = vsub.f32 %v228, %v6728
        %6730 = vmatprep.mubr.f32.mxu0 %v6729
        %v6731 = vand.u32 %v227, 4294901760
        %v6732 = vsub.f32 %v227, %v6731
        %6733 = vmatmul.mubr.f32.gmra.mrb[0].mxu0 %v6732
        %v6734 = vpop.f32.mrb[0].mxu0
        %v6735 = vadd.f32 %v6159, %v6734
        %v6736 = vpop.f32.mrb[0].mxu0
        %v6737 = vand.u32 %v232, 4294901760
        %v6738 = vsub.f32 %v232, %v6737
        %6739 = vmatprep.mubr.f32.mxu0 %v6738
        %v6740 = vand.u32 %v231, 4294901760
        %v6741 = vsub.f32 %v231, %v6740
        %6742 = vmatmul.mubr.f32.gmra.mrb[0].mxu0 %v6741
        %v6743 = vpop.f32.mrb[0].mxu0
        %v6744 = vadd.f32 %v6166, %v6743
        %v6745 = vpop.f32.mrb[0].mxu0
        %v6746 = vand.u32 %v236, 4294901760
        %v6747 = vsub.f32 %v236, %v6746
        %6748 = vmatprep.mubr.f32.mxu0 %v6747
        %v6749 = vand.u32 %v235, 4294901760
        %v6750 = vsub.f32 %v235, %v6749
        %6751 = vmatmul.mubr.f32.gmra.mrb[0].mxu0 %v6750
        %v6752 = vpop.f32.mrb[0].mxu0
        %v6753 = vadd.f32 %v6173, %v6752
        %v6754 = vpop.f32.mrb[0].mxu0
        %v6755 = vand.u32 %v240, 4294901760
        %v6756 = vsub.f32 %v240, %v6755
        %6757 = vmatprep.mubr.f32.mxu0 %v6756
        %v6758 = vand.u32 %v239, 4294901760
        %v6759 = vsub.f32 %v239, %v6758
        %6760 = vmatmul.mubr.f32.gmra.mrb[0].mxu0 %v6759
        %v6761 = vpop.f32.mrb[0].mxu0
        %v6762 = vadd.f32 %v6180, %v6761
        %v6763 = vpop.f32.mrb[0].mxu0
        %v6764 = vand.u32 %v244, 4294901760
        %v6765 = vsub.f32 %v244, %v6764
        %6766 = vmatprep.mubr.f32.mxu0 %v6765
        %v6767 = vand.u32 %v243, 4294901760
        %v6768 = vsub.f32 %v243, %v6767
        %6769 = vmatmul.mubr.f32.gmra.mrb[0].mxu0 %v6768
        %v6770 = vpop.f32.mrb[0].mxu0
        %v6771 = vadd.f32 %v6187, %v6770
        %v6772 = vpop.f32.mrb[0].mxu0
        %v6773 = vand.u32 %v248, 4294901760
        %v6774 = vsub.f32 %v248, %v6773
        %6775 = vmatprep.mubr.f32.mxu0 %v6774
        %v6776 = vand.u32 %v247, 4294901760
        %v6777 = vsub.f32 %v247, %v6776
        %6778 = vmatmul.mubr.f32.gmra.mrb[0].mxu0 %v6777
        %v6779 = vpop.f32.mrb[0].mxu0
        %v6780 = vadd.f32 %v6194, %v6779
        %v6781 = vpop.f32.mrb[0].mxu0
        %v6782 = vand.u32 %v252, 4294901760
        %v6783 = vsub.f32 %v252, %v6782
        %6784 = vmatprep.mubr.f32.mxu0 %v6783
        %v6785 = vand.u32 %v251, 4294901760
        %v6786 = vsub.f32 %v251, %v6785
        %6787 = vmatmul.mubr.f32.gmra.mrb[0].mxu0 %v6786
        %v6788 = vpop.f32.mrb[0].mxu0
        %v6789 = vadd.f32 %v6201, %v6788
        %v6790 = vpop.f32.mrb[0].mxu0
        %v6791 = vand.u32 %v256, 4294901760
        %v6792 = vsub.f32 %v256, %v6791
        %6793 = vmatprep.mubr.f32.mxu0 %v6792
        %v6794 = vand.u32 %v255, 4294901760
        %v6795 = vsub.f32 %v255, %v6794
        %6796 = vmatmul.mubr.f32.gmra.mrb[0].mxu0 %v6795
        %v6797 = vpop.f32.mrb[0].mxu0
        %v6798 = vadd.f32 %v6208, %v6797
        %v6799 = vpop.f32.mrb[0].mxu0
        %v6800 = vand.u32 %v260, 4294901760
        %v6801 = vsub.f32 %v260, %v6800
        %6802 = vmatprep.mubr.f32.mxu0 %v6801
        %v6803 = vand.u32 %v259, 4294901760
        %v6804 = vsub.f32 %v259, %v6803
        %6805 = vmatmul.mubr.f32.gmra.mrb[0].mxu0 %v6804
        %v6806 = vpop.f32.mrb[0].mxu0
        %v6807 = vadd.f32 %v6215, %v6806
        %v6808 = vpop.f32.mrb[0].mxu0
        %v6809 = vand.u32 %v264, 4294901760
        %v6810 = vsub.f32 %v264, %v6809
        %6811 = vmatprep.mubr.f32.mxu0 %v6810
        %v6812 = vand.u32 %v263, 4294901760
        %v6813 = vsub.f32 %v263, %v6812
        %6814 = vmatmul.mubr.f32.gmra.mrb[0].mxu0 %v6813
        %v6815 = vpop.f32.mrb[0].mxu0
        %v6816 = vadd.f32 %v6222, %v6815
        %v6817 = vpop.f32.mrb[0].mxu0
        %v6818 = vand.u32 %v268, 4294901760
        %v6819 = vsub.f32 %v268, %v6818
        %6820 = vmatprep.mubr.f32.mxu0 %v6819
        %v6821 = vand.u32 %v267, 4294901760
        %v6822 = vsub.f32 %v267, %v6821
        %6823 = vmatmul.mubr.f32.gmra.mrb[0].mxu0 %v6822
        %v6824 = vpop.f32.mrb[0].mxu0
        %v6825 = vadd.f32 %v6229, %v6824
        %v6826 = vpop.f32.mrb[0].mxu0
        %v6827 = vand.u32 %v272, 4294901760
        %v6828 = vsub.f32 %v272, %v6827
        %6829 = vmatprep.mubr.f32.mxu0 %v6828
        %v6830 = vand.u32 %v271, 4294901760
        %v6831 = vsub.f32 %v271, %v6830
        %6832 = vmatmul.mubr.f32.gmra.mrb[0].mxu0 %v6831
        %v6833 = vpop.f32.mrb[0].mxu0
        %v6834 = vadd.f32 %v6236, %v6833
        %v6835 = vpop.f32.mrb[0].mxu0
        %v6836 = vand.u32 %v276, 4294901760
        %v6837 = vsub.f32 %v276, %v6836
        %6838 = vmatprep.mubr.f32.mxu0 %v6837
        %v6839 = vand.u32 %v275, 4294901760
        %v6840 = vsub.f32 %v275, %v6839
        %6841 = vmatmul.mubr.f32.gmra.mrb[0].mxu0 %v6840
        %v6842 = vpop.f32.mrb[0].mxu0
        %v6843 = vadd.f32 %v6243, %v6842
        %v6844 = vpop.f32.mrb[0].mxu0
        %v6845 = vand.u32 %v280, 4294901760
        %v6846 = vsub.f32 %v280, %v6845
        %6847 = vmatprep.mubr.f32.mxu0 %v6846
        %v6848 = vand.u32 %v279, 4294901760
        %v6849 = vsub.f32 %v279, %v6848
        %6850 = vmatmul.mubr.f32.gmra.mrb[0].mxu0 %v6849
        %v6851 = vpop.f32.mrb[0].mxu0
        %v6852 = vadd.f32 %v6250, %v6851
        %v6853 = vpop.f32.mrb[0].mxu0
        %v6854 = vand.u32 %v284, 4294901760
        %v6855 = vsub.f32 %v284, %v6854
        %6856 = vmatprep.mubr.f32.mxu0 %v6855
        %v6857 = vand.u32 %v283, 4294901760
        %v6858 = vsub.f32 %v283, %v6857
        %6859 = vmatmul.mubr.f32.gmra.mrb[0].mxu0 %v6858
        %v6860 = vpop.f32.mrb[0].mxu0
        %v6861 = vadd.f32 %v6257, %v6860
        %v6862 = vpop.f32.mrb[0].mxu0
        %v6863 = vand.u32 %v288, 4294901760
        %v6864 = vsub.f32 %v288, %v6863
        %6865 = vmatprep.mubr.f32.mxu0 %v6864
        %v6866 = vand.u32 %v287, 4294901760
        %v6867 = vsub.f32 %v287, %v6866
        %6868 = vmatmul.mubr.f32.gmra.mrb[0].mxu0 %v6867
        %v6869 = vpop.f32.mrb[0].mxu0
        %v6870 = vadd.f32 %v6264, %v6869
        %v6871 = vpop.f32.mrb[0].mxu0
        %v6872 = vand.u32 %v292, 4294901760
        %v6873 = vsub.f32 %v292, %v6872
        %6874 = vmatprep.mubr.f32.mxu0 %v6873
        %v6875 = vand.u32 %v291, 4294901760
        %v6876 = vsub.f32 %v291, %v6875
        %6877 = vmatmul.mubr.f32.gmra.mrb[0].mxu0 %v6876
        %v6878 = vpop.f32.mrb[0].mxu0
        %v6879 = vadd.f32 %v6271, %v6878
        %v6880 = vpop.f32.mrb[0].mxu0
        %v6881 = vand.u32 %v296, 4294901760
        %v6882 = vsub.f32 %v296, %v6881
        %6883 = vmatprep.mubr.f32.mxu0 %v6882
        %v6884 = vand.u32 %v295, 4294901760
        %v6885 = vsub.f32 %v295, %v6884
        %6886 = vmatmul.mubr.f32.gmra.mrb[0].mxu0 %v6885
        %v6887 = vpop.f32.mrb[0].mxu0
        %v6888 = vadd.f32 %v6278, %v6887
        %v6889 = vpop.f32.mrb[0].mxu0
        %v6890 = vand.u32 %v300, 4294901760
        %v6891 = vsub.f32 %v300, %v6890
        %6892 = vmatprep.mubr.f32.mxu0 %v6891
        %v6893 = vand.u32 %v299, 4294901760
        %v6894 = vsub.f32 %v299, %v6893
        %6895 = vmatmul.mubr.f32.gmra.mrb[0].mxu0 %v6894
        %v6896 = vpop.f32.mrb[0].mxu0
        %v6897 = vadd.f32 %v6285, %v6896
        %v6898 = vpop.f32.mrb[0].mxu0
        %v6899 = vand.u32 %v304, 4294901760
        %v6900 = vsub.f32 %v304, %v6899
        %6901 = vmatprep.mubr.f32.mxu0 %v6900
        %v6902 = vand.u32 %v303, 4294901760
        %v6903 = vsub.f32 %v303, %v6902
        %6904 = vmatmul.mubr.f32.gmra.mrb[0].mxu0 %v6903
        %v6905 = vpop.f32.mrb[0].mxu0
        %v6906 = vadd.f32 %v6292, %v6905
        %v6907 = vpop.f32.mrb[0].mxu0
        %v6908 = vand.u32 %v308, 4294901760
        %v6909 = vsub.f32 %v308, %v6908
        %6910 = vmatprep.mubr.f32.mxu0 %v6909
        %v6911 = vand.u32 %v307, 4294901760
        %v6912 = vsub.f32 %v307, %v6911
        %6913 = vmatmul.mubr.f32.gmra.mrb[0].mxu0 %v6912
        %v6914 = vpop.f32.mrb[0].mxu0
        %v6915 = vadd.f32 %v6299, %v6914
        %v6916 = vpop.f32.mrb[0].mxu0
        %v6917 = vand.u32 %v312, 4294901760
        %v6918 = vsub.f32 %v312, %v6917
        %6919 = vmatprep.mubr.f32.mxu0 %v6918
        %v6920 = vand.u32 %v311, 4294901760
        %v6921 = vsub.f32 %v311, %v6920
        %6922 = vmatmul.mubr.f32.gmra.mrb[0].mxu0 %v6921
        %v6923 = vpop.f32.mrb[0].mxu0
        %v6924 = vadd.f32 %v6306, %v6923
        %v6925 = vpop.f32.mrb[0].mxu0
        %v6926 = vand.u32 %v316, 4294901760
        %v6927 = vsub.f32 %v316, %v6926
        %6928 = vmatprep.mubr.f32.mxu0 %v6927
        %v6929 = vand.u32 %v315, 4294901760
        %v6930 = vsub.f32 %v315, %v6929
        %6931 = vmatmul.mubr.f32.gmra.mrb[0].mxu0 %v6930
        %v6932 = vpop.f32.mrb[0].mxu0
        %v6933 = vadd.f32 %v6313, %v6932
        %v6934 = vpop.f32.mrb[0].mxu0
        %v6935 = vand.u32 %v320, 4294901760
        %v6936 = vsub.f32 %v320, %v6935
        %6937 = vmatprep.mubr.f32.mxu0 %v6936
        %v6938 = vand.u32 %v319, 4294901760
        %v6939 = vsub.f32 %v319, %v6938
        %6940 = vmatmul.mubr.f32.gmra.mrb[0].mxu0 %v6939
        %v6941 = vpop.f32.mrb[0].mxu0
        %v6942 = vadd.f32 %v6320, %v6941
        %v6943 = vpop.f32.mrb[0].mxu0
        %v6944 = vand.u32 %v324, 4294901760
        %v6945 = vsub.f32 %v324, %v6944
        %6946 = vmatprep.mubr.f32.mxu0 %v6945
        %v6947 = vand.u32 %v323, 4294901760
        %v6948 = vsub.f32 %v323, %v6947
        %6949 = vmatmul.mubr.f32.gmra.mrb[0].mxu0 %v6948
        %v6950 = vpop.f32.mrb[0].mxu0
        %v6951 = vadd.f32 %v6327, %v6950
        %v6952 = vpop.f32.mrb[0].mxu0
        %v6953 = vand.u32 %v328, 4294901760
        %v6954 = vsub.f32 %v328, %v6953
        %6955 = vmatprep.mubr.f32.mxu0 %v6954
        %v6956 = vand.u32 %v327, 4294901760
        %v6957 = vsub.f32 %v327, %v6956
        %6958 = vmatmul.mubr.f32.gmra.mrb[0].mxu0 %v6957
        %v6959 = vpop.f32.mrb[0].mxu0
        %v6960 = vadd.f32 %v6334, %v6959
        %v6961 = vpop.f32.mrb[0].mxu0
        %v6962 = vand.u32 %v332, 4294901760
        %v6963 = vsub.f32 %v332, %v6962
        %6964 = vmatprep.mubr.f32.mxu0 %v6963
        %v6965 = vand.u32 %v331, 4294901760
        %v6966 = vsub.f32 %v331, %v6965
        %6967 = vmatmul.mubr.f32.gmra.mrb[0].mxu0 %v6966
        %v6968 = vpop.f32.mrb[0].mxu0
        %v6969 = vadd.f32 %v6341, %v6968
        %v6970 = vpop.f32.mrb[0].mxu0
        %v6971 = vand.u32 %v336, 4294901760
        %v6972 = vsub.f32 %v336, %v6971
        %6973 = vmatprep.mubr.f32.mxu0 %v6972
        %v6974 = vand.u32 %v335, 4294901760
        %v6975 = vsub.f32 %v335, %v6974
        %6976 = vmatmul.mubr.f32.gmra.mrb[0].mxu0 %v6975
        %v6977 = vpop.f32.mrb[0].mxu0
        %v6978 = vadd.f32 %v6348, %v6977
        %v6979 = vpop.f32.mrb[0].mxu0
        %v6980 = vand.u32 %v340, 4294901760
        %v6981 = vsub.f32 %v340, %v6980
        %6982 = vmatprep.mubr.f32.mxu0 %v6981
        %v6983 = vand.u32 %v339, 4294901760
        %v6984 = vsub.f32 %v339, %v6983
        %6985 = vmatmul.mubr.f32.gmra.mrb[0].mxu0 %v6984
        %v6986 = vpop.f32.mrb[0].mxu0
        %v6987 = vadd.f32 %v6355, %v6986
        %v6988 = vpop.f32.mrb[0].mxu0
        %v6989 = vand.u32 %v344, 4294901760
        %v6990 = vsub.f32 %v344, %v6989
        %6991 = vmatprep.mubr.f32.mxu0 %v6990
        %v6992 = vand.u32 %v343, 4294901760
        %v6993 = vsub.f32 %v343, %v6992
        %6994 = vmatmul.mubr.f32.gmra.mrb[0].mxu0 %v6993
        %v6995 = vpop.f32.mrb[0].mxu0
        %v6996 = vadd.f32 %v6362, %v6995
        %v6997 = vpop.f32.mrb[0].mxu0
        %v6998 = vand.u32 %v348, 4294901760
        %v6999 = vsub.f32 %v348, %v6998
        %7000 = vmatprep.mubr.f32.mxu0 %v6999
        %v7001 = vand.u32 %v347, 4294901760
        %v7002 = vsub.f32 %v347, %v7001
        %7003 = vmatmul.mubr.f32.gmra.mrb[0].mxu0 %v7002
        %v7004 = vpop.f32.mrb[0].mxu0
        %v7005 = vadd.f32 %v6369, %v7004
        %v7006 = vpop.f32.mrb[0].mxu0
        %v7007 = vand.u32 %v352, 4294901760
        %v7008 = vsub.f32 %v352, %v7007
        %7009 = vmatprep.mubr.f32.mxu0 %v7008
        %v7010 = vand.u32 %v351, 4294901760
        %v7011 = vsub.f32 %v351, %v7010
        %7012 = vmatmul.mubr.f32.gmra.mrb[0].mxu0 %v7011
        %v7013 = vpop.f32.mrb[0].mxu0
        %v7014 = vadd.f32 %v6376, %v7013
        %v7015 = vpop.f32.mrb[0].mxu0
        %v7016 = vand.u32 %v356, 4294901760
        %v7017 = vsub.f32 %v356, %v7016
        %7018 = vmatprep.mubr.f32.mxu0 %v7017
        %v7019 = vand.u32 %v355, 4294901760
        %v7020 = vsub.f32 %v355, %v7019
        %7021 = vmatmul.mubr.f32.gmra.mrb[0].mxu0 %v7020
        %v7022 = vpop.f32.mrb[0].mxu0
        %v7023 = vadd.f32 %v6383, %v7022
        %v7024 = vpop.f32.mrb[0].mxu0
        %v7025 = vand.u32 %v360, 4294901760
        %v7026 = vsub.f32 %v360, %v7025
        %7027 = vmatprep.mubr.f32.mxu0 %v7026
        %v7028 = vand.u32 %v359, 4294901760
        %v7029 = vsub.f32 %v359, %v7028
        %7030 = vmatmul.mubr.f32.gmra.mrb[0].mxu0 %v7029
        %v7031 = vpop.f32.mrb[0].mxu0
        %v7032 = vadd.f32 %v6390, %v7031
        %v7033 = vpop.f32.mrb[0].mxu0
        %v7034 = vand.u32 %v364, 4294901760
        %v7035 = vsub.f32 %v364, %v7034
        %7036 = vmatprep.mubr.f32.mxu0 %v7035
        %v7037 = vand.u32 %v363, 4294901760
        %v7038 = vsub.f32 %v363, %v7037
        %7039 = vmatmul.mubr.f32.gmra.mrb[0].mxu0 %v7038
        %v7040 = vpop.f32.mrb[0].mxu0
        %v7041 = vadd.f32 %v6397, %v7040
        %v7042 = vpop.f32.mrb[0].mxu0
        %v7043 = vand.u32 %v368, 4294901760
        %v7044 = vsub.f32 %v368, %v7043
        %7045 = vmatprep.mubr.f32.mxu0 %v7044
        %v7046 = vand.u32 %v367, 4294901760
        %v7047 = vsub.f32 %v367, %v7046
        %7048 = vmatmul.mubr.f32.gmra.mrb[0].mxu0 %v7047
        %v7049 = vpop.f32.mrb[0].mxu0
        %v7050 = vadd.f32 %v6404, %v7049
        %v7051 = vpop.f32.mrb[0].mxu0
        %v7052 = vand.u32 %v372, 4294901760
        %v7053 = vsub.f32 %v372, %v7052
        %7054 = vmatprep.mubr.f32.mxu0 %v7053
        %v7055 = vand.u32 %v371, 4294901760
        %v7056 = vsub.f32 %v371, %v7055
        %7057 = vmatmul.mubr.f32.gmra.mrb[0].mxu0 %v7056
        %v7058 = vpop.f32.mrb[0].mxu0
        %v7059 = vadd.f32 %v6411, %v7058
        %v7060 = vpop.f32.mrb[0].mxu0
        %v7061 = vand.u32 %v376, 4294901760
        %v7062 = vsub.f32 %v376, %v7061
        %7063 = vmatprep.mubr.f32.mxu0 %v7062
        %v7064 = vand.u32 %v375, 4294901760
        %v7065 = vsub.f32 %v375, %v7064
        %7066 = vmatmul.mubr.f32.gmra.mrb[0].mxu0 %v7065
        %v7067 = vpop.f32.mrb[0].mxu0
        %v7068 = vadd.f32 %v6418, %v7067
        %v7069 = vpop.f32.mrb[0].mxu0
        %v7070 = vand.u32 %v380, 4294901760
        %v7071 = vsub.f32 %v380, %v7070
        %7072 = vmatprep.mubr.f32.mxu0 %v7071
        %v7073 = vand.u32 %v379, 4294901760
        %v7074 = vsub.f32 %v379, %v7073
        %7075 = vmatmul.mubr.f32.gmra.mrb[0].mxu0 %v7074
        %v7076 = vpop.f32.mrb[0].mxu0
        %v7077 = vadd.f32 %v6425, %v7076
        %v7078 = vpop.f32.mrb[0].mxu0
        %v7079 = vand.u32 %v384, 4294901760
        %v7080 = vsub.f32 %v384, %v7079
        %7081 = vmatprep.mubr.f32.mxu0 %v7080
        %v7082 = vand.u32 %v383, 4294901760
        %v7083 = vsub.f32 %v383, %v7082
        %7084 = vmatmul.mubr.f32.gmra.mrb[0].mxu0 %v7083
        %v7085 = vpop.f32.mrb[0].mxu0
        %v7086 = vadd.f32 %v6432, %v7085
        %v7087 = vpop.f32.mrb[0].mxu0
        %v7088 = vand.u32 %v388, 4294901760
        %v7089 = vsub.f32 %v388, %v7088
        %7090 = vmatprep.mubr.f32.mxu0 %v7089
        %v7091 = vand.u32 %v387, 4294901760
        %v7092 = vsub.f32 %v387, %v7091
        %7093 = vmatmul.mubr.f32.gmra.mrb[0].mxu0 %v7092
        %v7094 = vpop.f32.mrb[0].mxu0
        %v7095 = vadd.f32 %v6439, %v7094
        %v7096 = vpop.f32.mrb[0].mxu0
        %v7097 = vand.u32 %v392, 4294901760
        %v7098 = vsub.f32 %v392, %v7097
        %7099 = vmatprep.mubr.f32.mxu0 %v7098
        %v7100 = vand.u32 %v391, 4294901760
        %v7101 = vsub.f32 %v391, %v7100
        %7102 = vmatmul.mubr.f32.gmra.mrb[0].mxu0 %v7101
        %v7103 = vpop.f32.mrb[0].mxu0
        %v7104 = vadd.f32 %v6446, %v7103
        %v7105 = vpop.f32.mrb[0].mxu0
        %v7106 = vand.u32 %v396, 4294901760
        %v7107 = vsub.f32 %v396, %v7106
        %7108 = vmatprep.mubr.f32.mxu0 %v7107
        %v7109 = vand.u32 %v395, 4294901760
        %v7110 = vsub.f32 %v395, %v7109
        %7111 = vmatmul.mubr.f32.gmra.mrb[0].mxu0 %v7110
        %v7112 = vpop.f32.mrb[0].mxu0
        %v7113 = vadd.f32 %v6453, %v7112
        %v7114 = vpop.f32.mrb[0].mxu0
        %v7115 = vand.u32 %v400, 4294901760
        %v7116 = vsub.f32 %v400, %v7115
        %7117 = vmatprep.mubr.f32.mxu0 %v7116
        %v7118 = vand.u32 %v399, 4294901760
        %v7119 = vsub.f32 %v399, %v7118
        %7120 = vmatmul.mubr.f32.gmra.mrb[0].mxu0 %v7119
        %v7121 = vpop.f32.mrb[0].mxu0
        %v7122 = vadd.f32 %v6460, %v7121
        %v7123 = vpop.f32.mrb[0].mxu0
        %v7124 = vand.u32 %v404, 4294901760
        %v7125 = vsub.f32 %v404, %v7124
        %7126 = vmatprep.mubr.f32.mxu0 %v7125
        %v7127 = vand.u32 %v403, 4294901760
        %v7128 = vsub.f32 %v403, %v7127
        %7129 = vmatmul.mubr.f32.gmra.mrb[0].mxu0 %v7128
        %v7130 = vpop.f32.mrb[0].mxu0
        %v7131 = vadd.f32 %v6467, %v7130
        %v7132 = vpop.f32.mrb[0].mxu0
        %v7133 = vand.u32 %v408, 4294901760
        %v7134 = vsub.f32 %v408, %v7133
        %7135 = vmatprep.mubr.f32.mxu0 %v7134
        %v7136 = vand.u32 %v407, 4294901760
        %v7137 = vsub.f32 %v407, %v7136
        %7138 = vmatmul.mubr.f32.gmra.mrb[0].mxu0 %v7137
        %v7139 = vpop.f32.mrb[0].mxu0
        %v7140 = vadd.f32 %v6474, %v7139
        %v7141 = vpop.f32.mrb[0].mxu0
        %v7142 = vand.u32 %v412, 4294901760
        %v7143 = vsub.f32 %v412, %v7142
        %7144 = vmatprep.mubr.f32.mxu0 %v7143
        %v7145 = vand.u32 %v411, 4294901760
        %v7146 = vsub.f32 %v411, %v7145
        %7147 = vmatmul.mubr.f32.gmra.mrb[0].mxu0 %v7146
        %v7148 = vpop.f32.mrb[0].mxu0
        %v7149 = vadd.f32 %v6481, %v7148
        %v7150 = vpop.f32.mrb[0].mxu0
        %v7151 = vand.u32 %v416, 4294901760
        %v7152 = vsub.f32 %v416, %v7151
        %7153 = vmatprep.mubr.f32.mxu0 %v7152
        %v7154 = vand.u32 %v415, 4294901760
        %v7155 = vsub.f32 %v415, %v7154
        %7156 = vmatmul.mubr.f32.gmra.mrb[0].mxu0 %v7155
        %v7157 = vpop.f32.mrb[0].mxu0
        %v7158 = vadd.f32 %v6488, %v7157
        %v7159 = vpop.f32.mrb[0].mxu0
        %v7160 = vand.u32 %v420, 4294901760
        %v7161 = vsub.f32 %v420, %v7160
        %7162 = vmatprep.mubr.f32.mxu0 %v7161
        %v7163 = vand.u32 %v419, 4294901760
        %v7164 = vsub.f32 %v419, %v7163
        %7165 = vmatmul.mubr.f32.gmra.mrb[0].mxu0 %v7164
        %v7166 = vpop.f32.mrb[0].mxu0
        %v7167 = vadd.f32 %v6495, %v7166
        %v7168 = vpop.f32.mrb[0].mxu0
        %v7169 = vand.u32 %v424, 4294901760
        %v7170 = vsub.f32 %v424, %v7169
        %7171 = vmatprep.mubr.f32.mxu0 %v7170
        %v7172 = vand.u32 %v423, 4294901760
        %v7173 = vsub.f32 %v423, %v7172
        %7174 = vmatmul.mubr.f32.gmra.mrb[0].mxu0 %v7173
        %v7175 = vpop.f32.mrb[0].mxu0
        %v7176 = vadd.f32 %v6502, %v7175
        %v7177 = vpop.f32.mrb[0].mxu0
        %v7178 = vand.u32 %v428, 4294901760
        %v7179 = vsub.f32 %v428, %v7178
        %7180 = vmatprep.mubr.f32.mxu0 %v7179
        %v7181 = vand.u32 %v427, 4294901760
        %v7182 = vsub.f32 %v427, %v7181
        %7183 = vmatmul.mubr.f32.gmra.mrb[0].mxu0 %v7182
        %v7184 = vpop.f32.mrb[0].mxu0
        %v7185 = vadd.f32 %v6509, %v7184
        %v7186 = vpop.f32.mrb[0].mxu0
        %v7187 = vand.u32 %v432, 4294901760
        %v7188 = vsub.f32 %v432, %v7187
        %7189 = vmatprep.mubr.f32.mxu0 %v7188
        %v7190 = vand.u32 %v431, 4294901760
        %v7191 = vsub.f32 %v431, %v7190
        %7192 = vmatmul.mubr.f32.gmra.mrb[0].mxu0 %v7191
        %v7193 = vpop.f32.mrb[0].mxu0
        %v7194 = vadd.f32 %v6516, %v7193
        %v7195 = vpop.f32.mrb[0].mxu0
        %v7196 = vand.u32 %v436, 4294901760
        %v7197 = vsub.f32 %v436, %v7196
        %7198 = vmatprep.mubr.f32.mxu0 %v7197
        %v7199 = vand.u32 %v435, 4294901760
        %v7200 = vsub.f32 %v435, %v7199
        %7201 = vmatmul.mubr.f32.gmra.mrb[0].mxu0 %v7200
        %v7202 = vpop.f32.mrb[0].mxu0
        %v7203 = vadd.f32 %v6523, %v7202
        %v7204 = vpop.f32.mrb[0].mxu0
        %v7205 = vand.u32 %v440, 4294901760
        %v7206 = vsub.f32 %v440, %v7205
        %7207 = vmatprep.mubr.f32.mxu0 %v7206
        %v7208 = vand.u32 %v439, 4294901760
        %v7209 = vsub.f32 %v439, %v7208
        %7210 = vmatmul.mubr.f32.gmra.mrb[0].mxu0 %v7209
        %v7211 = vpop.f32.mrb[0].mxu0
        %v7212 = vadd.f32 %v6530, %v7211
        %v7213 = vpop.f32.mrb[0].mxu0
        %v7214 = vand.u32 %v444, 4294901760
        %v7215 = vsub.f32 %v444, %v7214
        %7216 = vmatprep.mubr.f32.mxu0 %v7215
        %v7217 = vand.u32 %v443, 4294901760
        %v7218 = vsub.f32 %v443, %v7217
        %7219 = vmatmul.mubr.f32.gmra.mrb[0].mxu0 %v7218
        %v7220 = vpop.f32.mrb[0].mxu0
        %v7221 = vadd.f32 %v6537, %v7220
        %v7222 = vpop.f32.mrb[0].mxu0
        %v7223 = vand.u32 %v448, 4294901760
        %v7224 = vsub.f32 %v448, %v7223
        %7225 = vmatprep.mubr.f32.mxu0 %v7224
        %v7226 = vand.u32 %v447, 4294901760
        %v7227 = vsub.f32 %v447, %v7226
        %7228 = vmatmul.mubr.f32.gmra.mrb[0].mxu0 %v7227
        %v7229 = vpop.f32.mrb[0].mxu0
        %v7230 = vadd.f32 %v6544, %v7229
        %v7231 = vpop.f32.mrb[0].mxu0
        %v7232 = vand.u32 %v452, 4294901760
        %v7233 = vsub.f32 %v452, %v7232
        %7234 = vmatprep.mubr.f32.mxu0 %v7233
        %v7235 = vand.u32 %v451, 4294901760
        %v7236 = vsub.f32 %v451, %v7235
        %7237 = vmatmul.mubr.f32.gmra.mrb[0].mxu0 %v7236
        %v7238 = vpop.f32.mrb[0].mxu0
        %v7239 = vadd.f32 %v6551, %v7238
        %v7240 = vpop.f32.mrb[0].mxu0
        %v7241 = vand.u32 %v456, 4294901760
        %v7242 = vsub.f32 %v456, %v7241
        %7243 = vmatprep.mubr.f32.mxu0 %v7242
        %v7244 = vand.u32 %v455, 4294901760
        %v7245 = vsub.f32 %v455, %v7244
        %7246 = vmatmul.mubr.f32.gmra.mrb[0].mxu0 %v7245
        %v7247 = vpop.f32.mrb[0].mxu0
        %v7248 = vadd.f32 %v6558, %v7247
        %v7249 = vpop.f32.mrb[0].mxu0
        %v7250 = vand.u32 %v460, 4294901760
        %v7251 = vsub.f32 %v460, %v7250
        %7252 = vmatprep.mubr.f32.mxu0 %v7251
        %v7253 = vand.u32 %v459, 4294901760
        %v7254 = vsub.f32 %v459, %v7253
        %7255 = vmatmul.mubr.f32.gmra.mrb[0].mxu0 %v7254
        %v7256 = vpop.f32.mrb[0].mxu0
        %v7257 = vadd.f32 %v6565, %v7256
        %v7258 = vpop.f32.mrb[0].mxu0
        %v7259 = vand.u32 %v464, 4294901760
        %v7260 = vsub.f32 %v464, %v7259
        %7261 = vmatprep.mubr.f32.mxu0 %v7260
        %v7262 = vand.u32 %v463, 4294901760
        %v7263 = vsub.f32 %v463, %v7262
        %7264 = vmatmul.mubr.f32.gmra.mrb[0].mxu0 %v7263
        %v7265 = vpop.f32.mrb[0].mxu0
        %v7266 = vadd.f32 %v6572, %v7265
        %v7267 = vpop.f32.mrb[0].mxu0
        %v7268 = vand.u32 %v468, 4294901760
        %v7269 = vsub.f32 %v468, %v7268
        %7270 = vmatprep.mubr.f32.mxu0 %v7269
        %v7271 = vand.u32 %v467, 4294901760
        %v7272 = vsub.f32 %v467, %v7271
        %7273 = vmatmul.mubr.f32.gmra.mrb[0].mxu0 %v7272
        %v7274 = vpop.f32.mrb[0].mxu0
        %v7275 = vadd.f32 %v6579, %v7274
        %v7276 = vpop.f32.mrb[0].mxu0
        %7277 = vdwg.mxu0
        %7278 = vmatprep.subr.mxu0 0.0
        %v7279 = vand.u32 %v501, 4294901760
        %7280 = vmatpush1.msra.mxu0 %v7279
        %7281 = vmatprep.subr.mxu0 0.0
        %v7282 = vand.u32 %v502, 4294901760
        %7283 = vmatpush1.msra.mxu0 %v7282
        %7284 = vmatprep.subr.mxu0 0.0
        %v7285 = vand.u32 %v503, 4294901760
        %7286 = vmatpush1.msra.mxu0 %v7285
        %7287 = vmatprep.subr.mxu0 0.0
        %v7288 = vand.u32 %v504, 4294901760
        %7289 = vmatpush1.msra.mxu0 %v7288
        %7290 = vmatprep.subr.mxu0 0.0
        %v7291 = vand.u32 %v505, 4294901760
        %7292 = vmatpush1.msra.mxu0 %v7291
        %7293 = vmatprep.subr.mxu0 0.0
        %v7294 = vand.u32 %v506, 4294901760
        %7295 = vmatpush1.msra.mxu0 %v7294
        %7296 = vmatprep.subr.mxu0 0.0
        %v7297 = vand.u32 %v507, 4294901760
        %7298 = vmatpush1.msra.mxu0 %v7297
        %7299 = vmatprep.subr.mxu0 0.0
        %v7300 = vand.u32 %v508, 4294901760
        %7301 = vmatpush1.msra.mxu0 %v7300
        %7302 = vmatprep.subr.mxu0 0.0
        %v7303 = vand.u32 %v509, 4294901760
        %7304 = vmatpush1.msra.mxu0 %v7303
        %7305 = vmatprep.subr.mxu0 0.0
        %v7306 = vand.u32 %v510, 4294901760
        %7307 = vmatpush1.msra.mxu0 %v7306
        %7308 = vmatprep.subr.mxu0 0.0
        %v7309 = vand.u32 %v511, 4294901760
        %7310 = vmatpush1.msra.mxu0 %v7309
        %7311 = vmatprep.subr.mxu0 0.0
        %v7312 = vand.u32 %v512, 4294901760
        %7313 = vmatpush1.msra.mxu0 %v7312
        %7314 = vmatprep.subr.mxu0 0.0
        %v7315 = vand.u32 %v513, 4294901760
        %7316 = vmatpush1.msra.mxu0 %v7315
        %7317 = vmatprep.subr.mxu0 0.0
        %v7318 = vand.u32 %v514, 4294901760
        %7319 = vmatpush1.msra.mxu0 %v7318
        %7320 = vmatprep.subr.mxu0 0.0
        %v7321 = vand.u32 %v515, 4294901760
        %7322 = vmatpush1.msra.mxu0 %v7321
        %7323 = vmatprep.subr.mxu0 0.0
        %v7324 = vand.u32 %v516, 4294901760
        %7325 = vmatpush1.msra.mxu0 %v7324
        %7326 = vmatprep.subr.mxu0 0.0
        %v7327 = vand.u32 %v517, 4294901760
        %7328 = vmatpush1.msra.mxu0 %v7327
        %7329 = vmatprep.subr.mxu0 0.0
        %v7330 = vand.u32 %v518, 4294901760
        %7331 = vmatpush1.msra.mxu0 %v7330
        %7332 = vmatprep.subr.mxu0 0.0
        %v7333 = vand.u32 %v519, 4294901760
        %7334 = vmatpush1.msra.mxu0 %v7333
        %7335 = vmatprep.subr.mxu0 0.0
        %v7336 = vand.u32 %v520, 4294901760
        %7337 = vmatpush1.msra.mxu0 %v7336
        %7338 = vmatprep.subr.mxu0 0.0
        %v7339 = vand.u32 %v521, 4294901760
        %7340 = vmatpush1.msra.mxu0 %v7339
        %7341 = vmatprep.subr.mxu0 0.0
        %v7342 = vand.u32 %v522, 4294901760
        %7343 = vmatpush1.msra.mxu0 %v7342
        %7344 = vmatprep.subr.mxu0 0.0
        %v7345 = vand.u32 %v523, 4294901760
        %7346 = vmatpush1.msra.mxu0 %v7345
        %7347 = vmatprep.subr.mxu0 0.0
        %v7348 = vand.u32 %v524, 4294901760
        %7349 = vmatpush1.msra.mxu0 %v7348
        %7350 = vmatprep.subr.mxu0 0.0
        %v7351 = vand.u32 %v525, 4294901760
        %7352 = vmatpush1.msra.mxu0 %v7351
        %7353 = vmatprep.subr.mxu0 0.0
        %v7354 = vand.u32 %v526, 4294901760
        %7355 = vmatpush1.msra.mxu0 %v7354
        %7356 = vmatprep.subr.mxu0 0.0
        %v7357 = vand.u32 %v527, 4294901760
        %7358 = vmatpush1.msra.mxu0 %v7357
        %7359 = vmatprep.subr.mxu0 0.0
        %v7360 = vand.u32 %v528, 4294901760
        %7361 = vmatpush1.msra.mxu0 %v7360
        %7362 = vmatprep.subr.mxu0 0.0
        %v7363 = vand.u32 %v529, 4294901760
        %7364 = vmatpush1.msra.mxu0 %v7363
        %7365 = vmatprep.subr.mxu0 0.0
        %v7366 = vand.u32 %v530, 4294901760
        %7367 = vmatpush1.msra.mxu0 %v7366
        %7368 = vmatprep.subr.mxu0 0.0
        %v7369 = vand.u32 %v531, 4294901760
        %7370 = vmatpush1.msra.mxu0 %v7369
        %7371 = vmatprep.subr.mxu0 0.0
        %v7372 = vand.u32 %v532, 4294901760
        %7373 = vmatpush1.msra.mxu0 %v7372
        %v7374 = vand.u32 %v220, 4294901760
        %v7375 = vsub.f32 %v220, %v7374
        %v7376 = vand.u32 %v7375, 4294901760
        %7377 = vmatprep.mubr.f32.mxu0 %v7376
        %v7378 = vand.u32 %v219, 4294901760
        %v7379 = vsub.f32 %v219, %v7378
        %v7380 = vand.u32 %v7379, 4294901760
        %7381 = vmatmul.mubr.f32.gmra.mrb[0].mxu0 %v7380
        %v7382 = vpop.f32.mrb[0].mxu0
        %v7383 = vadd.f32 %v6717, %v7382
        %v7384 = vpop.f32.mrb[0].mxu0
        %v7385 = vand.u32 %v224, 4294901760
        %v7386 = vsub.f32 %v224, %v7385
        %v7387 = vand.u32 %v7386, 4294901760
        %7388 = vmatprep.mubr.f32.mxu0 %v7387
        %v7389 = vand.u32 %v223, 4294901760
        %v7390 = vsub.f32 %v223, %v7389
        %v7391 = vand.u32 %v7390, 4294901760
        %7392 = vmatmul.mubr.f32.gmra.mrb[0].mxu0 %v7391
        %v7393 = vpop.f32.mrb[0].mxu0
        %v7394 = vadd.f32 %v6726, %v7393
        %v7395 = vpop.f32.mrb[0].mxu0
        %v7396 = vand.u32 %v228, 4294901760
        %v7397 = vsub.f32 %v228, %v7396
        %v7398 = vand.u32 %v7397, 4294901760
        %7399 = vmatprep.mubr.f32.mxu0 %v7398
        %v7400 = vand.u32 %v227, 4294901760
        %v7401 = vsub.f32 %v227, %v7400
        %v7402 = vand.u32 %v7401, 4294901760
        %7403 = vmatmul.mubr.f32.gmra.mrb[0].mxu0 %v7402
        %v7404 = vpop.f32.mrb[0].mxu0
        %v7405 = vadd.f32 %v6735, %v7404
        %v7406 = vpop.f32.mrb[0].mxu0
        %v7407 = vand.u32 %v232, 4294901760
        %v7408 = vsub.f32 %v232, %v7407
        %v7409 = vand.u32 %v7408, 4294901760
        %7410 = vmatprep.mubr.f32.mxu0 %v7409
        %v7411 = vand.u32 %v231, 4294901760
        %v7412 = vsub.f32 %v231, %v7411
        %v7413 = vand.u32 %v7412, 4294901760
        %7414 = vmatmul.mubr.f32.gmra.mrb[0].mxu0 %v7413
        %v7415 = vpop.f32.mrb[0].mxu0
        %v7416 = vadd.f32 %v6744, %v7415
        %v7417 = vpop.f32.mrb[0].mxu0
        %v7418 = vand.u32 %v236, 4294901760
        %v7419 = vsub.f32 %v236, %v7418
        %v7420 = vand.u32 %v7419, 4294901760
        %7421 = vmatprep.mubr.f32.mxu0 %v7420
        %v7422 = vand.u32 %v235, 4294901760
        %v7423 = vsub.f32 %v235, %v7422
        %v7424 = vand.u32 %v7423, 4294901760
        %7425 = vmatmul.mubr.f32.gmra.mrb[0].mxu0 %v7424
        %v7426 = vpop.f32.mrb[0].mxu0
        %v7427 = vadd.f32 %v6753, %v7426
        %v7428 = vpop.f32.mrb[0].mxu0
        %v7429 = vand.u32 %v240, 4294901760
        %v7430 = vsub.f32 %v240, %v7429
        %v7431 = vand.u32 %v7430, 4294901760
        %7432 = vmatprep.mubr.f32.mxu0 %v7431
        %v7433 = vand.u32 %v239, 4294901760
        %v7434 = vsub.f32 %v239, %v7433
        %v7435 = vand.u32 %v7434, 4294901760
        %7436 = vmatmul.mubr.f32.gmra.mrb[0].mxu0 %v7435
        %v7437 = vpop.f32.mrb[0].mxu0
        %v7438 = vadd.f32 %v6762, %v7437
        %v7439 = vpop.f32.mrb[0].mxu0
        %v7440 = vand.u32 %v244, 4294901760
        %v7441 = vsub.f32 %v244, %v7440
        %v7442 = vand.u32 %v7441, 4294901760
        %7443 = vmatprep.mubr.f32.mxu0 %v7442
        %v7444 = vand.u32 %v243, 4294901760
        %v7445 = vsub.f32 %v243, %v7444
        %v7446 = vand.u32 %v7445, 4294901760
        %7447 = vmatmul.mubr.f32.gmra.mrb[0].mxu0 %v7446
        %v7448 = vpop.f32.mrb[0].mxu0
        %v7449 = vadd.f32 %v6771, %v7448
        %v7450 = vpop.f32.mrb[0].mxu0
        %v7451 = vand.u32 %v248, 4294901760
        %v7452 = vsub.f32 %v248, %v7451
        %v7453 = vand.u32 %v7452, 4294901760
        %7454 = vmatprep.mubr.f32.mxu0 %v7453
        %v7455 = vand.u32 %v247, 4294901760
        %v7456 = vsub.f32 %v247, %v7455
        %v7457 = vand.u32 %v7456, 4294901760
        %7458 = vmatmul.mubr.f32.gmra.mrb[0].mxu0 %v7457
        %v7459 = vpop.f32.mrb[0].mxu0
        %v7460 = vadd.f32 %v6780, %v7459
        %v7461 = vpop.f32.mrb[0].mxu0
        %v7462 = vand.u32 %v252, 4294901760
        %v7463 = vsub.f32 %v252, %v7462
        %v7464 = vand.u32 %v7463, 4294901760
        %7465 = vmatprep.mubr.f32.mxu0 %v7464
        %v7466 = vand.u32 %v251, 4294901760
        %v7467 = vsub.f32 %v251, %v7466
        %v7468 = vand.u32 %v7467, 4294901760
        %7469 = vmatmul.mubr.f32.gmra.mrb[0].mxu0 %v7468
        %v7470 = vpop.f32.mrb[0].mxu0
        %v7471 = vadd.f32 %v6789, %v7470
        %v7472 = vpop.f32.mrb[0].mxu0
        %v7473 = vand.u32 %v256, 4294901760
        %v7474 = vsub.f32 %v256, %v7473
        %v7475 = vand.u32 %v7474, 4294901760
        %7476 = vmatprep.mubr.f32.mxu0 %v7475
        %v7477 = vand.u32 %v255, 4294901760
        %v7478 = vsub.f32 %v255, %v7477
        %v7479 = vand.u32 %v7478, 4294901760
        %7480 = vmatmul.mubr.f32.gmra.mrb[0].mxu0 %v7479
        %v7481 = vpop.f32.mrb[0].mxu0
        %v7482 = vadd.f32 %v6798, %v7481
        %v7483 = vpop.f32.mrb[0].mxu0
        %v7484 = vand.u32 %v260, 4294901760
        %v7485 = vsub.f32 %v260, %v7484
        %v7486 = vand.u32 %v7485, 4294901760
        %7487 = vmatprep.mubr.f32.mxu0 %v7486
        %v7488 = vand.u32 %v259, 4294901760
        %v7489 = vsub.f32 %v259, %v7488
        %v7490 = vand.u32 %v7489, 4294901760
        %7491 = vmatmul.mubr.f32.gmra.mrb[0].mxu0 %v7490
        %v7492 = vpop.f32.mrb[0].mxu0
        %v7493 = vadd.f32 %v6807, %v7492
        %v7494 = vpop.f32.mrb[0].mxu0
        %v7495 = vand.u32 %v264, 4294901760
        %v7496 = vsub.f32 %v264, %v7495
        %v7497 = vand.u32 %v7496, 4294901760
        %7498 = vmatprep.mubr.f32.mxu0 %v7497
        %v7499 = vand.u32 %v263, 4294901760
        %v7500 = vsub.f32 %v263, %v7499
        %v7501 = vand.u32 %v7500, 4294901760
        %7502 = vmatmul.mubr.f32.gmra.mrb[0].mxu0 %v7501
        %v7503 = vpop.f32.mrb[0].mxu0
        %v7504 = vadd.f32 %v6816, %v7503
        %v7505 = vpop.f32.mrb[0].mxu0
        %v7506 = vand.u32 %v268, 4294901760
        %v7507 = vsub.f32 %v268, %v7506
        %v7508 = vand.u32 %v7507, 4294901760
        %7509 = vmatprep.mubr.f32.mxu0 %v7508
        %v7510 = vand.u32 %v267, 4294901760
        %v7511 = vsub.f32 %v267, %v7510
        %v7512 = vand.u32 %v7511, 4294901760
        %7513 = vmatmul.mubr.f32.gmra.mrb[0].mxu0 %v7512
        %v7514 = vpop.f32.mrb[0].mxu0
        %v7515 = vadd.f32 %v6825, %v7514
        %v7516 = vpop.f32.mrb[0].mxu0
        %v7517 = vand.u32 %v272, 4294901760
        %v7518 = vsub.f32 %v272, %v7517
        %v7519 = vand.u32 %v7518, 4294901760
        %7520 = vmatprep.mubr.f32.mxu0 %v7519
        %v7521 = vand.u32 %v271, 4294901760
        %v7522 = vsub.f32 %v271, %v7521
        %v7523 = vand.u32 %v7522, 4294901760
        %7524 = vmatmul.mubr.f32.gmra.mrb[0].mxu0 %v7523
        %v7525 = vpop.f32.mrb[0].mxu0
        %v7526 = vadd.f32 %v6834, %v7525
        %v7527 = vpop.f32.mrb[0].mxu0
        %v7528 = vand.u32 %v276, 4294901760
        %v7529 = vsub.f32 %v276, %v7528
        %v7530 = vand.u32 %v7529, 4294901760
        %7531 = vmatprep.mubr.f32.mxu0 %v7530
        %v7532 = vand.u32 %v275, 4294901760
        %v7533 = vsub.f32 %v275, %v7532
        %v7534 = vand.u32 %v7533, 4294901760
        %7535 = vmatmul.mubr.f32.gmra.mrb[0].mxu0 %v7534
        %v7536 = vpop.f32.mrb[0].mxu0
        %v7537 = vadd.f32 %v6843, %v7536
        %v7538 = vpop.f32.mrb[0].mxu0
        %v7539 = vand.u32 %v280, 4294901760
        %v7540 = vsub.f32 %v280, %v7539
        %v7541 = vand.u32 %v7540, 4294901760
        %7542 = vmatprep.mubr.f32.mxu0 %v7541
        %v7543 = vand.u32 %v279, 4294901760
        %v7544 = vsub.f32 %v279, %v7543
        %v7545 = vand.u32 %v7544, 4294901760
        %7546 = vmatmul.mubr.f32.gmra.mrb[0].mxu0 %v7545
        %v7547 = vpop.f32.mrb[0].mxu0
        %v7548 = vadd.f32 %v6852, %v7547
        %v7549 = vpop.f32.mrb[0].mxu0
        %v7550 = vand.u32 %v284, 4294901760
        %v7551 = vsub.f32 %v284, %v7550
        %v7552 = vand.u32 %v7551, 4294901760
        %7553 = vmatprep.mubr.f32.mxu0 %v7552
        %v7554 = vand.u32 %v283, 4294901760
        %v7555 = vsub.f32 %v283, %v7554
        %v7556 = vand.u32 %v7555, 4294901760
        %7557 = vmatmul.mubr.f32.gmra.mrb[0].mxu0 %v7556
        %v7558 = vpop.f32.mrb[0].mxu0
        %v7559 = vadd.f32 %v6861, %v7558
        %v7560 = vpop.f32.mrb[0].mxu0
        %v7561 = vand.u32 %v288, 4294901760
        %v7562 = vsub.f32 %v288, %v7561
        %v7563 = vand.u32 %v7562, 4294901760
        %7564 = vmatprep.mubr.f32.mxu0 %v7563
        %v7565 = vand.u32 %v287, 4294901760
        %v7566 = vsub.f32 %v287, %v7565
        %v7567 = vand.u32 %v7566, 4294901760
        %7568 = vmatmul.mubr.f32.gmra.mrb[0].mxu0 %v7567
        %v7569 = vpop.f32.mrb[0].mxu0
        %v7570 = vadd.f32 %v6870, %v7569
        %v7571 = vpop.f32.mrb[0].mxu0
        %v7572 = vand.u32 %v292, 4294901760
        %v7573 = vsub.f32 %v292, %v7572
        %v7574 = vand.u32 %v7573, 4294901760
        %7575 = vmatprep.mubr.f32.mxu0 %v7574
        %v7576 = vand.u32 %v291, 4294901760
        %v7577 = vsub.f32 %v291, %v7576
        %v7578 = vand.u32 %v7577, 4294901760
        %7579 = vmatmul.mubr.f32.gmra.mrb[0].mxu0 %v7578
        %v7580 = vpop.f32.mrb[0].mxu0
        %v7581 = vadd.f32 %v6879, %v7580
        %v7582 = vpop.f32.mrb[0].mxu0
        %v7583 = vand.u32 %v296, 4294901760
        %v7584 = vsub.f32 %v296, %v7583
        %v7585 = vand.u32 %v7584, 4294901760
        %7586 = vmatprep.mubr.f32.mxu0 %v7585
        %v7587 = vand.u32 %v295, 4294901760
        %v7588 = vsub.f32 %v295, %v7587
        %v7589 = vand.u32 %v7588, 4294901760
        %7590 = vmatmul.mubr.f32.gmra.mrb[0].mxu0 %v7589
        %v7591 = vpop.f32.mrb[0].mxu0
        %v7592 = vadd.f32 %v6888, %v7591
        %v7593 = vpop.f32.mrb[0].mxu0
        %v7594 = vand.u32 %v300, 4294901760
        %v7595 = vsub.f32 %v300, %v7594
        %v7596 = vand.u32 %v7595, 4294901760
        %7597 = vmatprep.mubr.f32.mxu0 %v7596
        %v7598 = vand.u32 %v299, 4294901760
        %v7599 = vsub.f32 %v299, %v7598
        %v7600 = vand.u32 %v7599, 4294901760
        %7601 = vmatmul.mubr.f32.gmra.mrb[0].mxu0 %v7600
        %v7602 = vpop.f32.mrb[0].mxu0
        %v7603 = vadd.f32 %v6897, %v7602
        %v7604 = vpop.f32.mrb[0].mxu0
        %v7605 = vand.u32 %v304, 4294901760
        %v7606 = vsub.f32 %v304, %v7605
        %v7607 = vand.u32 %v7606, 4294901760
        %7608 = vmatprep.mubr.f32.mxu0 %v7607
        %v7609 = vand.u32 %v303, 4294901760
        %v7610 = vsub.f32 %v303, %v7609
        %v7611 = vand.u32 %v7610, 4294901760
        %7612 = vmatmul.mubr.f32.gmra.mrb[0].mxu0 %v7611
        %v7613 = vpop.f32.mrb[0].mxu0
        %v7614 = vadd.f32 %v6906, %v7613
        %v7615 = vpop.f32.mrb[0].mxu0
        %v7616 = vand.u32 %v308, 4294901760
        %v7617 = vsub.f32 %v308, %v7616
        %v7618 = vand.u32 %v7617, 4294901760
        %7619 = vmatprep.mubr.f32.mxu0 %v7618
        %v7620 = vand.u32 %v307, 4294901760
        %v7621 = vsub.f32 %v307, %v7620
        %v7622 = vand.u32 %v7621, 4294901760
        %7623 = vmatmul.mubr.f32.gmra.mrb[0].mxu0 %v7622
        %v7624 = vpop.f32.mrb[0].mxu0
        %v7625 = vadd.f32 %v6915, %v7624
        %v7626 = vpop.f32.mrb[0].mxu0
        %v7627 = vand.u32 %v312, 4294901760
        %v7628 = vsub.f32 %v312, %v7627
        %v7629 = vand.u32 %v7628, 4294901760
        %7630 = vmatprep.mubr.f32.mxu0 %v7629
        %v7631 = vand.u32 %v311, 4294901760
        %v7632 = vsub.f32 %v311, %v7631
        %v7633 = vand.u32 %v7632, 4294901760
        %7634 = vmatmul.mubr.f32.gmra.mrb[0].mxu0 %v7633
        %v7635 = vpop.f32.mrb[0].mxu0
        %v7636 = vadd.f32 %v6924, %v7635
        %v7637 = vpop.f32.mrb[0].mxu0
        %v7638 = vand.u32 %v316, 4294901760
        %v7639 = vsub.f32 %v316, %v7638
        %v7640 = vand.u32 %v7639, 4294901760
        %7641 = vmatprep.mubr.f32.mxu0 %v7640
        %v7642 = vand.u32 %v315, 4294901760
        %v7643 = vsub.f32 %v315, %v7642
        %v7644 = vand.u32 %v7643, 4294901760
        %7645 = vmatmul.mubr.f32.gmra.mrb[0].mxu0 %v7644
        %v7646 = vpop.f32.mrb[0].mxu0
        %v7647 = vadd.f32 %v6933, %v7646
        %v7648 = vpop.f32.mrb[0].mxu0
        %v7649 = vand.u32 %v320, 4294901760
        %v7650 = vsub.f32 %v320, %v7649
        %v7651 = vand.u32 %v7650, 4294901760
        %7652 = vmatprep.mubr.f32.mxu0 %v7651
        %v7653 = vand.u32 %v319, 4294901760
        %v7654 = vsub.f32 %v319, %v7653
        %v7655 = vand.u32 %v7654, 4294901760
        %7656 = vmatmul.mubr.f32.gmra.mrb[0].mxu0 %v7655
        %v7657 = vpop.f32.mrb[0].mxu0
        %v7658 = vadd.f32 %v6942, %v7657
        %v7659 = vpop.f32.mrb[0].mxu0
        %v7660 = vand.u32 %v324, 4294901760
        %v7661 = vsub.f32 %v324, %v7660
        %v7662 = vand.u32 %v7661, 4294901760
        %7663 = vmatprep.mubr.f32.mxu0 %v7662
        %v7664 = vand.u32 %v323, 4294901760
        %v7665 = vsub.f32 %v323, %v7664
        %v7666 = vand.u32 %v7665, 4294901760
        %7667 = vmatmul.mubr.f32.gmra.mrb[0].mxu0 %v7666
        %v7668 = vpop.f32.mrb[0].mxu0
        %v7669 = vadd.f32 %v6951, %v7668
        %v7670 = vpop.f32.mrb[0].mxu0
        %v7671 = vand.u32 %v328, 4294901760
        %v7672 = vsub.f32 %v328, %v7671
        %v7673 = vand.u32 %v7672, 4294901760
        %7674 = vmatprep.mubr.f32.mxu0 %v7673
        %v7675 = vand.u32 %v327, 4294901760
        %v7676 = vsub.f32 %v327, %v7675
        %v7677 = vand.u32 %v7676, 4294901760
        %7678 = vmatmul.mubr.f32.gmra.mrb[0].mxu0 %v7677
        %v7679 = vpop.f32.mrb[0].mxu0
        %v7680 = vadd.f32 %v6960, %v7679
        %v7681 = vpop.f32.mrb[0].mxu0
        %v7682 = vand.u32 %v332, 4294901760
        %v7683 = vsub.f32 %v332, %v7682
        %v7684 = vand.u32 %v7683, 4294901760
        %7685 = vmatprep.mubr.f32.mxu0 %v7684
        %v7686 = vand.u32 %v331, 4294901760
        %v7687 = vsub.f32 %v331, %v7686
        %v7688 = vand.u32 %v7687, 4294901760
        %7689 = vmatmul.mubr.f32.gmra.mrb[0].mxu0 %v7688
        %v7690 = vpop.f32.mrb[0].mxu0
        %v7691 = vadd.f32 %v6969, %v7690
        %v7692 = vpop.f32.mrb[0].mxu0
        %v7693 = vand.u32 %v336, 4294901760
        %v7694 = vsub.f32 %v336, %v7693
        %v7695 = vand.u32 %v7694, 4294901760
        %7696 = vmatprep.mubr.f32.mxu0 %v7695
        %v7697 = vand.u32 %v335, 4294901760
        %v7698 = vsub.f32 %v335, %v7697
        %v7699 = vand.u32 %v7698, 4294901760
        %7700 = vmatmul.mubr.f32.gmra.mrb[0].mxu0 %v7699
        %v7701 = vpop.f32.mrb[0].mxu0
        %v7702 = vadd.f32 %v6978, %v7701
        %v7703 = vpop.f32.mrb[0].mxu0
        %v7704 = vand.u32 %v340, 4294901760
        %v7705 = vsub.f32 %v340, %v7704
        %v7706 = vand.u32 %v7705, 4294901760
        %7707 = vmatprep.mubr.f32.mxu0 %v7706
        %v7708 = vand.u32 %v339, 4294901760
        %v7709 = vsub.f32 %v339, %v7708
        %v7710 = vand.u32 %v7709, 4294901760
        %7711 = vmatmul.mubr.f32.gmra.mrb[0].mxu0 %v7710
        %v7712 = vpop.f32.mrb[0].mxu0
        %v7713 = vadd.f32 %v6987, %v7712
        %v7714 = vpop.f32.mrb[0].mxu0
        %v7715 = vand.u32 %v344, 4294901760
        %v7716 = vsub.f32 %v344, %v7715
        %v7717 = vand.u32 %v7716, 4294901760
        %7718 = vmatprep.mubr.f32.mxu0 %v7717
        %v7719 = vand.u32 %v343, 4294901760
        %v7720 = vsub.f32 %v343, %v7719
        %v7721 = vand.u32 %v7720, 4294901760
        %7722 = vmatmul.mubr.f32.gmra.mrb[0].mxu0 %v7721
        %v7723 = vpop.f32.mrb[0].mxu0
        %v7724 = vadd.f32 %v6996, %v7723
        %v7725 = vpop.f32.mrb[0].mxu0
        %v7726 = vand.u32 %v348, 4294901760
        %v7727 = vsub.f32 %v348, %v7726
        %v7728 = vand.u32 %v7727, 4294901760
        %7729 = vmatprep.mubr.f32.mxu0 %v7728
        %v7730 = vand.u32 %v347, 4294901760
        %v7731 = vsub.f32 %v347, %v7730
        %v7732 = vand.u32 %v7731, 4294901760
        %7733 = vmatmul.mubr.f32.gmra.mrb[0].mxu0 %v7732
        %v7734 = vpop.f32.mrb[0].mxu0
        %v7735 = vadd.f32 %v7005, %v7734
        %v7736 = vpop.f32.mrb[0].mxu0
        %v7737 = vand.u32 %v352, 4294901760
        %v7738 = vsub.f32 %v352, %v7737
        %v7739 = vand.u32 %v7738, 4294901760
        %7740 = vmatprep.mubr.f32.mxu0 %v7739
        %v7741 = vand.u32 %v351, 4294901760
        %v7742 = vsub.f32 %v351, %v7741
        %v7743 = vand.u32 %v7742, 4294901760
        %7744 = vmatmul.mubr.f32.gmra.mrb[0].mxu0 %v7743
        %v7745 = vpop.f32.mrb[0].mxu0
        %v7746 = vadd.f32 %v7014, %v7745
        %v7747 = vpop.f32.mrb[0].mxu0
        %v7748 = vand.u32 %v356, 4294901760
        %v7749 = vsub.f32 %v356, %v7748
        %v7750 = vand.u32 %v7749, 4294901760
        %7751 = vmatprep.mubr.f32.mxu0 %v7750
        %v7752 = vand.u32 %v355, 4294901760
        %v7753 = vsub.f32 %v355, %v7752
        %v7754 = vand.u32 %v7753, 4294901760
        %7755 = vmatmul.mubr.f32.gmra.mrb[0].mxu0 %v7754
        %v7756 = vpop.f32.mrb[0].mxu0
        %v7757 = vadd.f32 %v7023, %v7756
        %v7758 = vpop.f32.mrb[0].mxu0
        %v7759 = vand.u32 %v360, 4294901760
        %v7760 = vsub.f32 %v360, %v7759
        %v7761 = vand.u32 %v7760, 4294901760
        %7762 = vmatprep.mubr.f32.mxu0 %v7761
        %v7763 = vand.u32 %v359, 4294901760
        %v7764 = vsub.f32 %v359, %v7763
        %v7765 = vand.u32 %v7764, 4294901760
        %7766 = vmatmul.mubr.f32.gmra.mrb[0].mxu0 %v7765
        %v7767 = vpop.f32.mrb[0].mxu0
        %v7768 = vadd.f32 %v7032, %v7767
        %v7769 = vpop.f32.mrb[0].mxu0
        %v7770 = vand.u32 %v364, 4294901760
        %v7771 = vsub.f32 %v364, %v7770
        %v7772 = vand.u32 %v7771, 4294901760
        %7773 = vmatprep.mubr.f32.mxu0 %v7772
        %v7774 = vand.u32 %v363, 4294901760
        %v7775 = vsub.f32 %v363, %v7774
        %v7776 = vand.u32 %v7775, 4294901760
        %7777 = vmatmul.mubr.f32.gmra.mrb[0].mxu0 %v7776
        %v7778 = vpop.f32.mrb[0].mxu0
        %v7779 = vadd.f32 %v7041, %v7778
        %v7780 = vpop.f32.mrb[0].mxu0
        %v7781 = vand.u32 %v368, 4294901760
        %v7782 = vsub.f32 %v368, %v7781
        %v7783 = vand.u32 %v7782, 4294901760
        %7784 = vmatprep.mubr.f32.mxu0 %v7783
        %v7785 = vand.u32 %v367, 4294901760
        %v7786 = vsub.f32 %v367, %v7785
        %v7787 = vand.u32 %v7786, 4294901760
        %7788 = vmatmul.mubr.f32.gmra.mrb[0].mxu0 %v7787
        %v7789 = vpop.f32.mrb[0].mxu0
        %v7790 = vadd.f32 %v7050, %v7789
        %v7791 = vpop.f32.mrb[0].mxu0
        %v7792 = vand.u32 %v372, 4294901760
        %v7793 = vsub.f32 %v372, %v7792
        %v7794 = vand.u32 %v7793, 4294901760
        %7795 = vmatprep.mubr.f32.mxu0 %v7794
        %v7796 = vand.u32 %v371, 4294901760
        %v7797 = vsub.f32 %v371, %v7796
        %v7798 = vand.u32 %v7797, 4294901760
        %7799 = vmatmul.mubr.f32.gmra.mrb[0].mxu0 %v7798
        %v7800 = vpop.f32.mrb[0].mxu0
        %v7801 = vadd.f32 %v7059, %v7800
        %v7802 = vpop.f32.mrb[0].mxu0
        %v7803 = vand.u32 %v376, 4294901760
        %v7804 = vsub.f32 %v376, %v7803
        %v7805 = vand.u32 %v7804, 4294901760
        %7806 = vmatprep.mubr.f32.mxu0 %v7805
        %v7807 = vand.u32 %v375, 4294901760
        %v7808 = vsub.f32 %v375, %v7807
        %v7809 = vand.u32 %v7808, 4294901760
        %7810 = vmatmul.mubr.f32.gmra.mrb[0].mxu0 %v7809
        %v7811 = vpop.f32.mrb[0].mxu0
        %v7812 = vadd.f32 %v7068, %v7811
        %v7813 = vpop.f32.mrb[0].mxu0
        %v7814 = vand.u32 %v380, 4294901760
        %v7815 = vsub.f32 %v380, %v7814
        %v7816 = vand.u32 %v7815, 4294901760
        %7817 = vmatprep.mubr.f32.mxu0 %v7816
        %v7818 = vand.u32 %v379, 4294901760
        %v7819 = vsub.f32 %v379, %v7818
        %v7820 = vand.u32 %v7819, 4294901760
        %7821 = vmatmul.mubr.f32.gmra.mrb[0].mxu0 %v7820
        %v7822 = vpop.f32.mrb[0].mxu0
        %v7823 = vadd.f32 %v7077, %v7822
        %v7824 = vpop.f32.mrb[0].mxu0
        %v7825 = vand.u32 %v384, 4294901760
        %v7826 = vsub.f32 %v384, %v7825
        %v7827 = vand.u32 %v7826, 4294901760
        %7828 = vmatprep.mubr.f32.mxu0 %v7827
        %v7829 = vand.u32 %v383, 4294901760
        %v7830 = vsub.f32 %v383, %v7829
        %v7831 = vand.u32 %v7830, 4294901760
        %7832 = vmatmul.mubr.f32.gmra.mrb[0].mxu0 %v7831
        %v7833 = vpop.f32.mrb[0].mxu0
        %v7834 = vadd.f32 %v7086, %v7833
        %v7835 = vpop.f32.mrb[0].mxu0
        %v7836 = vand.u32 %v388, 4294901760
        %v7837 = vsub.f32 %v388, %v7836
        %v7838 = vand.u32 %v7837, 4294901760
        %7839 = vmatprep.mubr.f32.mxu0 %v7838
        %v7840 = vand.u32 %v387, 4294901760
        %v7841 = vsub.f32 %v387, %v7840
        %v7842 = vand.u32 %v7841, 4294901760
        %7843 = vmatmul.mubr.f32.gmra.mrb[0].mxu0 %v7842
        %v7844 = vpop.f32.mrb[0].mxu0
        %v7845 = vadd.f32 %v7095, %v7844
        %v7846 = vpop.f32.mrb[0].mxu0
        %v7847 = vand.u32 %v392, 4294901760
        %v7848 = vsub.f32 %v392, %v7847
        %v7849 = vand.u32 %v7848, 4294901760
        %7850 = vmatprep.mubr.f32.mxu0 %v7849
        %v7851 = vand.u32 %v391, 4294901760
        %v7852 = vsub.f32 %v391, %v7851
        %v7853 = vand.u32 %v7852, 4294901760
        %7854 = vmatmul.mubr.f32.gmra.mrb[0].mxu0 %v7853
        %v7855 = vpop.f32.mrb[0].mxu0
        %v7856 = vadd.f32 %v7104, %v7855
        %v7857 = vpop.f32.mrb[0].mxu0
        %v7858 = vand.u32 %v396, 4294901760
        %v7859 = vsub.f32 %v396, %v7858
        %v7860 = vand.u32 %v7859, 4294901760
        %7861 = vmatprep.mubr.f32.mxu0 %v7860
        %v7862 = vand.u32 %v395, 4294901760
        %v7863 = vsub.f32 %v395, %v7862
        %v7864 = vand.u32 %v7863, 4294901760
        %7865 = vmatmul.mubr.f32.gmra.mrb[0].mxu0 %v7864
        %v7866 = vpop.f32.mrb[0].mxu0
        %v7867 = vadd.f32 %v7113, %v7866
        %v7868 = vpop.f32.mrb[0].mxu0
        %v7869 = vand.u32 %v400, 4294901760
        %v7870 = vsub.f32 %v400, %v7869
        %v7871 = vand.u32 %v7870, 4294901760
        %7872 = vmatprep.mubr.f32.mxu0 %v7871
        %v7873 = vand.u32 %v399, 4294901760
        %v7874 = vsub.f32 %v399, %v7873
        %v7875 = vand.u32 %v7874, 4294901760
        %7876 = vmatmul.mubr.f32.gmra.mrb[0].mxu0 %v7875
        %v7877 = vpop.f32.mrb[0].mxu0
        %v7878 = vadd.f32 %v7122, %v7877
        %v7879 = vpop.f32.mrb[0].mxu0
        %v7880 = vand.u32 %v404, 4294901760
        %v7881 = vsub.f32 %v404, %v7880
        %v7882 = vand.u32 %v7881, 4294901760
        %7883 = vmatprep.mubr.f32.mxu0 %v7882
        %v7884 = vand.u32 %v403, 4294901760
        %v7885 = vsub.f32 %v403, %v7884
        %v7886 = vand.u32 %v7885, 4294901760
        %7887 = vmatmul.mubr.f32.gmra.mrb[0].mxu0 %v7886
        %v7888 = vpop.f32.mrb[0].mxu0
        %v7889 = vadd.f32 %v7131, %v7888
        %v7890 = vpop.f32.mrb[0].mxu0
        %v7891 = vand.u32 %v408, 4294901760
        %v7892 = vsub.f32 %v408, %v7891
        %v7893 = vand.u32 %v7892, 4294901760
        %7894 = vmatprep.mubr.f32.mxu0 %v7893
        %v7895 = vand.u32 %v407, 4294901760
        %v7896 = vsub.f32 %v407, %v7895
        %v7897 = vand.u32 %v7896, 4294901760
        %7898 = vmatmul.mubr.f32.gmra.mrb[0].mxu0 %v7897
        %v7899 = vpop.f32.mrb[0].mxu0
        %v7900 = vadd.f32 %v7140, %v7899
        %v7901 = vpop.f32.mrb[0].mxu0
        %v7902 = vand.u32 %v412, 4294901760
        %v7903 = vsub.f32 %v412, %v7902
        %v7904 = vand.u32 %v7903, 4294901760
        %7905 = vmatprep.mubr.f32.mxu0 %v7904
        %v7906 = vand.u32 %v411, 4294901760
        %v7907 = vsub.f32 %v411, %v7906
        %v7908 = vand.u32 %v7907, 4294901760
        %7909 = vmatmul.mubr.f32.gmra.mrb[0].mxu0 %v7908
        %v7910 = vpop.f32.mrb[0].mxu0
        %v7911 = vadd.f32 %v7149, %v7910
        %v7912 = vpop.f32.mrb[0].mxu0
        %v7913 = vand.u32 %v416, 4294901760
        %v7914 = vsub.f32 %v416, %v7913
        %v7915 = vand.u32 %v7914, 4294901760
        %7916 = vmatprep.mubr.f32.mxu0 %v7915
        %v7917 = vand.u32 %v415, 4294901760
        %v7918 = vsub.f32 %v415, %v7917
        %v7919 = vand.u32 %v7918, 4294901760
        %7920 = vmatmul.mubr.f32.gmra.mrb[0].mxu0 %v7919
        %v7921 = vpop.f32.mrb[0].mxu0
        %v7922 = vadd.f32 %v7158, %v7921
        %v7923 = vpop.f32.mrb[0].mxu0
        %v7924 = vand.u32 %v420, 4294901760
        %v7925 = vsub.f32 %v420, %v7924
        %v7926 = vand.u32 %v7925, 4294901760
        %7927 = vmatprep.mubr.f32.mxu0 %v7926
        %v7928 = vand.u32 %v419, 4294901760
        %v7929 = vsub.f32 %v419, %v7928
        %v7930 = vand.u32 %v7929, 4294901760
        %7931 = vmatmul.mubr.f32.gmra.mrb[0].mxu0 %v7930
        %v7932 = vpop.f32.mrb[0].mxu0
        %v7933 = vadd.f32 %v7167, %v7932
        %v7934 = vpop.f32.mrb[0].mxu0
        %v7935 = vand.u32 %v424, 4294901760
        %v7936 = vsub.f32 %v424, %v7935
        %v7937 = vand.u32 %v7936, 4294901760
        %7938 = vmatprep.mubr.f32.mxu0 %v7937
        %v7939 = vand.u32 %v423, 4294901760
        %v7940 = vsub.f32 %v423, %v7939
        %v7941 = vand.u32 %v7940, 4294901760
        %7942 = vmatmul.mubr.f32.gmra.mrb[0].mxu0 %v7941
        %v7943 = vpop.f32.mrb[0].mxu0
        %v7944 = vadd.f32 %v7176, %v7943
        %v7945 = vpop.f32.mrb[0].mxu0
        %v7946 = vand.u32 %v428, 4294901760
        %v7947 = vsub.f32 %v428, %v7946
        %v7948 = vand.u32 %v7947, 4294901760
        %7949 = vmatprep.mubr.f32.mxu0 %v7948
        %v7950 = vand.u32 %v427, 4294901760
        %v7951 = vsub.f32 %v427, %v7950
        %v7952 = vand.u32 %v7951, 4294901760
        %7953 = vmatmul.mubr.f32.gmra.mrb[0].mxu0 %v7952
        %v7954 = vpop.f32.mrb[0].mxu0
        %v7955 = vadd.f32 %v7185, %v7954
        %v7956 = vpop.f32.mrb[0].mxu0
        %v7957 = vand.u32 %v432, 4294901760
        %v7958 = vsub.f32 %v432, %v7957
        %v7959 = vand.u32 %v7958, 4294901760
        %7960 = vmatprep.mubr.f32.mxu0 %v7959
        %v7961 = vand.u32 %v431, 4294901760
        %v7962 = vsub.f32 %v431, %v7961
        %v7963 = vand.u32 %v7962, 4294901760
        %7964 = vmatmul.mubr.f32.gmra.mrb[0].mxu0 %v7963
        %v7965 = vpop.f32.mrb[0].mxu0
        %v7966 = vadd.f32 %v7194, %v7965
        %v7967 = vpop.f32.mrb[0].mxu0
        %v7968 = vand.u32 %v436, 4294901760
        %v7969 = vsub.f32 %v436, %v7968
        %v7970 = vand.u32 %v7969, 4294901760
        %7971 = vmatprep.mubr.f32.mxu0 %v7970
        %v7972 = vand.u32 %v435, 4294901760
        %v7973 = vsub.f32 %v435, %v7972
        %v7974 = vand.u32 %v7973, 4294901760
        %7975 = vmatmul.mubr.f32.gmra.mrb[0].mxu0 %v7974
        %v7976 = vpop.f32.mrb[0].mxu0
        %v7977 = vadd.f32 %v7203, %v7976
        %v7978 = vpop.f32.mrb[0].mxu0
        %v7979 = vand.u32 %v440, 4294901760
        %v7980 = vsub.f32 %v440, %v7979
        %v7981 = vand.u32 %v7980, 4294901760
        %7982 = vmatprep.mubr.f32.mxu0 %v7981
        %v7983 = vand.u32 %v439, 4294901760
        %v7984 = vsub.f32 %v439, %v7983
        %v7985 = vand.u32 %v7984, 4294901760
        %7986 = vmatmul.mubr.f32.gmra.mrb[0].mxu0 %v7985
        %v7987 = vpop.f32.mrb[0].mxu0
        %v7988 = vadd.f32 %v7212, %v7987
        %v7989 = vpop.f32.mrb[0].mxu0
        %v7990 = vand.u32 %v444, 4294901760
        %v7991 = vsub.f32 %v444, %v7990
        %v7992 = vand.u32 %v7991, 4294901760
        %7993 = vmatprep.mubr.f32.mxu0 %v7992
        %v7994 = vand.u32 %v443, 4294901760
        %v7995 = vsub.f32 %v443, %v7994
        %v7996 = vand.u32 %v7995, 4294901760
        %7997 = vmatmul.mubr.f32.gmra.mrb[0].mxu0 %v7996
        %v7998 = vpop.f32.mrb[0].mxu0
        %v7999 = vadd.f32 %v7221, %v7998
        %v8000 = vpop.f32.mrb[0].mxu0
        %v8001 = vand.u32 %v448, 4294901760
        %v8002 = vsub.f32 %v448, %v8001
        %v8003 = vand.u32 %v8002, 4294901760
        %8004 = vmatprep.mubr.f32.mxu0 %v8003
        %v8005 = vand.u32 %v447, 4294901760
        %v8006 = vsub.f32 %v447, %v8005
        %v8007 = vand.u32 %v8006, 4294901760
        %8008 = vmatmul.mubr.f32.gmra.mrb[0].mxu0 %v8007
        %v8009 = vpop.f32.mrb[0].mxu0
        %v8010 = vadd.f32 %v7230, %v8009
        %v8011 = vpop.f32.mrb[0].mxu0
        %v8012 = vand.u32 %v452, 4294901760
        %v8013 = vsub.f32 %v452, %v8012
        %v8014 = vand.u32 %v8013, 4294901760
        %8015 = vmatprep.mubr.f32.mxu0 %v8014
        %v8016 = vand.u32 %v451, 4294901760
        %v8017 = vsub.f32 %v451, %v8016
        %v8018 = vand.u32 %v8017, 4294901760
        %8019 = vmatmul.mubr.f32.gmra.mrb[0].mxu0 %v8018
        %v8020 = vpop.f32.mrb[0].mxu0
        %v8021 = vadd.f32 %v7239, %v8020
        %v8022 = vpop.f32.mrb[0].mxu0
        %v8023 = vand.u32 %v456, 4294901760
        %v8024 = vsub.f32 %v456, %v8023
        %v8025 = vand.u32 %v8024, 4294901760
        %8026 = vmatprep.mubr.f32.mxu0 %v8025
        %v8027 = vand.u32 %v455, 4294901760
        %v8028 = vsub.f32 %v455, %v8027
        %v8029 = vand.u32 %v8028, 4294901760
        %8030 = vmatmul.mubr.f32.gmra.mrb[0].mxu0 %v8029
        %v8031 = vpop.f32.mrb[0].mxu0
        %v8032 = vadd.f32 %v7248, %v8031
        %v8033 = vpop.f32.mrb[0].mxu0
        %v8034 = vand.u32 %v460, 4294901760
        %v8035 = vsub.f32 %v460, %v8034
        %v8036 = vand.u32 %v8035, 4294901760
        %8037 = vmatprep.mubr.f32.mxu0 %v8036
        %v8038 = vand.u32 %v459, 4294901760
        %v8039 = vsub.f32 %v459, %v8038
        %v8040 = vand.u32 %v8039, 4294901760
        %8041 = vmatmul.mubr.f32.gmra.mrb[0].mxu0 %v8040
        %v8042 = vpop.f32.mrb[0].mxu0
        %v8043 = vadd.f32 %v7257, %v8042
        %v8044 = vpop.f32.mrb[0].mxu0
        %v8045 = vand.u32 %v464, 4294901760
        %v8046 = vsub.f32 %v464, %v8045
        %v8047 = vand.u32 %v8046, 4294901760
        %8048 = vmatprep.mubr.f32.mxu0 %v8047
        %v8049 = vand.u32 %v463, 4294901760
        %v8050 = vsub.f32 %v463, %v8049
        %v8051 = vand.u32 %v8050, 4294901760
        %8052 = vmatmul.mubr.f32.gmra.mrb[0].mxu0 %v8051
        %v8053 = vpop.f32.mrb[0].mxu0
        %v8054 = vadd.f32 %v7266, %v8053
        %v8055 = vpop.f32.mrb[0].mxu0
        %v8056 = vand.u32 %v468, 4294901760
        %v8057 = vsub.f32 %v468, %v8056
        %v8058 = vand.u32 %v8057, 4294901760
        %8059 = vmatprep.mubr.f32.mxu0 %v8058
        %v8060 = vand.u32 %v467, 4294901760
        %v8061 = vsub.f32 %v467, %v8060
        %v8062 = vand.u32 %v8061, 4294901760
        %8063 = vmatmul.mubr.f32.gmra.mrb[0].mxu0 %v8062
        %v8064 = vpop.f32.mrb[0].mxu0
        %v8065 = vadd.f32 %v7275, %v8064
        %v8066 = vpop.f32.mrb[0].mxu0
        %8067 = vdwg.mxu0
        %8068 = vmatprep.subr.mxu0 0.0
        %v8069 = vand.u32 %v501, 4294901760
        %v8070 = vsub.f32 %v501, %v8069
        %v8071 = vand.u32 %v8070, 4294901760
        %8072 = vmatpush1.msra.mxu0 %v8071
        %8073 = vmatprep.subr.mxu0 0.0
        %v8074 = vand.u32 %v502, 4294901760
        %v8075 = vsub.f32 %v502, %v8074
        %v8076 = vand.u32 %v8075, 4294901760
        %8077 = vmatpush1.msra.mxu0 %v8076
        %8078 = vmatprep.subr.mxu0 0.0
        %v8079 = vand.u32 %v503, 4294901760
        %v8080 = vsub.f32 %v503, %v8079
        %v8081 = vand.u32 %v8080, 4294901760
        %8082 = vmatpush1.msra.mxu0 %v8081
        %8083 = vmatprep.subr.mxu0 0.0
        %v8084 = vand.u32 %v504, 4294901760
        %v8085 = vsub.f32 %v504, %v8084
        %v8086 = vand.u32 %v8085, 4294901760
        %8087 = vmatpush1.msra.mxu0 %v8086
        %8088 = vmatprep.subr.mxu0 0.0
        %v8089 = vand.u32 %v505, 4294901760
        %v8090 = vsub.f32 %v505, %v8089
        %v8091 = vand.u32 %v8090, 4294901760
        %8092 = vmatpush1.msra.mxu0 %v8091
        %8093 = vmatprep.subr.mxu0 0.0
        %v8094 = vand.u32 %v506, 4294901760
        %v8095 = vsub.f32 %v506, %v8094
        %v8096 = vand.u32 %v8095, 4294901760
        %8097 = vmatpush1.msra.mxu0 %v8096
        %8098 = vmatprep.subr.mxu0 0.0
        %v8099 = vand.u32 %v507, 4294901760
        %v8100 = vsub.f32 %v507, %v8099
        %v8101 = vand.u32 %v8100, 4294901760
        %8102 = vmatpush1.msra.mxu0 %v8101
        %8103 = vmatprep.subr.mxu0 0.0
        %v8104 = vand.u32 %v508, 4294901760
        %v8105 = vsub.f32 %v508, %v8104
        %v8106 = vand.u32 %v8105, 4294901760
        %8107 = vmatpush1.msra.mxu0 %v8106
        %8108 = vmatprep.subr.mxu0 0.0
        %v8109 = vand.u32 %v509, 4294901760
        %v8110 = vsub.f32 %v509, %v8109
        %v8111 = vand.u32 %v8110, 4294901760
        %8112 = vmatpush1.msra.mxu0 %v8111
        %8113 = vmatprep.subr.mxu0 0.0
        %v8114 = vand.u32 %v510, 4294901760
        %v8115 = vsub.f32 %v510, %v8114
        %v8116 = vand.u32 %v8115, 4294901760
        %8117 = vmatpush1.msra.mxu0 %v8116
        %8118 = vmatprep.subr.mxu0 0.0
        %v8119 = vand.u32 %v511, 4294901760
        %v8120 = vsub.f32 %v511, %v8119
        %v8121 = vand.u32 %v8120, 4294901760
        %8122 = vmatpush1.msra.mxu0 %v8121
        %8123 = vmatprep.subr.mxu0 0.0
        %v8124 = vand.u32 %v512, 4294901760
        %v8125 = vsub.f32 %v512, %v8124
        %v8126 = vand.u32 %v8125, 4294901760
        %8127 = vmatpush1.msra.mxu0 %v8126
        %8128 = vmatprep.subr.mxu0 0.0
        %v8129 = vand.u32 %v513, 4294901760
        %v8130 = vsub.f32 %v513, %v8129
        %v8131 = vand.u32 %v8130, 4294901760
        %8132 = vmatpush1.msra.mxu0 %v8131
        %8133 = vmatprep.subr.mxu0 0.0
        %v8134 = vand.u32 %v514, 4294901760
        %v8135 = vsub.f32 %v514, %v8134
        %v8136 = vand.u32 %v8135, 4294901760
        %8137 = vmatpush1.msra.mxu0 %v8136
        %8138 = vmatprep.subr.mxu0 0.0
        %v8139 = vand.u32 %v515, 4294901760
        %v8140 = vsub.f32 %v515, %v8139
        %v8141 = vand.u32 %v8140, 4294901760
        %8142 = vmatpush1.msra.mxu0 %v8141
        %8143 = vmatprep.subr.mxu0 0.0
        %v8144 = vand.u32 %v516, 4294901760
        %v8145 = vsub.f32 %v516, %v8144
        %v8146 = vand.u32 %v8145, 4294901760
        %8147 = vmatpush1.msra.mxu0 %v8146
        %8148 = vmatprep.subr.mxu0 0.0
        %v8149 = vand.u32 %v517, 4294901760
        %v8150 = vsub.f32 %v517, %v8149
        %v8151 = vand.u32 %v8150, 4294901760
        %8152 = vmatpush1.msra.mxu0 %v8151
        %8153 = vmatprep.subr.mxu0 0.0
        %v8154 = vand.u32 %v518, 4294901760
        %v8155 = vsub.f32 %v518, %v8154
        %v8156 = vand.u32 %v8155, 4294901760
        %8157 = vmatpush1.msra.mxu0 %v8156
        %8158 = vmatprep.subr.mxu0 0.0
        %v8159 = vand.u32 %v519, 4294901760
        %v8160 = vsub.f32 %v519, %v8159
        %v8161 = vand.u32 %v8160, 4294901760
        %8162 = vmatpush1.msra.mxu0 %v8161
        %8163 = vmatprep.subr.mxu0 0.0
        %v8164 = vand.u32 %v520, 4294901760
        %v8165 = vsub.f32 %v520, %v8164
        %v8166 = vand.u32 %v8165, 4294901760
        %8167 = vmatpush1.msra.mxu0 %v8166
        %8168 = vmatprep.subr.mxu0 0.0
        %v8169 = vand.u32 %v521, 4294901760
        %v8170 = vsub.f32 %v521, %v8169
        %v8171 = vand.u32 %v8170, 4294901760
        %8172 = vmatpush1.msra.mxu0 %v8171
        %8173 = vmatprep.subr.mxu0 0.0
        %v8174 = vand.u32 %v522, 4294901760
        %v8175 = vsub.f32 %v522, %v8174
        %v8176 = vand.u32 %v8175, 4294901760
        %8177 = vmatpush1.msra.mxu0 %v8176
        %8178 = vmatprep.subr.mxu0 0.0
        %v8179 = vand.u32 %v523, 4294901760
        %v8180 = vsub.f32 %v523, %v8179
        %v8181 = vand.u32 %v8180, 4294901760
        %8182 = vmatpush1.msra.mxu0 %v8181
        %8183 = vmatprep.subr.mxu0 0.0
        %v8184 = vand.u32 %v524, 4294901760
        %v8185 = vsub.f32 %v524, %v8184
        %v8186 = vand.u32 %v8185, 4294901760
        %8187 = vmatpush1.msra.mxu0 %v8186
        %8188 = vmatprep.subr.mxu0 0.0
        %v8189 = vand.u32 %v525, 4294901760
        %v8190 = vsub.f32 %v525, %v8189
        %v8191 = vand.u32 %v8190, 4294901760
        %8192 = vmatpush1.msra.mxu0 %v8191
        %8193 = vmatprep.subr.mxu0 0.0
        %v8194 = vand.u32 %v526, 4294901760
        %v8195 = vsub.f32 %v526, %v8194
        %v8196 = vand.u32 %v8195, 4294901760
        %8197 = vmatpush1.msra.mxu0 %v8196
        %8198 = vmatprep.subr.mxu0 0.0
        %v8199 = vand.u32 %v527, 4294901760
        %v8200 = vsub.f32 %v527, %v8199
        %v8201 = vand.u32 %v8200, 4294901760
        %8202 = vmatpush1.msra.mxu0 %v8201
        %8203 = vmatprep.subr.mxu0 0.0
        %v8204 = vand.u32 %v528, 4294901760
        %v8205 = vsub.f32 %v528, %v8204
        %v8206 = vand.u32 %v8205, 4294901760
        %8207 = vmatpush1.msra.mxu0 %v8206
        %8208 = vmatprep.subr.mxu0 0.0
        %v8209 = vand.u32 %v529, 4294901760
        %v8210 = vsub.f32 %v529, %v8209
        %v8211 = vand.u32 %v8210, 4294901760
        %8212 = vmatpush1.msra.mxu0 %v8211
        %8213 = vmatprep.subr.mxu0 0.0
        %v8214 = vand.u32 %v530, 4294901760
        %v8215 = vsub.f32 %v530, %v8214
        %v8216 = vand.u32 %v8215, 4294901760
        %8217 = vmatpush1.msra.mxu0 %v8216
        %8218 = vmatprep.subr.mxu0 0.0
        %v8219 = vand.u32 %v531, 4294901760
        %v8220 = vsub.f32 %v531, %v8219
        %v8221 = vand.u32 %v8220, 4294901760
        %8222 = vmatpush1.msra.mxu0 %v8221
        %8223 = vmatprep.subr.mxu0 0.0
        %v8224 = vand.u32 %v532, 4294901760
        %v8225 = vsub.f32 %v532, %v8224
        %v8226 = vand.u32 %v8225, 4294901760
        %8227 = vmatpush1.msra.mxu0 %v8226
        %v8228 = vand.u32 %v220, 4294901760
        %8229 = vmatprep.mubr.f32.mxu0 %v8228
        %v8230 = vand.u32 %v219, 4294901760
        %8231 = vmatmul.mubr.f32.gmra.mrb[0].mxu0 %v8230
        %v8232 = vpop.f32.mrb[0].mxu0
        %v8233 = vadd.f32 %v7383, %v8232
        %v8234 = vpop.f32.mrb[0].mxu0
        %v8235 = vand.u32 %v224, 4294901760
        %8236 = vmatprep.mubr.f32.mxu0 %v8235
        %v8237 = vand.u32 %v223, 4294901760
        %8238 = vmatmul.mubr.f32.gmra.mrb[0].mxu0 %v8237
        %v8239 = vpop.f32.mrb[0].mxu0
        %v8240 = vadd.f32 %v7394, %v8239
        %v8241 = vpop.f32.mrb[0].mxu0
        %v8242 = vand.u32 %v228, 4294901760
        %8243 = vmatprep.mubr.f32.mxu0 %v8242
        %v8244 = vand.u32 %v227, 4294901760
        %8245 = vmatmul.mubr.f32.gmra.mrb[0].mxu0 %v8244
        %v8246 = vpop.f32.mrb[0].mxu0
        %v8247 = vadd.f32 %v7405, %v8246
        %v8248 = vpop.f32.mrb[0].mxu0
        %v8249 = vand.u32 %v232, 4294901760
        %8250 = vmatprep.mubr.f32.mxu0 %v8249
        %v8251 = vand.u32 %v231, 4294901760
        %8252 = vmatmul.mubr.f32.gmra.mrb[0].mxu0 %v8251
        %v8253 = vpop.f32.mrb[0].mxu0
        %v8254 = vadd.f32 %v7416, %v8253
        %v8255 = vpop.f32.mrb[0].mxu0
        %v8256 = vand.u32 %v236, 4294901760
        %8257 = vmatprep.mubr.f32.mxu0 %v8256
        %v8258 = vand.u32 %v235, 4294901760
        %8259 = vmatmul.mubr.f32.gmra.mrb[0].mxu0 %v8258
        %v8260 = vpop.f32.mrb[0].mxu0
        %v8261 = vadd.f32 %v7427, %v8260
        %v8262 = vpop.f32.mrb[0].mxu0
        %v8263 = vand.u32 %v240, 4294901760
        %8264 = vmatprep.mubr.f32.mxu0 %v8263
        %v8265 = vand.u32 %v239, 4294901760
        %8266 = vmatmul.mubr.f32.gmra.mrb[0].mxu0 %v8265
        %v8267 = vpop.f32.mrb[0].mxu0
        %v8268 = vadd.f32 %v7438, %v8267
        %v8269 = vpop.f32.mrb[0].mxu0
        %v8270 = vand.u32 %v244, 4294901760
        %8271 = vmatprep.mubr.f32.mxu0 %v8270
        %v8272 = vand.u32 %v243, 4294901760
        %8273 = vmatmul.mubr.f32.gmra.mrb[0].mxu0 %v8272
        %v8274 = vpop.f32.mrb[0].mxu0
        %v8275 = vadd.f32 %v7449, %v8274
        %v8276 = vpop.f32.mrb[0].mxu0
        %v8277 = vand.u32 %v248, 4294901760
        %8278 = vmatprep.mubr.f32.mxu0 %v8277
        %v8279 = vand.u32 %v247, 4294901760
        %8280 = vmatmul.mubr.f32.gmra.mrb[0].mxu0 %v8279
        %v8281 = vpop.f32.mrb[0].mxu0
        %v8282 = vadd.f32 %v7460, %v8281
        %v8283 = vpop.f32.mrb[0].mxu0
        %v8284 = vand.u32 %v252, 4294901760
        %8285 = vmatprep.mubr.f32.mxu0 %v8284
        %v8286 = vand.u32 %v251, 4294901760
        %8287 = vmatmul.mubr.f32.gmra.mrb[0].mxu0 %v8286
        %v8288 = vpop.f32.mrb[0].mxu0
        %v8289 = vadd.f32 %v7471, %v8288
        %v8290 = vpop.f32.mrb[0].mxu0
        %v8291 = vand.u32 %v256, 4294901760
        %8292 = vmatprep.mubr.f32.mxu0 %v8291
        %v8293 = vand.u32 %v255, 4294901760
        %8294 = vmatmul.mubr.f32.gmra.mrb[0].mxu0 %v8293
        %v8295 = vpop.f32.mrb[0].mxu0
        %v8296 = vadd.f32 %v7482, %v8295
        %v8297 = vpop.f32.mrb[0].mxu0
        %v8298 = vand.u32 %v260, 4294901760
        %8299 = vmatprep.mubr.f32.mxu0 %v8298
        %v8300 = vand.u32 %v259, 4294901760
        %8301 = vmatmul.mubr.f32.gmra.mrb[0].mxu0 %v8300
        %v8302 = vpop.f32.mrb[0].mxu0
        %v8303 = vadd.f32 %v7493, %v8302
        %v8304 = vpop.f32.mrb[0].mxu0
        %v8305 = vand.u32 %v264, 4294901760
        %8306 = vmatprep.mubr.f32.mxu0 %v8305
        %v8307 = vand.u32 %v263, 4294901760
        %8308 = vmatmul.mubr.f32.gmra.mrb[0].mxu0 %v8307
        %v8309 = vpop.f32.mrb[0].mxu0
        %v8310 = vadd.f32 %v7504, %v8309
        %v8311 = vpop.f32.mrb[0].mxu0
        %v8312 = vand.u32 %v268, 4294901760
        %8313 = vmatprep.mubr.f32.mxu0 %v8312
        %v8314 = vand.u32 %v267, 4294901760
        %8315 = vmatmul.mubr.f32.gmra.mrb[0].mxu0 %v8314
        %v8316 = vpop.f32.mrb[0].mxu0
        %v8317 = vadd.f32 %v7515, %v8316
        %v8318 = vpop.f32.mrb[0].mxu0
        %v8319 = vand.u32 %v272, 4294901760
        %8320 = vmatprep.mubr.f32.mxu0 %v8319
        %v8321 = vand.u32 %v271, 4294901760
        %8322 = vmatmul.mubr.f32.gmra.mrb[0].mxu0 %v8321
        %v8323 = vpop.f32.mrb[0].mxu0
        %v8324 = vadd.f32 %v7526, %v8323
        %v8325 = vpop.f32.mrb[0].mxu0
        %v8326 = vand.u32 %v276, 4294901760
        %8327 = vmatprep.mubr.f32.mxu0 %v8326
        %v8328 = vand.u32 %v275, 4294901760
        %8329 = vmatmul.mubr.f32.gmra.mrb[0].mxu0 %v8328
        %v8330 = vpop.f32.mrb[0].mxu0
        %v8331 = vadd.f32 %v7537, %v8330
        %v8332 = vpop.f32.mrb[0].mxu0
        %v8333 = vand.u32 %v280, 4294901760
        %8334 = vmatprep.mubr.f32.mxu0 %v8333
        %v8335 = vand.u32 %v279, 4294901760
        %8336 = vmatmul.mubr.f32.gmra.mrb[0].mxu0 %v8335
        %v8337 = vpop.f32.mrb[0].mxu0
        %v8338 = vadd.f32 %v7548, %v8337
        %v8339 = vpop.f32.mrb[0].mxu0
        %v8340 = vand.u32 %v284, 4294901760
        %8341 = vmatprep.mubr.f32.mxu0 %v8340
        %v8342 = vand.u32 %v283, 4294901760
        %8343 = vmatmul.mubr.f32.gmra.mrb[0].mxu0 %v8342
        %v8344 = vpop.f32.mrb[0].mxu0
        %v8345 = vadd.f32 %v7559, %v8344
        %v8346 = vpop.f32.mrb[0].mxu0
        %v8347 = vand.u32 %v288, 4294901760
        %8348 = vmatprep.mubr.f32.mxu0 %v8347
        %v8349 = vand.u32 %v287, 4294901760
        %8350 = vmatmul.mubr.f32.gmra.mrb[0].mxu0 %v8349
        %v8351 = vpop.f32.mrb[0].mxu0
        %v8352 = vadd.f32 %v7570, %v8351
        %v8353 = vpop.f32.mrb[0].mxu0
        %v8354 = vand.u32 %v292, 4294901760
        %8355 = vmatprep.mubr.f32.mxu0 %v8354
        %v8356 = vand.u32 %v291, 4294901760
        %8357 = vmatmul.mubr.f32.gmra.mrb[0].mxu0 %v8356
        %v8358 = vpop.f32.mrb[0].mxu0
        %v8359 = vadd.f32 %v7581, %v8358
        %v8360 = vpop.f32.mrb[0].mxu0
        %v8361 = vand.u32 %v296, 4294901760
        %8362 = vmatprep.mubr.f32.mxu0 %v8361
        %v8363 = vand.u32 %v295, 4294901760
        %8364 = vmatmul.mubr.f32.gmra.mrb[0].mxu0 %v8363
        %v8365 = vpop.f32.mrb[0].mxu0
        %v8366 = vadd.f32 %v7592, %v8365
        %v8367 = vpop.f32.mrb[0].mxu0
        %v8368 = vand.u32 %v300, 4294901760
        %8369 = vmatprep.mubr.f32.mxu0 %v8368
        %v8370 = vand.u32 %v299, 4294901760
        %8371 = vmatmul.mubr.f32.gmra.mrb[0].mxu0 %v8370
        %v8372 = vpop.f32.mrb[0].mxu0
        %v8373 = vadd.f32 %v7603, %v8372
        %v8374 = vpop.f32.mrb[0].mxu0
        %v8375 = vand.u32 %v304, 4294901760
        %8376 = vmatprep.mubr.f32.mxu0 %v8375
        %v8377 = vand.u32 %v303, 4294901760
        %8378 = vmatmul.mubr.f32.gmra.mrb[0].mxu0 %v8377
        %v8379 = vpop.f32.mrb[0].mxu0
        %v8380 = vadd.f32 %v7614, %v8379
        %v8381 = vpop.f32.mrb[0].mxu0
        %v8382 = vand.u32 %v308, 4294901760
        %8383 = vmatprep.mubr.f32.mxu0 %v8382
        %v8384 = vand.u32 %v307, 4294901760
        %8385 = vmatmul.mubr.f32.gmra.mrb[0].mxu0 %v8384
        %v8386 = vpop.f32.mrb[0].mxu0
        %v8387 = vadd.f32 %v7625, %v8386
        %v8388 = vpop.f32.mrb[0].mxu0
        %v8389 = vand.u32 %v312, 4294901760
        %8390 = vmatprep.mubr.f32.mxu0 %v8389
        %v8391 = vand.u32 %v311, 4294901760
        %8392 = vmatmul.mubr.f32.gmra.mrb[0].mxu0 %v8391
        %v8393 = vpop.f32.mrb[0].mxu0
        %v8394 = vadd.f32 %v7636, %v8393
        %v8395 = vpop.f32.mrb[0].mxu0
        %v8396 = vand.u32 %v316, 4294901760
        %8397 = vmatprep.mubr.f32.mxu0 %v8396
        %v8398 = vand.u32 %v315, 4294901760
        %8399 = vmatmul.mubr.f32.gmra.mrb[0].mxu0 %v8398
        %v8400 = vpop.f32.mrb[0].mxu0
        %v8401 = vadd.f32 %v7647, %v8400
        %v8402 = vpop.f32.mrb[0].mxu0
        %v8403 = vand.u32 %v320, 4294901760
        %8404 = vmatprep.mubr.f32.mxu0 %v8403
        %v8405 = vand.u32 %v319, 4294901760
        %8406 = vmatmul.mubr.f32.gmra.mrb[0].mxu0 %v8405
        %v8407 = vpop.f32.mrb[0].mxu0
        %v8408 = vadd.f32 %v7658, %v8407
        %v8409 = vpop.f32.mrb[0].mxu0
        %v8410 = vand.u32 %v324, 4294901760
        %8411 = vmatprep.mubr.f32.mxu0 %v8410
        %v8412 = vand.u32 %v323, 4294901760
        %8413 = vmatmul.mubr.f32.gmra.mrb[0].mxu0 %v8412
        %v8414 = vpop.f32.mrb[0].mxu0
        %v8415 = vadd.f32 %v7669, %v8414
        %v8416 = vpop.f32.mrb[0].mxu0
        %v8417 = vand.u32 %v328, 4294901760
        %8418 = vmatprep.mubr.f32.mxu0 %v8417
        %v8419 = vand.u32 %v327, 4294901760
        %8420 = vmatmul.mubr.f32.gmra.mrb[0].mxu0 %v8419
        %v8421 = vpop.f32.mrb[0].mxu0
        %v8422 = vadd.f32 %v7680, %v8421
        %v8423 = vpop.f32.mrb[0].mxu0
        %v8424 = vand.u32 %v332, 4294901760
        %8425 = vmatprep.mubr.f32.mxu0 %v8424
        %v8426 = vand.u32 %v331, 4294901760
        %8427 = vmatmul.mubr.f32.gmra.mrb[0].mxu0 %v8426
        %v8428 = vpop.f32.mrb[0].mxu0
        %v8429 = vadd.f32 %v7691, %v8428
        %v8430 = vpop.f32.mrb[0].mxu0
        %v8431 = vand.u32 %v336, 4294901760
        %8432 = vmatprep.mubr.f32.mxu0 %v8431
        %v8433 = vand.u32 %v335, 4294901760
        %8434 = vmatmul.mubr.f32.gmra.mrb[0].mxu0 %v8433
        %v8435 = vpop.f32.mrb[0].mxu0
        %v8436 = vadd.f32 %v7702, %v8435
        %v8437 = vpop.f32.mrb[0].mxu0
        %v8438 = vand.u32 %v340, 4294901760
        %8439 = vmatprep.mubr.f32.mxu0 %v8438
        %v8440 = vand.u32 %v339, 4294901760
        %8441 = vmatmul.mubr.f32.gmra.mrb[0].mxu0 %v8440
        %v8442 = vpop.f32.mrb[0].mxu0
        %v8443 = vadd.f32 %v7713, %v8442
        %v8444 = vpop.f32.mrb[0].mxu0
        %v8445 = vand.u32 %v344, 4294901760
        %8446 = vmatprep.mubr.f32.mxu0 %v8445
        %v8447 = vand.u32 %v343, 4294901760
        %8448 = vmatmul.mubr.f32.gmra.mrb[0].mxu0 %v8447
        %v8449 = vpop.f32.mrb[0].mxu0
        %v8450 = vadd.f32 %v7724, %v8449
        %v8451 = vpop.f32.mrb[0].mxu0
        %v8452 = vand.u32 %v348, 4294901760
        %8453 = vmatprep.mubr.f32.mxu0 %v8452
        %v8454 = vand.u32 %v347, 4294901760
        %8455 = vmatmul.mubr.f32.gmra.mrb[0].mxu0 %v8454
        %v8456 = vpop.f32.mrb[0].mxu0
        %v8457 = vadd.f32 %v7735, %v8456
        %v8458 = vpop.f32.mrb[0].mxu0
        %v8459 = vand.u32 %v352, 4294901760
        %8460 = vmatprep.mubr.f32.mxu0 %v8459
        %v8461 = vand.u32 %v351, 4294901760
        %8462 = vmatmul.mubr.f32.gmra.mrb[0].mxu0 %v8461
        %v8463 = vpop.f32.mrb[0].mxu0
        %v8464 = vadd.f32 %v7746, %v8463
        %v8465 = vpop.f32.mrb[0].mxu0
        %v8466 = vand.u32 %v356, 4294901760
        %8467 = vmatprep.mubr.f32.mxu0 %v8466
        %v8468 = vand.u32 %v355, 4294901760
        %8469 = vmatmul.mubr.f32.gmra.mrb[0].mxu0 %v8468
        %v8470 = vpop.f32.mrb[0].mxu0
        %v8471 = vadd.f32 %v7757, %v8470
        %v8472 = vpop.f32.mrb[0].mxu0
        %v8473 = vand.u32 %v360, 4294901760
        %8474 = vmatprep.mubr.f32.mxu0 %v8473
        %v8475 = vand.u32 %v359, 4294901760
        %8476 = vmatmul.mubr.f32.gmra.mrb[0].mxu0 %v8475
        %v8477 = vpop.f32.mrb[0].mxu0
        %v8478 = vadd.f32 %v7768, %v8477
        %v8479 = vpop.f32.mrb[0].mxu0
        %v8480 = vand.u32 %v364, 4294901760
        %8481 = vmatprep.mubr.f32.mxu0 %v8480
        %v8482 = vand.u32 %v363, 4294901760
        %8483 = vmatmul.mubr.f32.gmra.mrb[0].mxu0 %v8482
        %v8484 = vpop.f32.mrb[0].mxu0
        %v8485 = vadd.f32 %v7779, %v8484
        %v8486 = vpop.f32.mrb[0].mxu0
        %v8487 = vand.u32 %v368, 4294901760
        %8488 = vmatprep.mubr.f32.mxu0 %v8487
        %v8489 = vand.u32 %v367, 4294901760
        %8490 = vmatmul.mubr.f32.gmra.mrb[0].mxu0 %v8489
        %v8491 = vpop.f32.mrb[0].mxu0
        %v8492 = vadd.f32 %v7790, %v8491
        %v8493 = vpop.f32.mrb[0].mxu0
        %v8494 = vand.u32 %v372, 4294901760
        %8495 = vmatprep.mubr.f32.mxu0 %v8494
        %v8496 = vand.u32 %v371, 4294901760
        %8497 = vmatmul.mubr.f32.gmra.mrb[0].mxu0 %v8496
        %v8498 = vpop.f32.mrb[0].mxu0
        %v8499 = vadd.f32 %v7801, %v8498
        %v8500 = vpop.f32.mrb[0].mxu0
        %v8501 = vand.u32 %v376, 4294901760
        %8502 = vmatprep.mubr.f32.mxu0 %v8501
        %v8503 = vand.u32 %v375, 4294901760
        %8504 = vmatmul.mubr.f32.gmra.mrb[0].mxu0 %v8503
        %v8505 = vpop.f32.mrb[0].mxu0
        %v8506 = vadd.f32 %v7812, %v8505
        %v8507 = vpop.f32.mrb[0].mxu0
        %v8508 = vand.u32 %v380, 4294901760
        %8509 = vmatprep.mubr.f32.mxu0 %v8508
        %v8510 = vand.u32 %v379, 4294901760
        %8511 = vmatmul.mubr.f32.gmra.mrb[0].mxu0 %v8510
        %v8512 = vpop.f32.mrb[0].mxu0
        %v8513 = vadd.f32 %v7823, %v8512
        %v8514 = vpop.f32.mrb[0].mxu0
        %v8515 = vand.u32 %v384, 4294901760
        %8516 = vmatprep.mubr.f32.mxu0 %v8515
        %v8517 = vand.u32 %v383, 4294901760
        %8518 = vmatmul.mubr.f32.gmra.mrb[0].mxu0 %v8517
        %v8519 = vpop.f32.mrb[0].mxu0
        %v8520 = vadd.f32 %v7834, %v8519
        %v8521 = vpop.f32.mrb[0].mxu0
        %v8522 = vand.u32 %v388, 4294901760
        %8523 = vmatprep.mubr.f32.mxu0 %v8522
        %v8524 = vand.u32 %v387, 4294901760
        %8525 = vmatmul.mubr.f32.gmra.mrb[0].mxu0 %v8524
        %v8526 = vpop.f32.mrb[0].mxu0
        %v8527 = vadd.f32 %v7845, %v8526
        %v8528 = vpop.f32.mrb[0].mxu0
        %v8529 = vand.u32 %v392, 4294901760
        %8530 = vmatprep.mubr.f32.mxu0 %v8529
        %v8531 = vand.u32 %v391, 4294901760
        %8532 = vmatmul.mubr.f32.gmra.mrb[0].mxu0 %v8531
        %v8533 = vpop.f32.mrb[0].mxu0
        %v8534 = vadd.f32 %v7856, %v8533
        %v8535 = vpop.f32.mrb[0].mxu0
        %v8536 = vand.u32 %v396, 4294901760
        %8537 = vmatprep.mubr.f32.mxu0 %v8536
        %v8538 = vand.u32 %v395, 4294901760
        %8539 = vmatmul.mubr.f32.gmra.mrb[0].mxu0 %v8538
        %v8540 = vpop.f32.mrb[0].mxu0
        %v8541 = vadd.f32 %v7867, %v8540
        %v8542 = vpop.f32.mrb[0].mxu0
        %v8543 = vand.u32 %v400, 4294901760
        %8544 = vmatprep.mubr.f32.mxu0 %v8543
        %v8545 = vand.u32 %v399, 4294901760
        %8546 = vmatmul.mubr.f32.gmra.mrb[0].mxu0 %v8545
        %v8547 = vpop.f32.mrb[0].mxu0
        %v8548 = vadd.f32 %v7878, %v8547
        %v8549 = vpop.f32.mrb[0].mxu0
        %v8550 = vand.u32 %v404, 4294901760
        %8551 = vmatprep.mubr.f32.mxu0 %v8550
        %v8552 = vand.u32 %v403, 4294901760
        %8553 = vmatmul.mubr.f32.gmra.mrb[0].mxu0 %v8552
        %v8554 = vpop.f32.mrb[0].mxu0
        %v8555 = vadd.f32 %v7889, %v8554
        %v8556 = vpop.f32.mrb[0].mxu0
        %v8557 = vand.u32 %v408, 4294901760
        %8558 = vmatprep.mubr.f32.mxu0 %v8557
        %v8559 = vand.u32 %v407, 4294901760
        %8560 = vmatmul.mubr.f32.gmra.mrb[0].mxu0 %v8559
        %v8561 = vpop.f32.mrb[0].mxu0
        %v8562 = vadd.f32 %v7900, %v8561
        %v8563 = vpop.f32.mrb[0].mxu0
        %v8564 = vand.u32 %v412, 4294901760
        %8565 = vmatprep.mubr.f32.mxu0 %v8564
        %v8566 = vand.u32 %v411, 4294901760
        %8567 = vmatmul.mubr.f32.gmra.mrb[0].mxu0 %v8566
        %v8568 = vpop.f32.mrb[0].mxu0
        %v8569 = vadd.f32 %v7911, %v8568
        %v8570 = vpop.f32.mrb[0].mxu0
        %v8571 = vand.u32 %v416, 4294901760
        %8572 = vmatprep.mubr.f32.mxu0 %v8571
        %v8573 = vand.u32 %v415, 4294901760
        %8574 = vmatmul.mubr.f32.gmra.mrb[0].mxu0 %v8573
        %v8575 = vpop.f32.mrb[0].mxu0
        %v8576 = vadd.f32 %v7922, %v8575
        %v8577 = vpop.f32.mrb[0].mxu0
        %v8578 = vand.u32 %v420, 4294901760
        %8579 = vmatprep.mubr.f32.mxu0 %v8578
        %v8580 = vand.u32 %v419, 4294901760
        %8581 = vmatmul.mubr.f32.gmra.mrb[0].mxu0 %v8580
        %v8582 = vpop.f32.mrb[0].mxu0
        %v8583 = vadd.f32 %v7933, %v8582
        %v8584 = vpop.f32.mrb[0].mxu0
        %v8585 = vand.u32 %v424, 4294901760
        %8586 = vmatprep.mubr.f32.mxu0 %v8585
        %v8587 = vand.u32 %v423, 4294901760
        %8588 = vmatmul.mubr.f32.gmra.mrb[0].mxu0 %v8587
        %v8589 = vpop.f32.mrb[0].mxu0
        %v8590 = vadd.f32 %v7944, %v8589
        %v8591 = vpop.f32.mrb[0].mxu0
        %v8592 = vand.u32 %v428, 4294901760
        %8593 = vmatprep.mubr.f32.mxu0 %v8592
        %v8594 = vand.u32 %v427, 4294901760
        %8595 = vmatmul.mubr.f32.gmra.mrb[0].mxu0 %v8594
        %v8596 = vpop.f32.mrb[0].mxu0
        %v8597 = vadd.f32 %v7955, %v8596
        %v8598 = vpop.f32.mrb[0].mxu0
        %v8599 = vand.u32 %v432, 4294901760
        %8600 = vmatprep.mubr.f32.mxu0 %v8599
        %v8601 = vand.u32 %v431, 4294901760
        %8602 = vmatmul.mubr.f32.gmra.mrb[0].mxu0 %v8601
        %v8603 = vpop.f32.mrb[0].mxu0
        %v8604 = vadd.f32 %v7966, %v8603
        %v8605 = vpop.f32.mrb[0].mxu0
        %v8606 = vand.u32 %v436, 4294901760
        %8607 = vmatprep.mubr.f32.mxu0 %v8606
        %v8608 = vand.u32 %v435, 4294901760
        %8609 = vmatmul.mubr.f32.gmra.mrb[0].mxu0 %v8608
        %v8610 = vpop.f32.mrb[0].mxu0
        %v8611 = vadd.f32 %v7977, %v8610
        %v8612 = vpop.f32.mrb[0].mxu0
        %v8613 = vand.u32 %v440, 4294901760
        %8614 = vmatprep.mubr.f32.mxu0 %v8613
        %v8615 = vand.u32 %v439, 4294901760
        %8616 = vmatmul.mubr.f32.gmra.mrb[0].mxu0 %v8615
        %v8617 = vpop.f32.mrb[0].mxu0
        %v8618 = vadd.f32 %v7988, %v8617
        %v8619 = vpop.f32.mrb[0].mxu0
        %v8620 = vand.u32 %v444, 4294901760
        %8621 = vmatprep.mubr.f32.mxu0 %v8620
        %v8622 = vand.u32 %v443, 4294901760
        %8623 = vmatmul.mubr.f32.gmra.mrb[0].mxu0 %v8622
        %v8624 = vpop.f32.mrb[0].mxu0
        %v8625 = vadd.f32 %v7999, %v8624
        %v8626 = vpop.f32.mrb[0].mxu0
        %v8627 = vand.u32 %v448, 4294901760
        %8628 = vmatprep.mubr.f32.mxu0 %v8627
        %v8629 = vand.u32 %v447, 4294901760
        %8630 = vmatmul.mubr.f32.gmra.mrb[0].mxu0 %v8629
        %v8631 = vpop.f32.mrb[0].mxu0
        %v8632 = vadd.f32 %v8010, %v8631
        %v8633 = vpop.f32.mrb[0].mxu0
        %v8634 = vand.u32 %v452, 4294901760
        %8635 = vmatprep.mubr.f32.mxu0 %v8634
        %v8636 = vand.u32 %v451, 4294901760
        %8637 = vmatmul.mubr.f32.gmra.mrb[0].mxu0 %v8636
        %v8638 = vpop.f32.mrb[0].mxu0
        %v8639 = vadd.f32 %v8021, %v8638
        %v8640 = vpop.f32.mrb[0].mxu0
        %v8641 = vand.u32 %v456, 4294901760
        %8642 = vmatprep.mubr.f32.mxu0 %v8641
        %v8643 = vand.u32 %v455, 4294901760
        %8644 = vmatmul.mubr.f32.gmra.mrb[0].mxu0 %v8643
        %v8645 = vpop.f32.mrb[0].mxu0
        %v8646 = vadd.f32 %v8032, %v8645
        %v8647 = vpop.f32.mrb[0].mxu0
        %v8648 = vand.u32 %v460, 4294901760
        %8649 = vmatprep.mubr.f32.mxu0 %v8648
        %v8650 = vand.u32 %v459, 4294901760
        %8651 = vmatmul.mubr.f32.gmra.mrb[0].mxu0 %v8650
        %v8652 = vpop.f32.mrb[0].mxu0
        %v8653 = vadd.f32 %v8043, %v8652
        %v8654 = vpop.f32.mrb[0].mxu0
        %v8655 = vand.u32 %v464, 4294901760
        %8656 = vmatprep.mubr.f32.mxu0 %v8655
        %v8657 = vand.u32 %v463, 4294901760
        %8658 = vmatmul.mubr.f32.gmra.mrb[0].mxu0 %v8657
        %v8659 = vpop.f32.mrb[0].mxu0
        %v8660 = vadd.f32 %v8054, %v8659
        %v8661 = vpop.f32.mrb[0].mxu0
        %v8662 = vand.u32 %v468, 4294901760
        %8663 = vmatprep.mubr.f32.mxu0 %v8662
        %v8664 = vand.u32 %v467, 4294901760
        %8665 = vmatmul.mubr.f32.gmra.mrb[0].mxu0 %v8664
        %v8666 = vpop.f32.mrb[0].mxu0
        %v8667 = vadd.f32 %v8065, %v8666
        %v8668 = vpop.f32.mrb[0].mxu0
        %8669 = vdwg.mxu0
        %8670 = vmatprep.subr.mxu0 0.0
        %v8671 = vand.u32 %v501, 4294901760
        %8672 = vmatpush1.msra.mxu0 %v8671
        %8673 = vmatprep.subr.mxu0 0.0
        %v8674 = vand.u32 %v502, 4294901760
        %8675 = vmatpush1.msra.mxu0 %v8674
        %8676 = vmatprep.subr.mxu0 0.0
        %v8677 = vand.u32 %v503, 4294901760
        %8678 = vmatpush1.msra.mxu0 %v8677
        %8679 = vmatprep.subr.mxu0 0.0
        %v8680 = vand.u32 %v504, 4294901760
        %8681 = vmatpush1.msra.mxu0 %v8680
        %8682 = vmatprep.subr.mxu0 0.0
        %v8683 = vand.u32 %v505, 4294901760
        %8684 = vmatpush1.msra.mxu0 %v8683
        %8685 = vmatprep.subr.mxu0 0.0
        %v8686 = vand.u32 %v506, 4294901760
        %8687 = vmatpush1.msra.mxu0 %v8686
        %8688 = vmatprep.subr.mxu0 0.0
        %v8689 = vand.u32 %v507, 4294901760
        %8690 = vmatpush1.msra.mxu0 %v8689
        %8691 = vmatprep.subr.mxu0 0.0
        %v8692 = vand.u32 %v508, 4294901760
        %8693 = vmatpush1.msra.mxu0 %v8692
        %8694 = vmatprep.subr.mxu0 0.0
        %v8695 = vand.u32 %v509, 4294901760
        %8696 = vmatpush1.msra.mxu0 %v8695
        %8697 = vmatprep.subr.mxu0 0.0
        %v8698 = vand.u32 %v510, 4294901760
        %8699 = vmatpush1.msra.mxu0 %v8698
        %8700 = vmatprep.subr.mxu0 0.0
        %v8701 = vand.u32 %v511, 4294901760
        %8702 = vmatpush1.msra.mxu0 %v8701
        %8703 = vmatprep.subr.mxu0 0.0
        %v8704 = vand.u32 %v512, 4294901760
        %8705 = vmatpush1.msra.mxu0 %v8704
        %8706 = vmatprep.subr.mxu0 0.0
        %v8707 = vand.u32 %v513, 4294901760
        %8708 = vmatpush1.msra.mxu0 %v8707
        %8709 = vmatprep.subr.mxu0 0.0
        %v8710 = vand.u32 %v514, 4294901760
        %8711 = vmatpush1.msra.mxu0 %v8710
        %8712 = vmatprep.subr.mxu0 0.0
        %v8713 = vand.u32 %v515, 4294901760
        %8714 = vmatpush1.msra.mxu0 %v8713
        %8715 = vmatprep.subr.mxu0 0.0
        %v8716 = vand.u32 %v516, 4294901760
        %8717 = vmatpush1.msra.mxu0 %v8716
        %8718 = vmatprep.subr.mxu0 0.0
        %v8719 = vand.u32 %v517, 4294901760
        %8720 = vmatpush1.msra.mxu0 %v8719
        %8721 = vmatprep.subr.mxu0 0.0
        %v8722 = vand.u32 %v518, 4294901760
        %8723 = vmatpush1.msra.mxu0 %v8722
        %8724 = vmatprep.subr.mxu0 0.0
        %v8725 = vand.u32 %v519, 4294901760
        %8726 = vmatpush1.msra.mxu0 %v8725
        %8727 = vmatprep.subr.mxu0 0.0
        %v8728 = vand.u32 %v520, 4294901760
        %8729 = vmatpush1.msra.mxu0 %v8728
        %8730 = vmatprep.subr.mxu0 0.0
        %v8731 = vand.u32 %v521, 4294901760
        %8732 = vmatpush1.msra.mxu0 %v8731
        %8733 = vmatprep.subr.mxu0 0.0
        %v8734 = vand.u32 %v522, 4294901760
        %8735 = vmatpush1.msra.mxu0 %v8734
        %8736 = vmatprep.subr.mxu0 0.0
        %v8737 = vand.u32 %v523, 4294901760
        %8738 = vmatpush1.msra.mxu0 %v8737
        %8739 = vmatprep.subr.mxu0 0.0
        %v8740 = vand.u32 %v524, 4294901760
        %8741 = vmatpush1.msra.mxu0 %v8740
        %8742 = vmatprep.subr.mxu0 0.0
        %v8743 = vand.u32 %v525, 4294901760
        %8744 = vmatpush1.msra.mxu0 %v8743
        %8745 = vmatprep.subr.mxu0 0.0
        %v8746 = vand.u32 %v526, 4294901760
        %8747 = vmatpush1.msra.mxu0 %v8746
        %8748 = vmatprep.subr.mxu0 0.0
        %v8749 = vand.u32 %v527, 4294901760
        %8750 = vmatpush1.msra.mxu0 %v8749
        %8751 = vmatprep.subr.mxu0 0.0
        %v8752 = vand.u32 %v528, 4294901760
        %8753 = vmatpush1.msra.mxu0 %v8752
        %8754 = vmatprep.subr.mxu0 0.0
        %v8755 = vand.u32 %v529, 4294901760
        %8756 = vmatpush1.msra.mxu0 %v8755
        %8757 = vmatprep.subr.mxu0 0.0
        %v8758 = vand.u32 %v530, 4294901760
        %8759 = vmatpush1.msra.mxu0 %v8758
        %8760 = vmatprep.subr.mxu0 0.0
        %v8761 = vand.u32 %v531, 4294901760
        %8762 = vmatpush1.msra.mxu0 %v8761
        %8763 = vmatprep.subr.mxu0 0.0
        %v8764 = vand.u32 %v532, 4294901760
        %8765 = vmatpush1.msra.mxu0 %v8764
        %v8766 = vand.u32 %v220, 4294901760
        %8767 = vmatprep.mubr.f32.mxu0 %v8766
        %v8768 = vand.u32 %v219, 4294901760
        %8769 = vmatmul.mubr.f32.gmra.mrb[0].mxu0 %v8768
        %v8770 = vpop.f32.mrb[0].mxu0
        %v8771 = vadd.f32 %v8233, %v8770
        %v8772 = vpop.f32.mrb[0].mxu0
        %v8773 = vand.u32 %v224, 4294901760
        %8774 = vmatprep.mubr.f32.mxu0 %v8773
        %v8775 = vand.u32 %v223, 4294901760
        %8776 = vmatmul.mubr.f32.gmra.mrb[0].mxu0 %v8775
        %v8777 = vpop.f32.mrb[0].mxu0
        %v8778 = vadd.f32 %v8240, %v8777
        %v8779 = vpop.f32.mrb[0].mxu0
        %v8780 = vand.u32 %v228, 4294901760
        %8781 = vmatprep.mubr.f32.mxu0 %v8780
        %v8782 = vand.u32 %v227, 4294901760
        %8783 = vmatmul.mubr.f32.gmra.mrb[0].mxu0 %v8782
        %v8784 = vpop.f32.mrb[0].mxu0
        %v8785 = vadd.f32 %v8247, %v8784
        %v8786 = vpop.f32.mrb[0].mxu0
        %v8787 = vand.u32 %v232, 4294901760
        %8788 = vmatprep.mubr.f32.mxu0 %v8787
        %v8789 = vand.u32 %v231, 4294901760
        %8790 = vmatmul.mubr.f32.gmra.mrb[0].mxu0 %v8789
        %v8791 = vpop.f32.mrb[0].mxu0
        %v8792 = vadd.f32 %v8254, %v8791
        %v8793 = vpop.f32.mrb[0].mxu0
        %v8794 = vand.u32 %v236, 4294901760
        %8795 = vmatprep.mubr.f32.mxu0 %v8794
        %v8796 = vand.u32 %v235, 4294901760
        %8797 = vmatmul.mubr.f32.gmra.mrb[0].mxu0 %v8796
        %v8798 = vpop.f32.mrb[0].mxu0
        %v8799 = vadd.f32 %v8261, %v8798
        %v8800 = vpop.f32.mrb[0].mxu0
        %v8801 = vand.u32 %v240, 4294901760
        %8802 = vmatprep.mubr.f32.mxu0 %v8801
        %v8803 = vand.u32 %v239, 4294901760
        %8804 = vmatmul.mubr.f32.gmra.mrb[0].mxu0 %v8803
        %v8805 = vpop.f32.mrb[0].mxu0
        %v8806 = vadd.f32 %v8268, %v8805
        %v8807 = vpop.f32.mrb[0].mxu0
        %v8808 = vand.u32 %v244, 4294901760
        %8809 = vmatprep.mubr.f32.mxu0 %v8808
        %v8810 = vand.u32 %v243, 4294901760
        %8811 = vmatmul.mubr.f32.gmra.mrb[0].mxu0 %v8810
        %v8812 = vpop.f32.mrb[0].mxu0
        %v8813 = vadd.f32 %v8275, %v8812
        %v8814 = vpop.f32.mrb[0].mxu0
        %v8815 = vand.u32 %v248, 4294901760
        %8816 = vmatprep.mubr.f32.mxu0 %v8815
        %v8817 = vand.u32 %v247, 4294901760
        %8818 = vmatmul.mubr.f32.gmra.mrb[0].mxu0 %v8817
        %v8819 = vpop.f32.mrb[0].mxu0
        %v8820 = vadd.f32 %v8282, %v8819
        %v8821 = vpop.f32.mrb[0].mxu0
        %v8822 = vand.u32 %v252, 4294901760
        %8823 = vmatprep.mubr.f32.mxu0 %v8822
        %v8824 = vand.u32 %v251, 4294901760
        %8825 = vmatmul.mubr.f32.gmra.mrb[0].mxu0 %v8824
        %v8826 = vpop.f32.mrb[0].mxu0
        %v8827 = vadd.f32 %v8289, %v8826
        %v8828 = vpop.f32.mrb[0].mxu0
        %v8829 = vand.u32 %v256, 4294901760
        %8830 = vmatprep.mubr.f32.mxu0 %v8829
        %v8831 = vand.u32 %v255, 4294901760
        %8832 = vmatmul.mubr.f32.gmra.mrb[0].mxu0 %v8831
        %v8833 = vpop.f32.mrb[0].mxu0
        %v8834 = vadd.f32 %v8296, %v8833
        %v8835 = vpop.f32.mrb[0].mxu0
        %v8836 = vand.u32 %v260, 4294901760
        %8837 = vmatprep.mubr.f32.mxu0 %v8836
        %v8838 = vand.u32 %v259, 4294901760
        %8839 = vmatmul.mubr.f32.gmra.mrb[0].mxu0 %v8838
        %v8840 = vpop.f32.mrb[0].mxu0
        %v8841 = vadd.f32 %v8303, %v8840
        %v8842 = vpop.f32.mrb[0].mxu0
        %v8843 = vand.u32 %v264, 4294901760
        %8844 = vmatprep.mubr.f32.mxu0 %v8843
        %v8845 = vand.u32 %v263, 4294901760
        %8846 = vmatmul.mubr.f32.gmra.mrb[0].mxu0 %v8845
        %v8847 = vpop.f32.mrb[0].mxu0
        %v8848 = vadd.f32 %v8310, %v8847
        %v8849 = vpop.f32.mrb[0].mxu0
        %v8850 = vand.u32 %v268, 4294901760
        %8851 = vmatprep.mubr.f32.mxu0 %v8850
        %v8852 = vand.u32 %v267, 4294901760
        %8853 = vmatmul.mubr.f32.gmra.mrb[0].mxu0 %v8852
        %v8854 = vpop.f32.mrb[0].mxu0
        %v8855 = vadd.f32 %v8317, %v8854
        %v8856 = vpop.f32.mrb[0].mxu0
        %v8857 = vand.u32 %v272, 4294901760
        %8858 = vmatprep.mubr.f32.mxu0 %v8857
        %v8859 = vand.u32 %v271, 4294901760
        %8860 = vmatmul.mubr.f32.gmra.mrb[0].mxu0 %v8859
        %v8861 = vpop.f32.mrb[0].mxu0
        %v8862 = vadd.f32 %v8324, %v8861
        %v8863 = vpop.f32.mrb[0].mxu0
        %v8864 = vand.u32 %v276, 4294901760
        %8865 = vmatprep.mubr.f32.mxu0 %v8864
        %v8866 = vand.u32 %v275, 4294901760
        %8867 = vmatmul.mubr.f32.gmra.mrb[0].mxu0 %v8866
        %v8868 = vpop.f32.mrb[0].mxu0
        %v8869 = vadd.f32 %v8331, %v8868
        %v8870 = vpop.f32.mrb[0].mxu0
        %v8871 = vand.u32 %v280, 4294901760
        %8872 = vmatprep.mubr.f32.mxu0 %v8871
        %v8873 = vand.u32 %v279, 4294901760
        %8874 = vmatmul.mubr.f32.gmra.mrb[0].mxu0 %v8873
        %v8875 = vpop.f32.mrb[0].mxu0
        %v8876 = vadd.f32 %v8338, %v8875
        %v8877 = vpop.f32.mrb[0].mxu0
        %v8878 = vand.u32 %v284, 4294901760
        %8879 = vmatprep.mubr.f32.mxu0 %v8878
        %v8880 = vand.u32 %v283, 4294901760
        %8881 = vmatmul.mubr.f32.gmra.mrb[0].mxu0 %v8880
        %v8882 = vpop.f32.mrb[0].mxu0
        %v8883 = vadd.f32 %v8345, %v8882
        %v8884 = vpop.f32.mrb[0].mxu0
        %v8885 = vand.u32 %v288, 4294901760
        %8886 = vmatprep.mubr.f32.mxu0 %v8885
        %v8887 = vand.u32 %v287, 4294901760
        %8888 = vmatmul.mubr.f32.gmra.mrb[0].mxu0 %v8887
        %v8889 = vpop.f32.mrb[0].mxu0
        %v8890 = vadd.f32 %v8352, %v8889
        %v8891 = vpop.f32.mrb[0].mxu0
        %v8892 = vand.u32 %v292, 4294901760
        %8893 = vmatprep.mubr.f32.mxu0 %v8892
        %v8894 = vand.u32 %v291, 4294901760
        %8895 = vmatmul.mubr.f32.gmra.mrb[0].mxu0 %v8894
        %v8896 = vpop.f32.mrb[0].mxu0
        %v8897 = vadd.f32 %v8359, %v8896
        %v8898 = vpop.f32.mrb[0].mxu0
        %v8899 = vand.u32 %v296, 4294901760
        %8900 = vmatprep.mubr.f32.mxu0 %v8899
        %v8901 = vand.u32 %v295, 4294901760
        %8902 = vmatmul.mubr.f32.gmra.mrb[0].mxu0 %v8901
        %v8903 = vpop.f32.mrb[0].mxu0
        %v8904 = vadd.f32 %v8366, %v8903
        %v8905 = vpop.f32.mrb[0].mxu0
        %v8906 = vand.u32 %v300, 4294901760
        %8907 = vmatprep.mubr.f32.mxu0 %v8906
        %v8908 = vand.u32 %v299, 4294901760
        %8909 = vmatmul.mubr.f32.gmra.mrb[0].mxu0 %v8908
        %v8910 = vpop.f32.mrb[0].mxu0
        %v8911 = vadd.f32 %v8373, %v8910
        %v8912 = vpop.f32.mrb[0].mxu0
        %v8913 = vand.u32 %v304, 4294901760
        %8914 = vmatprep.mubr.f32.mxu0 %v8913
        %v8915 = vand.u32 %v303, 4294901760
        %8916 = vmatmul.mubr.f32.gmra.mrb[0].mxu0 %v8915
        %v8917 = vpop.f32.mrb[0].mxu0
        %v8918 = vadd.f32 %v8380, %v8917
        %v8919 = vpop.f32.mrb[0].mxu0
        %v8920 = vand.u32 %v308, 4294901760
        %8921 = vmatprep.mubr.f32.mxu0 %v8920
        %v8922 = vand.u32 %v307, 4294901760
        %8923 = vmatmul.mubr.f32.gmra.mrb[0].mxu0 %v8922
        %v8924 = vpop.f32.mrb[0].mxu0
        %v8925 = vadd.f32 %v8387, %v8924
        %v8926 = vpop.f32.mrb[0].mxu0
        %v8927 = vand.u32 %v312, 4294901760
        %8928 = vmatprep.mubr.f32.mxu0 %v8927
        %v8929 = vand.u32 %v311, 4294901760
        %8930 = vmatmul.mubr.f32.gmra.mrb[0].mxu0 %v8929
        %v8931 = vpop.f32.mrb[0].mxu0
        %v8932 = vadd.f32 %v8394, %v8931
        %v8933 = vpop.f32.mrb[0].mxu0
        %v8934 = vand.u32 %v316, 4294901760
        %8935 = vmatprep.mubr.f32.mxu0 %v8934
        %v8936 = vand.u32 %v315, 4294901760
        %8937 = vmatmul.mubr.f32.gmra.mrb[0].mxu0 %v8936
        %v8938 = vpop.f32.mrb[0].mxu0
        %v8939 = vadd.f32 %v8401, %v8938
        %v8940 = vpop.f32.mrb[0].mxu0
        %v8941 = vand.u32 %v320, 4294901760
        %8942 = vmatprep.mubr.f32.mxu0 %v8941
        %v8943 = vand.u32 %v319, 4294901760
        %8944 = vmatmul.mubr.f32.gmra.mrb[0].mxu0 %v8943
        %v8945 = vpop.f32.mrb[0].mxu0
        %v8946 = vadd.f32 %v8408, %v8945
        %v8947 = vpop.f32.mrb[0].mxu0
        %v8948 = vand.u32 %v324, 4294901760
        %8949 = vmatprep.mubr.f32.mxu0 %v8948
        %v8950 = vand.u32 %v323, 4294901760
        %8951 = vmatmul.mubr.f32.gmra.mrb[0].mxu0 %v8950
        %v8952 = vpop.f32.mrb[0].mxu0
        %v8953 = vadd.f32 %v8415, %v8952
        %v8954 = vpop.f32.mrb[0].mxu0
        %v8955 = vand.u32 %v328, 4294901760
        %8956 = vmatprep.mubr.f32.mxu0 %v8955
        %v8957 = vand.u32 %v327, 4294901760
        %8958 = vmatmul.mubr.f32.gmra.mrb[0].mxu0 %v8957
        %v8959 = vpop.f32.mrb[0].mxu0
        %v8960 = vadd.f32 %v8422, %v8959
        %v8961 = vpop.f32.mrb[0].mxu0
        %v8962 = vand.u32 %v332, 4294901760
        %8963 = vmatprep.mubr.f32.mxu0 %v8962
        %v8964 = vand.u32 %v331, 4294901760
        %8965 = vmatmul.mubr.f32.gmra.mrb[0].mxu0 %v8964
        %v8966 = vpop.f32.mrb[0].mxu0
        %v8967 = vadd.f32 %v8429, %v8966
        %v8968 = vpop.f32.mrb[0].mxu0
        %v8969 = vand.u32 %v336, 4294901760
        %8970 = vmatprep.mubr.f32.mxu0 %v8969
        %v8971 = vand.u32 %v335, 4294901760
        %8972 = vmatmul.mubr.f32.gmra.mrb[0].mxu0 %v8971
        %v8973 = vpop.f32.mrb[0].mxu0
        %v8974 = vadd.f32 %v8436, %v8973
        %v8975 = vpop.f32.mrb[0].mxu0
        %v8976 = vand.u32 %v340, 4294901760
        %8977 = vmatprep.mubr.f32.mxu0 %v8976
        %v8978 = vand.u32 %v339, 4294901760
        %8979 = vmatmul.mubr.f32.gmra.mrb[0].mxu0 %v8978
        %v8980 = vpop.f32.mrb[0].mxu0
        %v8981 = vadd.f32 %v8443, %v8980
        %v8982 = vpop.f32.mrb[0].mxu0
        %v8983 = vand.u32 %v344, 4294901760
        %8984 = vmatprep.mubr.f32.mxu0 %v8983
        %v8985 = vand.u32 %v343, 4294901760
        %8986 = vmatmul.mubr.f32.gmra.mrb[0].mxu0 %v8985
        %v8987 = vpop.f32.mrb[0].mxu0
        %v8988 = vadd.f32 %v8450, %v8987
        %v8989 = vpop.f32.mrb[0].mxu0
        %v8990 = vand.u32 %v348, 4294901760
        %8991 = vmatprep.mubr.f32.mxu0 %v8990
        %v8992 = vand.u32 %v347, 4294901760
        %8993 = vmatmul.mubr.f32.gmra.mrb[0].mxu0 %v8992
        %v8994 = vpop.f32.mrb[0].mxu0
        %v8995 = vadd.f32 %v8457, %v8994
        %v8996 = vpop.f32.mrb[0].mxu0
        %v8997 = vand.u32 %v352, 4294901760
        %8998 = vmatprep.mubr.f32.mxu0 %v8997
        %v8999 = vand.u32 %v351, 4294901760
        %9000 = vmatmul.mubr.f32.gmra.mrb[0].mxu0 %v8999
        %v9001 = vpop.f32.mrb[0].mxu0
        %v9002 = vadd.f32 %v8464, %v9001
        %v9003 = vpop.f32.mrb[0].mxu0
        %v9004 = vand.u32 %v356, 4294901760
        %9005 = vmatprep.mubr.f32.mxu0 %v9004
        %v9006 = vand.u32 %v355, 4294901760
        %9007 = vmatmul.mubr.f32.gmra.mrb[0].mxu0 %v9006
        %v9008 = vpop.f32.mrb[0].mxu0
        %v9009 = vadd.f32 %v8471, %v9008
        %v9010 = vpop.f32.mrb[0].mxu0
        %v9011 = vand.u32 %v360, 4294901760
        %9012 = vmatprep.mubr.f32.mxu0 %v9011
        %v9013 = vand.u32 %v359, 4294901760
        %9014 = vmatmul.mubr.f32.gmra.mrb[0].mxu0 %v9013
        %v9015 = vpop.f32.mrb[0].mxu0
        %v9016 = vadd.f32 %v8478, %v9015
        %v9017 = vpop.f32.mrb[0].mxu0
        %v9018 = vand.u32 %v364, 4294901760
        %9019 = vmatprep.mubr.f32.mxu0 %v9018
        %v9020 = vand.u32 %v363, 4294901760
        %9021 = vmatmul.mubr.f32.gmra.mrb[0].mxu0 %v9020
        %v9022 = vpop.f32.mrb[0].mxu0
        %v9023 = vadd.f32 %v8485, %v9022
        %v9024 = vpop.f32.mrb[0].mxu0
        %v9025 = vand.u32 %v368, 4294901760
        %9026 = vmatprep.mubr.f32.mxu0 %v9025
        %v9027 = vand.u32 %v367, 4294901760
        %9028 = vmatmul.mubr.f32.gmra.mrb[0].mxu0 %v9027
        %v9029 = vpop.f32.mrb[0].mxu0
        %v9030 = vadd.f32 %v8492, %v9029
        %v9031 = vpop.f32.mrb[0].mxu0
        %v9032 = vand.u32 %v372, 4294901760
        %9033 = vmatprep.mubr.f32.mxu0 %v9032
        %v9034 = vand.u32 %v371, 4294901760
        %9035 = vmatmul.mubr.f32.gmra.mrb[0].mxu0 %v9034
        %v9036 = vpop.f32.mrb[0].mxu0
        %v9037 = vadd.f32 %v8499, %v9036
        %v9038 = vpop.f32.mrb[0].mxu0
        %v9039 = vand.u32 %v376, 4294901760
        %9040 = vmatprep.mubr.f32.mxu0 %v9039
        %v9041 = vand.u32 %v375, 4294901760
        %9042 = vmatmul.mubr.f32.gmra.mrb[0].mxu0 %v9041
        %v9043 = vpop.f32.mrb[0].mxu0
        %v9044 = vadd.f32 %v8506, %v9043
        %v9045 = vpop.f32.mrb[0].mxu0
        %v9046 = vand.u32 %v380, 4294901760
        %9047 = vmatprep.mubr.f32.mxu0 %v9046
        %v9048 = vand.u32 %v379, 4294901760
        %9049 = vmatmul.mubr.f32.gmra.mrb[0].mxu0 %v9048
        %v9050 = vpop.f32.mrb[0].mxu0
        %v9051 = vadd.f32 %v8513, %v9050
        %v9052 = vpop.f32.mrb[0].mxu0
        %v9053 = vand.u32 %v384, 4294901760
        %9054 = vmatprep.mubr.f32.mxu0 %v9053
        %v9055 = vand.u32 %v383, 4294901760
        %9056 = vmatmul.mubr.f32.gmra.mrb[0].mxu0 %v9055
        %v9057 = vpop.f32.mrb[0].mxu0
        %v9058 = vadd.f32 %v8520, %v9057
        %v9059 = vpop.f32.mrb[0].mxu0
        %v9060 = vand.u32 %v388, 4294901760
        %9061 = vmatprep.mubr.f32.mxu0 %v9060
        %v9062 = vand.u32 %v387, 4294901760
        %9063 = vmatmul.mubr.f32.gmra.mrb[0].mxu0 %v9062
        %v9064 = vpop.f32.mrb[0].mxu0
        %v9065 = vadd.f32 %v8527, %v9064
        %v9066 = vpop.f32.mrb[0].mxu0
        %v9067 = vand.u32 %v392, 4294901760
        %9068 = vmatprep.mubr.f32.mxu0 %v9067
        %v9069 = vand.u32 %v391, 4294901760
        %9070 = vmatmul.mubr.f32.gmra.mrb[0].mxu0 %v9069
        %v9071 = vpop.f32.mrb[0].mxu0
        %v9072 = vadd.f32 %v8534, %v9071
        %v9073 = vpop.f32.mrb[0].mxu0
        %v9074 = vand.u32 %v396, 4294901760
        %9075 = vmatprep.mubr.f32.mxu0 %v9074
        %v9076 = vand.u32 %v395, 4294901760
        %9077 = vmatmul.mubr.f32.gmra.mrb[0].mxu0 %v9076
        %v9078 = vpop.f32.mrb[0].mxu0
        %v9079 = vadd.f32 %v8541, %v9078
        %v9080 = vpop.f32.mrb[0].mxu0
        %v9081 = vand.u32 %v400, 4294901760
        %9082 = vmatprep.mubr.f32.mxu0 %v9081
        %v9083 = vand.u32 %v399, 4294901760
        %9084 = vmatmul.mubr.f32.gmra.mrb[0].mxu0 %v9083
        %v9085 = vpop.f32.mrb[0].mxu0
        %v9086 = vadd.f32 %v8548, %v9085
        %v9087 = vpop.f32.mrb[0].mxu0
        %v9088 = vand.u32 %v404, 4294901760
        %9089 = vmatprep.mubr.f32.mxu0 %v9088
        %v9090 = vand.u32 %v403, 4294901760
        %9091 = vmatmul.mubr.f32.gmra.mrb[0].mxu0 %v9090
        %v9092 = vpop.f32.mrb[0].mxu0
        %v9093 = vadd.f32 %v8555, %v9092
        %v9094 = vpop.f32.mrb[0].mxu0
        %v9095 = vand.u32 %v408, 4294901760
        %9096 = vmatprep.mubr.f32.mxu0 %v9095
        %v9097 = vand.u32 %v407, 4294901760
        %9098 = vmatmul.mubr.f32.gmra.mrb[0].mxu0 %v9097
        %v9099 = vpop.f32.mrb[0].mxu0
        %v9100 = vadd.f32 %v8562, %v9099
        %v9101 = vpop.f32.mrb[0].mxu0
        %v9102 = vand.u32 %v412, 4294901760
        %9103 = vmatprep.mubr.f32.mxu0 %v9102
        %v9104 = vand.u32 %v411, 4294901760
        %9105 = vmatmul.mubr.f32.gmra.mrb[0].mxu0 %v9104
        %v9106 = vpop.f32.mrb[0].mxu0
        %v9107 = vadd.f32 %v8569, %v9106
        %v9108 = vpop.f32.mrb[0].mxu0
        %v9109 = vand.u32 %v416, 4294901760
        %9110 = vmatprep.mubr.f32.mxu0 %v9109
        %v9111 = vand.u32 %v415, 4294901760
        %9112 = vmatmul.mubr.f32.gmra.mrb[0].mxu0 %v9111
        %v9113 = vpop.f32.mrb[0].mxu0
        %v9114 = vadd.f32 %v8576, %v9113
        %v9115 = vpop.f32.mrb[0].mxu0
        %v9116 = vand.u32 %v420, 4294901760
        %9117 = vmatprep.mubr.f32.mxu0 %v9116
        %v9118 = vand.u32 %v419, 4294901760
        %9119 = vmatmul.mubr.f32.gmra.mrb[0].mxu0 %v9118
        %v9120 = vpop.f32.mrb[0].mxu0
        %v9121 = vadd.f32 %v8583, %v9120
        %v9122 = vpop.f32.mrb[0].mxu0
        %v9123 = vand.u32 %v424, 4294901760
        %9124 = vmatprep.mubr.f32.mxu0 %v9123
        %v9125 = vand.u32 %v423, 4294901760
        %9126 = vmatmul.mubr.f32.gmra.mrb[0].mxu0 %v9125
        %v9127 = vpop.f32.mrb[0].mxu0
        %v9128 = vadd.f32 %v8590, %v9127
        %v9129 = vpop.f32.mrb[0].mxu0
        %v9130 = vand.u32 %v428, 4294901760
        %9131 = vmatprep.mubr.f32.mxu0 %v9130
        %v9132 = vand.u32 %v427, 4294901760
        %9133 = vmatmul.mubr.f32.gmra.mrb[0].mxu0 %v9132
        %v9134 = vpop.f32.mrb[0].mxu0
        %v9135 = vadd.f32 %v8597, %v9134
        %v9136 = vpop.f32.mrb[0].mxu0
        %v9137 = vand.u32 %v432, 4294901760
        %9138 = vmatprep.mubr.f32.mxu0 %v9137
        %v9139 = vand.u32 %v431, 4294901760
        %9140 = vmatmul.mubr.f32.gmra.mrb[0].mxu0 %v9139
        %v9141 = vpop.f32.mrb[0].mxu0
        %v9142 = vadd.f32 %v8604, %v9141
        %v9143 = vpop.f32.mrb[0].mxu0
        %v9144 = vand.u32 %v436, 4294901760
        %9145 = vmatprep.mubr.f32.mxu0 %v9144
        %v9146 = vand.u32 %v435, 4294901760
        %9147 = vmatmul.mubr.f32.gmra.mrb[0].mxu0 %v9146
        %v9148 = vpop.f32.mrb[0].mxu0
        %v9149 = vadd.f32 %v8611, %v9148
        %v9150 = vpop.f32.mrb[0].mxu0
        %v9151 = vand.u32 %v440, 4294901760
        %9152 = vmatprep.mubr.f32.mxu0 %v9151
        %v9153 = vand.u32 %v439, 4294901760
        %9154 = vmatmul.mubr.f32.gmra.mrb[0].mxu0 %v9153
        %v9155 = vpop.f32.mrb[0].mxu0
        %v9156 = vadd.f32 %v8618, %v9155
        %v9157 = vpop.f32.mrb[0].mxu0
        %v9158 = vand.u32 %v444, 4294901760
        %9159 = vmatprep.mubr.f32.mxu0 %v9158
        %v9160 = vand.u32 %v443, 4294901760
        %9161 = vmatmul.mubr.f32.gmra.mrb[0].mxu0 %v9160
        %v9162 = vpop.f32.mrb[0].mxu0
        %v9163 = vadd.f32 %v8625, %v9162
        %v9164 = vpop.f32.mrb[0].mxu0
        %v9165 = vand.u32 %v448, 4294901760
        %9166 = vmatprep.mubr.f32.mxu0 %v9165
        %v9167 = vand.u32 %v447, 4294901760
        %9168 = vmatmul.mubr.f32.gmra.mrb[0].mxu0 %v9167
        %v9169 = vpop.f32.mrb[0].mxu0
        %v9170 = vadd.f32 %v8632, %v9169
        %v9171 = vpop.f32.mrb[0].mxu0
        %v9172 = vand.u32 %v452, 4294901760
        %9173 = vmatprep.mubr.f32.mxu0 %v9172
        %v9174 = vand.u32 %v451, 4294901760
        %9175 = vmatmul.mubr.f32.gmra.mrb[0].mxu0 %v9174
        %v9176 = vpop.f32.mrb[0].mxu0
        %v9177 = vadd.f32 %v8639, %v9176
        %v9178 = vpop.f32.mrb[0].mxu0
        %v9179 = vand.u32 %v456, 4294901760
        %9180 = vmatprep.mubr.f32.mxu0 %v9179
        %v9181 = vand.u32 %v455, 4294901760
        %9182 = vmatmul.mubr.f32.gmra.mrb[0].mxu0 %v9181
        %v9183 = vpop.f32.mrb[0].mxu0
        %v9184 = vadd.f32 %v8646, %v9183
        %v9185 = vpop.f32.mrb[0].mxu0
        %v9186 = vand.u32 %v460, 4294901760
        %9187 = vmatprep.mubr.f32.mxu0 %v9186
        %v9188 = vand.u32 %v459, 4294901760
        %9189 = vmatmul.mubr.f32.gmra.mrb[0].mxu0 %v9188
        %v9190 = vpop.f32.mrb[0].mxu0
        %v9191 = vadd.f32 %v8653, %v9190
        %v9192 = vpop.f32.mrb[0].mxu0
        %v9193 = vand.u32 %v464, 4294901760
        %9194 = vmatprep.mubr.f32.mxu0 %v9193
        %v9195 = vand.u32 %v463, 4294901760
        %9196 = vmatmul.mubr.f32.gmra.mrb[0].mxu0 %v9195
        %v9197 = vpop.f32.mrb[0].mxu0
        %v9198 = vadd.f32 %v8660, %v9197
        %v9199 = vpop.f32.mrb[0].mxu0
        %v9200 = vand.u32 %v468, 4294901760
        %9201 = vmatprep.mubr.f32.mxu0 %v9200
        %v9202 = vand.u32 %v467, 4294901760
        %9203 = vmatmul.mubr.f32.gmra.mrb[0].mxu0 %v9202
        %v9204 = vpop.f32.mrb[0].mxu0
        %v9205 = vadd.f32 %v8667, %v9204
        %v9206 = vpop.f32.mrb[0].mxu0
        %9207 = vdwg.mxu0
        %vm9208 = vcmask 211968
        %9209 = vst.msk [vmem:[%s205] sm:$0xff] %vm9208, %v8771
        %9210 = vst.msk [vmem:[%s205 + $0x8] sm:$0xff] %vm9208, %v8778
        %9211 = vst.msk [vmem:[%s205 + $0x10] sm:$0xff] %vm9208, %v8785
        %9212 = vst.msk [vmem:[%s205 + $0x18] sm:$0xff] %vm9208, %v8792
        %9213 = vst.msk [vmem:[%s205 + $0x20] sm:$0xff] %vm9208, %v8799
        %9214 = vst.msk [vmem:[%s205 + $0x28] sm:$0xff] %vm9208, %v8806
        %9215 = vst.msk [vmem:[%s205 + $0x30] sm:$0xff] %vm9208, %v8813
        %9216 = vst.msk [vmem:[%s205 + $0x38] sm:$0xff] %vm9208, %v8820
        %9217 = vst.msk [vmem:[%s205 + $0x40] sm:$0xff] %vm9208, %v8827
        %9218 = vst.msk [vmem:[%s205 + $0x48] sm:$0xff] %vm9208, %v8834
        %9219 = vst.msk [vmem:[%s205 + $0x50] sm:$0xff] %vm9208, %v8841
        %9220 = vst.msk [vmem:[%s205 + $0x58] sm:$0xff] %vm9208, %v8848
        %9221 = vst.msk [vmem:[%s205 + $0x60] sm:$0xff] %vm9208, %v8855
        %9222 = vst.msk [vmem:[%s205 + $0x68] sm:$0xff] %vm9208, %v8862
        %9223 = vst.msk [vmem:[%s205 + $0x70] sm:$0xff] %vm9208, %v8869
        %9224 = vst.msk [vmem:[%s205 + $0x78] sm:$0xff] %vm9208, %v8876
        %9225 = vst.msk [vmem:[%s205 + $0x80] sm:$0xff] %vm9208, %v8883
        %9226 = vst.msk [vmem:[%s205 + $0x88] sm:$0xff] %vm9208, %v8890
        %9227 = vst.msk [vmem:[%s205 + $0x90] sm:$0xff] %vm9208, %v8897
        %9228 = vst.msk [vmem:[%s205 + $0x98] sm:$0xff] %vm9208, %v8904
        %9229 = vst.msk [vmem:[%s205 + $0xa0] sm:$0xff] %vm9208, %v8911
        %9230 = vst.msk [vmem:[%s205 + $0xa8] sm:$0xff] %vm9208, %v8918
        %9231 = vst.msk [vmem:[%s205 + $0xb0] sm:$0xff] %vm9208, %v8925
        %9232 = vst.msk [vmem:[%s205 + $0xb8] sm:$0xff] %vm9208, %v8932
        %9233 = vst.msk [vmem:[%s205 + $0xc0] sm:$0xff] %vm9208, %v8939
        %9234 = vst.msk [vmem:[%s205 + $0xc8] sm:$0xff] %vm9208, %v8946
        %9235 = vst.msk [vmem:[%s205 + $0xd0] sm:$0xff] %vm9208, %v8953
        %9236 = vst.msk [vmem:[%s205 + $0xd8] sm:$0xff] %vm9208, %v8960
        %9237 = vst.msk [vmem:[%s205 + $0xe0] sm:$0xff] %vm9208, %v8967
        %9238 = vst.msk [vmem:[%s205 + $0xe8] sm:$0xff] %vm9208, %v8974
        %9239 = vst.msk [vmem:[%s205 + $0xf0] sm:$0xff] %vm9208, %v8981
        %9240 = vst.msk [vmem:[%s205 + $0xf8] sm:$0xff] %vm9208, %v8988
        %9241 = vst.msk [vmem:[%s205 + $0x100] sm:$0xff] %vm9208, %v8995
        %9242 = vst.msk [vmem:[%s205 + $0x108] sm:$0xff] %vm9208, %v9002
        %9243 = vst.msk [vmem:[%s205 + $0x110] sm:$0xff] %vm9208, %v9009
        %9244 = vst.msk [vmem:[%s205 + $0x118] sm:$0xff] %vm9208, %v9016
        %9245 = vst.msk [vmem:[%s205 + $0x120] sm:$0xff] %vm9208, %v9023
        %9246 = vst.msk [vmem:[%s205 + $0x128] sm:$0xff] %vm9208, %v9030
        %9247 = vst.msk [vmem:[%s205 + $0x130] sm:$0xff] %vm9208, %v9037
        %9248 = vst.msk [vmem:[%s205 + $0x138] sm:$0xff] %vm9208, %v9044
        %9249 = vst.msk [vmem:[%s205 + $0x140] sm:$0xff] %vm9208, %v9051
        %9250 = vst.msk [vmem:[%s205 + $0x148] sm:$0xff] %vm9208, %v9058
        %9251 = vst.msk [vmem:[%s205 + $0x150] sm:$0xff] %vm9208, %v9065
        %9252 = vst.msk [vmem:[%s205 + $0x158] sm:$0xff] %vm9208, %v9072
        %9253 = vst.msk [vmem:[%s205 + $0x160] sm:$0xff] %vm9208, %v9079
        %9254 = vst.msk [vmem:[%s205 + $0x168] sm:$0xff] %vm9208, %v9086
        %9255 = vst.msk [vmem:[%s205 + $0x170] sm:$0xff] %vm9208, %v9093
        %9256 = vst.msk [vmem:[%s205 + $0x178] sm:$0xff] %vm9208, %v9100
        %9257 = vst.msk [vmem:[%s205 + $0x180] sm:$0xff] %vm9208, %v9107
        %9258 = vst.msk [vmem:[%s205 + $0x188] sm:$0xff] %vm9208, %v9114
        %9259 = vst.msk [vmem:[%s205 + $0x190] sm:$0xff] %vm9208, %v9121
        %9260 = vst.msk [vmem:[%s205 + $0x198] sm:$0xff] %vm9208, %v9128
        %9261 = vst.msk [vmem:[%s205 + $0x1a0] sm:$0xff] %vm9208, %v9135
        %9262 = vst.msk [vmem:[%s205 + $0x1a8] sm:$0xff] %vm9208, %v9142
        %9263 = vst.msk [vmem:[%s205 + $0x1b0] sm:$0xff] %vm9208, %v9149
        %9264 = vst.msk [vmem:[%s205 + $0x1b8] sm:$0xff] %vm9208, %v9156
        %9265 = vst.msk [vmem:[%s205 + $0x1c0] sm:$0xff] %vm9208, %v9163
        %9266 = vst.msk [vmem:[%s205 + $0x1c8] sm:$0xff] %vm9208, %v9170
        %9267 = vst.msk [vmem:[%s205 + $0x1d0] sm:$0xff] %vm9208, %v9177
        %9268 = vst.msk [vmem:[%s205 + $0x1d8] sm:$0xff] %vm9208, %v9184
        %9269 = vst.msk [vmem:[%s205 + $0x1e0] sm:$0xff] %vm9208, %v9191
        %9270 = vst.msk [vmem:[%s205 + $0x1e8] sm:$0xff] %vm9208, %v9198
        %9271 = vst.msk [vmem:[%s205 + $0x1f0] sm:$0xff] %vm9208, %v9205
        %s9272 = sand.u32 %s94, 1
        %s9273 = sand.u32 %s94, 1
        %s9274 = smul.addr %s9273, 504
        %s9275 = scalar_lea.vmem [#allocation6], %s9274
        // Predicated region
        $region41: #{tpu_custom_call.1} parent=31 // pred_check
          %p9276 = pneg %p104
        $region42: #{tpu_custom_call.1} parent=31 // pred_check_branch
          %9278 = sbr.rel (%p9276) target = $region44
        $region43: #{tpu_custom_call.1} parent=31 // pred_region
          %s9279 = smul.u32 63, %s18
          %s9280 = ssub.s32 125, %s9279
          %p9281 = scmp.lt.s32.totalorder %s9280, 63
          %s9282 = scalar_select %p9281, %s9280, 63
          %s9283 = smul.u32 128, %s9282
          %p9284 = scmp.ne.s32.totalorder 0, %s9283
          %s9285 = smul.addr %s9279, 8
          %s9286 = scalar_lea.vmem %s3, %s9285
          // Predicated region
          $region45: #{tpu_custom_call.1} parent=43 // pred_check
            %p9287 = pneg %p9284
          $region46: #{tpu_custom_call.1} parent=43 // pred_check_branch
            %9289 = sbr.rel (%p9287) target = $region48
          $region47: #{tpu_custom_call.1} parent=43 // pred_region
            // Predicated region
            $region49: #{tpu_custom_call.1} parent=47 // pred_check
              _
            $region50: #{tpu_custom_call.1} parent=47 // pred_check_branch
              %9291 = sbr.rel (0) target = $region52
            $region51: #{tpu_custom_call.1} parent=47 // pred_region
              // Predicated region
              $region71: #{tpu_custom_call.1} parent=51 // pred_check
                _
              $region72: #{tpu_custom_call.1} parent=51 // pred_check_branch
                %9465 = sbr.rel (0) target = $region74
              $region73: #{tpu_custom_call.1} parent=51 // pred_region
                %s9466 = sdiv.u32.pop %s9282, 63
                %s9467 = srem.u32.pop %s9282, 63
                // While loop
                $region75: #{tpu_custom_call.1} parent=73 // loop_pre_header
                  _
                $region76: #{tpu_custom_call.1} parent=73 // loop_header
                  %s9469 = sphi 0, %s9471
                  %p9470 = scmp.ge.s32.totalorder %s9469, %s9466
                  %s9474 = sphi 0, %s9605
                  %s9475 = sphi %s9275, %s9608
                  %s9476 = sphi %s9286, %s9609
                $region77: #{tpu_custom_call.1} parent=73 // loop_header_branch
                  %9473 = sbr.rel (%p9470) target = $region81
                $region78: #{tpu_custom_call.1} parent=73 // loop_body
                  %v9477 = vld [vmem:[%s9475] sm:$0xff]
                  %9478 = vst [vmem:[%s9476] sm:$0xff] %v9477
                  %v9479 = vld [vmem:[%s9475 + $0x8] sm:$0xff]
                  %9480 = vst [vmem:[%s9476 + $0x8] sm:$0xff] %v9479
                  %v9481 = vld [vmem:[%s9475 + $0x10] sm:$0xff]
                  %9482 = vst [vmem:[%s9476 + $0x10] sm:$0xff] %v9481
                  %v9483 = vld [vmem:[%s9475 + $0x18] sm:$0xff]
                  %9484 = vst [vmem:[%s9476 + $0x18] sm:$0xff] %v9483
                  %v9485 = vld [vmem:[%s9475 + $0x20] sm:$0xff]
                  %9486 = vst [vmem:[%s9476 + $0x20] sm:$0xff] %v9485
                  %v9487 = vld [vmem:[%s9475 + $0x28] sm:$0xff]
                  %9488 = vst [vmem:[%s9476 + $0x28] sm:$0xff] %v9487
                  %v9489 = vld [vmem:[%s9475 + $0x30] sm:$0xff]
                  %9490 = vst [vmem:[%s9476 + $0x30] sm:$0xff] %v9489
                  %v9491 = vld [vmem:[%s9475 + $0x38] sm:$0xff]
                  %9492 = vst [vmem:[%s9476 + $0x38] sm:$0xff] %v9491
                  %v9493 = vld [vmem:[%s9475 + $0x40] sm:$0xff]
                  %9494 = vst [vmem:[%s9476 + $0x40] sm:$0xff] %v9493
                  %v9495 = vld [vmem:[%s9475 + $0x48] sm:$0xff]
                  %9496 = vst [vmem:[%s9476 + $0x48] sm:$0xff] %v9495
                  %v9497 = vld [vmem:[%s9475 + $0x50] sm:$0xff]
                  %9498 = vst [vmem:[%s9476 + $0x50] sm:$0xff] %v9497
                  %v9499 = vld [vmem:[%s9475 + $0x58] sm:$0xff]
                  %9500 = vst [vmem:[%s9476 + $0x58] sm:$0xff] %v9499
                  %v9501 = vld [vmem:[%s9475 + $0x60] sm:$0xff]
                  %9502 = vst [vmem:[%s9476 + $0x60] sm:$0xff] %v9501
                  %v9503 = vld [vmem:[%s9475 + $0x68] sm:$0xff]
                  %9504 = vst [vmem:[%s9476 + $0x68] sm:$0xff] %v9503
                  %v9505 = vld [vmem:[%s9475 + $0x70] sm:$0xff]
                  %9506 = vst [vmem:[%s9476 + $0x70] sm:$0xff] %v9505
                  %v9507 = vld [vmem:[%s9475 + $0x78] sm:$0xff]
                  %9508 = vst [vmem:[%s9476 + $0x78] sm:$0xff] %v9507
                  %v9509 = vld [vmem:[%s9475 + $0x80] sm:$0xff]
                  %9510 = vst [vmem:[%s9476 + $0x80] sm:$0xff] %v9509
                  %v9511 = vld [vmem:[%s9475 + $0x88] sm:$0xff]
                  %9512 = vst [vmem:[%s9476 + $0x88] sm:$0xff] %v9511
                  %v9513 = vld [vmem:[%s9475 + $0x90] sm:$0xff]
                  %9514 = vst [vmem:[%s9476 + $0x90] sm:$0xff] %v9513
                  %v9515 = vld [vmem:[%s9475 + $0x98] sm:$0xff]
                  %9516 = vst [vmem:[%s9476 + $0x98] sm:$0xff] %v9515
                  %v9517 = vld [vmem:[%s9475 + $0xa0] sm:$0xff]
                  %9518 = vst [vmem:[%s9476 + $0xa0] sm:$0xff] %v9517
                  %v9519 = vld [vmem:[%s9475 + $0xa8] sm:$0xff]
                  %9520 = vst [vmem:[%s9476 + $0xa8] sm:$0xff] %v9519
                  %v9521 = vld [vmem:[%s9475 + $0xb0] sm:$0xff]
                  %9522 = vst [vmem:[%s9476 + $0xb0] sm:$0xff] %v9521
                  %v9523 = vld [vmem:[%s9475 + $0xb8] sm:$0xff]
                  %9524 = vst [vmem:[%s9476 + $0xb8] sm:$0xff] %v9523
                  %v9525 = vld [vmem:[%s9475 + $0xc0] sm:$0xff]
                  %9526 = vst [vmem:[%s9476 + $0xc0] sm:$0xff] %v9525
                  %v9527 = vld [vmem:[%s9475 + $0xc8] sm:$0xff]
                  %9528 = vst [vmem:[%s9476 + $0xc8] sm:$0xff] %v9527
                  %v9529 = vld [vmem:[%s9475 + $0xd0] sm:$0xff]
                  %9530 = vst [vmem:[%s9476 + $0xd0] sm:$0xff] %v9529
                  %v9531 = vld [vmem:[%s9475 + $0xd8] sm:$0xff]
                  %9532 = vst [vmem:[%s9476 + $0xd8] sm:$0xff] %v9531
                  %v9533 = vld [vmem:[%s9475 + $0xe0] sm:$0xff]
                  %9534 = vst [vmem:[%s9476 + $0xe0] sm:$0xff] %v9533
                  %v9535 = vld [vmem:[%s9475 + $0xe8] sm:$0xff]
                  %9536 = vst [vmem:[%s9476 + $0xe8] sm:$0xff] %v9535
                  %v9537 = vld [vmem:[%s9475 + $0xf0] sm:$0xff]
                  %9538 = vst [vmem:[%s9476 + $0xf0] sm:$0xff] %v9537
                  %v9539 = vld [vmem:[%s9475 + $0xf8] sm:$0xff]
                  %9540 = vst [vmem:[%s9476 + $0xf8] sm:$0xff] %v9539
                  %v9541 = vld [vmem:[%s9475 + $0x100] sm:$0xff]
                  %9542 = vst [vmem:[%s9476 + $0x100] sm:$0xff] %v9541
                  %v9543 = vld [vmem:[%s9475 + $0x108] sm:$0xff]
                  %9544 = vst [vmem:[%s9476 + $0x108] sm:$0xff] %v9543
                  %v9545 = vld [vmem:[%s9475 + $0x110] sm:$0xff]
                  %9546 = vst [vmem:[%s9476 + $0x110] sm:$0xff] %v9545
                  %v9547 = vld [vmem:[%s9475 + $0x118] sm:$0xff]
                  %9548 = vst [vmem:[%s9476 + $0x118] sm:$0xff] %v9547
                  %v9549 = vld [vmem:[%s9475 + $0x120] sm:$0xff]
                  %9550 = vst [vmem:[%s9476 + $0x120] sm:$0xff] %v9549
                  %v9551 = vld [vmem:[%s9475 + $0x128] sm:$0xff]
                  %9552 = vst [vmem:[%s9476 + $0x128] sm:$0xff] %v9551
                  %v9553 = vld [vmem:[%s9475 + $0x130] sm:$0xff]
                  %9554 = vst [vmem:[%s9476 + $0x130] sm:$0xff] %v9553
                  %v9555 = vld [vmem:[%s9475 + $0x138] sm:$0xff]
                  %9556 = vst [vmem:[%s9476 + $0x138] sm:$0xff] %v9555
                  %v9557 = vld [vmem:[%s9475 + $0x140] sm:$0xff]
                  %9558 = vst [vmem:[%s9476 + $0x140] sm:$0xff] %v9557
                  %v9559 = vld [vmem:[%s9475 + $0x148] sm:$0xff]
                  %9560 = vst [vmem:[%s9476 + $0x148] sm:$0xff] %v9559
                  %v9561 = vld [vmem:[%s9475 + $0x150] sm:$0xff]
                  %9562 = vst [vmem:[%s9476 + $0x150] sm:$0xff] %v9561
                  %v9563 = vld [vmem:[%s9475 + $0x158] sm:$0xff]
                  %9564 = vst [vmem:[%s9476 + $0x158] sm:$0xff] %v9563
                  %v9565 = vld [vmem:[%s9475 + $0x160] sm:$0xff]
                  %9566 = vst [vmem:[%s9476 + $0x160] sm:$0xff] %v9565
                  %v9567 = vld [vmem:[%s9475 + $0x168] sm:$0xff]
                  %9568 = vst [vmem:[%s9476 + $0x168] sm:$0xff] %v9567
                  %v9569 = vld [vmem:[%s9475 + $0x170] sm:$0xff]
                  %9570 = vst [vmem:[%s9476 + $0x170] sm:$0xff] %v9569
                  %v9571 = vld [vmem:[%s9475 + $0x178] sm:$0xff]
                  %9572 = vst [vmem:[%s9476 + $0x178] sm:$0xff] %v9571
                  %v9573 = vld [vmem:[%s9475 + $0x180] sm:$0xff]
                  %9574 = vst [vmem:[%s9476 + $0x180] sm:$0xff] %v9573
                  %v9575 = vld [vmem:[%s9475 + $0x188] sm:$0xff]
                  %9576 = vst [vmem:[%s9476 + $0x188] sm:$0xff] %v9575
                  %v9577 = vld [vmem:[%s9475 + $0x190] sm:$0xff]
                  %9578 = vst [vmem:[%s9476 + $0x190] sm:$0xff] %v9577
                  %v9579 = vld [vmem:[%s9475 + $0x198] sm:$0xff]
                  %9580 = vst [vmem:[%s9476 + $0x198] sm:$0xff] %v9579
                  %v9581 = vld [vmem:[%s9475 + $0x1a0] sm:$0xff]
                  %9582 = vst [vmem:[%s9476 + $0x1a0] sm:$0xff] %v9581
                  %v9583 = vld [vmem:[%s9475 + $0x1a8] sm:$0xff]
                  %9584 = vst [vmem:[%s9476 + $0x1a8] sm:$0xff] %v9583
                  %v9585 = vld [vmem:[%s9475 + $0x1b0] sm:$0xff]
                  %9586 = vst [vmem:[%s9476 + $0x1b0] sm:$0xff] %v9585
                  %v9587 = vld [vmem:[%s9475 + $0x1b8] sm:$0xff]
                  %9588 = vst [vmem:[%s9476 + $0x1b8] sm:$0xff] %v9587
                  %v9589 = vld [vmem:[%s9475 + $0x1c0] sm:$0xff]
                  %9590 = vst [vmem:[%s9476 + $0x1c0] sm:$0xff] %v9589
                  %v9591 = vld [vmem:[%s9475 + $0x1c8] sm:$0xff]
                  %9592 = vst [vmem:[%s9476 + $0x1c8] sm:$0xff] %v9591
                  %v9593 = vld [vmem:[%s9475 + $0x1d0] sm:$0xff]
                  %9594 = vst [vmem:[%s9476 + $0x1d0] sm:$0xff] %v9593
                  %v9595 = vld [vmem:[%s9475 + $0x1d8] sm:$0xff]
                  %9596 = vst [vmem:[%s9476 + $0x1d8] sm:$0xff] %v9595
                  %v9597 = vld [vmem:[%s9475 + $0x1e0] sm:$0xff]
                  %9598 = vst [vmem:[%s9476 + $0x1e0] sm:$0xff] %v9597
                  %v9599 = vld [vmem:[%s9475 + $0x1e8] sm:$0xff]
                  %9600 = vst [vmem:[%s9476 + $0x1e8] sm:$0xff] %v9599
                  %v9601 = vld [vmem:[%s9475 + $0x1f0] sm:$0xff]
                  %9602 = vst [vmem:[%s9476 + $0x1f0] sm:$0xff] %v9601
                  %s9603 = sadd.s32 1, %s9474
                  %p9604 = scmp.ge.s32.totalorder %s9603, %s9466
                  %s9605 = scalar_select %p9604, 0, %s9603
                  %s9606 = smul.u32 %s9605, 504
                  %s9607 = smul.u32 %s9605, 504
                  %s9608 = scalar_lea.vmem %s9275, %s9606 [#allocation6]
                  %s9609 = scalar_lea.vmem %s9286, %s9607
                $region79: #{tpu_custom_call.1} parent=73 // loop_footer
                  %s9471 = sadd.s32 %s9469, 1
                $region80: #{tpu_custom_call.1} parent=73 // loop_footer_branch
                  %9468 = sbr.rel target = $region76
                $region81: #{tpu_custom_call.1} parent=73 // loop_exit
                  _
                %s9610 = sdiv.u32.pop %s9282, 63
                %s9611 = srem.u32.pop %s9282, 63
                %s9612 = smul.u32 %s9610, 63
                %s9613 = smul.u32 8, %s9612
                %s9614 = scalar_lea.vmem %s9275, %s9613 [#allocation6]
                %s9615 = smul.u32 8, %s9612
                %s9616 = scalar_lea.vmem %s9286, %s9615
                // While loop
                $region82: #{tpu_custom_call.1} parent=73 // loop_pre_header
                  _
                $region83: #{tpu_custom_call.1} parent=73 // loop_header
                  %s9618 = sphi 0, %s9620
                  %p9619 = scmp.ge.s32.totalorder %s9618, %s9611
                  %s9623 = sphi 0, %s9630
                  %s9624 = sphi %s9614, %s9633
                  %s9625 = sphi %s9616, %s9634
                $region84: #{tpu_custom_call.1} parent=73 // loop_header_branch
                  %9622 = sbr.rel (%p9619) target = $region88
                $region85: #{tpu_custom_call.1} parent=73 // loop_body
                  %v9626 = vld [vmem:[%s9624] sm:$0xff]
                  %9627 = vst [vmem:[%s9625] sm:$0xff] %v9626
                  %s9628 = sadd.s32 1, %s9623
                  %p9629 = scmp.ge.s32.totalorder %s9628, %s9611
                  %s9630 = scalar_select %p9629, 0, %s9628
                  %s9631 = smul.u32 %s9630, 8
                  %s9632 = smul.u32 %s9630, 8
                  %s9633 = scalar_lea.vmem %s9614, %s9631 [#allocation6]
                  %s9634 = scalar_lea.vmem %s9616, %s9632
                $region86: #{tpu_custom_call.1} parent=73 // loop_footer
                  %s9620 = sadd.s32 %s9618, 1
                $region87: #{tpu_custom_call.1} parent=73 // loop_footer_branch
                  %9617 = sbr.rel target = $region83
                $region88: #{tpu_custom_call.1} parent=73 // loop_exit
                  _
              $region74: #{tpu_custom_call.1} parent=51 // pred_fallthru
                _
              // Predicated region
              $region89: #{tpu_custom_call.1} parent=51 // pred_check
                _
              $region90: #{tpu_custom_call.1} parent=51 // pred_check_branch
                %9636 = sbr.rel target = $region92
              $region91: #{tpu_custom_call.1} parent=51 // pred_region
                _
              $region92: #{tpu_custom_call.1} parent=51 // pred_fallthru
                _
            $region52: #{tpu_custom_call.1} parent=47 // pred_fallthru
              _
            // Predicated region
            $region53: #{tpu_custom_call.1} parent=47 // pred_check
              _
            $region54: #{tpu_custom_call.1} parent=47 // pred_check_branch
              %9293 = sbr.rel target = $region56
            $region55: #{tpu_custom_call.1} parent=47 // pred_region
              %s9295 = sdiv.u32.pop %s9282, 63
              %s9296 = srem.u32.pop %s9282, 63
              // While loop
              $region57: #{tpu_custom_call.1} parent=55 // loop_pre_header
                _
              $region58: #{tpu_custom_call.1} parent=55 // loop_header
                %s9298 = sphi 0, %s9300
                %p9299 = scmp.ge.s32.totalorder %s9298, %s9295
                %s9303 = sphi 0, %s9434
                %s9304 = sphi %s9275, %s9437
                %s9305 = sphi %s9286, %s9438
              $region59: #{tpu_custom_call.1} parent=55 // loop_header_branch
                %9302 = sbr.rel (%p9299) target = $region63
              $region60: #{tpu_custom_call.1} parent=55 // loop_body
                %v9306 = vld [vmem:[%s9304] sm:$0xff]
                %9307 = vst [vmem:[%s9305] sm:$0xff] %v9306
                %v9308 = vld [vmem:[%s9304 + $0x8] sm:$0xff]
                %9309 = vst [vmem:[%s9305 + $0x8] sm:$0xff] %v9308
                %v9310 = vld [vmem:[%s9304 + $0x10] sm:$0xff]
                %9311 = vst [vmem:[%s9305 + $0x10] sm:$0xff] %v9310
                %v9312 = vld [vmem:[%s9304 + $0x18] sm:$0xff]
                %9313 = vst [vmem:[%s9305 + $0x18] sm:$0xff] %v9312
                %v9314 = vld [vmem:[%s9304 + $0x20] sm:$0xff]
                %9315 = vst [vmem:[%s9305 + $0x20] sm:$0xff] %v9314
                %v9316 = vld [vmem:[%s9304 + $0x28] sm:$0xff]
                %9317 = vst [vmem:[%s9305 + $0x28] sm:$0xff] %v9316
                %v9318 = vld [vmem:[%s9304 + $0x30] sm:$0xff]
                %9319 = vst [vmem:[%s9305 + $0x30] sm:$0xff] %v9318
                %v9320 = vld [vmem:[%s9304 + $0x38] sm:$0xff]
                %9321 = vst [vmem:[%s9305 + $0x38] sm:$0xff] %v9320
                %v9322 = vld [vmem:[%s9304 + $0x40] sm:$0xff]
                %9323 = vst [vmem:[%s9305 + $0x40] sm:$0xff] %v9322
                %v9324 = vld [vmem:[%s9304 + $0x48] sm:$0xff]
                %9325 = vst [vmem:[%s9305 + $0x48] sm:$0xff] %v9324
                %v9326 = vld [vmem:[%s9304 + $0x50] sm:$0xff]
                %9327 = vst [vmem:[%s9305 + $0x50] sm:$0xff] %v9326
                %v9328 = vld [vmem:[%s9304 + $0x58] sm:$0xff]
                %9329 = vst [vmem:[%s9305 + $0x58] sm:$0xff] %v9328
                %v9330 = vld [vmem:[%s9304 + $0x60] sm:$0xff]
                %9331 = vst [vmem:[%s9305 + $0x60] sm:$0xff] %v9330
                %v9332 = vld [vmem:[%s9304 + $0x68] sm:$0xff]
                %9333 = vst [vmem:[%s9305 + $0x68] sm:$0xff] %v9332
                %v9334 = vld [vmem:[%s9304 + $0x70] sm:$0xff]
                %9335 = vst [vmem:[%s9305 + $0x70] sm:$0xff] %v9334
                %v9336 = vld [vmem:[%s9304 + $0x78] sm:$0xff]
                %9337 = vst [vmem:[%s9305 + $0x78] sm:$0xff] %v9336
                %v9338 = vld [vmem:[%s9304 + $0x80] sm:$0xff]
                %9339 = vst [vmem:[%s9305 + $0x80] sm:$0xff] %v9338
                %v9340 = vld [vmem:[%s9304 + $0x88] sm:$0xff]
                %9341 = vst [vmem:[%s9305 + $0x88] sm:$0xff] %v9340
                %v9342 = vld [vmem:[%s9304 + $0x90] sm:$0xff]
                %9343 = vst [vmem:[%s9305 + $0x90] sm:$0xff] %v9342
                %v9344 = vld [vmem:[%s9304 + $0x98] sm:$0xff]
                %9345 = vst [vmem:[%s9305 + $0x98] sm:$0xff] %v9344
                %v9346 = vld [vmem:[%s9304 + $0xa0] sm:$0xff]
                %9347 = vst [vmem:[%s9305 + $0xa0] sm:$0xff] %v9346
                %v9348 = vld [vmem:[%s9304 + $0xa8] sm:$0xff]
                %9349 = vst [vmem:[%s9305 + $0xa8] sm:$0xff] %v9348
                %v9350 = vld [vmem:[%s9304 + $0xb0] sm:$0xff]
                %9351 = vst [vmem:[%s9305 + $0xb0] sm:$0xff] %v9350
                %v9352 = vld [vmem:[%s9304 + $0xb8] sm:$0xff]
                %9353 = vst [vmem:[%s9305 + $0xb8] sm:$0xff] %v9352
                %v9354 = vld [vmem:[%s9304 + $0xc0] sm:$0xff]
                %9355 = vst [vmem:[%s9305 + $0xc0] sm:$0xff] %v9354
                %v9356 = vld [vmem:[%s9304 + $0xc8] sm:$0xff]
                %9357 = vst [vmem:[%s9305 + $0xc8] sm:$0xff] %v9356
                %v9358 = vld [vmem:[%s9304 + $0xd0] sm:$0xff]
                %9359 = vst [vmem:[%s9305 + $0xd0] sm:$0xff] %v9358
                %v9360 = vld [vmem:[%s9304 + $0xd8] sm:$0xff]
                %9361 = vst [vmem:[%s9305 + $0xd8] sm:$0xff] %v9360
                %v9362 = vld [vmem:[%s9304 + $0xe0] sm:$0xff]
                %9363 = vst [vmem:[%s9305 + $0xe0] sm:$0xff] %v9362
                %v9364 = vld [vmem:[%s9304 + $0xe8] sm:$0xff]
                %9365 = vst [vmem:[%s9305 + $0xe8] sm:$0xff] %v9364
                %v9366 = vld [vmem:[%s9304 + $0xf0] sm:$0xff]
                %9367 = vst [vmem:[%s9305 + $0xf0] sm:$0xff] %v9366
                %v9368 = vld [vmem:[%s9304 + $0xf8] sm:$0xff]
                %9369 = vst [vmem:[%s9305 + $0xf8] sm:$0xff] %v9368
                %v9370 = vld [vmem:[%s9304 + $0x100] sm:$0xff]
                %9371 = vst [vmem:[%s9305 + $0x100] sm:$0xff] %v9370
                %v9372 = vld [vmem:[%s9304 + $0x108] sm:$0xff]
                %9373 = vst [vmem:[%s9305 + $0x108] sm:$0xff] %v9372
                %v9374 = vld [vmem:[%s9304 + $0x110] sm:$0xff]
                %9375 = vst [vmem:[%s9305 + $0x110] sm:$0xff] %v9374
                %v9376 = vld [vmem:[%s9304 + $0x118] sm:$0xff]
                %9377 = vst [vmem:[%s9305 + $0x118] sm:$0xff] %v9376
                %v9378 = vld [vmem:[%s9304 + $0x120] sm:$0xff]
                %9379 = vst [vmem:[%s9305 + $0x120] sm:$0xff] %v9378
                %v9380 = vld [vmem:[%s9304 + $0x128] sm:$0xff]
                %9381 = vst [vmem:[%s9305 + $0x128] sm:$0xff] %v9380
                %v9382 = vld [vmem:[%s9304 + $0x130] sm:$0xff]
                %9383 = vst [vmem:[%s9305 + $0x130] sm:$0xff] %v9382
                %v9384 = vld [vmem:[%s9304 + $0x138] sm:$0xff]
                %9385 = vst [vmem:[%s9305 + $0x138] sm:$0xff] %v9384
                %v9386 = vld [vmem:[%s9304 + $0x140] sm:$0xff]
                %9387 = vst [vmem:[%s9305 + $0x140] sm:$0xff] %v9386
                %v9388 = vld [vmem:[%s9304 + $0x148] sm:$0xff]
                %9389 = vst [vmem:[%s9305 + $0x148] sm:$0xff] %v9388
                %v9390 = vld [vmem:[%s9304 + $0x150] sm:$0xff]
                %9391 = vst [vmem:[%s9305 + $0x150] sm:$0xff] %v9390
                %v9392 = vld [vmem:[%s9304 + $0x158] sm:$0xff]
                %9393 = vst [vmem:[%s9305 + $0x158] sm:$0xff] %v9392
                %v9394 = vld [vmem:[%s9304 + $0x160] sm:$0xff]
                %9395 = vst [vmem:[%s9305 + $0x160] sm:$0xff] %v9394
                %v9396 = vld [vmem:[%s9304 + $0x168] sm:$0xff]
                %9397 = vst [vmem:[%s9305 + $0x168] sm:$0xff] %v9396
                %v9398 = vld [vmem:[%s9304 + $0x170] sm:$0xff]
                %9399 = vst [vmem:[%s9305 + $0x170] sm:$0xff] %v9398
                %v9400 = vld [vmem:[%s9304 + $0x178] sm:$0xff]
                %9401 = vst [vmem:[%s9305 + $0x178] sm:$0xff] %v9400
                %v9402 = vld [vmem:[%s9304 + $0x180] sm:$0xff]
                %9403 = vst [vmem:[%s9305 + $0x180] sm:$0xff] %v9402
                %v9404 = vld [vmem:[%s9304 + $0x188] sm:$0xff]
                %9405 = vst [vmem:[%s9305 + $0x188] sm:$0xff] %v9404
                %v9406 = vld [vmem:[%s9304 + $0x190] sm:$0xff]
                %9407 = vst [vmem:[%s9305 + $0x190] sm:$0xff] %v9406
                %v9408 = vld [vmem:[%s9304 + $0x198] sm:$0xff]
                %9409 = vst [vmem:[%s9305 + $0x198] sm:$0xff] %v9408
                %v9410 = vld [vmem:[%s9304 + $0x1a0] sm:$0xff]
                %9411 = vst [vmem:[%s9305 + $0x1a0] sm:$0xff] %v9410
                %v9412 = vld [vmem:[%s9304 + $0x1a8] sm:$0xff]
                %9413 = vst [vmem:[%s9305 + $0x1a8] sm:$0xff] %v9412
                %v9414 = vld [vmem:[%s9304 + $0x1b0] sm:$0xff]
                %9415 = vst [vmem:[%s9305 + $0x1b0] sm:$0xff] %v9414
                %v9416 = vld [vmem:[%s9304 + $0x1b8] sm:$0xff]
                %9417 = vst [vmem:[%s9305 + $0x1b8] sm:$0xff] %v9416
                %v9418 = vld [vmem:[%s9304 + $0x1c0] sm:$0xff]
                %9419 = vst [vmem:[%s9305 + $0x1c0] sm:$0xff] %v9418
                %v9420 = vld [vmem:[%s9304 + $0x1c8] sm:$0xff]
                %9421 = vst [vmem:[%s9305 + $0x1c8] sm:$0xff] %v9420
                %v9422 = vld [vmem:[%s9304 + $0x1d0] sm:$0xff]
                %9423 = vst [vmem:[%s9305 + $0x1d0] sm:$0xff] %v9422
                %v9424 = vld [vmem:[%s9304 + $0x1d8] sm:$0xff]
                %9425 = vst [vmem:[%s9305 + $0x1d8] sm:$0xff] %v9424
                %v9426 = vld [vmem:[%s9304 + $0x1e0] sm:$0xff]
                %9427 = vst [vmem:[%s9305 + $0x1e0] sm:$0xff] %v9426
                %v9428 = vld [vmem:[%s9304 + $0x1e8] sm:$0xff]
                %9429 = vst [vmem:[%s9305 + $0x1e8] sm:$0xff] %v9428
                %v9430 = vld [vmem:[%s9304 + $0x1f0] sm:$0xff]
                %9431 = vst [vmem:[%s9305 + $0x1f0] sm:$0xff] %v9430
                %s9432 = sadd.s32 1, %s9303
                %p9433 = scmp.ge.s32.totalorder %s9432, %s9295
                %s9434 = scalar_select %p9433, 0, %s9432
                %s9435 = smul.u32 %s9434, 504
                %s9436 = smul.u32 %s9434, 504
                %s9437 = scalar_lea.vmem %s9275, %s9435 [#allocation6]
                %s9438 = scalar_lea.vmem %s9286, %s9436
              $region61: #{tpu_custom_call.1} parent=55 // loop_footer
                %s9300 = sadd.s32 %s9298, 1
              $region62: #{tpu_custom_call.1} parent=55 // loop_footer_branch
                %9297 = sbr.rel target = $region58
              $region63: #{tpu_custom_call.1} parent=55 // loop_exit
                _
              %s9439 = sdiv.u32.pop %s9282, 63
              %s9440 = srem.u32.pop %s9282, 63
              %s9441 = smul.u32 %s9439, 63
              %s9442 = smul.u32 8, %s9441
              %s9443 = scalar_lea.vmem %s9275, %s9442 [#allocation6]
              %s9444 = smul.u32 8, %s9441
              %s9445 = scalar_lea.vmem %s9286, %s9444
              // While loop
              $region64: #{tpu_custom_call.1} parent=55 // loop_pre_header
                _
              $region65: #{tpu_custom_call.1} parent=55 // loop_header
                %s9447 = sphi 0, %s9449
                %p9448 = scmp.ge.s32.totalorder %s9447, %s9440
                %s9452 = sphi 0, %s9459
                %s9453 = sphi %s9443, %s9462
                %s9454 = sphi %s9445, %s9463
              $region66: #{tpu_custom_call.1} parent=55 // loop_header_branch
                %9451 = sbr.rel (%p9448) target = $region70
              $region67: #{tpu_custom_call.1} parent=55 // loop_body
                %v9455 = vld [vmem:[%s9453] sm:$0xff]
                %9456 = vst [vmem:[%s9454] sm:$0xff] %v9455
                %s9457 = sadd.s32 1, %s9452
                %p9458 = scmp.ge.s32.totalorder %s9457, %s9440
                %s9459 = scalar_select %p9458, 0, %s9457
                %s9460 = smul.u32 %s9459, 8
                %s9461 = smul.u32 %s9459, 8
                %s9462 = scalar_lea.vmem %s9443, %s9460 [#allocation6]
                %s9463 = scalar_lea.vmem %s9445, %s9461
              $region68: #{tpu_custom_call.1} parent=55 // loop_footer
                %s9449 = sadd.s32 %s9447, 1
              $region69: #{tpu_custom_call.1} parent=55 // loop_footer_branch
                %9446 = sbr.rel target = $region65
              $region70: #{tpu_custom_call.1} parent=55 // loop_exit
                _
            $region56: #{tpu_custom_call.1} parent=47 // pred_fallthru
              _
          $region48: #{tpu_custom_call.1} parent=43 // pred_fallthru
            _
          %9637 = vnop
        $region44: #{tpu_custom_call.1} parent=31 // pred_fallthru
          _
      $region32: #{tpu_custom_call.1} parent=5 // pred_fallthru
        _
      %p9638 = scmp.le.s32.totalorder 2, %s13
      // Predicated region
      $region93: #{tpu_custom_call.1} parent=5 // pred_check
        %p9639 = pneg %p9638
      $region94: #{tpu_custom_call.1} parent=5 // pred_check_branch
        %9641 = sbr.rel (%p9639) target = $region96
      $region95: #{tpu_custom_call.1} parent=5 // pred_region
        %s9642 = ssub.s32 %s13, 2
        // Predicated region
        $region97: #{tpu_custom_call.1} parent=95 // pred_check
          %p9643 = pneg %p110
        $region98: #{tpu_custom_call.1} parent=95 // pred_check_branch
          %9645 = sbr.rel (%p9643) target = $region100
        $region99: #{tpu_custom_call.1} parent=95 // pred_region
          %s9646 = sand.u32 %s95, 1
          %s9647 = sand.u32 %s95, 1
          %s9648 = smul.addr %s9647, 504
          %s9649 = scalar_lea.vmem [#allocation6], %s9648
        $region100: #{tpu_custom_call.1} parent=95 // pred_fallthru
          _
      $region96: #{tpu_custom_call.1} parent=5 // pred_fallthru
        _
    $region6: #{tpu_custom_call.1} parent=1 // loop_footer
      %s17 = sadd.s32 1, %s13
    $region7: #{tpu_custom_call.1} parent=1 // loop_footer_branch
      %12 = sbr.rel target = $region3
    $region8: #{tpu_custom_call.1} parent=1 // loop_exit
      _
    %9650 = vsyncpa [#allocation3], 1
    %s9651 = scalar_lea.sflag [#allocation3], 1
    %9652 = vsyncpa %s9651, 1
    %9653 = vsyncpa [#allocation5], 1

</llo_original>
